<compile_context>
chip_gen: v6e
topology: v6e:2x2x1
jax: 0.10.0
libtpu: 0.0.40
codegen_flags: <defaults>
</compile_context>

<pallas_src>
import functools

import jax
import jax.numpy as jnp
from jax import lax
from jax.experimental import pallas as pl
from jax.experimental.pallas import tpu as pltpu

_CLASS_PAD = 128   # lane-dense head-output width; real classes live in [:num_classes]
_FC_PAD = 128      # lane-dense fc_inner width; real units live in [:fc_inner]


def _nbytes(a):
    return int(a.size) * a.dtype.itemsize


def _vmem_limit(nbytes):
    # Re-derive scoped-VMEM budget per TPU generation; keep headroom for
    # compiler-internal scratch (important on v7x's 64 MiB per-TC VMEM).
    try:
        cap = int(pltpu.get_tpu_info().vmem_capacity_bytes)
    except Exception:
        cap = 64 << 20
    want = max(2 * int(nbytes) + (8 << 20), 32 << 20)
    return int(min(want, max(cap - (16 << 20), 32 << 20)))


# -----------------------------------------------------------------------------
# Fused kernel: input projection prologue + interleaved bidirectional LSTM
# recurrence + batched fc_out head. PyTorch gate order: i, f, g, o.
# -----------------------------------------------------------------------------
def _make_fused_kernel(T, Bp, D, unroll):
    bf16 = jnp.bfloat16

    def kernel(x_ref, wihf_ref, wihb_ref, bf_ref, bb_ref,
               whhf_ref, whhb_ref, w1_ref, c1_ref, w2_ref, b2_ref,
               out_ref, gf_scr, gb_scr, y_scr):
        # ---------------- Prologue: batched input projection -----------------
        # G = x @ W_ih + (b_ih + b_hh), both directions, one dense row-batched
        # MXU matmul each (off the serial path, stays in VMEM scratch).
        x_bf = x_ref[...]                                   # (T*Bp, D) bf16
        gf_scr[...] = (jnp.dot(x_bf, wihf_ref[...],
                               preferred_element_type=jnp.float32) + bf_ref[...])
        gb_scr[...] = (jnp.dot(x_bf, wihb_ref[...],
                               preferred_element_type=jnp.float32) + bb_ref[...])

        # ------------- Interleaved bidirectional recurrence ------------------
        # h/c live in loop-carried vregs; only h @ W_hh is on the serial chain.
        def lstm_cell(g, c_prev):
            i = jax.nn.sigmoid(g[:, 0:D])
            f = jax.nn.sigmoid(g[:, D:2 * D])
            g_hat = jnp.tanh(g[:, 2 * D:3 * D])
            o = jax.nn.sigmoid(g[:, 3 * D:4 * D])
            c = f * c_prev + i * g_hat
            h = o * jnp.tanh(c)
            return h, c

        def step(k, carry):
            hf, cf, hb, cb = carry
            rf = pl.multiple_of(k * Bp, Bp)                 # fwd time k
            rb = pl.multiple_of((T - 1 - k) * Bp, Bp)       # bwd time T-1-k
            gf = gf_scr[pl.ds(rf, Bp), :] + jnp.dot(
                hf.astype(bf16), whhf_ref[...], preferred_element_type=jnp.float32)
            gb = gb_scr[pl.ds(rb, Bp), :] + jnp.dot(
                hb.astype(bf16), whhb_ref[...], preferred_element_type=jnp.float32)
            hf, cf = lstm_cell(gf, cf)
            hb, cb = lstm_cell(gb, cb)
            # Bidirectional "concat" is just an aligned lane-offset store.
            y_scr[pl.ds(rf, Bp), pl.ds(0, D)] = hf
            y_scr[pl.ds(rb, Bp), pl.ds(D, D)] = hb
            return hf, cf, hb, cb

        zeros = jnp.zeros((Bp, D), jnp.float32)
        lax.fori_loop(0, T, step, (zeros, zeros, zeros, zeros), unroll=unroll)

        # ---------------- Fused, batched fc_out head --------------------------
        # BatchNorm folded into W1/c1 (eval mode), Dropout is identity.
        # One (T*Bp, 2D)x(2D, FC_PAD) matmul + ReLU + (.., FC_PAD)x(FC_PAD, 128)
        # matmul + one lane-dense softmax/store slab.
        h1 = (jnp.dot(y_scr[...].astype(bf16), w1_ref[...],
                      preferred_element_type=jnp.float32) + c1_ref[...])
        h1 = jnp.maximum(h1, 0.0)                            # ReLU
        logits = (jnp.dot(h1.astype(bf16), w2_ref[...],
                          preferred_element_type=jnp.float32) + b2_ref[...])
        # Padded class columns carry bias -1e30 -> exp == 0, so softmax over the
        # padded lane-dense row equals Softmax(dim=1) over the real classes.
        m = jnp.max(logits, axis=-1, keepdims=True)
        e = jnp.exp(logits - m)
        s = jnp.sum(e, axis=-1, keepdims=True)
        out_ref[...] = e / s                                 # exact division

    return kernel


def fused_bilstm_head(x2d, params, *, T, Bp):
    """x2d: (T*Bp, D) bf16 (batch padded to Bp, a multiple of 8)."""
    N, D = x2d.shape
    assert N == T * Bp
    unroll = True if T <= 16 else 8
    kernel = _make_fused_kernel(T, Bp, D, unroll)
    vmem = pl.BlockSpec(memory_space=pltpu.MemorySpace.VMEM)
    args = (x2d, params["wih_f"], params["wih_b"], params["b_f"], params["b_b"],
            params["whh_f"], params["whh_b"], params["w1"], params["c1"],
            params["w2"], params["b2"])
    nbytes = (sum(_nbytes(a) for a in args)
              + N * _CLASS_PAD * 4          # output
              + 2 * N * 4 * D * 4           # gf / gb scratch (f32)
              + N * 2 * D * 4)              # y scratch (f32, sublane-aligned stores)
    return pl.pallas_call(
        kernel,
        out_shape=jax.ShapeDtypeStruct((N, _CLASS_PAD), jnp.float32),
        in_specs=[vmem] * len(args),
        out_specs=vmem,
        scratch_shapes=[pltpu.VMEM((N, 4 * D), jnp.float32),   # gate pre-acts fwd
                        pltpu.VMEM((N, 4 * D), jnp.float32),   # gate pre-acts bwd
                        pltpu.VMEM((N, 2 * D), jnp.float32)],  # bidirectional y
        compiler_params=pltpu.CompilerParams(
            vmem_limit_bytes=_vmem_limit(nbytes)),
    )(*args)


# -----------------------------------------------------------------------------
# Full forward (glue in plain JAX: batch padding, free reshapes, final slice).
# -----------------------------------------------------------------------------
def eeg_sleep_edf_seq_forward(x, params, *, num_classes):
    # x = self.enc_0(x)  -- encoder treated as identity (see TODO above).
    T, B, D = x.shape
    Bp = max(8, ((B + 7) // 8) * 8)          # pad batch to a full sublane tile
    if Bp != B:
        x = jnp.pad(x, ((0, 0), (0, Bp - B), (0, 0)))
    x2d = x.reshape(T * Bp, D).astype(jnp.bfloat16)
    probs = fused_bilstm_head(x2d, params, T=T, Bp=Bp)       # (T*Bp, CLASS_PAD)
    probs = probs.reshape(T, Bp, _CLASS_PAD)[:, :B, :num_classes]
    return probs.reshape(T * B, num_classes)                 # flatten(0,1) order


def make_params(key, d_model, fc_inner, num_classes):
    ks = jax.random.split(key, 14)
    D = d_model
    s = 0.1
    u = lambda k, shp: jax.random.uniform(k, shp, jnp.float32, -s, s)
    bf16 = jnp.bfloat16

    # LSTM weights, PyTorch layout (4D, D)/(4D,), pre-transposed to (D, 4D); bf16 for MXU.
    wih_f = u(ks[0], (4 * D, D)).T.astype(bf16)
    whh_f = u(ks[1], (4 * D, D)).T.astype(bf16)
    b_f = (u(ks[2], (4 * D,)) + u(ks[3], (4 * D,))).reshape(1, 4 * D)   # b_ih + b_hh
    wih_b = u(ks[4], (4 * D, D)).T.astype(bf16)
    whh_b = u(ks[5], (4 * D, D)).T.astype(bf16)
    b_b = (u(ks[6], (4 * D,)) + u(ks[7], (4 * D,))).reshape(1, 4 * D)

    # BatchNorm1d(2D) eval-mode running stats -> fold into the first Linear.
    gamma = 1.0 + 0.1 * jax.random.normal(ks[8], (2 * D,), jnp.float32)
    beta = 0.1 * jax.random.normal(ks[9], (2 * D,), jnp.float32)
    run_mean = 0.1 * jax.random.normal(ks[10], (2 * D,), jnp.float32)
    run_var = jnp.abs(jax.random.normal(ks[11], (2 * D,), jnp.float32)) + 0.5
    eps = 1e-5
    bn_scale = gamma / jnp.sqrt(run_var + eps)            # (2D,)
    bn_shift = beta - run_mean * bn_scale                 # (2D,)

    # fc_out Linears: torch layout (out, in) -> pre-transposed to (in, out).
    w1 = u(ks[12], (fc_inner, 2 * D)).T                   # (2D, fc_inner), f32
    b1 = jnp.zeros((1, fc_inner), jnp.float32) + 0.01
    w2 = u(ks[13], (num_classes, fc_inner)).T             # (fc_inner, num_classes), f32
    b2 = jnp.zeros((1, num_classes), jnp.float32)

    # Fold BN into W1 / bias. W1 stays UNSPLIT (full 2D-deep contraction) and
    # fc_inner is zero-padded to a lane-dense width: padded columns give
    # ReLU(0 + 0) = 0 and the corresponding W2 rows are 0, so logits are exact.
    w1s = bn_scale[:, None] * w1                          # (2D, fc_inner)
    c1 = bn_shift[None, :] @ w1 + b1                      # (1, fc_inner)
    w1p = jnp.zeros((2 * D, _FC_PAD), jnp.float32).at[:, :fc_inner].set(w1s).astype(bf16)
    c1p = jnp.zeros((1, _FC_PAD), jnp.float32).at[:, :fc_inner].set(c1)

    # Pad W2 / b2 to a lane-dense 128-wide head output; padded class biases are
    # -1e30 so their softmax probability is exactly 0.
    w2p = jnp.zeros((_FC_PAD, _CLASS_PAD), jnp.float32)
    w2p = w2p.at[:fc_inner, :num_classes].set(w2).astype(bf16)
    b2p = jnp.full((1, _CLASS_PAD), -1e30, jnp.float32).at[:, :num_classes].set(b2)

    return dict(wih_f=wih_f, whh_f=whh_f, b_f=b_f,
                wih_b=wih_b, whh_b=whh_b, b_b=b_b,
                w1=w1p, c1=c1p, w2=w2p, b2=b2p)


if __name__ == "__main__":
    # Small shapes consistent with the module's forward (d_model reduced from 1024 for test).
    T, B, D = 8, 2, 128
    FC_INNER, NUM_CLASSES = 32, 5

    key = jax.random.PRNGKey(0)
    k_x, k_p = jax.random.split(key)
    x = jax.random.normal(k_x, (T, B, D), jnp.float32)    # encoded sequence (enc_0 output)
    params = make_params(k_p, D, FC_INNER, NUM_CLASSES)

    fwd = jax.jit(functools.partial(eeg_sleep_edf_seq_forward, num_classes=NUM_CLASSES))
    out = jax.block_until_ready(fwd(x, params))

    assert out.shape == (T * B, NUM_CLASSES), out.shape
    assert bool(jnp.all(jnp.isfinite(out)))
    assert bool(jnp.all(out >= 0.0))
    row_sums = jnp.sum(out, axis=1)
    # exact division in the softmax -> rows sum to 1 up to f32 rounding
    assert bool(jnp.allclose(row_sums, 1.0, atol=1e-4)), row_sums
    print("KERNEL_OK")
</pallas_src>

<mosaic_0001>
module attributes {stable_mosaic.version = 11 : i64} {
  func.func @kernel(%arg0: memref<64x128xbf16, #tpu.memory_space<vmem>>, %arg1: memref<128x512xbf16, #tpu.memory_space<vmem>>, %arg2: memref<128x512xbf16, #tpu.memory_space<vmem>>, %arg3: memref<1x512xf32, #tpu.memory_space<vmem>>, %arg4: memref<1x512xf32, #tpu.memory_space<vmem>>, %arg5: memref<128x512xbf16, #tpu.memory_space<vmem>>, %arg6: memref<128x512xbf16, #tpu.memory_space<vmem>>, %arg7: memref<256x128xbf16, #tpu.memory_space<vmem>>, %arg8: memref<1x128xf32, #tpu.memory_space<vmem>>, %arg9: memref<128x128xbf16, #tpu.memory_space<vmem>>, %arg10: memref<1x128xf32, #tpu.memory_space<vmem>>, %arg11: memref<64x128xf32, #tpu.memory_space<vmem>>, %arg12: memref<64x512xf32, #tpu.memory_space<vmem>>, %arg13: memref<64x512xf32, #tpu.memory_space<vmem>>, %arg14: memref<64x256xf32, #tpu.memory_space<vmem>>) attributes {dimension_semantics = [], scalar_prefetch = 0 : i64, scratch_operands = 3 : i64, tpu.core_type = #tpu.core_type<tc>} {
    %c0 = arith.constant 0 : index
    %c0_0 = arith.constant 0 : index
    %0 = vector.load %arg0[%c0, %c0_0] : memref<64x128xbf16, #tpu.memory_space<vmem>>, vector<64x128xbf16>
    %c0_1 = arith.constant 0 : index
    %c0_2 = arith.constant 0 : index
    %1 = vector.load %arg1[%c0_1, %c0_2] : memref<128x512xbf16, #tpu.memory_space<vmem>>, vector<128x512xbf16>
    %cst = arith.constant dense<0.000000e+00> : vector<64x512xf32>
    %2 = tpu.matmul %0, %1, %cst {dimension_numbers = #tpu.dot_dimension_numbers<[1], [0], [0], [1], [0, 0, 1, 1], [], []>} : vector<64x128xbf16>, vector<128x512xbf16>, vector<64x512xf32> -> vector<64x512xf32>
    %c0_3 = arith.constant 0 : index
    %c0_4 = arith.constant 0 : index
    %3 = vector.load %arg3[%c0_3, %c0_4] : memref<1x512xf32, #tpu.memory_space<vmem>>, vector<1x512xf32>
    %4 = vector.broadcast %3 : vector<1x512xf32> to vector<64x512xf32>
    %5 = arith.addf %2, %4 : vector<64x512xf32>
    %c0_5 = arith.constant 0 : index
    %c0_6 = arith.constant 0 : index
    %6 = vector.load %arg12[%c0_5, %c0_6] : memref<64x512xf32, #tpu.memory_space<vmem>>, vector<64x512xf32>
    tpu.vector_store %arg12[%c0_5, %c0_6], %5 {strides = array<i32>} : memref<64x512xf32, #tpu.memory_space<vmem>>, vector<64x512xf32>,
    %c0_7 = arith.constant 0 : index
    %c0_8 = arith.constant 0 : index
    %7 = vector.load %arg2[%c0_7, %c0_8] : memref<128x512xbf16, #tpu.memory_space<vmem>>, vector<128x512xbf16>
    %cst_9 = arith.constant dense<0.000000e+00> : vector<64x512xf32>
    %8 = tpu.matmul %0, %7, %cst_9 {dimension_numbers = #tpu.dot_dimension_numbers<[1], [0], [0], [1], [0, 0, 1, 1], [], []>} : vector<64x128xbf16>, vector<128x512xbf16>, vector<64x512xf32> -> vector<64x512xf32>
    %c0_10 = arith.constant 0 : index
    %c0_11 = arith.constant 0 : index
    %9 = vector.load %arg4[%c0_10, %c0_11] : memref<1x512xf32, #tpu.memory_space<vmem>>, vector<1x512xf32>
    %10 = vector.broadcast %9 : vector<1x512xf32> to vector<64x512xf32>
    %11 = arith.addf %8, %10 : vector<64x512xf32>
    %c0_12 = arith.constant 0 : index
    %c0_13 = arith.constant 0 : index
    %12 = vector.load %arg13[%c0_12, %c0_13] : memref<64x512xf32, #tpu.memory_space<vmem>>, vector<64x512xf32>
    tpu.vector_store %arg13[%c0_12, %c0_13], %11 {strides = array<i32>} : memref<64x512xf32, #tpu.memory_space<vmem>>, vector<64x512xf32>,
    %cst_14 = arith.constant 0.000000e+00 : f32
    %13 = vector.broadcast %cst_14 : f32 to vector<8x128xf32>
    %c0_i32 = arith.constant 0 : i32
    %c8_i32 = arith.constant 8 : i32
    %14 = arith.muli %c0_i32, %c8_i32 : i32
    %15 = tpu.assume_multiple %14, 8 : i32
    %c7_i32 = arith.constant 7 : i32
    %16 = arith.subi %c7_i32, %c0_i32 : i32
    %c8_i32_15 = arith.constant 8 : i32
    %17 = arith.muli %16, %c8_i32_15 : i32
    %18 = tpu.assume_multiple %17, 8 : i32
    %19 = arith.index_cast %15 : i32 to index
    %c0_16 = arith.constant 0 : index
    %20 = vector.load %arg12[%19, %c0_16] : memref<64x512xf32, #tpu.memory_space<vmem>>, vector<8x512xf32>
    %21 = arith.truncf %13 : vector<8x128xf32> to vector<8x128xbf16>
    %c0_17 = arith.constant 0 : index
    %c0_18 = arith.constant 0 : index
    %22 = vector.load %arg5[%c0_17, %c0_18] : memref<128x512xbf16, #tpu.memory_space<vmem>>, vector<128x512xbf16>
    %cst_19 = arith.constant dense<0.000000e+00> : vector<8x512xf32>
    %23 = tpu.matmul %21, %22, %cst_19 {dimension_numbers = #tpu.dot_dimension_numbers<[1], [0], [0], [1], [0, 0, 1, 1], [], []>} : vector<8x128xbf16>, vector<128x512xbf16>, vector<8x512xf32> -> vector<8x512xf32>
    %24 = arith.addf %20, %23 : vector<8x512xf32>
    %25 = arith.index_cast %18 : i32 to index
    %c0_20 = arith.constant 0 : index
    %26 = vector.load %arg13[%25, %c0_20] : memref<64x512xf32, #tpu.memory_space<vmem>>, vector<8x512xf32>
    %27 = arith.truncf %13 : vector<8x128xf32> to vector<8x128xbf16>
    %c0_21 = arith.constant 0 : index
    %c0_22 = arith.constant 0 : index
    %28 = vector.load %arg6[%c0_21, %c0_22] : memref<128x512xbf16, #tpu.memory_space<vmem>>, vector<128x512xbf16>
    %cst_23 = arith.constant dense<0.000000e+00> : vector<8x512xf32>
    %29 = tpu.matmul %27, %28, %cst_23 {dimension_numbers = #tpu.dot_dimension_numbers<[1], [0], [0], [1], [0, 0, 1, 1], [], []>} : vector<8x128xbf16>, vector<128x512xbf16>, vector<8x512xf32> -> vector<8x512xf32>
    %30 = arith.addf %26, %29 : vector<8x512xf32>
    %31 = vector.extract_strided_slice %24 {offsets = [0, 0], sizes = [8, 128], strides = [1, 1]} : vector<8x512xf32> to vector<8x128xf32>
    %32 = arith.negf %31 : vector<8x128xf32>
    %33 = math.exp %32 : vector<8x128xf32>
    %cst_24 = arith.constant 1.000000e+00 : f32
    %34 = vector.broadcast %cst_24 : f32 to vector<8x128xf32>
    %35 = arith.addf %34, %33 : vector<8x128xf32>
    %36 = arith.divf %34, %35 : vector<8x128xf32>
    %37 = vector.extract_strided_slice %24 {offsets = [0, 128], sizes = [8, 128], strides = [1, 1]} : vector<8x512xf32> to vector<8x128xf32>
    %38 = arith.negf %37 : vector<8x128xf32>
    %39 = math.exp %38 : vector<8x128xf32>
    %cst_25 = arith.constant 1.000000e+00 : f32
    %40 = vector.broadcast %cst_25 : f32 to vector<8x128xf32>
    %41 = arith.addf %40, %39 : vector<8x128xf32>
    %42 = arith.divf %40, %41 : vector<8x128xf32>
    %43 = vector.extract_strided_slice %24 {offsets = [0, 256], sizes = [8, 128], strides = [1, 1]} : vector<8x512xf32> to vector<8x128xf32>
    %44 = math.tanh %43 : vector<8x128xf32>
    %45 = vector.extract_strided_slice %24 {offsets = [0, 384], sizes = [8, 128], strides = [1, 1]} : vector<8x512xf32> to vector<8x128xf32>
    %46 = arith.negf %45 : vector<8x128xf32>
    %47 = math.exp %46 : vector<8x128xf32>
    %cst_26 = arith.constant 1.000000e+00 : f32
    %48 = vector.broadcast %cst_26 : f32 to vector<8x128xf32>
    %49 = arith.addf %48, %47 : vector<8x128xf32>
    %50 = arith.divf %48, %49 : vector<8x128xf32>
    %51 = arith.mulf %42, %13 : vector<8x128xf32>
    %52 = arith.mulf %36, %44 : vector<8x128xf32>
    %53 = arith.addf %51, %52 : vector<8x128xf32>
    %54 = math.tanh %53 : vector<8x128xf32>
    %55 = arith.mulf %50, %54 : vector<8x128xf32>
    %56 = vector.extract_strided_slice %30 {offsets = [0, 0], sizes = [8, 128], strides = [1, 1]} : vector<8x512xf32> to vector<8x128xf32>
    %57 = arith.negf %56 : vector<8x128xf32>
    %58 = math.exp %57 : vector<8x128xf32>
    %cst_27 = arith.constant 1.000000e+00 : f32
    %59 = vector.broadcast %cst_27 : f32 to vector<8x128xf32>
    %60 = arith.addf %59, %58 : vector<8x128xf32>
    %61 = arith.divf %59, %60 : vector<8x128xf32>
    %62 = vector.extract_strided_slice %30 {offsets = [0, 128], sizes = [8, 128], strides = [1, 1]} : vector<8x512xf32> to vector<8x128xf32>
    %63 = arith.negf %62 : vector<8x128xf32>
    %64 = math.exp %63 : vector<8x128xf32>
    %cst_28 = arith.constant 1.000000e+00 : f32
    %65 = vector.broadcast %cst_28 : f32 to vector<8x128xf32>
    %66 = arith.addf %65, %64 : vector<8x128xf32>
    %67 = arith.divf %65, %66 : vector<8x128xf32>
    %68 = vector.extract_strided_slice %30 {offsets = [0, 256], sizes = [8, 128], strides = [1, 1]} : vector<8x512xf32> to vector<8x128xf32>
    %69 = math.tanh %68 : vector<8x128xf32>
    %70 = vector.extract_strided_slice %30 {offsets = [0, 384], sizes = [8, 128], strides = [1, 1]} : vector<8x512xf32> to vector<8x128xf32>
    %71 = arith.negf %70 : vector<8x128xf32>
    %72 = math.exp %71 : vector<8x128xf32>
    %cst_29 = arith.constant 1.000000e+00 : f32
    %73 = vector.broadcast %cst_29 : f32 to vector<8x128xf32>
    %74 = arith.addf %73, %72 : vector<8x128xf32>
    %75 = arith.divf %73, %74 : vector<8x128xf32>
    %76 = arith.mulf %67, %13 : vector<8x128xf32>
    %77 = arith.mulf %61, %69 : vector<8x128xf32>
    %78 = arith.addf %76, %77 : vector<8x128xf32>
    %79 = math.tanh %78 : vector<8x128xf32>
    %80 = arith.mulf %75, %79 : vector<8x128xf32>
    %81 = arith.index_cast %15 : i32 to index
    %c0_30 = arith.constant 0 : index
    %82 = vector.load %arg14[%81, %c0_30] : memref<64x256xf32, #tpu.memory_space<vmem>>, vector<8x128xf32>
    tpu.vector_store %arg14[%81, %c0_30], %55 {strides = array<i32>} : memref<64x256xf32, #tpu.memory_space<vmem>>, vector<8x128xf32>,
    %83 = arith.index_cast %18 : i32 to index
    %c128 = arith.constant 128 : index
    %84 = vector.load %arg14[%83, %c128] : memref<64x256xf32, #tpu.memory_space<vmem>>, vector<8x128xf32>
    tpu.vector_store %arg14[%83, %c128], %80 {strides = array<i32>} : memref<64x256xf32, #tpu.memory_space<vmem>>, vector<8x128xf32>,
    %c1_i32 = arith.constant 1 : i32
    %c8_i32_31 = arith.constant 8 : i32
    %85 = arith.muli %c1_i32, %c8_i32_31 : i32
    %86 = tpu.assume_multiple %85, 8 : i32
    %c7_i32_32 = arith.constant 7 : i32
    %87 = arith.subi %c7_i32_32, %c1_i32 : i32
    %c8_i32_33 = arith.constant 8 : i32
    %88 = arith.muli %87, %c8_i32_33 : i32
    %89 = tpu.assume_multiple %88, 8 : i32
    %90 = arith.index_cast %86 : i32 to index
    %c0_34 = arith.constant 0 : index
    %91 = vector.load %arg12[%90, %c0_34] : memref<64x512xf32, #tpu.memory_space<vmem>>, vector<8x512xf32>
    %92 = arith.truncf %55 : vector<8x128xf32> to vector<8x128xbf16>
    %c0_35 = arith.constant 0 : index
    %c0_36 = arith.constant 0 : index
    %93 = vector.load %arg5[%c0_35, %c0_36] : memref<128x512xbf16, #tpu.memory_space<vmem>>, vector<128x512xbf16>
    %cst_37 = arith.constant dense<0.000000e+00> : vector<8x512xf32>
    %94 = tpu.matmul %92, %93, %cst_37 {dimension_numbers = #tpu.dot_dimension_numbers<[1], [0], [0], [1], [0, 0, 1, 1], [], []>} : vector<8x128xbf16>, vector<128x512xbf16>, vector<8x512xf32> -> vector<8x512xf32>
    %95 = arith.addf %91, %94 : vector<8x512xf32>
    %96 = arith.index_cast %89 : i32 to index
    %c0_38 = arith.constant 0 : index
    %97 = vector.load %arg13[%96, %c0_38] : memref<64x512xf32, #tpu.memory_space<vmem>>, vector<8x512xf32>
    %98 = arith.truncf %80 : vector<8x128xf32> to vector<8x128xbf16>
    %c0_39 = arith.constant 0 : index
    %c0_40 = arith.constant 0 : index
    %99 = vector.load %arg6[%c0_39, %c0_40] : memref<128x512xbf16, #tpu.memory_space<vmem>>, vector<128x512xbf16>
    %cst_41 = arith.constant dense<0.000000e+00> : vector<8x512xf32>
    %100 = tpu.matmul %98, %99, %cst_41 {dimension_numbers = #tpu.dot_dimension_numbers<[1], [0], [0], [1], [0, 0, 1, 1], [], []>} : vector<8x128xbf16>, vector<128x512xbf16>, vector<8x512xf32> -> vector<8x512xf32>
    %101 = arith.addf %97, %100 : vector<8x512xf32>
    %102 = vector.extract_strided_slice %95 {offsets = [0, 0], sizes = [8, 128], strides = [1, 1]} : vector<8x512xf32> to vector<8x128xf32>
    %103 = arith.negf %102 : vector<8x128xf32>
    %104 = math.exp %103 : vector<8x128xf32>
    %cst_42 = arith.constant 1.000000e+00 : f32
    %105 = vector.broadcast %cst_42 : f32 to vector<8x128xf32>
    %106 = arith.addf %105, %104 : vector<8x128xf32>
    %107 = arith.divf %105, %106 : vector<8x128xf32>
    %108 = vector.extract_strided_slice %95 {offsets = [0, 128], sizes = [8, 128], strides = [1, 1]} : vector<8x512xf32> to vector<8x128xf32>
    %109 = arith.negf %108 : vector<8x128xf32>
    %110 = math.exp %109 : vector<8x128xf32>
    %cst_43 = arith.constant 1.000000e+00 : f32
    %111 = vector.broadcast %cst_43 : f32 to vector<8x128xf32>
    %112 = arith.addf %111, %110 : vector<8x128xf32>
    %113 = arith.divf %111, %112 : vector<8x128xf32>
    %114 = vector.extract_strided_slice %95 {offsets = [0, 256], sizes = [8, 128], strides = [1, 1]} : vector<8x512xf32> to vector<8x128xf32>
    %115 = math.tanh %114 : vector<8x128xf32>
    %116 = vector.extract_strided_slice %95 {offsets = [0, 384], sizes = [8, 128], strides = [1, 1]} : vector<8x512xf32> to vector<8x128xf32>
    %117 = arith.negf %116 : vector<8x128xf32>
    %118 = math.exp %117 : vector<8x128xf32>
    %cst_44 = arith.constant 1.000000e+00 : f32
    %119 = vector.broadcast %cst_44 : f32 to vector<8x128xf32>
    %120 = arith.addf %119, %118 : vector<8x128xf32>
    %121 = arith.divf %119, %120 : vector<8x128xf32>
    %122 = arith.mulf %113, %53 : vector<8x128xf32>
    %123 = arith.mulf %107, %115 : vector<8x128xf32>
    %124 = arith.addf %122, %123 : vector<8x128xf32>
    %125 = math.tanh %124 : vector<8x128xf32>
    %126 = arith.mulf %121, %125 : vector<8x128xf32>
    %127 = vector.extract_strided_slice %101 {offsets = [0, 0], sizes = [8, 128], strides = [1, 1]} : vector<8x512xf32> to vector<8x128xf32>
    %128 = arith.negf %127 : vector<8x128xf32>
    %129 = math.exp %128 : vector<8x128xf32>
    %cst_45 = arith.constant 1.000000e+00 : f32
    %130 = vector.broadcast %cst_45 : f32 to vector<8x128xf32>
    %131 = arith.addf %130, %129 : vector<8x128xf32>
    %132 = arith.divf %130, %131 : vector<8x128xf32>
    %133 = vector.extract_strided_slice %101 {offsets = [0, 128], sizes = [8, 128], strides = [1, 1]} : vector<8x512xf32> to vector<8x128xf32>
    %134 = arith.negf %133 : vector<8x128xf32>
    %135 = math.exp %134 : vector<8x128xf32>
    %cst_46 = arith.constant 1.000000e+00 : f32
    %136 = vector.broadcast %cst_46 : f32 to vector<8x128xf32>
    %137 = arith.addf %136, %135 : vector<8x128xf32>
    %138 = arith.divf %136, %137 : vector<8x128xf32>
    %139 = vector.extract_strided_slice %101 {offsets = [0, 256], sizes = [8, 128], strides = [1, 1]} : vector<8x512xf32> to vector<8x128xf32>
    %140 = math.tanh %139 : vector<8x128xf32>
    %141 = vector.extract_strided_slice %101 {offsets = [0, 384], sizes = [8, 128], strides = [1, 1]} : vector<8x512xf32> to vector<8x128xf32>
    %142 = arith.negf %141 : vector<8x128xf32>
    %143 = math.exp %142 : vector<8x128xf32>
    %cst_47 = arith.constant 1.000000e+00 : f32
    %144 = vector.broadcast %cst_47 : f32 to vector<8x128xf32>
    %145 = arith.addf %144, %143 : vector<8x128xf32>
    %146 = arith.divf %144, %145 : vector<8x128xf32>
    %147 = arith.mulf %138, %78 : vector<8x128xf32>
    %148 = arith.mulf %132, %140 : vector<8x128xf32>
    %149 = arith.addf %147, %148 : vector<8x128xf32>
    %150 = math.tanh %149 : vector<8x128xf32>
    %151 = arith.mulf %146, %150 : vector<8x128xf32>
    %152 = arith.index_cast %86 : i32 to index
    %c0_48 = arith.constant 0 : index
    %153 = vector.load %arg14[%152, %c0_48] : memref<64x256xf32, #tpu.memory_space<vmem>>, vector<8x128xf32>
    tpu.vector_store %arg14[%152, %c0_48], %126 {strides = array<i32>} : memref<64x256xf32, #tpu.memory_space<vmem>>, vector<8x128xf32>,
    %154 = arith.index_cast %89 : i32 to index
    %c128_49 = arith.constant 128 : index
    %155 = vector.load %arg14[%154, %c128_49] : memref<64x256xf32, #tpu.memory_space<vmem>>, vector<8x128xf32>
    tpu.vector_store %arg14[%154, %c128_49], %151 {strides = array<i32>} : memref<64x256xf32, #tpu.memory_space<vmem>>, vector<8x128xf32>,
    %c2_i32 = arith.constant 2 : i32
    %c8_i32_50 = arith.constant 8 : i32
    %156 = arith.muli %c2_i32, %c8_i32_50 : i32
    %157 = tpu.assume_multiple %156, 8 : i32
    %c7_i32_51 = arith.constant 7 : i32
    %158 = arith.subi %c7_i32_51, %c2_i32 : i32
    %c8_i32_52 = arith.constant 8 : i32
    %159 = arith.muli %158, %c8_i32_52 : i32
    %160 = tpu.assume_multiple %159, 8 : i32
    %161 = arith.index_cast %157 : i32 to index
    %c0_53 = arith.constant 0 : index
    %162 = vector.load %arg12[%161, %c0_53] : memref<64x512xf32, #tpu.memory_space<vmem>>, vector<8x512xf32>
    %163 = arith.truncf %126 : vector<8x128xf32> to vector<8x128xbf16>
    %c0_54 = arith.constant 0 : index
    %c0_55 = arith.constant 0 : index
    %164 = vector.load %arg5[%c0_54, %c0_55] : memref<128x512xbf16, #tpu.memory_space<vmem>>, vector<128x512xbf16>
    %cst_56 = arith.constant dense<0.000000e+00> : vector<8x512xf32>
    %165 = tpu.matmul %163, %164, %cst_56 {dimension_numbers = #tpu.dot_dimension_numbers<[1], [0], [0], [1], [0, 0, 1, 1], [], []>} : vector<8x128xbf16>, vector<128x512xbf16>, vector<8x512xf32> -> vector<8x512xf32>
    %166 = arith.addf %162, %165 : vector<8x512xf32>
    %167 = arith.index_cast %160 : i32 to index
    %c0_57 = arith.constant 0 : index
    %168 = vector.load %arg13[%167, %c0_57] : memref<64x512xf32, #tpu.memory_space<vmem>>, vector<8x512xf32>
    %169 = arith.truncf %151 : vector<8x128xf32> to vector<8x128xbf16>
    %c0_58 = arith.constant 0 : index
    %c0_59 = arith.constant 0 : index
    %170 = vector.load %arg6[%c0_58, %c0_59] : memref<128x512xbf16, #tpu.memory_space<vmem>>, vector<128x512xbf16>
    %cst_60 = arith.constant dense<0.000000e+00> : vector<8x512xf32>
    %171 = tpu.matmul %169, %170, %cst_60 {dimension_numbers = #tpu.dot_dimension_numbers<[1], [0], [0], [1], [0, 0, 1, 1], [], []>} : vector<8x128xbf16>, vector<128x512xbf16>, vector<8x512xf32> -> vector<8x512xf32>
    %172 = arith.addf %168, %171 : vector<8x512xf32>
    %173 = vector.extract_strided_slice %166 {offsets = [0, 0], sizes = [8, 128], strides = [1, 1]} : vector<8x512xf32> to vector<8x128xf32>
    %174 = arith.negf %173 : vector<8x128xf32>
    %175 = math.exp %174 : vector<8x128xf32>
    %cst_61 = arith.constant 1.000000e+00 : f32
    %176 = vector.broadcast %cst_61 : f32 to vector<8x128xf32>
    %177 = arith.addf %176, %175 : vector<8x128xf32>
    %178 = arith.divf %176, %177 : vector<8x128xf32>
    %179 = vector.extract_strided_slice %166 {offsets = [0, 128], sizes = [8, 128], strides = [1, 1]} : vector<8x512xf32> to vector<8x128xf32>
    %180 = arith.negf %179 : vector<8x128xf32>
    %181 = math.exp %180 : vector<8x128xf32>
    %cst_62 = arith.constant 1.000000e+00 : f32
    %182 = vector.broadcast %cst_62 : f32 to vector<8x128xf32>
    %183 = arith.addf %182, %181 : vector<8x128xf32>
    %184 = arith.divf %182, %183 : vector<8x128xf32>
    %185 = vector.extract_strided_slice %166 {offsets = [0, 256], sizes = [8, 128], strides = [1, 1]} : vector<8x512xf32> to vector<8x128xf32>
    %186 = math.tanh %185 : vector<8x128xf32>
    %187 = vector.extract_strided_slice %166 {offsets = [0, 384], sizes = [8, 128], strides = [1, 1]} : vector<8x512xf32> to vector<8x128xf32>
    %188 = arith.negf %187 : vector<8x128xf32>
    %189 = math.exp %188 : vector<8x128xf32>
    %cst_63 = arith.constant 1.000000e+00 : f32
    %190 = vector.broadcast %cst_63 : f32 to vector<8x128xf32>
    %191 = arith.addf %190, %189 : vector<8x128xf32>
    %192 = arith.divf %190, %191 : vector<8x128xf32>
    %193 = arith.mulf %184, %124 : vector<8x128xf32>
    %194 = arith.mulf %178, %186 : vector<8x128xf32>
    %195 = arith.addf %193, %194 : vector<8x128xf32>
    %196 = math.tanh %195 : vector<8x128xf32>
    %197 = arith.mulf %192, %196 : vector<8x128xf32>
    %198 = vector.extract_strided_slice %172 {offsets = [0, 0], sizes = [8, 128], strides = [1, 1]} : vector<8x512xf32> to vector<8x128xf32>
    %199 = arith.negf %198 : vector<8x128xf32>
    %200 = math.exp %199 : vector<8x128xf32>
    %cst_64 = arith.constant 1.000000e+00 : f32
    %201 = vector.broadcast %cst_64 : f32 to vector<8x128xf32>
    %202 = arith.addf %201, %200 : vector<8x128xf32>
    %203 = arith.divf %201, %202 : vector<8x128xf32>
    %204 = vector.extract_strided_slice %172 {offsets = [0, 128], sizes = [8, 128], strides = [1, 1]} : vector<8x512xf32> to vector<8x128xf32>
    %205 = arith.negf %204 : vector<8x128xf32>
    %206 = math.exp %205 : vector<8x128xf32>
    %cst_65 = arith.constant 1.000000e+00 : f32
    %207 = vector.broadcast %cst_65 : f32 to vector<8x128xf32>
    %208 = arith.addf %207, %206 : vector<8x128xf32>
    %209 = arith.divf %207, %208 : vector<8x128xf32>
    %210 = vector.extract_strided_slice %172 {offsets = [0, 256], sizes = [8, 128], strides = [1, 1]} : vector<8x512xf32> to vector<8x128xf32>
    %211 = math.tanh %210 : vector<8x128xf32>
    %212 = vector.extract_strided_slice %172 {offsets = [0, 384], sizes = [8, 128], strides = [1, 1]} : vector<8x512xf32> to vector<8x128xf32>
    %213 = arith.negf %212 : vector<8x128xf32>
    %214 = math.exp %213 : vector<8x128xf32>
    %cst_66 = arith.constant 1.000000e+00 : f32
    %215 = vector.broadcast %cst_66 : f32 to vector<8x128xf32>
    %216 = arith.addf %215, %214 : vector<8x128xf32>
    %217 = arith.divf %215, %216 : vector<8x128xf32>
    %218 = arith.mulf %209, %149 : vector<8x128xf32>
    %219 = arith.mulf %203, %211 : vector<8x128xf32>
    %220 = arith.addf %218, %219 : vector<8x128xf32>
    %221 = math.tanh %220 : vector<8x128xf32>
    %222 = arith.mulf %217, %221 : vector<8x128xf32>
    %223 = arith.index_cast %157 : i32 to index
    %c0_67 = arith.constant 0 : index
    %224 = vector.load %arg14[%223, %c0_67] : memref<64x256xf32, #tpu.memory_space<vmem>>, vector<8x128xf32>
    tpu.vector_store %arg14[%223, %c0_67], %197 {strides = array<i32>} : memref<64x256xf32, #tpu.memory_space<vmem>>, vector<8x128xf32>,
    %225 = arith.index_cast %160 : i32 to index
    %c128_68 = arith.constant 128 : index
    %226 = vector.load %arg14[%225, %c128_68] : memref<64x256xf32, #tpu.memory_space<vmem>>, vector<8x128xf32>
    tpu.vector_store %arg14[%225, %c128_68], %222 {strides = array<i32>} : memref<64x256xf32, #tpu.memory_space<vmem>>, vector<8x128xf32>,
    %c3_i32 = arith.constant 3 : i32
    %c8_i32_69 = arith.constant 8 : i32
    %227 = arith.muli %c3_i32, %c8_i32_69 : i32
    %228 = tpu.assume_multiple %227, 8 : i32
    %c7_i32_70 = arith.constant 7 : i32
    %229 = arith.subi %c7_i32_70, %c3_i32 : i32
    %c8_i32_71 = arith.constant 8 : i32
    %230 = arith.muli %229, %c8_i32_71 : i32
    %231 = tpu.assume_multiple %230, 8 : i32
    %232 = arith.index_cast %228 : i32 to index
    %c0_72 = arith.constant 0 : index
    %233 = vector.load %arg12[%232, %c0_72] : memref<64x512xf32, #tpu.memory_space<vmem>>, vector<8x512xf32>
    %234 = arith.truncf %197 : vector<8x128xf32> to vector<8x128xbf16>
    %c0_73 = arith.constant 0 : index
    %c0_74 = arith.constant 0 : index
    %235 = vector.load %arg5[%c0_73, %c0_74] : memref<128x512xbf16, #tpu.memory_space<vmem>>, vector<128x512xbf16>
    %cst_75 = arith.constant dense<0.000000e+00> : vector<8x512xf32>
    %236 = tpu.matmul %234, %235, %cst_75 {dimension_numbers = #tpu.dot_dimension_numbers<[1], [0], [0], [1], [0, 0, 1, 1], [], []>} : vector<8x128xbf16>, vector<128x512xbf16>, vector<8x512xf32> -> vector<8x512xf32>
    %237 = arith.addf %233, %236 : vector<8x512xf32>
    %238 = arith.index_cast %231 : i32 to index
    %c0_76 = arith.constant 0 : index
    %239 = vector.load %arg13[%238, %c0_76] : memref<64x512xf32, #tpu.memory_space<vmem>>, vector<8x512xf32>
    %240 = arith.truncf %222 : vector<8x128xf32> to vector<8x128xbf16>
    %c0_77 = arith.constant 0 : index
    %c0_78 = arith.constant 0 : index
    %241 = vector.load %arg6[%c0_77, %c0_78] : memref<128x512xbf16, #tpu.memory_space<vmem>>, vector<128x512xbf16>
    %cst_79 = arith.constant dense<0.000000e+00> : vector<8x512xf32>
    %242 = tpu.matmul %240, %241, %cst_79 {dimension_numbers = #tpu.dot_dimension_numbers<[1], [0], [0], [1], [0, 0, 1, 1], [], []>} : vector<8x128xbf16>, vector<128x512xbf16>, vector<8x512xf32> -> vector<8x512xf32>
    %243 = arith.addf %239, %242 : vector<8x512xf32>
    %244 = vector.extract_strided_slice %237 {offsets = [0, 0], sizes = [8, 128], strides = [1, 1]} : vector<8x512xf32> to vector<8x128xf32>
    %245 = arith.negf %244 : vector<8x128xf32>
    %246 = math.exp %245 : vector<8x128xf32>
    %cst_80 = arith.constant 1.000000e+00 : f32
    %247 = vector.broadcast %cst_80 : f32 to vector<8x128xf32>
    %248 = arith.addf %247, %246 : vector<8x128xf32>
    %249 = arith.divf %247, %248 : vector<8x128xf32>
    %250 = vector.extract_strided_slice %237 {offsets = [0, 128], sizes = [8, 128], strides = [1, 1]} : vector<8x512xf32> to vector<8x128xf32>
    %251 = arith.negf %250 : vector<8x128xf32>
    %252 = math.exp %251 : vector<8x128xf32>
    %cst_81 = arith.constant 1.000000e+00 : f32
    %253 = vector.broadcast %cst_81 : f32 to vector<8x128xf32>
    %254 = arith.addf %253, %252 : vector<8x128xf32>
    %255 = arith.divf %253, %254 : vector<8x128xf32>
    %256 = vector.extract_strided_slice %237 {offsets = [0, 256], sizes = [8, 128], strides = [1, 1]} : vector<8x512xf32> to vector<8x128xf32>
    %257 = math.tanh %256 : vector<8x128xf32>
    %258 = vector.extract_strided_slice %237 {offsets = [0, 384], sizes = [8, 128], strides = [1, 1]} : vector<8x512xf32> to vector<8x128xf32>
    %259 = arith.negf %258 : vector<8x128xf32>
    %260 = math.exp %259 : vector<8x128xf32>
    %cst_82 = arith.constant 1.000000e+00 : f32
    %261 = vector.broadcast %cst_82 : f32 to vector<8x128xf32>
    %262 = arith.addf %261, %260 : vector<8x128xf32>
    %263 = arith.divf %261, %262 : vector<8x128xf32>
    %264 = arith.mulf %255, %195 : vector<8x128xf32>
    %265 = arith.mulf %249, %257 : vector<8x128xf32>
    %266 = arith.addf %264, %265 : vector<8x128xf32>
    %267 = math.tanh %266 : vector<8x128xf32>
    %268 = arith.mulf %263, %267 : vector<8x128xf32>
    %269 = vector.extract_strided_slice %243 {offsets = [0, 0], sizes = [8, 128], strides = [1, 1]} : vector<8x512xf32> to vector<8x128xf32>
    %270 = arith.negf %269 : vector<8x128xf32>
    %271 = math.exp %270 : vector<8x128xf32>
    %cst_83 = arith.constant 1.000000e+00 : f32
    %272 = vector.broadcast %cst_83 : f32 to vector<8x128xf32>
    %273 = arith.addf %272, %271 : vector<8x128xf32>
    %274 = arith.divf %272, %273 : vector<8x128xf32>
    %275 = vector.extract_strided_slice %243 {offsets = [0, 128], sizes = [8, 128], strides = [1, 1]} : vector<8x512xf32> to vector<8x128xf32>
    %276 = arith.negf %275 : vector<8x128xf32>
    %277 = math.exp %276 : vector<8x128xf32>
    %cst_84 = arith.constant 1.000000e+00 : f32
    %278 = vector.broadcast %cst_84 : f32 to vector<8x128xf32>
    %279 = arith.addf %278, %277 : vector<8x128xf32>
    %280 = arith.divf %278, %279 : vector<8x128xf32>
    %281 = vector.extract_strided_slice %243 {offsets = [0, 256], sizes = [8, 128], strides = [1, 1]} : vector<8x512xf32> to vector<8x128xf32>
    %282 = math.tanh %281 : vector<8x128xf32>
    %283 = vector.extract_strided_slice %243 {offsets = [0, 384], sizes = [8, 128], strides = [1, 1]} : vector<8x512xf32> to vector<8x128xf32>
    %284 = arith.negf %283 : vector<8x128xf32>
    %285 = math.exp %284 : vector<8x128xf32>
    %cst_85 = arith.constant 1.000000e+00 : f32
    %286 = vector.broadcast %cst_85 : f32 to vector<8x128xf32>
    %287 = arith.addf %286, %285 : vector<8x128xf32>
    %288 = arith.divf %286, %287 : vector<8x128xf32>
    %289 = arith.mulf %280, %220 : vector<8x128xf32>
    %290 = arith.mulf %274, %282 : vector<8x128xf32>
    %291 = arith.addf %289, %290 : vector<8x128xf32>
    %292 = math.tanh %291 : vector<8x128xf32>
    %293 = arith.mulf %288, %292 : vector<8x128xf32>
    %294 = arith.index_cast %228 : i32 to index
    %c0_86 = arith.constant 0 : index
    %295 = vector.load %arg14[%294, %c0_86] : memref<64x256xf32, #tpu.memory_space<vmem>>, vector<8x128xf32>
    tpu.vector_store %arg14[%294, %c0_86], %268 {strides = array<i32>} : memref<64x256xf32, #tpu.memory_space<vmem>>, vector<8x128xf32>,
    %296 = arith.index_cast %231 : i32 to index
    %c128_87 = arith.constant 128 : index
    %297 = vector.load %arg14[%296, %c128_87] : memref<64x256xf32, #tpu.memory_space<vmem>>, vector<8x128xf32>
    tpu.vector_store %arg14[%296, %c128_87], %293 {strides = array<i32>} : memref<64x256xf32, #tpu.memory_space<vmem>>, vector<8x128xf32>,
    %c4_i32 = arith.constant 4 : i32
    %c8_i32_88 = arith.constant 8 : i32
    %298 = arith.muli %c4_i32, %c8_i32_88 : i32
    %299 = tpu.assume_multiple %298, 8 : i32
    %c7_i32_89 = arith.constant 7 : i32
    %300 = arith.subi %c7_i32_89, %c4_i32 : i32
    %c8_i32_90 = arith.constant 8 : i32
    %301 = arith.muli %300, %c8_i32_90 : i32
    %302 = tpu.assume_multiple %301, 8 : i32
    %303 = arith.index_cast %299 : i32 to index
    %c0_91 = arith.constant 0 : index
    %304 = vector.load %arg12[%303, %c0_91] : memref<64x512xf32, #tpu.memory_space<vmem>>, vector<8x512xf32>
    %305 = arith.truncf %268 : vector<8x128xf32> to vector<8x128xbf16>
    %c0_92 = arith.constant 0 : index
    %c0_93 = arith.constant 0 : index
    %306 = vector.load %arg5[%c0_92, %c0_93] : memref<128x512xbf16, #tpu.memory_space<vmem>>, vector<128x512xbf16>
    %cst_94 = arith.constant dense<0.000000e+00> : vector<8x512xf32>
    %307 = tpu.matmul %305, %306, %cst_94 {dimension_numbers = #tpu.dot_dimension_numbers<[1], [0], [0], [1], [0, 0, 1, 1], [], []>} : vector<8x128xbf16>, vector<128x512xbf16>, vector<8x512xf32> -> vector<8x512xf32>
    %308 = arith.addf %304, %307 : vector<8x512xf32>
    %309 = arith.index_cast %302 : i32 to index
    %c0_95 = arith.constant 0 : index
    %310 = vector.load %arg13[%309, %c0_95] : memref<64x512xf32, #tpu.memory_space<vmem>>, vector<8x512xf32>
    %311 = arith.truncf %293 : vector<8x128xf32> to vector<8x128xbf16>
    %c0_96 = arith.constant 0 : index
    %c0_97 = arith.constant 0 : index
    %312 = vector.load %arg6[%c0_96, %c0_97] : memref<128x512xbf16, #tpu.memory_space<vmem>>, vector<128x512xbf16>
    %cst_98 = arith.constant dense<0.000000e+00> : vector<8x512xf32>
    %313 = tpu.matmul %311, %312, %cst_98 {dimension_numbers = #tpu.dot_dimension_numbers<[1], [0], [0], [1], [0, 0, 1, 1], [], []>} : vector<8x128xbf16>, vector<128x512xbf16>, vector<8x512xf32> -> vector<8x512xf32>
    %314 = arith.addf %310, %313 : vector<8x512xf32>
    %315 = vector.extract_strided_slice %308 {offsets = [0, 0], sizes = [8, 128], strides = [1, 1]} : vector<8x512xf32> to vector<8x128xf32>
    %316 = arith.negf %315 : vector<8x128xf32>
    %317 = math.exp %316 : vector<8x128xf32>
    %cst_99 = arith.constant 1.000000e+00 : f32
    %318 = vector.broadcast %cst_99 : f32 to vector<8x128xf32>
    %319 = arith.addf %318, %317 : vector<8x128xf32>
    %320 = arith.divf %318, %319 : vector<8x128xf32>
    %321 = vector.extract_strided_slice %308 {offsets = [0, 128], sizes = [8, 128], strides = [1, 1]} : vector<8x512xf32> to vector<8x128xf32>
    %322 = arith.negf %321 : vector<8x128xf32>
    %323 = math.exp %322 : vector<8x128xf32>
    %cst_100 = arith.constant 1.000000e+00 : f32
    %324 = vector.broadcast %cst_100 : f32 to vector<8x128xf32>
    %325 = arith.addf %324, %323 : vector<8x128xf32>
    %326 = arith.divf %324, %325 : vector<8x128xf32>
    %327 = vector.extract_strided_slice %308 {offsets = [0, 256], sizes = [8, 128], strides = [1, 1]} : vector<8x512xf32> to vector<8x128xf32>
    %328 = math.tanh %327 : vector<8x128xf32>
    %329 = vector.extract_strided_slice %308 {offsets = [0, 384], sizes = [8, 128], strides = [1, 1]} : vector<8x512xf32> to vector<8x128xf32>
    %330 = arith.negf %329 : vector<8x128xf32>
    %331 = math.exp %330 : vector<8x128xf32>
    %cst_101 = arith.constant 1.000000e+00 : f32
    %332 = vector.broadcast %cst_101 : f32 to vector<8x128xf32>
    %333 = arith.addf %332, %331 : vector<8x128xf32>
    %334 = arith.divf %332, %333 : vector<8x128xf32>
    %335 = arith.mulf %326, %266 : vector<8x128xf32>
    %336 = arith.mulf %320, %328 : vector<8x128xf32>
    %337 = arith.addf %335, %336 : vector<8x128xf32>
    %338 = math.tanh %337 : vector<8x128xf32>
    %339 = arith.mulf %334, %338 : vector<8x128xf32>
    %340 = vector.extract_strided_slice %314 {offsets = [0, 0], sizes = [8, 128], strides = [1, 1]} : vector<8x512xf32> to vector<8x128xf32>
    %341 = arith.negf %340 : vector<8x128xf32>
    %342 = math.exp %341 : vector<8x128xf32>
    %cst_102 = arith.constant 1.000000e+00 : f32
    %343 = vector.broadcast %cst_102 : f32 to vector<8x128xf32>
    %344 = arith.addf %343, %342 : vector<8x128xf32>
    %345 = arith.divf %343, %344 : vector<8x128xf32>
    %346 = vector.extract_strided_slice %314 {offsets = [0, 128], sizes = [8, 128], strides = [1, 1]} : vector<8x512xf32> to vector<8x128xf32>
    %347 = arith.negf %346 : vector<8x128xf32>
    %348 = math.exp %347 : vector<8x128xf32>
    %cst_103 = arith.constant 1.000000e+00 : f32
    %349 = vector.broadcast %cst_103 : f32 to vector<8x128xf32>
    %350 = arith.addf %349, %348 : vector<8x128xf32>
    %351 = arith.divf %349, %350 : vector<8x128xf32>
    %352 = vector.extract_strided_slice %314 {offsets = [0, 256], sizes = [8, 128], strides = [1, 1]} : vector<8x512xf32> to vector<8x128xf32>
    %353 = math.tanh %352 : vector<8x128xf32>
    %354 = vector.extract_strided_slice %314 {offsets = [0, 384], sizes = [8, 128], strides = [1, 1]} : vector<8x512xf32> to vector<8x128xf32>
    %355 = arith.negf %354 : vector<8x128xf32>
    %356 = math.exp %355 : vector<8x128xf32>
    %cst_104 = arith.constant 1.000000e+00 : f32
    %357 = vector.broadcast %cst_104 : f32 to vector<8x128xf32>
    %358 = arith.addf %357, %356 : vector<8x128xf32>
    %359 = arith.divf %357, %358 : vector<8x128xf32>
    %360 = arith.mulf %351, %291 : vector<8x128xf32>
    %361 = arith.mulf %345, %353 : vector<8x128xf32>
    %362 = arith.addf %360, %361 : vector<8x128xf32>
    %363 = math.tanh %362 : vector<8x128xf32>
    %364 = arith.mulf %359, %363 : vector<8x128xf32>
    %365 = arith.index_cast %299 : i32 to index
    %c0_105 = arith.constant 0 : index
    %366 = vector.load %arg14[%365, %c0_105] : memref<64x256xf32, #tpu.memory_space<vmem>>, vector<8x128xf32>
    tpu.vector_store %arg14[%365, %c0_105], %339 {strides = array<i32>} : memref<64x256xf32, #tpu.memory_space<vmem>>, vector<8x128xf32>,
    %367 = arith.index_cast %302 : i32 to index
    %c128_106 = arith.constant 128 : index
    %368 = vector.load %arg14[%367, %c128_106] : memref<64x256xf32, #tpu.memory_space<vmem>>, vector<8x128xf32>
    tpu.vector_store %arg14[%367, %c128_106], %364 {strides = array<i32>} : memref<64x256xf32, #tpu.memory_space<vmem>>, vector<8x128xf32>,
    %c5_i32 = arith.constant 5 : i32
    %c8_i32_107 = arith.constant 8 : i32
    %369 = arith.muli %c5_i32, %c8_i32_107 : i32
    %370 = tpu.assume_multiple %369, 8 : i32
    %c7_i32_108 = arith.constant 7 : i32
    %371 = arith.subi %c7_i32_108, %c5_i32 : i32
    %c8_i32_109 = arith.constant 8 : i32
    %372 = arith.muli %371, %c8_i32_109 : i32
    %373 = tpu.assume_multiple %372, 8 : i32
    %374 = arith.index_cast %370 : i32 to index
    %c0_110 = arith.constant 0 : index
    %375 = vector.load %arg12[%374, %c0_110] : memref<64x512xf32, #tpu.memory_space<vmem>>, vector<8x512xf32>
    %376 = arith.truncf %339 : vector<8x128xf32> to vector<8x128xbf16>
    %c0_111 = arith.constant 0 : index
    %c0_112 = arith.constant 0 : index
    %377 = vector.load %arg5[%c0_111, %c0_112] : memref<128x512xbf16, #tpu.memory_space<vmem>>, vector<128x512xbf16>
    %cst_113 = arith.constant dense<0.000000e+00> : vector<8x512xf32>
    %378 = tpu.matmul %376, %377, %cst_113 {dimension_numbers = #tpu.dot_dimension_numbers<[1], [0], [0], [1], [0, 0, 1, 1], [], []>} : vector<8x128xbf16>, vector<128x512xbf16>, vector<8x512xf32> -> vector<8x512xf32>
    %379 = arith.addf %375, %378 : vector<8x512xf32>
    %380 = arith.index_cast %373 : i32 to index
    %c0_114 = arith.constant 0 : index
    %381 = vector.load %arg13[%380, %c0_114] : memref<64x512xf32, #tpu.memory_space<vmem>>, vector<8x512xf32>
    %382 = arith.truncf %364 : vector<8x128xf32> to vector<8x128xbf16>
    %c0_115 = arith.constant 0 : index
    %c0_116 = arith.constant 0 : index
    %383 = vector.load %arg6[%c0_115, %c0_116] : memref<128x512xbf16, #tpu.memory_space<vmem>>, vector<128x512xbf16>
    %cst_117 = arith.constant dense<0.000000e+00> : vector<8x512xf32>
    %384 = tpu.matmul %382, %383, %cst_117 {dimension_numbers = #tpu.dot_dimension_numbers<[1], [0], [0], [1], [0, 0, 1, 1], [], []>} : vector<8x128xbf16>, vector<128x512xbf16>, vector<8x512xf32> -> vector<8x512xf32>
    %385 = arith.addf %381, %384 : vector<8x512xf32>
    %386 = vector.extract_strided_slice %379 {offsets = [0, 0], sizes = [8, 128], strides = [1, 1]} : vector<8x512xf32> to vector<8x128xf32>
    %387 = arith.negf %386 : vector<8x128xf32>
    %388 = math.exp %387 : vector<8x128xf32>
    %cst_118 = arith.constant 1.000000e+00 : f32
    %389 = vector.broadcast %cst_118 : f32 to vector<8x128xf32>
    %390 = arith.addf %389, %388 : vector<8x128xf32>
    %391 = arith.divf %389, %390 : vector<8x128xf32>
    %392 = vector.extract_strided_slice %379 {offsets = [0, 128], sizes = [8, 128], strides = [1, 1]} : vector<8x512xf32> to vector<8x128xf32>
    %393 = arith.negf %392 : vector<8x128xf32>
    %394 = math.exp %393 : vector<8x128xf32>
    %cst_119 = arith.constant 1.000000e+00 : f32
    %395 = vector.broadcast %cst_119 : f32 to vector<8x128xf32>
    %396 = arith.addf %395, %394 : vector<8x128xf32>
    %397 = arith.divf %395, %396 : vector<8x128xf32>
    %398 = vector.extract_strided_slice %379 {offsets = [0, 256], sizes = [8, 128], strides = [1, 1]} : vector<8x512xf32> to vector<8x128xf32>
    %399 = math.tanh %398 : vector<8x128xf32>
    %400 = vector.extract_strided_slice %379 {offsets = [0, 384], sizes = [8, 128], strides = [1, 1]} : vector<8x512xf32> to vector<8x128xf32>
    %401 = arith.negf %400 : vector<8x128xf32>
    %402 = math.exp %401 : vector<8x128xf32>
    %cst_120 = arith.constant 1.000000e+00 : f32
    %403 = vector.broadcast %cst_120 : f32 to vector<8x128xf32>
    %404 = arith.addf %403, %402 : vector<8x128xf32>
    %405 = arith.divf %403, %404 : vector<8x128xf32>
    %406 = arith.mulf %397, %337 : vector<8x128xf32>
    %407 = arith.mulf %391, %399 : vector<8x128xf32>
    %408 = arith.addf %406, %407 : vector<8x128xf32>
    %409 = math.tanh %408 : vector<8x128xf32>
    %410 = arith.mulf %405, %409 : vector<8x128xf32>
    %411 = vector.extract_strided_slice %385 {offsets = [0, 0], sizes = [8, 128], strides = [1, 1]} : vector<8x512xf32> to vector<8x128xf32>
    %412 = arith.negf %411 : vector<8x128xf32>
    %413 = math.exp %412 : vector<8x128xf32>
    %cst_121 = arith.constant 1.000000e+00 : f32
    %414 = vector.broadcast %cst_121 : f32 to vector<8x128xf32>
    %415 = arith.addf %414, %413 : vector<8x128xf32>
    %416 = arith.divf %414, %415 : vector<8x128xf32>
    %417 = vector.extract_strided_slice %385 {offsets = [0, 128], sizes = [8, 128], strides = [1, 1]} : vector<8x512xf32> to vector<8x128xf32>
    %418 = arith.negf %417 : vector<8x128xf32>
    %419 = math.exp %418 : vector<8x128xf32>
    %cst_122 = arith.constant 1.000000e+00 : f32
    %420 = vector.broadcast %cst_122 : f32 to vector<8x128xf32>
    %421 = arith.addf %420, %419 : vector<8x128xf32>
    %422 = arith.divf %420, %421 : vector<8x128xf32>
    %423 = vector.extract_strided_slice %385 {offsets = [0, 256], sizes = [8, 128], strides = [1, 1]} : vector<8x512xf32> to vector<8x128xf32>
    %424 = math.tanh %423 : vector<8x128xf32>
    %425 = vector.extract_strided_slice %385 {offsets = [0, 384], sizes = [8, 128], strides = [1, 1]} : vector<8x512xf32> to vector<8x128xf32>
    %426 = arith.negf %425 : vector<8x128xf32>
    %427 = math.exp %426 : vector<8x128xf32>
    %cst_123 = arith.constant 1.000000e+00 : f32
    %428 = vector.broadcast %cst_123 : f32 to vector<8x128xf32>
    %429 = arith.addf %428, %427 : vector<8x128xf32>
    %430 = arith.divf %428, %429 : vector<8x128xf32>
    %431 = arith.mulf %422, %362 : vector<8x128xf32>
    %432 = arith.mulf %416, %424 : vector<8x128xf32>
    %433 = arith.addf %431, %432 : vector<8x128xf32>
    %434 = math.tanh %433 : vector<8x128xf32>
    %435 = arith.mulf %430, %434 : vector<8x128xf32>
    %436 = arith.index_cast %370 : i32 to index
    %c0_124 = arith.constant 0 : index
    %437 = vector.load %arg14[%436, %c0_124] : memref<64x256xf32, #tpu.memory_space<vmem>>, vector<8x128xf32>
    tpu.vector_store %arg14[%436, %c0_124], %410 {strides = array<i32>} : memref<64x256xf32, #tpu.memory_space<vmem>>, vector<8x128xf32>,
    %438 = arith.index_cast %373 : i32 to index
    %c128_125 = arith.constant 128 : index
    %439 = vector.load %arg14[%438, %c128_125] : memref<64x256xf32, #tpu.memory_space<vmem>>, vector<8x128xf32>
    tpu.vector_store %arg14[%438, %c128_125], %435 {strides = array<i32>} : memref<64x256xf32, #tpu.memory_space<vmem>>, vector<8x128xf32>,
    %c6_i32 = arith.constant 6 : i32
    %c8_i32_126 = arith.constant 8 : i32
    %440 = arith.muli %c6_i32, %c8_i32_126 : i32
    %441 = tpu.assume_multiple %440, 8 : i32
    %c7_i32_127 = arith.constant 7 : i32
    %442 = arith.subi %c7_i32_127, %c6_i32 : i32
    %c8_i32_128 = arith.constant 8 : i32
    %443 = arith.muli %442, %c8_i32_128 : i32
    %444 = tpu.assume_multiple %443, 8 : i32
    %445 = arith.index_cast %441 : i32 to index
    %c0_129 = arith.constant 0 : index
    %446 = vector.load %arg12[%445, %c0_129] : memref<64x512xf32, #tpu.memory_space<vmem>>, vector<8x512xf32>
    %447 = arith.truncf %410 : vector<8x128xf32> to vector<8x128xbf16>
    %c0_130 = arith.constant 0 : index
    %c0_131 = arith.constant 0 : index
    %448 = vector.load %arg5[%c0_130, %c0_131] : memref<128x512xbf16, #tpu.memory_space<vmem>>, vector<128x512xbf16>
    %cst_132 = arith.constant dense<0.000000e+00> : vector<8x512xf32>
    %449 = tpu.matmul %447, %448, %cst_132 {dimension_numbers = #tpu.dot_dimension_numbers<[1], [0], [0], [1], [0, 0, 1, 1], [], []>} : vector<8x128xbf16>, vector<128x512xbf16>, vector<8x512xf32> -> vector<8x512xf32>
    %450 = arith.addf %446, %449 : vector<8x512xf32>
    %451 = arith.index_cast %444 : i32 to index
    %c0_133 = arith.constant 0 : index
    %452 = vector.load %arg13[%451, %c0_133] : memref<64x512xf32, #tpu.memory_space<vmem>>, vector<8x512xf32>
    %453 = arith.truncf %435 : vector<8x128xf32> to vector<8x128xbf16>
    %c0_134 = arith.constant 0 : index
    %c0_135 = arith.constant 0 : index
    %454 = vector.load %arg6[%c0_134, %c0_135] : memref<128x512xbf16, #tpu.memory_space<vmem>>, vector<128x512xbf16>
    %cst_136 = arith.constant dense<0.000000e+00> : vector<8x512xf32>
    %455 = tpu.matmul %453, %454, %cst_136 {dimension_numbers = #tpu.dot_dimension_numbers<[1], [0], [0], [1], [0, 0, 1, 1], [], []>} : vector<8x128xbf16>, vector<128x512xbf16>, vector<8x512xf32> -> vector<8x512xf32>
    %456 = arith.addf %452, %455 : vector<8x512xf32>
    %457 = vector.extract_strided_slice %450 {offsets = [0, 0], sizes = [8, 128], strides = [1, 1]} : vector<8x512xf32> to vector<8x128xf32>
    %458 = arith.negf %457 : vector<8x128xf32>
    %459 = math.exp %458 : vector<8x128xf32>
    %cst_137 = arith.constant 1.000000e+00 : f32
    %460 = vector.broadcast %cst_137 : f32 to vector<8x128xf32>
    %461 = arith.addf %460, %459 : vector<8x128xf32>
    %462 = arith.divf %460, %461 : vector<8x128xf32>
    %463 = vector.extract_strided_slice %450 {offsets = [0, 128], sizes = [8, 128], strides = [1, 1]} : vector<8x512xf32> to vector<8x128xf32>
    %464 = arith.negf %463 : vector<8x128xf32>
    %465 = math.exp %464 : vector<8x128xf32>
    %cst_138 = arith.constant 1.000000e+00 : f32
    %466 = vector.broadcast %cst_138 : f32 to vector<8x128xf32>
    %467 = arith.addf %466, %465 : vector<8x128xf32>
    %468 = arith.divf %466, %467 : vector<8x128xf32>
    %469 = vector.extract_strided_slice %450 {offsets = [0, 256], sizes = [8, 128], strides = [1, 1]} : vector<8x512xf32> to vector<8x128xf32>
    %470 = math.tanh %469 : vector<8x128xf32>
    %471 = vector.extract_strided_slice %450 {offsets = [0, 384], sizes = [8, 128], strides = [1, 1]} : vector<8x512xf32> to vector<8x128xf32>
    %472 = arith.negf %471 : vector<8x128xf32>
    %473 = math.exp %472 : vector<8x128xf32>
    %cst_139 = arith.constant 1.000000e+00 : f32
    %474 = vector.broadcast %cst_139 : f32 to vector<8x128xf32>
    %475 = arith.addf %474, %473 : vector<8x128xf32>
    %476 = arith.divf %474, %475 : vector<8x128xf32>
    %477 = arith.mulf %468, %408 : vector<8x128xf32>
    %478 = arith.mulf %462, %470 : vector<8x128xf32>
    %479 = arith.addf %477, %478 : vector<8x128xf32>
    %480 = math.tanh %479 : vector<8x128xf32>
    %481 = arith.mulf %476, %480 : vector<8x128xf32>
    %482 = vector.extract_strided_slice %456 {offsets = [0, 0], sizes = [8, 128], strides = [1, 1]} : vector<8x512xf32> to vector<8x128xf32>
    %483 = arith.negf %482 : vector<8x128xf32>
    %484 = math.exp %483 : vector<8x128xf32>
    %cst_140 = arith.constant 1.000000e+00 : f32
    %485 = vector.broadcast %cst_140 : f32 to vector<8x128xf32>
    %486 = arith.addf %485, %484 : vector<8x128xf32>
    %487 = arith.divf %485, %486 : vector<8x128xf32>
    %488 = vector.extract_strided_slice %456 {offsets = [0, 128], sizes = [8, 128], strides = [1, 1]} : vector<8x512xf32> to vector<8x128xf32>
    %489 = arith.negf %488 : vector<8x128xf32>
    %490 = math.exp %489 : vector<8x128xf32>
    %cst_141 = arith.constant 1.000000e+00 : f32
    %491 = vector.broadcast %cst_141 : f32 to vector<8x128xf32>
    %492 = arith.addf %491, %490 : vector<8x128xf32>
    %493 = arith.divf %491, %492 : vector<8x128xf32>
    %494 = vector.extract_strided_slice %456 {offsets = [0, 256], sizes = [8, 128], strides = [1, 1]} : vector<8x512xf32> to vector<8x128xf32>
    %495 = math.tanh %494 : vector<8x128xf32>
    %496 = vector.extract_strided_slice %456 {offsets = [0, 384], sizes = [8, 128], strides = [1, 1]} : vector<8x512xf32> to vector<8x128xf32>
    %497 = arith.negf %496 : vector<8x128xf32>
    %498 = math.exp %497 : vector<8x128xf32>
    %cst_142 = arith.constant 1.000000e+00 : f32
    %499 = vector.broadcast %cst_142 : f32 to vector<8x128xf32>
    %500 = arith.addf %499, %498 : vector<8x128xf32>
    %501 = arith.divf %499, %500 : vector<8x128xf32>
    %502 = arith.mulf %493, %433 : vector<8x128xf32>
    %503 = arith.mulf %487, %495 : vector<8x128xf32>
    %504 = arith.addf %502, %503 : vector<8x128xf32>
    %505 = math.tanh %504 : vector<8x128xf32>
    %506 = arith.mulf %501, %505 : vector<8x128xf32>
    %507 = arith.index_cast %441 : i32 to index
    %c0_143 = arith.constant 0 : index
    %508 = vector.load %arg14[%507, %c0_143] : memref<64x256xf32, #tpu.memory_space<vmem>>, vector<8x128xf32>
    tpu.vector_store %arg14[%507, %c0_143], %481 {strides = array<i32>} : memref<64x256xf32, #tpu.memory_space<vmem>>, vector<8x128xf32>,
    %509 = arith.index_cast %444 : i32 to index
    %c128_144 = arith.constant 128 : index
    %510 = vector.load %arg14[%509, %c128_144] : memref<64x256xf32, #tpu.memory_space<vmem>>, vector<8x128xf32>
    tpu.vector_store %arg14[%509, %c128_144], %506 {strides = array<i32>} : memref<64x256xf32, #tpu.memory_space<vmem>>, vector<8x128xf32>,
    %c7_i32_145 = arith.constant 7 : i32
    %c8_i32_146 = arith.constant 8 : i32
    %511 = arith.muli %c7_i32_145, %c8_i32_146 : i32
    %512 = tpu.assume_multiple %511, 8 : i32
    %c7_i32_147 = arith.constant 7 : i32
    %513 = arith.subi %c7_i32_147, %c7_i32_145 : i32
    %c8_i32_148 = arith.constant 8 : i32
    %514 = arith.muli %513, %c8_i32_148 : i32
    %515 = tpu.assume_multiple %514, 8 : i32
    %516 = arith.index_cast %512 : i32 to index
    %c0_149 = arith.constant 0 : index
    %517 = vector.load %arg12[%516, %c0_149] : memref<64x512xf32, #tpu.memory_space<vmem>>, vector<8x512xf32>
    %518 = arith.truncf %481 : vector<8x128xf32> to vector<8x128xbf16>
    %c0_150 = arith.constant 0 : index
    %c0_151 = arith.constant 0 : index
    %519 = vector.load %arg5[%c0_150, %c0_151] : memref<128x512xbf16, #tpu.memory_space<vmem>>, vector<128x512xbf16>
    %cst_152 = arith.constant dense<0.000000e+00> : vector<8x512xf32>
    %520 = tpu.matmul %518, %519, %cst_152 {dimension_numbers = #tpu.dot_dimension_numbers<[1], [0], [0], [1], [0, 0, 1, 1], [], []>} : vector<8x128xbf16>, vector<128x512xbf16>, vector<8x512xf32> -> vector<8x512xf32>
    %521 = arith.addf %517, %520 : vector<8x512xf32>
    %522 = arith.index_cast %515 : i32 to index
    %c0_153 = arith.constant 0 : index
    %523 = vector.load %arg13[%522, %c0_153] : memref<64x512xf32, #tpu.memory_space<vmem>>, vector<8x512xf32>
    %524 = arith.truncf %506 : vector<8x128xf32> to vector<8x128xbf16>
    %c0_154 = arith.constant 0 : index
    %c0_155 = arith.constant 0 : index
    %525 = vector.load %arg6[%c0_154, %c0_155] : memref<128x512xbf16, #tpu.memory_space<vmem>>, vector<128x512xbf16>
    %cst_156 = arith.constant dense<0.000000e+00> : vector<8x512xf32>
    %526 = tpu.matmul %524, %525, %cst_156 {dimension_numbers = #tpu.dot_dimension_numbers<[1], [0], [0], [1], [0, 0, 1, 1], [], []>} : vector<8x128xbf16>, vector<128x512xbf16>, vector<8x512xf32> -> vector<8x512xf32>
    %527 = arith.addf %523, %526 : vector<8x512xf32>
    %528 = vector.extract_strided_slice %521 {offsets = [0, 0], sizes = [8, 128], strides = [1, 1]} : vector<8x512xf32> to vector<8x128xf32>
    %529 = arith.negf %528 : vector<8x128xf32>
    %530 = math.exp %529 : vector<8x128xf32>
    %cst_157 = arith.constant 1.000000e+00 : f32
    %531 = vector.broadcast %cst_157 : f32 to vector<8x128xf32>
    %532 = arith.addf %531, %530 : vector<8x128xf32>
    %533 = arith.divf %531, %532 : vector<8x128xf32>
    %534 = vector.extract_strided_slice %521 {offsets = [0, 128], sizes = [8, 128], strides = [1, 1]} : vector<8x512xf32> to vector<8x128xf32>
    %535 = arith.negf %534 : vector<8x128xf32>
    %536 = math.exp %535 : vector<8x128xf32>
    %cst_158 = arith.constant 1.000000e+00 : f32
    %537 = vector.broadcast %cst_158 : f32 to vector<8x128xf32>
    %538 = arith.addf %537, %536 : vector<8x128xf32>
    %539 = arith.divf %537, %538 : vector<8x128xf32>
    %540 = vector.extract_strided_slice %521 {offsets = [0, 256], sizes = [8, 128], strides = [1, 1]} : vector<8x512xf32> to vector<8x128xf32>
    %541 = math.tanh %540 : vector<8x128xf32>
    %542 = vector.extract_strided_slice %521 {offsets = [0, 384], sizes = [8, 128], strides = [1, 1]} : vector<8x512xf32> to vector<8x128xf32>
    %543 = arith.negf %542 : vector<8x128xf32>
    %544 = math.exp %543 : vector<8x128xf32>
    %cst_159 = arith.constant 1.000000e+00 : f32
    %545 = vector.broadcast %cst_159 : f32 to vector<8x128xf32>
    %546 = arith.addf %545, %544 : vector<8x128xf32>
    %547 = arith.divf %545, %546 : vector<8x128xf32>
    %548 = arith.mulf %539, %479 : vector<8x128xf32>
    %549 = arith.mulf %533, %541 : vector<8x128xf32>
    %550 = arith.addf %548, %549 : vector<8x128xf32>
    %551 = math.tanh %550 : vector<8x128xf32>
    %552 = arith.mulf %547, %551 : vector<8x128xf32>
    %553 = vector.extract_strided_slice %527 {offsets = [0, 0], sizes = [8, 128], strides = [1, 1]} : vector<8x512xf32> to vector<8x128xf32>
    %554 = arith.negf %553 : vector<8x128xf32>
    %555 = math.exp %554 : vector<8x128xf32>
    %cst_160 = arith.constant 1.000000e+00 : f32
    %556 = vector.broadcast %cst_160 : f32 to vector<8x128xf32>
    %557 = arith.addf %556, %555 : vector<8x128xf32>
    %558 = arith.divf %556, %557 : vector<8x128xf32>
    %559 = vector.extract_strided_slice %527 {offsets = [0, 128], sizes = [8, 128], strides = [1, 1]} : vector<8x512xf32> to vector<8x128xf32>
    %560 = arith.negf %559 : vector<8x128xf32>
    %561 = math.exp %560 : vector<8x128xf32>
    %cst_161 = arith.constant 1.000000e+00 : f32
    %562 = vector.broadcast %cst_161 : f32 to vector<8x128xf32>
    %563 = arith.addf %562, %561 : vector<8x128xf32>
    %564 = arith.divf %562, %563 : vector<8x128xf32>
    %565 = vector.extract_strided_slice %527 {offsets = [0, 256], sizes = [8, 128], strides = [1, 1]} : vector<8x512xf32> to vector<8x128xf32>
    %566 = math.tanh %565 : vector<8x128xf32>
    %567 = vector.extract_strided_slice %527 {offsets = [0, 384], sizes = [8, 128], strides = [1, 1]} : vector<8x512xf32> to vector<8x128xf32>
    %568 = arith.negf %567 : vector<8x128xf32>
    %569 = math.exp %568 : vector<8x128xf32>
    %cst_162 = arith.constant 1.000000e+00 : f32
    %570 = vector.broadcast %cst_162 : f32 to vector<8x128xf32>
    %571 = arith.addf %570, %569 : vector<8x128xf32>
    %572 = arith.divf %570, %571 : vector<8x128xf32>
    %573 = arith.mulf %564, %504 : vector<8x128xf32>
    %574 = arith.mulf %558, %566 : vector<8x128xf32>
    %575 = arith.addf %573, %574 : vector<8x128xf32>
    %576 = math.tanh %575 : vector<8x128xf32>
    %577 = arith.mulf %572, %576 : vector<8x128xf32>
    %578 = arith.index_cast %512 : i32 to index
    %c0_163 = arith.constant 0 : index
    %579 = vector.load %arg14[%578, %c0_163] : memref<64x256xf32, #tpu.memory_space<vmem>>, vector<8x128xf32>
    tpu.vector_store %arg14[%578, %c0_163], %552 {strides = array<i32>} : memref<64x256xf32, #tpu.memory_space<vmem>>, vector<8x128xf32>,
    %580 = arith.index_cast %515 : i32 to index
    %c128_164 = arith.constant 128 : index
    %581 = vector.load %arg14[%580, %c128_164] : memref<64x256xf32, #tpu.memory_space<vmem>>, vector<8x128xf32>
    tpu.vector_store %arg14[%580, %c128_164], %577 {strides = array<i32>} : memref<64x256xf32, #tpu.memory_space<vmem>>, vector<8x128xf32>,
    %c8_i32_165 = arith.constant 8 : i32
    %c0_166 = arith.constant 0 : index
    %c0_167 = arith.constant 0 : index
    %582 = vector.load %arg14[%c0_166, %c0_167] : memref<64x256xf32, #tpu.memory_space<vmem>>, vector<64x256xf32>
    %583 = arith.truncf %582 : vector<64x256xf32> to vector<64x256xbf16>
    %c0_168 = arith.constant 0 : index
    %c0_169 = arith.constant 0 : index
    %584 = vector.load %arg7[%c0_168, %c0_169] : memref<256x128xbf16, #tpu.memory_space<vmem>>, vector<256x128xbf16>
    %cst_170 = arith.constant dense<0.000000e+00> : vector<64x128xf32>
    %585 = tpu.matmul %583, %584, %cst_170 {dimension_numbers = #tpu.dot_dimension_numbers<[1], [0], [0], [1], [0, 0, 1, 1], [], []>} : vector<64x256xbf16>, vector<256x128xbf16>, vector<64x128xf32> -> vector<64x128xf32>
    %c0_171 = arith.constant 0 : index
    %c0_172 = arith.constant 0 : index
    %586 = vector.load %arg8[%c0_171, %c0_172] : memref<1x128xf32, #tpu.memory_space<vmem>>, vector<1x128xf32>
    %587 = vector.broadcast %586 : vector<1x128xf32> to vector<64x128xf32>
    %588 = arith.addf %585, %587 : vector<64x128xf32>
    %cst_173 = arith.constant 0.000000e+00 : f32
    %589 = vector.broadcast %cst_173 : f32 to vector<64x128xf32>
    %590 = arith.maximumf %588, %589 : vector<64x128xf32>
    %591 = arith.truncf %590 : vector<64x128xf32> to vector<64x128xbf16>
    %c0_174 = arith.constant 0 : index
    %c0_175 = arith.constant 0 : index
    %592 = vector.load %arg9[%c0_174, %c0_175] : memref<128x128xbf16, #tpu.memory_space<vmem>>, vector<128x128xbf16>
    %cst_176 = arith.constant dense<0.000000e+00> : vector<64x128xf32>
    %593 = tpu.matmul %591, %592, %cst_176 {dimension_numbers = #tpu.dot_dimension_numbers<[1], [0], [0], [1], [0, 0, 1, 1], [], []>} : vector<64x128xbf16>, vector<128x128xbf16>, vector<64x128xf32> -> vector<64x128xf32>
    %c0_177 = arith.constant 0 : index
    %c0_178 = arith.constant 0 : index
    %594 = vector.load %arg10[%c0_177, %c0_178] : memref<1x128xf32, #tpu.memory_space<vmem>>, vector<1x128xf32>
    %595 = vector.broadcast %594 : vector<1x128xf32> to vector<64x128xf32>
    %596 = arith.addf %593, %595 : vector<64x128xf32>
    %cst_179 = arith.constant dense<0xFF800000> : vector<64xf32>
    %597 = vector.multi_reduction <maximumf>, %596, %cst_179 [1] : vector<64x128xf32> to vector<64xf32>
    %598 = vector.shape_cast %597 : vector<64xf32> to vector<64x1xf32>
    %599 = vector.broadcast %598 : vector<64x1xf32> to vector<64x128xf32>
    %600 = arith.subf %596, %599 : vector<64x128xf32>
    %601 = math.exp %600 : vector<64x128xf32>
    %cst_180 = arith.constant dense<0.000000e+00> : vector<64xf32>
    %602 = vector.multi_reduction <add>, %601, %cst_180 [1] : vector<64x128xf32> to vector<64xf32>
    %603 = vector.shape_cast %602 : vector<64xf32> to vector<64x1xf32>
    %604 = vector.broadcast %603 : vector<64x1xf32> to vector<64x128xf32>
    %605 = arith.divf %601, %604 : vector<64x128xf32>
    %c0_181 = arith.constant 0 : index
    %c0_182 = arith.constant 0 : index
    %606 = vector.load %arg11[%c0_181, %c0_182] : memref<64x128xf32, #tpu.memory_space<vmem>>, vector<64x128xf32>
    tpu.vector_store %arg11[%c0_181, %c0_182], %605 {strides = array<i32>} : memref<64x128xf32, #tpu.memory_space<vmem>>, vector<64x128xf32>,
    return
  }
}

</mosaic_0001>

<llo_original>
// kernel: eeg_sleep_edf_seq_forward.1
$region0: #{eeg_sleep_edf_seq_forward.1}
  #allocation0 [shape = 'u32[]', space=smem, size = 0x4, offset = 0x4, fixed_abs, tag = 'smem constant byte address 0x4 - core index']
  #allocation1 [shape = 'u32[144,128]{1,0:T(1,128)}', space=vmem, size = 0x12000, scoped, tag = 'internal scratch']
  #allocation2 [shape = 'f32[64,512]{1,0:T(8,128)}', space=vmem, size = 0x20000, scoped, tag = 'scratch operand']
  #allocation3 [shape = 'f32[64,512]{1,0:T(8,128)}', space=vmem, size = 0x20000, scoped, tag = 'scratch operand']
  #allocation4 [shape = 'f32[64,256]{1,0:T(8,128)}', space=vmem, size = 0x10000, scoped, tag = 'scratch operand']
  %s0 = inlined_call_operand.vmem [shape: bf16[64,128], index: 0, kind: input, shape index: {}]
  %s1 = inlined_call_operand.hbm [shape: bf16[128,512], index: 1, kind: input, shape index: {}]
  %s2 = inlined_call_operand.hbm [shape: bf16[128,512], index: 2, kind: input, shape index: {}]
  %s3 = inlined_call_operand.vmem [shape: f32[1,512], index: 3, kind: input, shape index: {}]
  %s4 = inlined_call_operand.vmem [shape: f32[1,512], index: 4, kind: input, shape index: {}]
  %s5 = inlined_call_operand.hbm [shape: bf16[128,512], index: 5, kind: input, shape index: {}]
  %s6 = inlined_call_operand.hbm [shape: bf16[128,512], index: 6, kind: input, shape index: {}]
  %s7 = inlined_call_operand.hbm [shape: bf16[256,128], index: 7, kind: input, shape index: {}]
  %s8 = inlined_call_operand.vmem [shape: f32[1,128], index: 8, kind: input, shape index: {}]
  %s9 = inlined_call_operand.vmem [shape: bf16[128,128], index: 9, kind: input, shape index: {}]
  %s10 = inlined_call_operand.vmem [shape: f32[1,128], index: 10, kind: input, shape index: {}]
  %s11 = inlined_call_operand.vmem [shape: f32[64,128], index: 11, kind: output, shape index: {}]
  %s12 = sld [smem:[#allocation0]]
  $region74: #{eeg_sleep_edf_seq_forward.1} parent=0
    _
  %s14 = ssub.s32 1, %s12
  %s15 = scalar_select 0, %s14, %s12
  $region1: #{eeg_sleep_edf_seq_forward.1} parent=0
    #allocation5 [shape = 'u8[131072]{0}', space=vmem, size = 0x20000, scoped, tag = 'input window, operand 1, single buffered']
    #allocation6 [shape = 's32[1]{0}', space=sflag, size = 0x4, scoped, tag = 'scoped memory for eeg_sleep_edf_seq_forward.1']
    #allocation7 [shape = 'u8[131072]{0}', space=vmem, size = 0x20000, scoped, tag = 'input window, operand 2, single buffered']
    #allocation8 [shape = 's32[1]{0}', space=sflag, size = 0x4, scoped, tag = 'scoped memory for eeg_sleep_edf_seq_forward.1']
    #allocation9 [shape = 'u8[131072]{0}', space=vmem, size = 0x20000, scoped, tag = 'input window, operand 5, single buffered']
    #allocation10 [shape = 'u8[131072]{0}', space=vmem, size = 0x20000, scoped, tag = 'input window, operand 6, single buffered']
    #allocation11 [shape = 's32[1]{0}', space=sflag, size = 0x4, scoped, tag = 'scoped memory for eeg_sleep_edf_seq_forward.1']
    #allocation12 [shape = 'u8[65536]{0}', space=vmem, size = 0x10000, scoped, tag = 'input window, operand 7, single buffered']
    %16 = vsyncpa [#allocation6], 0
    %17 = vsyncpa [#allocation8], 0
    %18 = vsyncpa [#allocation11], 0
    // Predicated region
    $region2: #{eeg_sleep_edf_seq_forward.1} parent=1 // pred_check
      _
    $region3: #{eeg_sleep_edf_seq_forward.1} parent=1 // pred_check_branch
      %20 = sbr.rel (0) target = $region5
    $region4: #{eeg_sleep_edf_seq_forward.1} parent=1 // pred_region
      _
    $region5: #{eeg_sleep_edf_seq_forward.1} parent=1 // pred_fallthru
      _
    // Predicated region
    $region6: #{eeg_sleep_edf_seq_forward.1} parent=1 // pred_check
      _
    $region7: #{eeg_sleep_edf_seq_forward.1} parent=1 // pred_check_branch
      %22 = sbr.rel (0) target = $region9
    $region8: #{eeg_sleep_edf_seq_forward.1} parent=1 // pred_region
      %s24 = ssub.s32 4096, 4096
      %25 = vsyncadd [#allocation6], %s24
      %s26 = sshll.u32 [#allocation5], 4
      %s27 = int_to_ptr.vmem [resolvable:$true] %s26
      %32 = dma.hbm_to_vmem [thread:$0]  %s1, 4096, %s27, [#allocation6], 256, 256, 16
    $region9: #{eeg_sleep_edf_seq_forward.1} parent=1 // pred_fallthru
      _
    // Predicated region
    $region10: #{eeg_sleep_edf_seq_forward.1} parent=1 // pred_check
      _
    $region11: #{eeg_sleep_edf_seq_forward.1} parent=1 // pred_check_branch
      %34 = sbr.rel (0) target = $region13
    $region12: #{eeg_sleep_edf_seq_forward.1} parent=1 // pred_region
      %s36 = ssub.s32 4096, 4096
      %37 = vsyncadd [#allocation8], %s36
      %s38 = sshll.u32 [#allocation7], 4
      %s39 = int_to_ptr.vmem [resolvable:$true] %s38
      %44 = dma.hbm_to_vmem [thread:$0]  %s2, 4096, %s39, [#allocation8], 256, 256, 16
    $region13: #{eeg_sleep_edf_seq_forward.1} parent=1 // pred_fallthru
      _
    // Predicated region
    $region14: #{eeg_sleep_edf_seq_forward.1} parent=1 // pred_check
      _
    $region15: #{eeg_sleep_edf_seq_forward.1} parent=1 // pred_check_branch
      %46 = sbr.rel (0) target = $region17
    $region16: #{eeg_sleep_edf_seq_forward.1} parent=1 // pred_region
      _
    $region17: #{eeg_sleep_edf_seq_forward.1} parent=1 // pred_fallthru
      _
    // Predicated region
    $region18: #{eeg_sleep_edf_seq_forward.1} parent=1 // pred_check
      _
    $region19: #{eeg_sleep_edf_seq_forward.1} parent=1 // pred_check_branch
      %48 = sbr.rel (0) target = $region21
    $region20: #{eeg_sleep_edf_seq_forward.1} parent=1 // pred_region
      _
    $region21: #{eeg_sleep_edf_seq_forward.1} parent=1 // pred_fallthru
      _
    // Predicated region
    $region22: #{eeg_sleep_edf_seq_forward.1} parent=1 // pred_check
      _
    $region23: #{eeg_sleep_edf_seq_forward.1} parent=1 // pred_check_branch
      %50 = sbr.rel (0) target = $region25
    $region24: #{eeg_sleep_edf_seq_forward.1} parent=1 // pred_region
      %s52 = ssub.s32 4096, 4096
      %53 = vsyncadd [#allocation8], %s52
      %s54 = sshll.u32 [#allocation9], 4
      %s55 = int_to_ptr.vmem [resolvable:$true] %s54
      %60 = dma.hbm_to_vmem [thread:$0]  %s5, 4096, %s55, [#allocation8], 256, 256, 16
    $region25: #{eeg_sleep_edf_seq_forward.1} parent=1 // pred_fallthru
      _
    // Predicated region
    $region26: #{eeg_sleep_edf_seq_forward.1} parent=1 // pred_check
      _
    $region27: #{eeg_sleep_edf_seq_forward.1} parent=1 // pred_check_branch
      %62 = sbr.rel (0) target = $region29
    $region28: #{eeg_sleep_edf_seq_forward.1} parent=1 // pred_region
      %s64 = ssub.s32 4096, 4096
      %65 = vsyncadd [#allocation11], %s64
      %s66 = sshll.u32 [#allocation10], 4
      %s67 = int_to_ptr.vmem [resolvable:$true] %s66
      %72 = dma.hbm_to_vmem [thread:$0]  %s6, 4096, %s67, [#allocation11], 256, 256, 16
    $region29: #{eeg_sleep_edf_seq_forward.1} parent=1 // pred_fallthru
      _
    // Predicated region
    $region30: #{eeg_sleep_edf_seq_forward.1} parent=1 // pred_check
      _
    $region31: #{eeg_sleep_edf_seq_forward.1} parent=1 // pred_check_branch
      %74 = sbr.rel (0) target = $region33
    $region32: #{eeg_sleep_edf_seq_forward.1} parent=1 // pred_region
      %s76 = ssub.s32 2048, 2048
      %77 = vsyncadd [#allocation11], %s76
      %s78 = sshll.u32 [#allocation12], 4
      %s79 = int_to_ptr.vmem [resolvable:$true] %s78
      %84 = dma.hbm_to_vmem [thread:$0]  %s7, 2048, %s79, [#allocation11], 64, 64, 4
    $region33: #{eeg_sleep_edf_seq_forward.1} parent=1 // pred_fallthru
      _
    // Predicated region
    $region34: #{eeg_sleep_edf_seq_forward.1} parent=1 // pred_check
      _
    $region35: #{eeg_sleep_edf_seq_forward.1} parent=1 // pred_check_branch
      %86 = sbr.rel (0) target = $region37
    $region36: #{eeg_sleep_edf_seq_forward.1} parent=1 // pred_region
      _
    $region37: #{eeg_sleep_edf_seq_forward.1} parent=1 // pred_fallthru
      _
    // Predicated region
    $region38: #{eeg_sleep_edf_seq_forward.1} parent=1 // pred_check
      _
    $region39: #{eeg_sleep_edf_seq_forward.1} parent=1 // pred_check_branch
      %88 = sbr.rel (0) target = $region41
    $region40: #{eeg_sleep_edf_seq_forward.1} parent=1 // pred_region
      _
    $region41: #{eeg_sleep_edf_seq_forward.1} parent=1 // pred_fallthru
      _
    // Predicated region
    $region42: #{eeg_sleep_edf_seq_forward.1} parent=1 // pred_check
      _
    $region43: #{eeg_sleep_edf_seq_forward.1} parent=1 // pred_check_branch
      %90 = sbr.rel (0) target = $region45
    $region44: #{eeg_sleep_edf_seq_forward.1} parent=1 // pred_region
      _
    $region45: #{eeg_sleep_edf_seq_forward.1} parent=1 // pred_fallthru
      _
    // Predicated region
    $region46: #{eeg_sleep_edf_seq_forward.1} parent=1 // pred_check
      _
    $region47: #{eeg_sleep_edf_seq_forward.1} parent=1 // pred_check_branch
      %92 = sbr.rel (0) target = $region49
    $region48: #{eeg_sleep_edf_seq_forward.1} parent=1 // pred_region
      %93 = dma.done [#allocation6], 4096
    $region49: #{eeg_sleep_edf_seq_forward.1} parent=1 // pred_fallthru
      _
    // Predicated region
    $region50: #{eeg_sleep_edf_seq_forward.1} parent=1 // pred_check
      _
    $region51: #{eeg_sleep_edf_seq_forward.1} parent=1 // pred_check_branch
      %95 = sbr.rel (0) target = $region53
    $region52: #{eeg_sleep_edf_seq_forward.1} parent=1 // pred_region
      %96 = dma.done [#allocation8], 4096
    $region53: #{eeg_sleep_edf_seq_forward.1} parent=1 // pred_fallthru
      _
    // Predicated region
    $region54: #{eeg_sleep_edf_seq_forward.1} parent=1 // pred_check
      _
    $region55: #{eeg_sleep_edf_seq_forward.1} parent=1 // pred_check_branch
      %98 = sbr.rel (0) target = $region57
    $region56: #{eeg_sleep_edf_seq_forward.1} parent=1 // pred_region
      %99 = dma.done [#allocation8], 4096
    $region57: #{eeg_sleep_edf_seq_forward.1} parent=1 // pred_fallthru
      _
    // Predicated region
    $region58: #{eeg_sleep_edf_seq_forward.1} parent=1 // pred_check
      _
    $region59: #{eeg_sleep_edf_seq_forward.1} parent=1 // pred_check_branch
      %101 = sbr.rel (0) target = $region61
    $region60: #{eeg_sleep_edf_seq_forward.1} parent=1 // pred_region
      %102 = dma.done [#allocation11], 4096
    $region61: #{eeg_sleep_edf_seq_forward.1} parent=1 // pred_fallthru
      _
    // Predicated region
    $region62: #{eeg_sleep_edf_seq_forward.1} parent=1 // pred_check
      _
    $region63: #{eeg_sleep_edf_seq_forward.1} parent=1 // pred_check_branch
      %104 = sbr.rel (0) target = $region65
    $region64: #{eeg_sleep_edf_seq_forward.1} parent=1 // pred_region
      %105 = dma.done [#allocation11], 2048
    $region65: #{eeg_sleep_edf_seq_forward.1} parent=1 // pred_fallthru
      _
    %v107 = vld [vmem:[%s0] sm:$0xf]
    %v108 = vld [vmem:[%s0 + $0x4] sm:$0xf]
    %v109 = vld [vmem:[%s0 + $0x8] sm:$0xf]
    %v110 = vld [vmem:[%s0 + $0xc] sm:$0xf]
    %v111 = vld [vmem:[%s0 + $0x10] sm:$0xf]
    %v112 = vld [vmem:[%s0 + $0x14] sm:$0xf]
    %v113 = vld [vmem:[%s0 + $0x18] sm:$0xf]
    %v114 = vld [vmem:[%s0 + $0x1c] sm:$0xf]
    %v115 = vld [vmem:[#allocation5] sm:$0xff]
    %v116 = vld [vmem:[#allocation5 + $0x8] sm:$0xff]
    %v117 = vld [vmem:[#allocation5 + $0x10] sm:$0xff]
    %v118 = vld [vmem:[#allocation5 + $0x18] sm:$0xff]
    %v119 = vld [vmem:[#allocation5 + $0x20] sm:$0xff]
    %v120 = vld [vmem:[#allocation5 + $0x28] sm:$0xff]
    %v121 = vld [vmem:[#allocation5 + $0x30] sm:$0xff]
    %v122 = vld [vmem:[#allocation5 + $0x38] sm:$0xff]
    %v123 = vld [vmem:[#allocation5 + $0x40] sm:$0xff]
    %v124 = vld [vmem:[#allocation5 + $0x48] sm:$0xff]
    %v125 = vld [vmem:[#allocation5 + $0x50] sm:$0xff]
    %v126 = vld [vmem:[#allocation5 + $0x58] sm:$0xff]
    %v127 = vld [vmem:[#allocation5 + $0x60] sm:$0xff]
    %v128 = vld [vmem:[#allocation5 + $0x68] sm:$0xff]
    %v129 = vld [vmem:[#allocation5 + $0x70] sm:$0xff]
    %v130 = vld [vmem:[#allocation5 + $0x78] sm:$0xff]
    %v131 = vld [vmem:[#allocation5 + $0x80] sm:$0xff]
    %v132 = vld [vmem:[#allocation5 + $0x88] sm:$0xff]
    %v133 = vld [vmem:[#allocation5 + $0x90] sm:$0xff]
    %v134 = vld [vmem:[#allocation5 + $0x98] sm:$0xff]
    %v135 = vld [vmem:[#allocation5 + $0xa0] sm:$0xff]
    %v136 = vld [vmem:[#allocation5 + $0xa8] sm:$0xff]
    %v137 = vld [vmem:[#allocation5 + $0xb0] sm:$0xff]
    %v138 = vld [vmem:[#allocation5 + $0xb8] sm:$0xff]
    %v139 = vld [vmem:[#allocation5 + $0xc0] sm:$0xff]
    %v140 = vld [vmem:[#allocation5 + $0xc8] sm:$0xff]
    %v141 = vld [vmem:[#allocation5 + $0xd0] sm:$0xff]
    %v142 = vld [vmem:[#allocation5 + $0xd8] sm:$0xff]
    %v143 = vld [vmem:[#allocation5 + $0xe0] sm:$0xff]
    %v144 = vld [vmem:[#allocation5 + $0xe8] sm:$0xff]
    %v145 = vld [vmem:[#allocation5 + $0xf0] sm:$0xff]
    %v146 = vld [vmem:[#allocation5 + $0xf8] sm:$0xff]
    %v147 = vld [vmem:[%s3] sm:$0xf]
    %v149 = vlaneseq
    %v150 = vshrl.u32 %v149, 7
    %v151 = vsub.s32 0, %v150
    %v152 = vrot.slane %v147, %v151
    %v153 = vlaneseq
    %v154 = vshrl.u32 %v153, 7
    %v155 = vsub.s32 1, %v154
    %v156 = vrot.slane %v147, %v155
    %v157 = vlaneseq
    %v158 = vshrl.u32 %v157, 7
    %v159 = vsub.s32 2, %v158
    %v160 = vrot.slane %v147, %v159
    %v161 = vlaneseq
    %v162 = vshrl.u32 %v161, 7
    %v163 = vsub.s32 3, %v162
    %v164 = vrot.slane %v147, %v163
    %v177 = vunpack.c.l.b16 %v107
    %v178 = vunpack.c.l.b16 %v108
    %v179 = vunpack.c.l.b16 %v109
    %v180 = vunpack.c.l.b16 %v110
    %v181 = vunpack.c.l.b16 %v111
    %v182 = vunpack.c.l.b16 %v112
    %v183 = vunpack.c.l.b16 %v113
    %v184 = vunpack.c.l.b16 %v114
    %v185 = vpack.c.b16 %v178, %v177
    %v186 = vpack.c.b16 %v180, %v179
    %v187 = vpack.c.b16 %v182, %v181
    %v188 = vpack.c.b16 %v184, %v183
    %v225 = vunpack.c.l.b16 %v115
    %v226 = vunpack.c.h.b16 %v115
    %v227 = vunpack.c.l.b16 %v116
    %v228 = vunpack.c.h.b16 %v116
    %v229 = vunpack.c.l.b16 %v117
    %v230 = vunpack.c.h.b16 %v117
    %v231 = vunpack.c.l.b16 %v118
    %v232 = vunpack.c.h.b16 %v118
    %v233 = vunpack.c.l.b16 %v119
    %v234 = vunpack.c.h.b16 %v119
    %v235 = vunpack.c.l.b16 %v120
    %v236 = vunpack.c.h.b16 %v120
    %v237 = vunpack.c.l.b16 %v121
    %v238 = vunpack.c.h.b16 %v121
    %v239 = vunpack.c.l.b16 %v122
    %v240 = vunpack.c.h.b16 %v122
    %v241 = vunpack.c.l.b16 %v123
    %v242 = vunpack.c.h.b16 %v123
    %v243 = vunpack.c.l.b16 %v124
    %v244 = vunpack.c.h.b16 %v124
    %v245 = vunpack.c.l.b16 %v125
    %v246 = vunpack.c.h.b16 %v125
    %v247 = vunpack.c.l.b16 %v126
    %v248 = vunpack.c.h.b16 %v126
    %v249 = vunpack.c.l.b16 %v127
    %v250 = vunpack.c.h.b16 %v127
    %v251 = vunpack.c.l.b16 %v128
    %v252 = vunpack.c.h.b16 %v128
    %v253 = vunpack.c.l.b16 %v129
    %v254 = vunpack.c.h.b16 %v129
    %v255 = vunpack.c.l.b16 %v130
    %v256 = vunpack.c.h.b16 %v130
    %v257 = vunpack.c.l.b16 %v131
    %v258 = vunpack.c.h.b16 %v131
    %v259 = vunpack.c.l.b16 %v132
    %v260 = vunpack.c.h.b16 %v132
    %v261 = vunpack.c.l.b16 %v133
    %v262 = vunpack.c.h.b16 %v133
    %v263 = vunpack.c.l.b16 %v134
    %v264 = vunpack.c.h.b16 %v134
    %v265 = vunpack.c.l.b16 %v135
    %v266 = vunpack.c.h.b16 %v135
    %v267 = vunpack.c.l.b16 %v136
    %v268 = vunpack.c.h.b16 %v136
    %v269 = vunpack.c.l.b16 %v137
    %v270 = vunpack.c.h.b16 %v137
    %v271 = vunpack.c.l.b16 %v138
    %v272 = vunpack.c.h.b16 %v138
    %v273 = vunpack.c.l.b16 %v139
    %v274 = vunpack.c.h.b16 %v139
    %v275 = vunpack.c.l.b16 %v140
    %v276 = vunpack.c.h.b16 %v140
    %v277 = vunpack.c.l.b16 %v141
    %v278 = vunpack.c.h.b16 %v141
    %v279 = vunpack.c.l.b16 %v142
    %v280 = vunpack.c.h.b16 %v142
    %v281 = vunpack.c.l.b16 %v143
    %v282 = vunpack.c.h.b16 %v143
    %v283 = vunpack.c.l.b16 %v144
    %v284 = vunpack.c.h.b16 %v144
    %v285 = vunpack.c.l.b16 %v145
    %v286 = vunpack.c.h.b16 %v145
    %v287 = vunpack.c.l.b16 %v146
    %v288 = vunpack.c.h.b16 %v146
    %v289 = vpack.c.b16 %v229, %v225
    %v290 = vpack.c.b16 %v230, %v226
    %v291 = vpack.c.b16 %v231, %v227
    %v292 = vpack.c.b16 %v232, %v228
    %v293 = vpack.c.b16 %v237, %v233
    %v294 = vpack.c.b16 %v238, %v234
    %v295 = vpack.c.b16 %v239, %v235
    %v296 = vpack.c.b16 %v240, %v236
    %v297 = vpack.c.b16 %v245, %v241
    %v298 = vpack.c.b16 %v246, %v242
    %v299 = vpack.c.b16 %v247, %v243
    %v300 = vpack.c.b16 %v248, %v244
    %v301 = vpack.c.b16 %v253, %v249
    %v302 = vpack.c.b16 %v254, %v250
    %v303 = vpack.c.b16 %v255, %v251
    %v304 = vpack.c.b16 %v256, %v252
    %v305 = vpack.c.b16 %v261, %v257
    %v306 = vpack.c.b16 %v262, %v258
    %v307 = vpack.c.b16 %v263, %v259
    %v308 = vpack.c.b16 %v264, %v260
    %v309 = vpack.c.b16 %v269, %v265
    %v310 = vpack.c.b16 %v270, %v266
    %v311 = vpack.c.b16 %v271, %v267
    %v312 = vpack.c.b16 %v272, %v268
    %v313 = vpack.c.b16 %v277, %v273
    %v314 = vpack.c.b16 %v278, %v274
    %v315 = vpack.c.b16 %v279, %v275
    %v316 = vpack.c.b16 %v280, %v276
    %v317 = vpack.c.b16 %v285, %v281
    %v318 = vpack.c.b16 %v286, %v282
    %v319 = vpack.c.b16 %v287, %v283
    %v320 = vpack.c.b16 %v288, %v284
    %353 = vmatprep.subr.bf16.mxu0 %v318
    %354 = vmatpush1.bf16.msra.mxu0 %v317
    %355 = vmatprep.subr.bf16.mxu0 %v314
    %356 = vmatpush1.bf16.msra.mxu0 %v313
    %357 = vmatprep.subr.bf16.mxu0 %v310
    %358 = vmatpush1.bf16.msra.mxu0 %v309
    %359 = vmatprep.subr.bf16.mxu0 %v306
    %360 = vmatpush1.bf16.msra.mxu0 %v305
    %361 = vmatprep.subr.bf16.mxu0 %v302
    %362 = vmatpush1.bf16.msra.mxu0 %v301
    %363 = vmatprep.subr.bf16.mxu0 %v298
    %364 = vmatpush1.bf16.msra.mxu0 %v297
    %365 = vmatprep.subr.bf16.mxu0 %v294
    %366 = vmatpush1.bf16.msra.mxu0 %v293
    %367 = vmatprep.subr.bf16.mxu0 %v290
    %368 = vmatpush1.bf16.msra.mxu0 %v289
    %369 = vmatprep.subr.bf16.mxu0 0
    %370 = vmatpush2.bf16.msra.mxu0 0
    %371 = vmatprep.subr.bf16.mxu0 0
    %372 = vmatpush2.bf16.msra.mxu0 0
    %373 = vmatprep.subr.bf16.mxu0 0
    %374 = vmatpush2.bf16.msra.mxu0 0
    %375 = vmatprep.subr.bf16.mxu0 0
    %376 = vmatpush2.bf16.msra.mxu0 0
    %377 = vmatprep.subr.bf16.mxu0 0
    %378 = vmatpush2.bf16.msra.mxu0 0
    %379 = vmatprep.subr.bf16.mxu0 0
    %380 = vmatpush2.bf16.msra.mxu0 0
    %381 = vmatprep.subr.bf16.mxu0 0
    %382 = vmatpush2.bf16.msra.mxu0 0
    %383 = vmatprep.subr.bf16.mxu0 0
    %384 = vmatpush2.bf16.msra.mxu0 0
    %385 = vmatprep.mubr.bf16.mxu0 0
    %386 = vmatmul.mubr.bf16.gmra.mxu0 %v185
    %v387 = vpop.f32.mrf.mxu0
    %v388 = vadd.f32 %v152, %v387
    %v389 = vpop.f32.mrf.mxu0
    %v390 = vadd.f32 %v156, %v389
    %v391 = vpop.f32.mrf.mxu0
    %v392 = vadd.f32 %v152, %v391
    %v393 = vpop.f32.mrf.mxu0
    %v394 = vadd.f32 %v156, %v393
    %395 = vmatprep.mubr.bf16.mxu0 0
    %396 = vmatmul.mubr.bf16.gmra.mxu0 %v186
    %v397 = vpop.f32.mrf.mxu0
    %v398 = vadd.f32 %v152, %v397
    %v399 = vpop.f32.mrf.mxu0
    %v400 = vadd.f32 %v156, %v399
    %v401 = vpop.f32.mrf.mxu0
    %v402 = vadd.f32 %v152, %v401
    %v403 = vpop.f32.mrf.mxu0
    %v404 = vadd.f32 %v156, %v403
    %405 = vmatprep.mubr.bf16.mxu0 0
    %406 = vmatmul.mubr.bf16.gmra.mxu0 %v187
    %v407 = vpop.f32.mrf.mxu0
    %v408 = vadd.f32 %v152, %v407
    %v409 = vpop.f32.mrf.mxu0
    %v410 = vadd.f32 %v156, %v409
    %v411 = vpop.f32.mrf.mxu0
    %v412 = vadd.f32 %v152, %v411
    %v413 = vpop.f32.mrf.mxu0
    %v414 = vadd.f32 %v156, %v413
    %415 = vmatprep.mubr.bf16.mxu0 0
    %416 = vmatmul.mubr.bf16.gmra.mxu0 %v188
    %v417 = vpop.f32.mrf.mxu0
    %v418 = vadd.f32 %v152, %v417
    %v419 = vpop.f32.mrf.mxu0
    %v420 = vadd.f32 %v156, %v419
    %v421 = vpop.f32.mrf.mxu0
    %v422 = vadd.f32 %v152, %v421
    %v423 = vpop.f32.mrf.mxu0
    %v424 = vadd.f32 %v156, %v423
    %425 = vdwg.mxu0
    %426 = vmatprep.subr.bf16.mxu0 %v320
    %427 = vmatpush1.bf16.msra.mxu0 %v319
    %428 = vmatprep.subr.bf16.mxu0 %v316
    %429 = vmatpush1.bf16.msra.mxu0 %v315
    %430 = vmatprep.subr.bf16.mxu0 %v312
    %431 = vmatpush1.bf16.msra.mxu0 %v311
    %432 = vmatprep.subr.bf16.mxu0 %v308
    %433 = vmatpush1.bf16.msra.mxu0 %v307
    %434 = vmatprep.subr.bf16.mxu0 %v304
    %435 = vmatpush1.bf16.msra.mxu0 %v303
    %436 = vmatprep.subr.bf16.mxu0 %v300
    %437 = vmatpush1.bf16.msra.mxu0 %v299
    %438 = vmatprep.subr.bf16.mxu0 %v296
    %439 = vmatpush1.bf16.msra.mxu0 %v295
    %440 = vmatprep.subr.bf16.mxu0 %v292
    %441 = vmatpush1.bf16.msra.mxu0 %v291
    %442 = vmatprep.subr.bf16.mxu0 0
    %443 = vmatpush2.bf16.msra.mxu0 0
    %444 = vmatprep.subr.bf16.mxu0 0
    %445 = vmatpush2.bf16.msra.mxu0 0
    %446 = vmatprep.subr.bf16.mxu0 0
    %447 = vmatpush2.bf16.msra.mxu0 0
    %448 = vmatprep.subr.bf16.mxu0 0
    %449 = vmatpush2.bf16.msra.mxu0 0
    %450 = vmatprep.subr.bf16.mxu0 0
    %451 = vmatpush2.bf16.msra.mxu0 0
    %452 = vmatprep.subr.bf16.mxu0 0
    %453 = vmatpush2.bf16.msra.mxu0 0
    %454 = vmatprep.subr.bf16.mxu0 0
    %455 = vmatpush2.bf16.msra.mxu0 0
    %456 = vmatprep.subr.bf16.mxu0 0
    %457 = vmatpush2.bf16.msra.mxu0 0
    %458 = vmatprep.mubr.bf16.mxu0 0
    %459 = vmatmul.mubr.bf16.gmra.mxu0 %v185
    %v460 = vpop.f32.mrf.mxu0
    %v461 = vadd.f32 %v160, %v460
    %v462 = vpop.f32.mrf.mxu0
    %v463 = vadd.f32 %v164, %v462
    %v464 = vpop.f32.mrf.mxu0
    %v465 = vadd.f32 %v160, %v464
    %v466 = vpop.f32.mrf.mxu0
    %v467 = vadd.f32 %v164, %v466
    %468 = vmatprep.mubr.bf16.mxu0 0
    %469 = vmatmul.mubr.bf16.gmra.mxu0 %v186
    %v470 = vpop.f32.mrf.mxu0
    %v471 = vadd.f32 %v160, %v470
    %v472 = vpop.f32.mrf.mxu0
    %v473 = vadd.f32 %v164, %v472
    %v474 = vpop.f32.mrf.mxu0
    %v475 = vadd.f32 %v160, %v474
    %v476 = vpop.f32.mrf.mxu0
    %v477 = vadd.f32 %v164, %v476
    %478 = vmatprep.mubr.bf16.mxu0 0
    %479 = vmatmul.mubr.bf16.gmra.mxu0 %v187
    %v480 = vpop.f32.mrf.mxu0
    %v481 = vadd.f32 %v160, %v480
    %v482 = vpop.f32.mrf.mxu0
    %v483 = vadd.f32 %v164, %v482
    %v484 = vpop.f32.mrf.mxu0
    %v485 = vadd.f32 %v160, %v484
    %v486 = vpop.f32.mrf.mxu0
    %v487 = vadd.f32 %v164, %v486
    %488 = vmatprep.mubr.bf16.mxu0 0
    %489 = vmatmul.mubr.bf16.gmra.mxu0 %v188
    %v490 = vpop.f32.mrf.mxu0
    %v491 = vadd.f32 %v160, %v490
    %v492 = vpop.f32.mrf.mxu0
    %v493 = vadd.f32 %v164, %v492
    %v494 = vpop.f32.mrf.mxu0
    %v495 = vadd.f32 %v160, %v494
    %v496 = vpop.f32.mrf.mxu0
    %v497 = vadd.f32 %v164, %v496
    %498 = vdwg.mxu0
    %499 = vst [vmem:[#allocation2] sm:$0xff] %v388
    %500 = vst [vmem:[#allocation2 + $0x8] sm:$0xff] %v390
    %501 = vst [vmem:[#allocation2 + $0x10] sm:$0xff] %v461
    %502 = vst [vmem:[#allocation2 + $0x18] sm:$0xff] %v463
    %503 = vst [vmem:[#allocation2 + $0x20] sm:$0xff] %v392
    %504 = vst [vmem:[#allocation2 + $0x28] sm:$0xff] %v394
    %505 = vst [vmem:[#allocation2 + $0x30] sm:$0xff] %v465
    %506 = vst [vmem:[#allocation2 + $0x38] sm:$0xff] %v467
    %507 = vst [vmem:[#allocation2 + $0x40] sm:$0xff] %v398
    %508 = vst [vmem:[#allocation2 + $0x48] sm:$0xff] %v400
    %509 = vst [vmem:[#allocation2 + $0x50] sm:$0xff] %v471
    %510 = vst [vmem:[#allocation2 + $0x58] sm:$0xff] %v473
    %511 = vst [vmem:[#allocation2 + $0x60] sm:$0xff] %v402
    %512 = vst [vmem:[#allocation2 + $0x68] sm:$0xff] %v404
    %513 = vst [vmem:[#allocation2 + $0x70] sm:$0xff] %v475
    %514 = vst [vmem:[#allocation2 + $0x78] sm:$0xff] %v477
    %515 = vst [vmem:[#allocation2 + $0x80] sm:$0xff] %v408
    %516 = vst [vmem:[#allocation2 + $0x88] sm:$0xff] %v410
    %517 = vst [vmem:[#allocation2 + $0x90] sm:$0xff] %v481
    %518 = vst [vmem:[#allocation2 + $0x98] sm:$0xff] %v483
    %519 = vst [vmem:[#allocation2 + $0xa0] sm:$0xff] %v412
    %520 = vst [vmem:[#allocation2 + $0xa8] sm:$0xff] %v414
    %521 = vst [vmem:[#allocation2 + $0xb0] sm:$0xff] %v485
    %522 = vst [vmem:[#allocation2 + $0xb8] sm:$0xff] %v487
    %523 = vst [vmem:[#allocation2 + $0xc0] sm:$0xff] %v418
    %524 = vst [vmem:[#allocation2 + $0xc8] sm:$0xff] %v420
    %525 = vst [vmem:[#allocation2 + $0xd0] sm:$0xff] %v491
    %526 = vst [vmem:[#allocation2 + $0xd8] sm:$0xff] %v493
    %527 = vst [vmem:[#allocation2 + $0xe0] sm:$0xff] %v422
    %528 = vst [vmem:[#allocation2 + $0xe8] sm:$0xff] %v424
    %529 = vst [vmem:[#allocation2 + $0xf0] sm:$0xff] %v495
    %530 = vst [vmem:[#allocation2 + $0xf8] sm:$0xff] %v497
    %v531 = vld [vmem:[#allocation7] sm:$0xff]
    %v532 = vld [vmem:[#allocation7 + $0x8] sm:$0xff]
    %v533 = vld [vmem:[#allocation7 + $0x10] sm:$0xff]
    %v534 = vld [vmem:[#allocation7 + $0x18] sm:$0xff]
    %v535 = vld [vmem:[#allocation7 + $0x20] sm:$0xff]
    %v536 = vld [vmem:[#allocation7 + $0x28] sm:$0xff]
    %v537 = vld [vmem:[#allocation7 + $0x30] sm:$0xff]
    %v538 = vld [vmem:[#allocation7 + $0x38] sm:$0xff]
    %v539 = vld [vmem:[#allocation7 + $0x40] sm:$0xff]
    %v540 = vld [vmem:[#allocation7 + $0x48] sm:$0xff]
    %v541 = vld [vmem:[#allocation7 + $0x50] sm:$0xff]
    %v542 = vld [vmem:[#allocation7 + $0x58] sm:$0xff]
    %v543 = vld [vmem:[#allocation7 + $0x60] sm:$0xff]
    %v544 = vld [vmem:[#allocation7 + $0x68] sm:$0xff]
    %v545 = vld [vmem:[#allocation7 + $0x70] sm:$0xff]
    %v546 = vld [vmem:[#allocation7 + $0x78] sm:$0xff]
    %v547 = vld [vmem:[#allocation7 + $0x80] sm:$0xff]
    %v548 = vld [vmem:[#allocation7 + $0x88] sm:$0xff]
    %v549 = vld [vmem:[#allocation7 + $0x90] sm:$0xff]
    %v550 = vld [vmem:[#allocation7 + $0x98] sm:$0xff]
    %v551 = vld [vmem:[#allocation7 + $0xa0] sm:$0xff]
    %v552 = vld [vmem:[#allocation7 + $0xa8] sm:$0xff]
    %v553 = vld [vmem:[#allocation7 + $0xb0] sm:$0xff]
    %v554 = vld [vmem:[#allocation7 + $0xb8] sm:$0xff]
    %v555 = vld [vmem:[#allocation7 + $0xc0] sm:$0xff]
    %v556 = vld [vmem:[#allocation7 + $0xc8] sm:$0xff]
    %v557 = vld [vmem:[#allocation7 + $0xd0] sm:$0xff]
    %v558 = vld [vmem:[#allocation7 + $0xd8] sm:$0xff]
    %v559 = vld [vmem:[#allocation7 + $0xe0] sm:$0xff]
    %v560 = vld [vmem:[#allocation7 + $0xe8] sm:$0xff]
    %v561 = vld [vmem:[#allocation7 + $0xf0] sm:$0xff]
    %v562 = vld [vmem:[#allocation7 + $0xf8] sm:$0xff]
    %v563 = vld [vmem:[%s4] sm:$0xf]
    %v565 = vlaneseq
    %v566 = vshrl.u32 %v565, 7
    %v567 = vsub.s32 0, %v566
    %v568 = vrot.slane %v563, %v567
    %v569 = vlaneseq
    %v570 = vshrl.u32 %v569, 7
    %v571 = vsub.s32 1, %v570
    %v572 = vrot.slane %v563, %v571
    %v573 = vlaneseq
    %v574 = vshrl.u32 %v573, 7
    %v575 = vsub.s32 2, %v574
    %v576 = vrot.slane %v563, %v575
    %v577 = vlaneseq
    %v578 = vshrl.u32 %v577, 7
    %v579 = vsub.s32 3, %v578
    %v580 = vrot.slane %v563, %v579
    %v617 = vunpack.c.l.b16 %v531
    %v618 = vunpack.c.h.b16 %v531
    %v619 = vunpack.c.l.b16 %v532
    %v620 = vunpack.c.h.b16 %v532
    %v621 = vunpack.c.l.b16 %v533
    %v622 = vunpack.c.h.b16 %v533
    %v623 = vunpack.c.l.b16 %v534
    %v624 = vunpack.c.h.b16 %v534
    %v625 = vunpack.c.l.b16 %v535
    %v626 = vunpack.c.h.b16 %v535
    %v627 = vunpack.c.l.b16 %v536
    %v628 = vunpack.c.h.b16 %v536
    %v629 = vunpack.c.l.b16 %v537
    %v630 = vunpack.c.h.b16 %v537
    %v631 = vunpack.c.l.b16 %v538
    %v632 = vunpack.c.h.b16 %v538
    %v633 = vunpack.c.l.b16 %v539
    %v634 = vunpack.c.h.b16 %v539
    %v635 = vunpack.c.l.b16 %v540
    %v636 = vunpack.c.h.b16 %v540
    %v637 = vunpack.c.l.b16 %v541
    %v638 = vunpack.c.h.b16 %v541
    %v639 = vunpack.c.l.b16 %v542
    %v640 = vunpack.c.h.b16 %v542
    %v641 = vunpack.c.l.b16 %v543
    %v642 = vunpack.c.h.b16 %v543
    %v643 = vunpack.c.l.b16 %v544
    %v644 = vunpack.c.h.b16 %v544
    %v645 = vunpack.c.l.b16 %v545
    %v646 = vunpack.c.h.b16 %v545
    %v647 = vunpack.c.l.b16 %v546
    %v648 = vunpack.c.h.b16 %v546
    %v649 = vunpack.c.l.b16 %v547
    %v650 = vunpack.c.h.b16 %v547
    %v651 = vunpack.c.l.b16 %v548
    %v652 = vunpack.c.h.b16 %v548
    %v653 = vunpack.c.l.b16 %v549
    %v654 = vunpack.c.h.b16 %v549
    %v655 = vunpack.c.l.b16 %v550
    %v656 = vunpack.c.h.b16 %v550
    %v657 = vunpack.c.l.b16 %v551
    %v658 = vunpack.c.h.b16 %v551
    %v659 = vunpack.c.l.b16 %v552
    %v660 = vunpack.c.h.b16 %v552
    %v661 = vunpack.c.l.b16 %v553
    %v662 = vunpack.c.h.b16 %v553
    %v663 = vunpack.c.l.b16 %v554
    %v664 = vunpack.c.h.b16 %v554
    %v665 = vunpack.c.l.b16 %v555
    %v666 = vunpack.c.h.b16 %v555
    %v667 = vunpack.c.l.b16 %v556
    %v668 = vunpack.c.h.b16 %v556
    %v669 = vunpack.c.l.b16 %v557
    %v670 = vunpack.c.h.b16 %v557
    %v671 = vunpack.c.l.b16 %v558
    %v672 = vunpack.c.h.b16 %v558
    %v673 = vunpack.c.l.b16 %v559
    %v674 = vunpack.c.h.b16 %v559
    %v675 = vunpack.c.l.b16 %v560
    %v676 = vunpack.c.h.b16 %v560
    %v677 = vunpack.c.l.b16 %v561
    %v678 = vunpack.c.h.b16 %v561
    %v679 = vunpack.c.l.b16 %v562
    %v680 = vunpack.c.h.b16 %v562
    %v681 = vpack.c.b16 %v621, %v617
    %v682 = vpack.c.b16 %v622, %v618
    %v683 = vpack.c.b16 %v623, %v619
    %v684 = vpack.c.b16 %v624, %v620
    %v685 = vpack.c.b16 %v629, %v625
    %v686 = vpack.c.b16 %v630, %v626
    %v687 = vpack.c.b16 %v631, %v627
    %v688 = vpack.c.b16 %v632, %v628
    %v689 = vpack.c.b16 %v637, %v633
    %v690 = vpack.c.b16 %v638, %v634
    %v691 = vpack.c.b16 %v639, %v635
    %v692 = vpack.c.b16 %v640, %v636
    %v693 = vpack.c.b16 %v645, %v641
    %v694 = vpack.c.b16 %v646, %v642
    %v695 = vpack.c.b16 %v647, %v643
    %v696 = vpack.c.b16 %v648, %v644
    %v697 = vpack.c.b16 %v653, %v649
    %v698 = vpack.c.b16 %v654, %v650
    %v699 = vpack.c.b16 %v655, %v651
    %v700 = vpack.c.b16 %v656, %v652
    %v701 = vpack.c.b16 %v661, %v657
    %v702 = vpack.c.b16 %v662, %v658
    %v703 = vpack.c.b16 %v663, %v659
    %v704 = vpack.c.b16 %v664, %v660
    %v705 = vpack.c.b16 %v669, %v665
    %v706 = vpack.c.b16 %v670, %v666
    %v707 = vpack.c.b16 %v671, %v667
    %v708 = vpack.c.b16 %v672, %v668
    %v709 = vpack.c.b16 %v677, %v673
    %v710 = vpack.c.b16 %v678, %v674
    %v711 = vpack.c.b16 %v679, %v675
    %v712 = vpack.c.b16 %v680, %v676
    %745 = vmatprep.subr.bf16.mxu0 %v710
    %746 = vmatpush1.bf16.msra.mxu0 %v709
    %747 = vmatprep.subr.bf16.mxu0 %v706
    %748 = vmatpush1.bf16.msra.mxu0 %v705
    %749 = vmatprep.subr.bf16.mxu0 %v702
    %750 = vmatpush1.bf16.msra.mxu0 %v701
    %751 = vmatprep.subr.bf16.mxu0 %v698
    %752 = vmatpush1.bf16.msra.mxu0 %v697
    %753 = vmatprep.subr.bf16.mxu0 %v694
    %754 = vmatpush1.bf16.msra.mxu0 %v693
    %755 = vmatprep.subr.bf16.mxu0 %v690
    %756 = vmatpush1.bf16.msra.mxu0 %v689
    %757 = vmatprep.subr.bf16.mxu0 %v686
    %758 = vmatpush1.bf16.msra.mxu0 %v685
    %759 = vmatprep.subr.bf16.mxu0 %v682
    %760 = vmatpush1.bf16.msra.mxu0 %v681
    %761 = vmatprep.subr.bf16.mxu0 0
    %762 = vmatpush2.bf16.msra.mxu0 0
    %763 = vmatprep.subr.bf16.mxu0 0
    %764 = vmatpush2.bf16.msra.mxu0 0
    %765 = vmatprep.subr.bf16.mxu0 0
    %766 = vmatpush2.bf16.msra.mxu0 0
    %767 = vmatprep.subr.bf16.mxu0 0
    %768 = vmatpush2.bf16.msra.mxu0 0
    %769 = vmatprep.subr.bf16.mxu0 0
    %770 = vmatpush2.bf16.msra.mxu0 0
    %771 = vmatprep.subr.bf16.mxu0 0
    %772 = vmatpush2.bf16.msra.mxu0 0
    %773 = vmatprep.subr.bf16.mxu0 0
    %774 = vmatpush2.bf16.msra.mxu0 0
    %775 = vmatprep.subr.bf16.mxu0 0
    %776 = vmatpush2.bf16.msra.mxu0 0
    %777 = vmatprep.mubr.bf16.mxu0 0
    %778 = vmatmul.mubr.bf16.gmra.mxu0 %v185
    %v779 = vpop.f32.mrf.mxu0
    %v780 = vadd.f32 %v568, %v779
    %v781 = vpop.f32.mrf.mxu0
    %v782 = vadd.f32 %v572, %v781
    %v783 = vpop.f32.mrf.mxu0
    %v784 = vadd.f32 %v568, %v783
    %v785 = vpop.f32.mrf.mxu0
    %v786 = vadd.f32 %v572, %v785
    %787 = vmatprep.mubr.bf16.mxu0 0
    %788 = vmatmul.mubr.bf16.gmra.mxu0 %v186
    %v789 = vpop.f32.mrf.mxu0
    %v790 = vadd.f32 %v568, %v789
    %v791 = vpop.f32.mrf.mxu0
    %v792 = vadd.f32 %v572, %v791
    %v793 = vpop.f32.mrf.mxu0
    %v794 = vadd.f32 %v568, %v793
    %v795 = vpop.f32.mrf.mxu0
    %v796 = vadd.f32 %v572, %v795
    %797 = vmatprep.mubr.bf16.mxu0 0
    %798 = vmatmul.mubr.bf16.gmra.mxu0 %v187
    %v799 = vpop.f32.mrf.mxu0
    %v800 = vadd.f32 %v568, %v799
    %v801 = vpop.f32.mrf.mxu0
    %v802 = vadd.f32 %v572, %v801
    %v803 = vpop.f32.mrf.mxu0
    %v804 = vadd.f32 %v568, %v803
    %v805 = vpop.f32.mrf.mxu0
    %v806 = vadd.f32 %v572, %v805
    %807 = vmatprep.mubr.bf16.mxu0 0
    %808 = vmatmul.mubr.bf16.gmra.mxu0 %v188
    %v809 = vpop.f32.mrf.mxu0
    %v810 = vadd.f32 %v568, %v809
    %v811 = vpop.f32.mrf.mxu0
    %v812 = vadd.f32 %v572, %v811
    %v813 = vpop.f32.mrf.mxu0
    %v814 = vadd.f32 %v568, %v813
    %v815 = vpop.f32.mrf.mxu0
    %v816 = vadd.f32 %v572, %v815
    %817 = vdwg.mxu0
    %818 = vmatprep.subr.bf16.mxu0 %v712
    %819 = vmatpush1.bf16.msra.mxu0 %v711
    %820 = vmatprep.subr.bf16.mxu0 %v708
    %821 = vmatpush1.bf16.msra.mxu0 %v707
    %822 = vmatprep.subr.bf16.mxu0 %v704
    %823 = vmatpush1.bf16.msra.mxu0 %v703
    %824 = vmatprep.subr.bf16.mxu0 %v700
    %825 = vmatpush1.bf16.msra.mxu0 %v699
    %826 = vmatprep.subr.bf16.mxu0 %v696
    %827 = vmatpush1.bf16.msra.mxu0 %v695
    %828 = vmatprep.subr.bf16.mxu0 %v692
    %829 = vmatpush1.bf16.msra.mxu0 %v691
    %830 = vmatprep.subr.bf16.mxu0 %v688
    %831 = vmatpush1.bf16.msra.mxu0 %v687
    %832 = vmatprep.subr.bf16.mxu0 %v684
    %833 = vmatpush1.bf16.msra.mxu0 %v683
    %834 = vmatprep.subr.bf16.mxu0 0
    %835 = vmatpush2.bf16.msra.mxu0 0
    %836 = vmatprep.subr.bf16.mxu0 0
    %837 = vmatpush2.bf16.msra.mxu0 0
    %838 = vmatprep.subr.bf16.mxu0 0
    %839 = vmatpush2.bf16.msra.mxu0 0
    %840 = vmatprep.subr.bf16.mxu0 0
    %841 = vmatpush2.bf16.msra.mxu0 0
    %842 = vmatprep.subr.bf16.mxu0 0
    %843 = vmatpush2.bf16.msra.mxu0 0
    %844 = vmatprep.subr.bf16.mxu0 0
    %845 = vmatpush2.bf16.msra.mxu0 0
    %846 = vmatprep.subr.bf16.mxu0 0
    %847 = vmatpush2.bf16.msra.mxu0 0
    %848 = vmatprep.subr.bf16.mxu0 0
    %849 = vmatpush2.bf16.msra.mxu0 0
    %850 = vmatprep.mubr.bf16.mxu0 0
    %851 = vmatmul.mubr.bf16.gmra.mxu0 %v185
    %v852 = vpop.f32.mrf.mxu0
    %v853 = vadd.f32 %v576, %v852
    %v854 = vpop.f32.mrf.mxu0
    %v855 = vadd.f32 %v580, %v854
    %v856 = vpop.f32.mrf.mxu0
    %v857 = vadd.f32 %v576, %v856
    %v858 = vpop.f32.mrf.mxu0
    %v859 = vadd.f32 %v580, %v858
    %860 = vmatprep.mubr.bf16.mxu0 0
    %861 = vmatmul.mubr.bf16.gmra.mxu0 %v186
    %v862 = vpop.f32.mrf.mxu0
    %v863 = vadd.f32 %v576, %v862
    %v864 = vpop.f32.mrf.mxu0
    %v865 = vadd.f32 %v580, %v864
    %v866 = vpop.f32.mrf.mxu0
    %v867 = vadd.f32 %v576, %v866
    %v868 = vpop.f32.mrf.mxu0
    %v869 = vadd.f32 %v580, %v868
    %870 = vmatprep.mubr.bf16.mxu0 0
    %871 = vmatmul.mubr.bf16.gmra.mxu0 %v187
    %v872 = vpop.f32.mrf.mxu0
    %v873 = vadd.f32 %v576, %v872
    %v874 = vpop.f32.mrf.mxu0
    %v875 = vadd.f32 %v580, %v874
    %v876 = vpop.f32.mrf.mxu0
    %v877 = vadd.f32 %v576, %v876
    %v878 = vpop.f32.mrf.mxu0
    %v879 = vadd.f32 %v580, %v878
    %880 = vmatprep.mubr.bf16.mxu0 0
    %881 = vmatmul.mubr.bf16.gmra.mxu0 %v188
    %v882 = vpop.f32.mrf.mxu0
    %v883 = vadd.f32 %v576, %v882
    %v884 = vpop.f32.mrf.mxu0
    %v885 = vadd.f32 %v580, %v884
    %v886 = vpop.f32.mrf.mxu0
    %v887 = vadd.f32 %v576, %v886
    %v888 = vpop.f32.mrf.mxu0
    %v889 = vadd.f32 %v580, %v888
    %890 = vdwg.mxu0
    %891 = vst [vmem:[#allocation3] sm:$0xff] %v780
    %892 = vst [vmem:[#allocation3 + $0x8] sm:$0xff] %v782
    %893 = vst [vmem:[#allocation3 + $0x10] sm:$0xff] %v853
    %894 = vst [vmem:[#allocation3 + $0x18] sm:$0xff] %v855
    %895 = vst [vmem:[#allocation3 + $0x20] sm:$0xff] %v784
    %896 = vst [vmem:[#allocation3 + $0x28] sm:$0xff] %v786
    %897 = vst [vmem:[#allocation3 + $0x30] sm:$0xff] %v857
    %898 = vst [vmem:[#allocation3 + $0x38] sm:$0xff] %v859
    %899 = vst [vmem:[#allocation3 + $0x40] sm:$0xff] %v790
    %900 = vst [vmem:[#allocation3 + $0x48] sm:$0xff] %v792
    %901 = vst [vmem:[#allocation3 + $0x50] sm:$0xff] %v863
    %902 = vst [vmem:[#allocation3 + $0x58] sm:$0xff] %v865
    %903 = vst [vmem:[#allocation3 + $0x60] sm:$0xff] %v794
    %904 = vst [vmem:[#allocation3 + $0x68] sm:$0xff] %v796
    %905 = vst [vmem:[#allocation3 + $0x70] sm:$0xff] %v867
    %906 = vst [vmem:[#allocation3 + $0x78] sm:$0xff] %v869
    %907 = vst [vmem:[#allocation3 + $0x80] sm:$0xff] %v800
    %908 = vst [vmem:[#allocation3 + $0x88] sm:$0xff] %v802
    %909 = vst [vmem:[#allocation3 + $0x90] sm:$0xff] %v873
    %910 = vst [vmem:[#allocation3 + $0x98] sm:$0xff] %v875
    %911 = vst [vmem:[#allocation3 + $0xa0] sm:$0xff] %v804
    %912 = vst [vmem:[#allocation3 + $0xa8] sm:$0xff] %v806
    %913 = vst [vmem:[#allocation3 + $0xb0] sm:$0xff] %v877
    %914 = vst [vmem:[#allocation3 + $0xb8] sm:$0xff] %v879
    %915 = vst [vmem:[#allocation3 + $0xc0] sm:$0xff] %v810
    %916 = vst [vmem:[#allocation3 + $0xc8] sm:$0xff] %v812
    %917 = vst [vmem:[#allocation3 + $0xd0] sm:$0xff] %v883
    %918 = vst [vmem:[#allocation3 + $0xd8] sm:$0xff] %v885
    %919 = vst [vmem:[#allocation3 + $0xe0] sm:$0xff] %v814
    %920 = vst [vmem:[#allocation3 + $0xe8] sm:$0xff] %v816
    %921 = vst [vmem:[#allocation3 + $0xf0] sm:$0xff] %v887
    %922 = vst [vmem:[#allocation3 + $0xf8] sm:$0xff] %v889
    %s923 = smul.u32 0, 4
    %s924 = smul.addr %s923, 8
    %s925 = scalar_lea.vmem [#allocation2], %s924
    %v926 = vld [vmem:[%s925] sm:$0xff]
    %v927 = vld [vmem:[%s925 + $0x8] sm:$0xff]
    %v928 = vld [vmem:[%s925 + $0x10] sm:$0xff]
    %v929 = vld [vmem:[%s925 + $0x18] sm:$0xff]
    %v930 = vld [vmem:[#allocation9] sm:$0xff]
    %v931 = vld [vmem:[#allocation9 + $0x8] sm:$0xff]
    %v932 = vld [vmem:[#allocation9 + $0x10] sm:$0xff]
    %v933 = vld [vmem:[#allocation9 + $0x18] sm:$0xff]
    %v934 = vld [vmem:[#allocation9 + $0x20] sm:$0xff]
    %v935 = vld [vmem:[#allocation9 + $0x28] sm:$0xff]
    %v936 = vld [vmem:[#allocation9 + $0x30] sm:$0xff]
    %v937 = vld [vmem:[#allocation9 + $0x38] sm:$0xff]
    %v938 = vld [vmem:[#allocation9 + $0x40] sm:$0xff]
    %v939 = vld [vmem:[#allocation9 + $0x48] sm:$0xff]
    %v940 = vld [vmem:[#allocation9 + $0x50] sm:$0xff]
    %v941 = vld [vmem:[#allocation9 + $0x58] sm:$0xff]
    %v942 = vld [vmem:[#allocation9 + $0x60] sm:$0xff]
    %v943 = vld [vmem:[#allocation9 + $0x68] sm:$0xff]
    %v944 = vld [vmem:[#allocation9 + $0x70] sm:$0xff]
    %v945 = vld [vmem:[#allocation9 + $0x78] sm:$0xff]
    %v946 = vld [vmem:[#allocation9 + $0x80] sm:$0xff]
    %v947 = vld [vmem:[#allocation9 + $0x88] sm:$0xff]
    %v948 = vld [vmem:[#allocation9 + $0x90] sm:$0xff]
    %v949 = vld [vmem:[#allocation9 + $0x98] sm:$0xff]
    %v950 = vld [vmem:[#allocation9 + $0xa0] sm:$0xff]
    %v951 = vld [vmem:[#allocation9 + $0xa8] sm:$0xff]
    %v952 = vld [vmem:[#allocation9 + $0xb0] sm:$0xff]
    %v953 = vld [vmem:[#allocation9 + $0xb8] sm:$0xff]
    %v954 = vld [vmem:[#allocation9 + $0xc0] sm:$0xff]
    %v955 = vld [vmem:[#allocation9 + $0xc8] sm:$0xff]
    %v956 = vld [vmem:[#allocation9 + $0xd0] sm:$0xff]
    %v957 = vld [vmem:[#allocation9 + $0xd8] sm:$0xff]
    %v958 = vld [vmem:[#allocation9 + $0xe0] sm:$0xff]
    %v959 = vld [vmem:[#allocation9 + $0xe8] sm:$0xff]
    %v960 = vld [vmem:[#allocation9 + $0xf0] sm:$0xff]
    %v961 = vld [vmem:[#allocation9 + $0xf8] sm:$0xff]
    %v994 = vunpack.c.l.b16 %v930
    %v995 = vunpack.c.h.b16 %v930
    %v996 = vunpack.c.l.b16 %v931
    %v997 = vunpack.c.h.b16 %v931
    %v998 = vunpack.c.l.b16 %v932
    %v999 = vunpack.c.h.b16 %v932
    %v1000 = vunpack.c.l.b16 %v933
    %v1001 = vunpack.c.h.b16 %v933
    %v1002 = vunpack.c.l.b16 %v934
    %v1003 = vunpack.c.h.b16 %v934
    %v1004 = vunpack.c.l.b16 %v935
    %v1005 = vunpack.c.h.b16 %v935
    %v1006 = vunpack.c.l.b16 %v936
    %v1007 = vunpack.c.h.b16 %v936
    %v1008 = vunpack.c.l.b16 %v937
    %v1009 = vunpack.c.h.b16 %v937
    %v1010 = vunpack.c.l.b16 %v938
    %v1011 = vunpack.c.h.b16 %v938
    %v1012 = vunpack.c.l.b16 %v939
    %v1013 = vunpack.c.h.b16 %v939
    %v1014 = vunpack.c.l.b16 %v940
    %v1015 = vunpack.c.h.b16 %v940
    %v1016 = vunpack.c.l.b16 %v941
    %v1017 = vunpack.c.h.b16 %v941
    %v1018 = vunpack.c.l.b16 %v942
    %v1019 = vunpack.c.h.b16 %v942
    %v1020 = vunpack.c.l.b16 %v943
    %v1021 = vunpack.c.h.b16 %v943
    %v1022 = vunpack.c.l.b16 %v944
    %v1023 = vunpack.c.h.b16 %v944
    %v1024 = vunpack.c.l.b16 %v945
    %v1025 = vunpack.c.h.b16 %v945
    %v1026 = vunpack.c.l.b16 %v946
    %v1027 = vunpack.c.h.b16 %v946
    %v1028 = vunpack.c.l.b16 %v947
    %v1029 = vunpack.c.h.b16 %v947
    %v1030 = vunpack.c.l.b16 %v948
    %v1031 = vunpack.c.h.b16 %v948
    %v1032 = vunpack.c.l.b16 %v949
    %v1033 = vunpack.c.h.b16 %v949
    %v1034 = vunpack.c.l.b16 %v950
    %v1035 = vunpack.c.h.b16 %v950
    %v1036 = vunpack.c.l.b16 %v951
    %v1037 = vunpack.c.h.b16 %v951
    %v1038 = vunpack.c.l.b16 %v952
    %v1039 = vunpack.c.h.b16 %v952
    %v1040 = vunpack.c.l.b16 %v953
    %v1041 = vunpack.c.h.b16 %v953
    %v1042 = vunpack.c.l.b16 %v954
    %v1043 = vunpack.c.h.b16 %v954
    %v1044 = vunpack.c.l.b16 %v955
    %v1045 = vunpack.c.h.b16 %v955
    %v1046 = vunpack.c.l.b16 %v956
    %v1047 = vunpack.c.h.b16 %v956
    %v1048 = vunpack.c.l.b16 %v957
    %v1049 = vunpack.c.h.b16 %v957
    %v1050 = vunpack.c.l.b16 %v958
    %v1051 = vunpack.c.h.b16 %v958
    %v1052 = vunpack.c.l.b16 %v959
    %v1053 = vunpack.c.h.b16 %v959
    %v1054 = vunpack.c.l.b16 %v960
    %v1055 = vunpack.c.h.b16 %v960
    %v1056 = vunpack.c.l.b16 %v961
    %v1057 = vunpack.c.h.b16 %v961
    %v1058 = vpack.c.b16 %v998, %v994
    %v1059 = vpack.c.b16 %v999, %v995
    %v1060 = vpack.c.b16 %v1000, %v996
    %v1061 = vpack.c.b16 %v1001, %v997
    %v1062 = vpack.c.b16 %v1006, %v1002
    %v1063 = vpack.c.b16 %v1007, %v1003
    %v1064 = vpack.c.b16 %v1008, %v1004
    %v1065 = vpack.c.b16 %v1009, %v1005
    %v1066 = vpack.c.b16 %v1014, %v1010
    %v1067 = vpack.c.b16 %v1015, %v1011
    %v1068 = vpack.c.b16 %v1016, %v1012
    %v1069 = vpack.c.b16 %v1017, %v1013
    %v1070 = vpack.c.b16 %v1022, %v1018
    %v1071 = vpack.c.b16 %v1023, %v1019
    %v1072 = vpack.c.b16 %v1024, %v1020
    %v1073 = vpack.c.b16 %v1025, %v1021
    %v1074 = vpack.c.b16 %v1030, %v1026
    %v1075 = vpack.c.b16 %v1031, %v1027
    %v1076 = vpack.c.b16 %v1032, %v1028
    %v1077 = vpack.c.b16 %v1033, %v1029
    %v1078 = vpack.c.b16 %v1038, %v1034
    %v1079 = vpack.c.b16 %v1039, %v1035
    %v1080 = vpack.c.b16 %v1040, %v1036
    %v1081 = vpack.c.b16 %v1041, %v1037
    %v1082 = vpack.c.b16 %v1046, %v1042
    %v1083 = vpack.c.b16 %v1047, %v1043
    %v1084 = vpack.c.b16 %v1048, %v1044
    %v1085 = vpack.c.b16 %v1049, %v1045
    %v1086 = vpack.c.b16 %v1054, %v1050
    %v1087 = vpack.c.b16 %v1055, %v1051
    %v1088 = vpack.c.b16 %v1056, %v1052
    %v1089 = vpack.c.b16 %v1057, %v1053
    %1122 = vmatprep.subr.bf16.mxu0 %v1087
    %1123 = vmatpush1.bf16.msra.mxu0 %v1086
    %1124 = vmatprep.subr.bf16.mxu0 %v1083
    %1125 = vmatpush1.bf16.msra.mxu0 %v1082
    %1126 = vmatprep.subr.bf16.mxu0 %v1079
    %1127 = vmatpush1.bf16.msra.mxu0 %v1078
    %1128 = vmatprep.subr.bf16.mxu0 %v1075
    %1129 = vmatpush1.bf16.msra.mxu0 %v1074
    %1130 = vmatprep.subr.bf16.mxu0 %v1071
    %1131 = vmatpush1.bf16.msra.mxu0 %v1070
    %1132 = vmatprep.subr.bf16.mxu0 %v1067
    %1133 = vmatpush1.bf16.msra.mxu0 %v1066
    %1134 = vmatprep.subr.bf16.mxu0 %v1063
    %1135 = vmatpush1.bf16.msra.mxu0 %v1062
    %1136 = vmatprep.subr.bf16.mxu0 %v1059
    %1137 = vmatpush1.bf16.msra.mxu0 %v1058
    %1138 = vmatprep.subr.bf16.mxu0 0
    %1139 = vmatpush2.bf16.msra.mxu0 0
    %1140 = vmatprep.subr.bf16.mxu0 0
    %1141 = vmatpush2.bf16.msra.mxu0 0
    %1142 = vmatprep.subr.bf16.mxu0 0
    %1143 = vmatpush2.bf16.msra.mxu0 0
    %1144 = vmatprep.subr.bf16.mxu0 0
    %1145 = vmatpush2.bf16.msra.mxu0 0
    %1146 = vmatprep.subr.bf16.mxu0 0
    %1147 = vmatpush2.bf16.msra.mxu0 0
    %1148 = vmatprep.subr.bf16.mxu0 0
    %1149 = vmatpush2.bf16.msra.mxu0 0
    %1150 = vmatprep.subr.bf16.mxu0 0
    %1151 = vmatpush2.bf16.msra.mxu0 0
    %1152 = vmatprep.subr.bf16.mxu0 0
    %1153 = vmatpush2.bf16.msra.mxu0 0
    %1154 = vmatprep.mubr.bf16.mxu0 0
    %1155 = vmatmul.mubr.bf16.gmra.mxu0 0
    %v1156 = vpop.f32.mrf.mxu0
    %v1157 = vadd.f32 0.0, %v1156
    %v1158 = vpop.f32.mrf.mxu0
    %v1159 = vadd.f32 0.0, %v1158
    %v1160 = vpop.f32.mrf.mxu0
    %v1161 = vpop.f32.mrf.mxu0
    %1162 = vdwg.mxu0
    %1163 = vmatprep.subr.bf16.mxu0 %v1089
    %1164 = vmatpush1.bf16.msra.mxu0 %v1088
    %1165 = vmatprep.subr.bf16.mxu0 %v1085
    %1166 = vmatpush1.bf16.msra.mxu0 %v1084
    %1167 = vmatprep.subr.bf16.mxu0 %v1081
    %1168 = vmatpush1.bf16.msra.mxu0 %v1080
    %1169 = vmatprep.subr.bf16.mxu0 %v1077
    %1170 = vmatpush1.bf16.msra.mxu0 %v1076
    %1171 = vmatprep.subr.bf16.mxu0 %v1073
    %1172 = vmatpush1.bf16.msra.mxu0 %v1072
    %1173 = vmatprep.subr.bf16.mxu0 %v1069
    %1174 = vmatpush1.bf16.msra.mxu0 %v1068
    %1175 = vmatprep.subr.bf16.mxu0 %v1065
    %1176 = vmatpush1.bf16.msra.mxu0 %v1064
    %1177 = vmatprep.subr.bf16.mxu0 %v1061
    %1178 = vmatpush1.bf16.msra.mxu0 %v1060
    %1179 = vmatprep.subr.bf16.mxu0 0
    %1180 = vmatpush2.bf16.msra.mxu0 0
    %1181 = vmatprep.subr.bf16.mxu0 0
    %1182 = vmatpush2.bf16.msra.mxu0 0
    %1183 = vmatprep.subr.bf16.mxu0 0
    %1184 = vmatpush2.bf16.msra.mxu0 0
    %1185 = vmatprep.subr.bf16.mxu0 0
    %1186 = vmatpush2.bf16.msra.mxu0 0
    %1187 = vmatprep.subr.bf16.mxu0 0
    %1188 = vmatpush2.bf16.msra.mxu0 0
    %1189 = vmatprep.subr.bf16.mxu0 0
    %1190 = vmatpush2.bf16.msra.mxu0 0
    %1191 = vmatprep.subr.bf16.mxu0 0
    %1192 = vmatpush2.bf16.msra.mxu0 0
    %1193 = vmatprep.subr.bf16.mxu0 0
    %1194 = vmatpush2.bf16.msra.mxu0 0
    %1195 = vmatprep.mubr.bf16.mxu0 0
    %1196 = vmatmul.mubr.bf16.gmra.mxu0 0
    %v1197 = vpop.f32.mrf.mxu0
    %v1198 = vadd.f32 0.0, %v1197
    %v1199 = vpop.f32.mrf.mxu0
    %v1200 = vadd.f32 0.0, %v1199
    %v1201 = vpop.f32.mrf.mxu0
    %v1202 = vpop.f32.mrf.mxu0
    %1203 = vdwg.mxu0
    %v1204 = vadd.f32 %v926, %v1157
    %v1205 = vadd.f32 %v927, %v1159
    %v1206 = vadd.f32 %v928, %v1198
    %v1207 = vadd.f32 %v929, %v1200
    %s1208 = smul.u32 7, 4
    %s1209 = smul.addr %s1208, 8
    %s1210 = scalar_lea.vmem [#allocation3], %s1209
    %v1211 = vld [vmem:[%s1210] sm:$0xff]
    %v1212 = vld [vmem:[%s1210 + $0x8] sm:$0xff]
    %v1213 = vld [vmem:[%s1210 + $0x10] sm:$0xff]
    %v1214 = vld [vmem:[%s1210 + $0x18] sm:$0xff]
    %v1215 = vld [vmem:[#allocation10] sm:$0xff]
    %v1216 = vld [vmem:[#allocation10 + $0x8] sm:$0xff]
    %v1217 = vld [vmem:[#allocation10 + $0x10] sm:$0xff]
    %v1218 = vld [vmem:[#allocation10 + $0x18] sm:$0xff]
    %v1219 = vld [vmem:[#allocation10 + $0x20] sm:$0xff]
    %v1220 = vld [vmem:[#allocation10 + $0x28] sm:$0xff]
    %v1221 = vld [vmem:[#allocation10 + $0x30] sm:$0xff]
    %v1222 = vld [vmem:[#allocation10 + $0x38] sm:$0xff]
    %v1223 = vld [vmem:[#allocation10 + $0x40] sm:$0xff]
    %v1224 = vld [vmem:[#allocation10 + $0x48] sm:$0xff]
    %v1225 = vld [vmem:[#allocation10 + $0x50] sm:$0xff]
    %v1226 = vld [vmem:[#allocation10 + $0x58] sm:$0xff]
    %v1227 = vld [vmem:[#allocation10 + $0x60] sm:$0xff]
    %v1228 = vld [vmem:[#allocation10 + $0x68] sm:$0xff]
    %v1229 = vld [vmem:[#allocation10 + $0x70] sm:$0xff]
    %v1230 = vld [vmem:[#allocation10 + $0x78] sm:$0xff]
    %v1231 = vld [vmem:[#allocation10 + $0x80] sm:$0xff]
    %v1232 = vld [vmem:[#allocation10 + $0x88] sm:$0xff]
    %v1233 = vld [vmem:[#allocation10 + $0x90] sm:$0xff]
    %v1234 = vld [vmem:[#allocation10 + $0x98] sm:$0xff]
    %v1235 = vld [vmem:[#allocation10 + $0xa0] sm:$0xff]
    %v1236 = vld [vmem:[#allocation10 + $0xa8] sm:$0xff]
    %v1237 = vld [vmem:[#allocation10 + $0xb0] sm:$0xff]
    %v1238 = vld [vmem:[#allocation10 + $0xb8] sm:$0xff]
    %v1239 = vld [vmem:[#allocation10 + $0xc0] sm:$0xff]
    %v1240 = vld [vmem:[#allocation10 + $0xc8] sm:$0xff]
    %v1241 = vld [vmem:[#allocation10 + $0xd0] sm:$0xff]
    %v1242 = vld [vmem:[#allocation10 + $0xd8] sm:$0xff]
    %v1243 = vld [vmem:[#allocation10 + $0xe0] sm:$0xff]
    %v1244 = vld [vmem:[#allocation10 + $0xe8] sm:$0xff]
    %v1245 = vld [vmem:[#allocation10 + $0xf0] sm:$0xff]
    %v1246 = vld [vmem:[#allocation10 + $0xf8] sm:$0xff]
    %v1279 = vunpack.c.l.b16 %v1215
    %v1280 = vunpack.c.h.b16 %v1215
    %v1281 = vunpack.c.l.b16 %v1216
    %v1282 = vunpack.c.h.b16 %v1216
    %v1283 = vunpack.c.l.b16 %v1217
    %v1284 = vunpack.c.h.b16 %v1217
    %v1285 = vunpack.c.l.b16 %v1218
    %v1286 = vunpack.c.h.b16 %v1218
    %v1287 = vunpack.c.l.b16 %v1219
    %v1288 = vunpack.c.h.b16 %v1219
    %v1289 = vunpack.c.l.b16 %v1220
    %v1290 = vunpack.c.h.b16 %v1220
    %v1291 = vunpack.c.l.b16 %v1221
    %v1292 = vunpack.c.h.b16 %v1221
    %v1293 = vunpack.c.l.b16 %v1222
    %v1294 = vunpack.c.h.b16 %v1222
    %v1295 = vunpack.c.l.b16 %v1223
    %v1296 = vunpack.c.h.b16 %v1223
    %v1297 = vunpack.c.l.b16 %v1224
    %v1298 = vunpack.c.h.b16 %v1224
    %v1299 = vunpack.c.l.b16 %v1225
    %v1300 = vunpack.c.h.b16 %v1225
    %v1301 = vunpack.c.l.b16 %v1226
    %v1302 = vunpack.c.h.b16 %v1226
    %v1303 = vunpack.c.l.b16 %v1227
    %v1304 = vunpack.c.h.b16 %v1227
    %v1305 = vunpack.c.l.b16 %v1228
    %v1306 = vunpack.c.h.b16 %v1228
    %v1307 = vunpack.c.l.b16 %v1229
    %v1308 = vunpack.c.h.b16 %v1229
    %v1309 = vunpack.c.l.b16 %v1230
    %v1310 = vunpack.c.h.b16 %v1230
    %v1311 = vunpack.c.l.b16 %v1231
    %v1312 = vunpack.c.h.b16 %v1231
    %v1313 = vunpack.c.l.b16 %v1232
    %v1314 = vunpack.c.h.b16 %v1232
    %v1315 = vunpack.c.l.b16 %v1233
    %v1316 = vunpack.c.h.b16 %v1233
    %v1317 = vunpack.c.l.b16 %v1234
    %v1318 = vunpack.c.h.b16 %v1234
    %v1319 = vunpack.c.l.b16 %v1235
    %v1320 = vunpack.c.h.b16 %v1235
    %v1321 = vunpack.c.l.b16 %v1236
    %v1322 = vunpack.c.h.b16 %v1236
    %v1323 = vunpack.c.l.b16 %v1237
    %v1324 = vunpack.c.h.b16 %v1237
    %v1325 = vunpack.c.l.b16 %v1238
    %v1326 = vunpack.c.h.b16 %v1238
    %v1327 = vunpack.c.l.b16 %v1239
    %v1328 = vunpack.c.h.b16 %v1239
    %v1329 = vunpack.c.l.b16 %v1240
    %v1330 = vunpack.c.h.b16 %v1240
    %v1331 = vunpack.c.l.b16 %v1241
    %v1332 = vunpack.c.h.b16 %v1241
    %v1333 = vunpack.c.l.b16 %v1242
    %v1334 = vunpack.c.h.b16 %v1242
    %v1335 = vunpack.c.l.b16 %v1243
    %v1336 = vunpack.c.h.b16 %v1243
    %v1337 = vunpack.c.l.b16 %v1244
    %v1338 = vunpack.c.h.b16 %v1244
    %v1339 = vunpack.c.l.b16 %v1245
    %v1340 = vunpack.c.h.b16 %v1245
    %v1341 = vunpack.c.l.b16 %v1246
    %v1342 = vunpack.c.h.b16 %v1246
    %v1343 = vpack.c.b16 %v1283, %v1279
    %v1344 = vpack.c.b16 %v1284, %v1280
    %v1345 = vpack.c.b16 %v1285, %v1281
    %v1346 = vpack.c.b16 %v1286, %v1282
    %v1347 = vpack.c.b16 %v1291, %v1287
    %v1348 = vpack.c.b16 %v1292, %v1288
    %v1349 = vpack.c.b16 %v1293, %v1289
    %v1350 = vpack.c.b16 %v1294, %v1290
    %v1351 = vpack.c.b16 %v1299, %v1295
    %v1352 = vpack.c.b16 %v1300, %v1296
    %v1353 = vpack.c.b16 %v1301, %v1297
    %v1354 = vpack.c.b16 %v1302, %v1298
    %v1355 = vpack.c.b16 %v1307, %v1303
    %v1356 = vpack.c.b16 %v1308, %v1304
    %v1357 = vpack.c.b16 %v1309, %v1305
    %v1358 = vpack.c.b16 %v1310, %v1306
    %v1359 = vpack.c.b16 %v1315, %v1311
    %v1360 = vpack.c.b16 %v1316, %v1312
    %v1361 = vpack.c.b16 %v1317, %v1313
    %v1362 = vpack.c.b16 %v1318, %v1314
    %v1363 = vpack.c.b16 %v1323, %v1319
    %v1364 = vpack.c.b16 %v1324, %v1320
    %v1365 = vpack.c.b16 %v1325, %v1321
    %v1366 = vpack.c.b16 %v1326, %v1322
    %v1367 = vpack.c.b16 %v1331, %v1327
    %v1368 = vpack.c.b16 %v1332, %v1328
    %v1369 = vpack.c.b16 %v1333, %v1329
    %v1370 = vpack.c.b16 %v1334, %v1330
    %v1371 = vpack.c.b16 %v1339, %v1335
    %v1372 = vpack.c.b16 %v1340, %v1336
    %v1373 = vpack.c.b16 %v1341, %v1337
    %v1374 = vpack.c.b16 %v1342, %v1338
    %1407 = vmatprep.subr.bf16.mxu0 %v1372
    %1408 = vmatpush1.bf16.msra.mxu0 %v1371
    %1409 = vmatprep.subr.bf16.mxu0 %v1368
    %1410 = vmatpush1.bf16.msra.mxu0 %v1367
    %1411 = vmatprep.subr.bf16.mxu0 %v1364
    %1412 = vmatpush1.bf16.msra.mxu0 %v1363
    %1413 = vmatprep.subr.bf16.mxu0 %v1360
    %1414 = vmatpush1.bf16.msra.mxu0 %v1359
    %1415 = vmatprep.subr.bf16.mxu0 %v1356
    %1416 = vmatpush1.bf16.msra.mxu0 %v1355
    %1417 = vmatprep.subr.bf16.mxu0 %v1352
    %1418 = vmatpush1.bf16.msra.mxu0 %v1351
    %1419 = vmatprep.subr.bf16.mxu0 %v1348
    %1420 = vmatpush1.bf16.msra.mxu0 %v1347
    %1421 = vmatprep.subr.bf16.mxu0 %v1344
    %1422 = vmatpush1.bf16.msra.mxu0 %v1343
    %1423 = vmatprep.subr.bf16.mxu0 0
    %1424 = vmatpush2.bf16.msra.mxu0 0
    %1425 = vmatprep.subr.bf16.mxu0 0
    %1426 = vmatpush2.bf16.msra.mxu0 0
    %1427 = vmatprep.subr.bf16.mxu0 0
    %1428 = vmatpush2.bf16.msra.mxu0 0
    %1429 = vmatprep.subr.bf16.mxu0 0
    %1430 = vmatpush2.bf16.msra.mxu0 0
    %1431 = vmatprep.subr.bf16.mxu0 0
    %1432 = vmatpush2.bf16.msra.mxu0 0
    %1433 = vmatprep.subr.bf16.mxu0 0
    %1434 = vmatpush2.bf16.msra.mxu0 0
    %1435 = vmatprep.subr.bf16.mxu0 0
    %1436 = vmatpush2.bf16.msra.mxu0 0
    %1437 = vmatprep.subr.bf16.mxu0 0
    %1438 = vmatpush2.bf16.msra.mxu0 0
    %1439 = vmatprep.mubr.bf16.mxu0 0
    %1440 = vmatmul.mubr.bf16.gmra.mxu0 0
    %v1441 = vpop.f32.mrf.mxu0
    %v1442 = vadd.f32 0.0, %v1441
    %v1443 = vpop.f32.mrf.mxu0
    %v1444 = vadd.f32 0.0, %v1443
    %v1445 = vpop.f32.mrf.mxu0
    %v1446 = vpop.f32.mrf.mxu0
    %1447 = vdwg.mxu0
    %1448 = vmatprep.subr.bf16.mxu0 %v1374
    %1449 = vmatpush1.bf16.msra.mxu0 %v1373
    %1450 = vmatprep.subr.bf16.mxu0 %v1370
    %1451 = vmatpush1.bf16.msra.mxu0 %v1369
    %1452 = vmatprep.subr.bf16.mxu0 %v1366
    %1453 = vmatpush1.bf16.msra.mxu0 %v1365
    %1454 = vmatprep.subr.bf16.mxu0 %v1362
    %1455 = vmatpush1.bf16.msra.mxu0 %v1361
    %1456 = vmatprep.subr.bf16.mxu0 %v1358
    %1457 = vmatpush1.bf16.msra.mxu0 %v1357
    %1458 = vmatprep.subr.bf16.mxu0 %v1354
    %1459 = vmatpush1.bf16.msra.mxu0 %v1353
    %1460 = vmatprep.subr.bf16.mxu0 %v1350
    %1461 = vmatpush1.bf16.msra.mxu0 %v1349
    %1462 = vmatprep.subr.bf16.mxu0 %v1346
    %1463 = vmatpush1.bf16.msra.mxu0 %v1345
    %1464 = vmatprep.subr.bf16.mxu0 0
    %1465 = vmatpush2.bf16.msra.mxu0 0
    %1466 = vmatprep.subr.bf16.mxu0 0
    %1467 = vmatpush2.bf16.msra.mxu0 0
    %1468 = vmatprep.subr.bf16.mxu0 0
    %1469 = vmatpush2.bf16.msra.mxu0 0
    %1470 = vmatprep.subr.bf16.mxu0 0
    %1471 = vmatpush2.bf16.msra.mxu0 0
    %1472 = vmatprep.subr.bf16.mxu0 0
    %1473 = vmatpush2.bf16.msra.mxu0 0
    %1474 = vmatprep.subr.bf16.mxu0 0
    %1475 = vmatpush2.bf16.msra.mxu0 0
    %1476 = vmatprep.subr.bf16.mxu0 0
    %1477 = vmatpush2.bf16.msra.mxu0 0
    %1478 = vmatprep.subr.bf16.mxu0 0
    %1479 = vmatpush2.bf16.msra.mxu0 0
    %1480 = vmatprep.mubr.bf16.mxu0 0
    %1481 = vmatmul.mubr.bf16.gmra.mxu0 0
    %v1482 = vpop.f32.mrf.mxu0
    %v1483 = vadd.f32 0.0, %v1482
    %v1484 = vpop.f32.mrf.mxu0
    %v1485 = vadd.f32 0.0, %v1484
    %v1486 = vpop.f32.mrf.mxu0
    %v1487 = vpop.f32.mrf.mxu0
    %1488 = vdwg.mxu0
    %v1489 = vadd.f32 %v1211, %v1442
    %v1490 = vadd.f32 %v1212, %v1444
    %v1491 = vadd.f32 %v1213, %v1483
    %v1492 = vadd.f32 %v1214, %v1485
    %v1493 = vxor.u32 %v1204, 2147483648
    %v1494 = vmul.f32 %v1493, 1.442695
    %v1495 = vpow.pop %v1494
    %v1496 = vadd.f32 %v1495, 1.0
    %v1497 = vrcp.pop %v1496
    %v1498 = vmul.f32 1.0, %v1497
    %v1499 = vxor.u32 %v1205, 2147483648
    %v1500 = vmul.f32 %v1499, 1.442695
    %v1501 = vpow.pop %v1500
    %v1502 = vadd.f32 %v1501, 1.0
    %v1503 = vrcp.pop %v1502
    %v1504 = vmul.f32 1.0, %v1503
    %v1505 = vtanh.pop %v1206
    %v1506 = vxor.u32 %v1207, 2147483648
    %v1507 = vmul.f32 %v1506, 1.442695
    %v1508 = vpow.pop %v1507
    %v1509 = vadd.f32 %v1508, 1.0
    %v1510 = vrcp.pop %v1509
    %v1511 = vmul.f32 1.0, %v1510
    %v1512 = vmul.f32 %v1504, 0.0
    %v1513 = vmul.f32 %v1498, %v1505
    %v1514 = vadd.f32 %v1512, %v1513
    %v1515 = vtanh.pop %v1514
    %v1516 = vmul.f32 %v1511, %v1515
    %v1517 = vxor.u32 %v1489, 2147483648
    %v1518 = vmul.f32 %v1517, 1.442695
    %v1519 = vpow.pop %v1518
    %v1520 = vadd.f32 %v1519, 1.0
    %v1521 = vrcp.pop %v1520
    %v1522 = vmul.f32 1.0, %v1521
    %v1523 = vxor.u32 %v1490, 2147483648
    %v1524 = vmul.f32 %v1523, 1.442695
    %v1525 = vpow.pop %v1524
    %v1526 = vadd.f32 %v1525, 1.0
    %v1527 = vrcp.pop %v1526
    %v1528 = vmul.f32 1.0, %v1527
    %v1529 = vtanh.pop %v1491
    %v1530 = vxor.u32 %v1492, 2147483648
    %v1531 = vmul.f32 %v1530, 1.442695
    %v1532 = vpow.pop %v1531
    %v1533 = vadd.f32 %v1532, 1.0
    %v1534 = vrcp.pop %v1533
    %v1535 = vmul.f32 1.0, %v1534
    %v1536 = vmul.f32 %v1528, 0.0
    %v1537 = vmul.f32 %v1522, %v1529
    %v1538 = vadd.f32 %v1536, %v1537
    %v1539 = vtanh.pop %v1538
    %v1540 = vmul.f32 %v1535, %v1539
    %s1541 = smul.u32 0, 2
    %s1542 = smul.addr %s1541, 8
    %s1543 = scalar_lea.vmem [#allocation4], %s1542
    %1544 = vst [vmem:[%s1543] sm:$0xff] %v1516
    %s1545 = smul.u32 7, 2
    %s1546 = smul.addr %s1545, 8
    %s1547 = scalar_lea.vmem [#allocation4], %s1546
    %1548 = vst [vmem:[%s1547 + $0x8] sm:$0xff] %v1540
    %s1549 = smul.u32 1, 4
    %s1550 = smul.addr %s1549, 8
    %s1551 = scalar_lea.vmem [#allocation2], %s1550
    %v1552 = vld [vmem:[%s1551] sm:$0xff]
    %v1553 = vld [vmem:[%s1551 + $0x8] sm:$0xff]
    %v1554 = vld [vmem:[%s1551 + $0x10] sm:$0xff]
    %v1555 = vld [vmem:[%s1551 + $0x18] sm:$0xff]
    %v1556 = vpack.c.bf16 %v1516, %v1516
    %v1557 = vld [vmem:[#allocation9] sm:$0xff]
    %v1558 = vld [vmem:[#allocation9 + $0x8] sm:$0xff]
    %v1559 = vld [vmem:[#allocation9 + $0x10] sm:$0xff]
    %v1560 = vld [vmem:[#allocation9 + $0x18] sm:$0xff]
    %v1561 = vld [vmem:[#allocation9 + $0x20] sm:$0xff]
    %v1562 = vld [vmem:[#allocation9 + $0x28] sm:$0xff]
    %v1563 = vld [vmem:[#allocation9 + $0x30] sm:$0xff]
    %v1564 = vld [vmem:[#allocation9 + $0x38] sm:$0xff]
    %v1565 = vld [vmem:[#allocation9 + $0x40] sm:$0xff]
    %v1566 = vld [vmem:[#allocation9 + $0x48] sm:$0xff]
    %v1567 = vld [vmem:[#allocation9 + $0x50] sm:$0xff]
    %v1568 = vld [vmem:[#allocation9 + $0x58] sm:$0xff]
    %v1569 = vld [vmem:[#allocation9 + $0x60] sm:$0xff]
    %v1570 = vld [vmem:[#allocation9 + $0x68] sm:$0xff]
    %v1571 = vld [vmem:[#allocation9 + $0x70] sm:$0xff]
    %v1572 = vld [vmem:[#allocation9 + $0x78] sm:$0xff]
    %v1573 = vld [vmem:[#allocation9 + $0x80] sm:$0xff]
    %v1574 = vld [vmem:[#allocation9 + $0x88] sm:$0xff]
    %v1575 = vld [vmem:[#allocation9 + $0x90] sm:$0xff]
    %v1576 = vld [vmem:[#allocation9 + $0x98] sm:$0xff]
    %v1577 = vld [vmem:[#allocation9 + $0xa0] sm:$0xff]
    %v1578 = vld [vmem:[#allocation9 + $0xa8] sm:$0xff]
    %v1579 = vld [vmem:[#allocation9 + $0xb0] sm:$0xff]
    %v1580 = vld [vmem:[#allocation9 + $0xb8] sm:$0xff]
    %v1581 = vld [vmem:[#allocation9 + $0xc0] sm:$0xff]
    %v1582 = vld [vmem:[#allocation9 + $0xc8] sm:$0xff]
    %v1583 = vld [vmem:[#allocation9 + $0xd0] sm:$0xff]
    %v1584 = vld [vmem:[#allocation9 + $0xd8] sm:$0xff]
    %v1585 = vld [vmem:[#allocation9 + $0xe0] sm:$0xff]
    %v1586 = vld [vmem:[#allocation9 + $0xe8] sm:$0xff]
    %v1587 = vld [vmem:[#allocation9 + $0xf0] sm:$0xff]
    %v1588 = vld [vmem:[#allocation9 + $0xf8] sm:$0xff]
    %v1621 = vunpack.c.l.b16 %v1557
    %v1622 = vunpack.c.h.b16 %v1557
    %v1623 = vunpack.c.l.b16 %v1558
    %v1624 = vunpack.c.h.b16 %v1558
    %v1625 = vunpack.c.l.b16 %v1559
    %v1626 = vunpack.c.h.b16 %v1559
    %v1627 = vunpack.c.l.b16 %v1560
    %v1628 = vunpack.c.h.b16 %v1560
    %v1629 = vunpack.c.l.b16 %v1561
    %v1630 = vunpack.c.h.b16 %v1561
    %v1631 = vunpack.c.l.b16 %v1562
    %v1632 = vunpack.c.h.b16 %v1562
    %v1633 = vunpack.c.l.b16 %v1563
    %v1634 = vunpack.c.h.b16 %v1563
    %v1635 = vunpack.c.l.b16 %v1564
    %v1636 = vunpack.c.h.b16 %v1564
    %v1637 = vunpack.c.l.b16 %v1565
    %v1638 = vunpack.c.h.b16 %v1565
    %v1639 = vunpack.c.l.b16 %v1566
    %v1640 = vunpack.c.h.b16 %v1566
    %v1641 = vunpack.c.l.b16 %v1567
    %v1642 = vunpack.c.h.b16 %v1567
    %v1643 = vunpack.c.l.b16 %v1568
    %v1644 = vunpack.c.h.b16 %v1568
    %v1645 = vunpack.c.l.b16 %v1569
    %v1646 = vunpack.c.h.b16 %v1569
    %v1647 = vunpack.c.l.b16 %v1570
    %v1648 = vunpack.c.h.b16 %v1570
    %v1649 = vunpack.c.l.b16 %v1571
    %v1650 = vunpack.c.h.b16 %v1571
    %v1651 = vunpack.c.l.b16 %v1572
    %v1652 = vunpack.c.h.b16 %v1572
    %v1653 = vunpack.c.l.b16 %v1573
    %v1654 = vunpack.c.h.b16 %v1573
    %v1655 = vunpack.c.l.b16 %v1574
    %v1656 = vunpack.c.h.b16 %v1574
    %v1657 = vunpack.c.l.b16 %v1575
    %v1658 = vunpack.c.h.b16 %v1575
    %v1659 = vunpack.c.l.b16 %v1576
    %v1660 = vunpack.c.h.b16 %v1576
    %v1661 = vunpack.c.l.b16 %v1577
    %v1662 = vunpack.c.h.b16 %v1577
    %v1663 = vunpack.c.l.b16 %v1578
    %v1664 = vunpack.c.h.b16 %v1578
    %v1665 = vunpack.c.l.b16 %v1579
    %v1666 = vunpack.c.h.b16 %v1579
    %v1667 = vunpack.c.l.b16 %v1580
    %v1668 = vunpack.c.h.b16 %v1580
    %v1669 = vunpack.c.l.b16 %v1581
    %v1670 = vunpack.c.h.b16 %v1581
    %v1671 = vunpack.c.l.b16 %v1582
    %v1672 = vunpack.c.h.b16 %v1582
    %v1673 = vunpack.c.l.b16 %v1583
    %v1674 = vunpack.c.h.b16 %v1583
    %v1675 = vunpack.c.l.b16 %v1584
    %v1676 = vunpack.c.h.b16 %v1584
    %v1677 = vunpack.c.l.b16 %v1585
    %v1678 = vunpack.c.h.b16 %v1585
    %v1679 = vunpack.c.l.b16 %v1586
    %v1680 = vunpack.c.h.b16 %v1586
    %v1681 = vunpack.c.l.b16 %v1587
    %v1682 = vunpack.c.h.b16 %v1587
    %v1683 = vunpack.c.l.b16 %v1588
    %v1684 = vunpack.c.h.b16 %v1588
    %v1685 = vpack.c.b16 %v1625, %v1621
    %v1686 = vpack.c.b16 %v1626, %v1622
    %v1687 = vpack.c.b16 %v1627, %v1623
    %v1688 = vpack.c.b16 %v1628, %v1624
    %v1689 = vpack.c.b16 %v1633, %v1629
    %v1690 = vpack.c.b16 %v1634, %v1630
    %v1691 = vpack.c.b16 %v1635, %v1631
    %v1692 = vpack.c.b16 %v1636, %v1632
    %v1693 = vpack.c.b16 %v1641, %v1637
    %v1694 = vpack.c.b16 %v1642, %v1638
    %v1695 = vpack.c.b16 %v1643, %v1639
    %v1696 = vpack.c.b16 %v1644, %v1640
    %v1697 = vpack.c.b16 %v1649, %v1645
    %v1698 = vpack.c.b16 %v1650, %v1646
    %v1699 = vpack.c.b16 %v1651, %v1647
    %v1700 = vpack.c.b16 %v1652, %v1648
    %v1701 = vpack.c.b16 %v1657, %v1653
    %v1702 = vpack.c.b16 %v1658, %v1654
    %v1703 = vpack.c.b16 %v1659, %v1655
    %v1704 = vpack.c.b16 %v1660, %v1656
    %v1705 = vpack.c.b16 %v1665, %v1661
    %v1706 = vpack.c.b16 %v1666, %v1662
    %v1707 = vpack.c.b16 %v1667, %v1663
    %v1708 = vpack.c.b16 %v1668, %v1664
    %v1709 = vpack.c.b16 %v1673, %v1669
    %v1710 = vpack.c.b16 %v1674, %v1670
    %v1711 = vpack.c.b16 %v1675, %v1671
    %v1712 = vpack.c.b16 %v1676, %v1672
    %v1713 = vpack.c.b16 %v1681, %v1677
    %v1714 = vpack.c.b16 %v1682, %v1678
    %v1715 = vpack.c.b16 %v1683, %v1679
    %v1716 = vpack.c.b16 %v1684, %v1680
    %1749 = vmatprep.subr.bf16.mxu0 %v1714
    %1750 = vmatpush1.bf16.msra.mxu0 %v1713
    %1751 = vmatprep.subr.bf16.mxu0 %v1710
    %1752 = vmatpush1.bf16.msra.mxu0 %v1709
    %1753 = vmatprep.subr.bf16.mxu0 %v1706
    %1754 = vmatpush1.bf16.msra.mxu0 %v1705
    %1755 = vmatprep.subr.bf16.mxu0 %v1702
    %1756 = vmatpush1.bf16.msra.mxu0 %v1701
    %1757 = vmatprep.subr.bf16.mxu0 %v1698
    %1758 = vmatpush1.bf16.msra.mxu0 %v1697
    %1759 = vmatprep.subr.bf16.mxu0 %v1694
    %1760 = vmatpush1.bf16.msra.mxu0 %v1693
    %1761 = vmatprep.subr.bf16.mxu0 %v1690
    %1762 = vmatpush1.bf16.msra.mxu0 %v1689
    %1763 = vmatprep.subr.bf16.mxu0 %v1686
    %1764 = vmatpush1.bf16.msra.mxu0 %v1685
    %1765 = vmatprep.subr.bf16.mxu0 0
    %1766 = vmatpush2.bf16.msra.mxu0 0
    %1767 = vmatprep.subr.bf16.mxu0 0
    %1768 = vmatpush2.bf16.msra.mxu0 0
    %1769 = vmatprep.subr.bf16.mxu0 0
    %1770 = vmatpush2.bf16.msra.mxu0 0
    %1771 = vmatprep.subr.bf16.mxu0 0
    %1772 = vmatpush2.bf16.msra.mxu0 0
    %1773 = vmatprep.subr.bf16.mxu0 0
    %1774 = vmatpush2.bf16.msra.mxu0 0
    %1775 = vmatprep.subr.bf16.mxu0 0
    %1776 = vmatpush2.bf16.msra.mxu0 0
    %1777 = vmatprep.subr.bf16.mxu0 0
    %1778 = vmatpush2.bf16.msra.mxu0 0
    %1779 = vmatprep.subr.bf16.mxu0 0
    %1780 = vmatpush2.bf16.msra.mxu0 0
    %1781 = vmatprep.mubr.bf16.mxu0 0
    %1782 = vmatmul.mubr.bf16.gmra.mxu0 %v1556
    %v1783 = vpop.f32.mrf.mxu0
    %v1784 = vadd.f32 0.0, %v1783
    %v1785 = vpop.f32.mrf.mxu0
    %v1786 = vadd.f32 0.0, %v1785
    %v1787 = vpop.f32.mrf.mxu0
    %v1788 = vpop.f32.mrf.mxu0
    %1789 = vdwg.mxu0
    %1790 = vmatprep.subr.bf16.mxu0 %v1716
    %1791 = vmatpush1.bf16.msra.mxu0 %v1715
    %1792 = vmatprep.subr.bf16.mxu0 %v1712
    %1793 = vmatpush1.bf16.msra.mxu0 %v1711
    %1794 = vmatprep.subr.bf16.mxu0 %v1708
    %1795 = vmatpush1.bf16.msra.mxu0 %v1707
    %1796 = vmatprep.subr.bf16.mxu0 %v1704
    %1797 = vmatpush1.bf16.msra.mxu0 %v1703
    %1798 = vmatprep.subr.bf16.mxu0 %v1700
    %1799 = vmatpush1.bf16.msra.mxu0 %v1699
    %1800 = vmatprep.subr.bf16.mxu0 %v1696
    %1801 = vmatpush1.bf16.msra.mxu0 %v1695
    %1802 = vmatprep.subr.bf16.mxu0 %v1692
    %1803 = vmatpush1.bf16.msra.mxu0 %v1691
    %1804 = vmatprep.subr.bf16.mxu0 %v1688
    %1805 = vmatpush1.bf16.msra.mxu0 %v1687
    %1806 = vmatprep.subr.bf16.mxu0 0
    %1807 = vmatpush2.bf16.msra.mxu0 0
    %1808 = vmatprep.subr.bf16.mxu0 0
    %1809 = vmatpush2.bf16.msra.mxu0 0
    %1810 = vmatprep.subr.bf16.mxu0 0
    %1811 = vmatpush2.bf16.msra.mxu0 0
    %1812 = vmatprep.subr.bf16.mxu0 0
    %1813 = vmatpush2.bf16.msra.mxu0 0
    %1814 = vmatprep.subr.bf16.mxu0 0
    %1815 = vmatpush2.bf16.msra.mxu0 0
    %1816 = vmatprep.subr.bf16.mxu0 0
    %1817 = vmatpush2.bf16.msra.mxu0 0
    %1818 = vmatprep.subr.bf16.mxu0 0
    %1819 = vmatpush2.bf16.msra.mxu0 0
    %1820 = vmatprep.subr.bf16.mxu0 0
    %1821 = vmatpush2.bf16.msra.mxu0 0
    %1822 = vmatprep.mubr.bf16.mxu0 0
    %1823 = vmatmul.mubr.bf16.gmra.mxu0 %v1556
    %v1824 = vpop.f32.mrf.mxu0
    %v1825 = vadd.f32 0.0, %v1824
    %v1826 = vpop.f32.mrf.mxu0
    %v1827 = vadd.f32 0.0, %v1826
    %v1828 = vpop.f32.mrf.mxu0
    %v1829 = vpop.f32.mrf.mxu0
    %1830 = vdwg.mxu0
    %v1831 = vadd.f32 %v1552, %v1784
    %v1832 = vadd.f32 %v1553, %v1786
    %v1833 = vadd.f32 %v1554, %v1825
    %v1834 = vadd.f32 %v1555, %v1827
    %s1835 = smul.u32 6, 4
    %s1836 = smul.addr %s1835, 8
    %s1837 = scalar_lea.vmem [#allocation3], %s1836
    %v1838 = vld [vmem:[%s1837] sm:$0xff]
    %v1839 = vld [vmem:[%s1837 + $0x8] sm:$0xff]
    %v1840 = vld [vmem:[%s1837 + $0x10] sm:$0xff]
    %v1841 = vld [vmem:[%s1837 + $0x18] sm:$0xff]
    %v1842 = vpack.c.bf16 %v1540, %v1540
    %v1843 = vld [vmem:[#allocation10] sm:$0xff]
    %v1844 = vld [vmem:[#allocation10 + $0x8] sm:$0xff]
    %v1845 = vld [vmem:[#allocation10 + $0x10] sm:$0xff]
    %v1846 = vld [vmem:[#allocation10 + $0x18] sm:$0xff]
    %v1847 = vld [vmem:[#allocation10 + $0x20] sm:$0xff]
    %v1848 = vld [vmem:[#allocation10 + $0x28] sm:$0xff]
    %v1849 = vld [vmem:[#allocation10 + $0x30] sm:$0xff]
    %v1850 = vld [vmem:[#allocation10 + $0x38] sm:$0xff]
    %v1851 = vld [vmem:[#allocation10 + $0x40] sm:$0xff]
    %v1852 = vld [vmem:[#allocation10 + $0x48] sm:$0xff]
    %v1853 = vld [vmem:[#allocation10 + $0x50] sm:$0xff]
    %v1854 = vld [vmem:[#allocation10 + $0x58] sm:$0xff]
    %v1855 = vld [vmem:[#allocation10 + $0x60] sm:$0xff]
    %v1856 = vld [vmem:[#allocation10 + $0x68] sm:$0xff]
    %v1857 = vld [vmem:[#allocation10 + $0x70] sm:$0xff]
    %v1858 = vld [vmem:[#allocation10 + $0x78] sm:$0xff]
    %v1859 = vld [vmem:[#allocation10 + $0x80] sm:$0xff]
    %v1860 = vld [vmem:[#allocation10 + $0x88] sm:$0xff]
    %v1861 = vld [vmem:[#allocation10 + $0x90] sm:$0xff]
    %v1862 = vld [vmem:[#allocation10 + $0x98] sm:$0xff]
    %v1863 = vld [vmem:[#allocation10 + $0xa0] sm:$0xff]
    %v1864 = vld [vmem:[#allocation10 + $0xa8] sm:$0xff]
    %v1865 = vld [vmem:[#allocation10 + $0xb0] sm:$0xff]
    %v1866 = vld [vmem:[#allocation10 + $0xb8] sm:$0xff]
    %v1867 = vld [vmem:[#allocation10 + $0xc0] sm:$0xff]
    %v1868 = vld [vmem:[#allocation10 + $0xc8] sm:$0xff]
    %v1869 = vld [vmem:[#allocation10 + $0xd0] sm:$0xff]
    %v1870 = vld [vmem:[#allocation10 + $0xd8] sm:$0xff]
    %v1871 = vld [vmem:[#allocation10 + $0xe0] sm:$0xff]
    %v1872 = vld [vmem:[#allocation10 + $0xe8] sm:$0xff]
    %v1873 = vld [vmem:[#allocation10 + $0xf0] sm:$0xff]
    %v1874 = vld [vmem:[#allocation10 + $0xf8] sm:$0xff]
    %v1907 = vunpack.c.l.b16 %v1843
    %v1908 = vunpack.c.h.b16 %v1843
    %v1909 = vunpack.c.l.b16 %v1844
    %v1910 = vunpack.c.h.b16 %v1844
    %v1911 = vunpack.c.l.b16 %v1845
    %v1912 = vunpack.c.h.b16 %v1845
    %v1913 = vunpack.c.l.b16 %v1846
    %v1914 = vunpack.c.h.b16 %v1846
    %v1915 = vunpack.c.l.b16 %v1847
    %v1916 = vunpack.c.h.b16 %v1847
    %v1917 = vunpack.c.l.b16 %v1848
    %v1918 = vunpack.c.h.b16 %v1848
    %v1919 = vunpack.c.l.b16 %v1849
    %v1920 = vunpack.c.h.b16 %v1849
    %v1921 = vunpack.c.l.b16 %v1850
    %v1922 = vunpack.c.h.b16 %v1850
    %v1923 = vunpack.c.l.b16 %v1851
    %v1924 = vunpack.c.h.b16 %v1851
    %v1925 = vunpack.c.l.b16 %v1852
    %v1926 = vunpack.c.h.b16 %v1852
    %v1927 = vunpack.c.l.b16 %v1853
    %v1928 = vunpack.c.h.b16 %v1853
    %v1929 = vunpack.c.l.b16 %v1854
    %v1930 = vunpack.c.h.b16 %v1854
    %v1931 = vunpack.c.l.b16 %v1855
    %v1932 = vunpack.c.h.b16 %v1855
    %v1933 = vunpack.c.l.b16 %v1856
    %v1934 = vunpack.c.h.b16 %v1856
    %v1935 = vunpack.c.l.b16 %v1857
    %v1936 = vunpack.c.h.b16 %v1857
    %v1937 = vunpack.c.l.b16 %v1858
    %v1938 = vunpack.c.h.b16 %v1858
    %v1939 = vunpack.c.l.b16 %v1859
    %v1940 = vunpack.c.h.b16 %v1859
    %v1941 = vunpack.c.l.b16 %v1860
    %v1942 = vunpack.c.h.b16 %v1860
    %v1943 = vunpack.c.l.b16 %v1861
    %v1944 = vunpack.c.h.b16 %v1861
    %v1945 = vunpack.c.l.b16 %v1862
    %v1946 = vunpack.c.h.b16 %v1862
    %v1947 = vunpack.c.l.b16 %v1863
    %v1948 = vunpack.c.h.b16 %v1863
    %v1949 = vunpack.c.l.b16 %v1864
    %v1950 = vunpack.c.h.b16 %v1864
    %v1951 = vunpack.c.l.b16 %v1865
    %v1952 = vunpack.c.h.b16 %v1865
    %v1953 = vunpack.c.l.b16 %v1866
    %v1954 = vunpack.c.h.b16 %v1866
    %v1955 = vunpack.c.l.b16 %v1867
    %v1956 = vunpack.c.h.b16 %v1867
    %v1957 = vunpack.c.l.b16 %v1868
    %v1958 = vunpack.c.h.b16 %v1868
    %v1959 = vunpack.c.l.b16 %v1869
    %v1960 = vunpack.c.h.b16 %v1869
    %v1961 = vunpack.c.l.b16 %v1870
    %v1962 = vunpack.c.h.b16 %v1870
    %v1963 = vunpack.c.l.b16 %v1871
    %v1964 = vunpack.c.h.b16 %v1871
    %v1965 = vunpack.c.l.b16 %v1872
    %v1966 = vunpack.c.h.b16 %v1872
    %v1967 = vunpack.c.l.b16 %v1873
    %v1968 = vunpack.c.h.b16 %v1873
    %v1969 = vunpack.c.l.b16 %v1874
    %v1970 = vunpack.c.h.b16 %v1874
    %v1971 = vpack.c.b16 %v1911, %v1907
    %v1972 = vpack.c.b16 %v1912, %v1908
    %v1973 = vpack.c.b16 %v1913, %v1909
    %v1974 = vpack.c.b16 %v1914, %v1910
    %v1975 = vpack.c.b16 %v1919, %v1915
    %v1976 = vpack.c.b16 %v1920, %v1916
    %v1977 = vpack.c.b16 %v1921, %v1917
    %v1978 = vpack.c.b16 %v1922, %v1918
    %v1979 = vpack.c.b16 %v1927, %v1923
    %v1980 = vpack.c.b16 %v1928, %v1924
    %v1981 = vpack.c.b16 %v1929, %v1925
    %v1982 = vpack.c.b16 %v1930, %v1926
    %v1983 = vpack.c.b16 %v1935, %v1931
    %v1984 = vpack.c.b16 %v1936, %v1932
    %v1985 = vpack.c.b16 %v1937, %v1933
    %v1986 = vpack.c.b16 %v1938, %v1934
    %v1987 = vpack.c.b16 %v1943, %v1939
    %v1988 = vpack.c.b16 %v1944, %v1940
    %v1989 = vpack.c.b16 %v1945, %v1941
    %v1990 = vpack.c.b16 %v1946, %v1942
    %v1991 = vpack.c.b16 %v1951, %v1947
    %v1992 = vpack.c.b16 %v1952, %v1948
    %v1993 = vpack.c.b16 %v1953, %v1949
    %v1994 = vpack.c.b16 %v1954, %v1950
    %v1995 = vpack.c.b16 %v1959, %v1955
    %v1996 = vpack.c.b16 %v1960, %v1956
    %v1997 = vpack.c.b16 %v1961, %v1957
    %v1998 = vpack.c.b16 %v1962, %v1958
    %v1999 = vpack.c.b16 %v1967, %v1963
    %v2000 = vpack.c.b16 %v1968, %v1964
    %v2001 = vpack.c.b16 %v1969, %v1965
    %v2002 = vpack.c.b16 %v1970, %v1966
    %2035 = vmatprep.subr.bf16.mxu0 %v2000
    %2036 = vmatpush1.bf16.msra.mxu0 %v1999
    %2037 = vmatprep.subr.bf16.mxu0 %v1996
    %2038 = vmatpush1.bf16.msra.mxu0 %v1995
    %2039 = vmatprep.subr.bf16.mxu0 %v1992
    %2040 = vmatpush1.bf16.msra.mxu0 %v1991
    %2041 = vmatprep.subr.bf16.mxu0 %v1988
    %2042 = vmatpush1.bf16.msra.mxu0 %v1987
    %2043 = vmatprep.subr.bf16.mxu0 %v1984
    %2044 = vmatpush1.bf16.msra.mxu0 %v1983
    %2045 = vmatprep.subr.bf16.mxu0 %v1980
    %2046 = vmatpush1.bf16.msra.mxu0 %v1979
    %2047 = vmatprep.subr.bf16.mxu0 %v1976
    %2048 = vmatpush1.bf16.msra.mxu0 %v1975
    %2049 = vmatprep.subr.bf16.mxu0 %v1972
    %2050 = vmatpush1.bf16.msra.mxu0 %v1971
    %2051 = vmatprep.subr.bf16.mxu0 0
    %2052 = vmatpush2.bf16.msra.mxu0 0
    %2053 = vmatprep.subr.bf16.mxu0 0
    %2054 = vmatpush2.bf16.msra.mxu0 0
    %2055 = vmatprep.subr.bf16.mxu0 0
    %2056 = vmatpush2.bf16.msra.mxu0 0
    %2057 = vmatprep.subr.bf16.mxu0 0
    %2058 = vmatpush2.bf16.msra.mxu0 0
    %2059 = vmatprep.subr.bf16.mxu0 0
    %2060 = vmatpush2.bf16.msra.mxu0 0
    %2061 = vmatprep.subr.bf16.mxu0 0
    %2062 = vmatpush2.bf16.msra.mxu0 0
    %2063 = vmatprep.subr.bf16.mxu0 0
    %2064 = vmatpush2.bf16.msra.mxu0 0
    %2065 = vmatprep.subr.bf16.mxu0 0
    %2066 = vmatpush2.bf16.msra.mxu0 0
    %2067 = vmatprep.mubr.bf16.mxu0 0
    %2068 = vmatmul.mubr.bf16.gmra.mxu0 %v1842
    %v2069 = vpop.f32.mrf.mxu0
    %v2070 = vadd.f32 0.0, %v2069
    %v2071 = vpop.f32.mrf.mxu0
    %v2072 = vadd.f32 0.0, %v2071
    %v2073 = vpop.f32.mrf.mxu0
    %v2074 = vpop.f32.mrf.mxu0
    %2075 = vdwg.mxu0
    %2076 = vmatprep.subr.bf16.mxu0 %v2002
    %2077 = vmatpush1.bf16.msra.mxu0 %v2001
    %2078 = vmatprep.subr.bf16.mxu0 %v1998
    %2079 = vmatpush1.bf16.msra.mxu0 %v1997
    %2080 = vmatprep.subr.bf16.mxu0 %v1994
    %2081 = vmatpush1.bf16.msra.mxu0 %v1993
    %2082 = vmatprep.subr.bf16.mxu0 %v1990
    %2083 = vmatpush1.bf16.msra.mxu0 %v1989
    %2084 = vmatprep.subr.bf16.mxu0 %v1986
    %2085 = vmatpush1.bf16.msra.mxu0 %v1985
    %2086 = vmatprep.subr.bf16.mxu0 %v1982
    %2087 = vmatpush1.bf16.msra.mxu0 %v1981
    %2088 = vmatprep.subr.bf16.mxu0 %v1978
    %2089 = vmatpush1.bf16.msra.mxu0 %v1977
    %2090 = vmatprep.subr.bf16.mxu0 %v1974
    %2091 = vmatpush1.bf16.msra.mxu0 %v1973
    %2092 = vmatprep.subr.bf16.mxu0 0
    %2093 = vmatpush2.bf16.msra.mxu0 0
    %2094 = vmatprep.subr.bf16.mxu0 0
    %2095 = vmatpush2.bf16.msra.mxu0 0
    %2096 = vmatprep.subr.bf16.mxu0 0
    %2097 = vmatpush2.bf16.msra.mxu0 0
    %2098 = vmatprep.subr.bf16.mxu0 0
    %2099 = vmatpush2.bf16.msra.mxu0 0
    %2100 = vmatprep.subr.bf16.mxu0 0
    %2101 = vmatpush2.bf16.msra.mxu0 0
    %2102 = vmatprep.subr.bf16.mxu0 0
    %2103 = vmatpush2.bf16.msra.mxu0 0
    %2104 = vmatprep.subr.bf16.mxu0 0
    %2105 = vmatpush2.bf16.msra.mxu0 0
    %2106 = vmatprep.subr.bf16.mxu0 0
    %2107 = vmatpush2.bf16.msra.mxu0 0
    %2108 = vmatprep.mubr.bf16.mxu0 0
    %2109 = vmatmul.mubr.bf16.gmra.mxu0 %v1842
    %v2110 = vpop.f32.mrf.mxu0
    %v2111 = vadd.f32 0.0, %v2110
    %v2112 = vpop.f32.mrf.mxu0
    %v2113 = vadd.f32 0.0, %v2112
    %v2114 = vpop.f32.mrf.mxu0
    %v2115 = vpop.f32.mrf.mxu0
    %2116 = vdwg.mxu0
    %v2117 = vadd.f32 %v1838, %v2070
    %v2118 = vadd.f32 %v1839, %v2072
    %v2119 = vadd.f32 %v1840, %v2111
    %v2120 = vadd.f32 %v1841, %v2113
    %v2121 = vxor.u32 %v1831, 2147483648
    %v2122 = vmul.f32 %v2121, 1.442695
    %v2123 = vpow.pop %v2122
    %v2124 = vadd.f32 %v2123, 1.0
    %v2125 = vrcp.pop %v2124
    %v2126 = vmul.f32 1.0, %v2125
    %v2127 = vxor.u32 %v1832, 2147483648
    %v2128 = vmul.f32 %v2127, 1.442695
    %v2129 = vpow.pop %v2128
    %v2130 = vadd.f32 %v2129, 1.0
    %v2131 = vrcp.pop %v2130
    %v2132 = vmul.f32 1.0, %v2131
    %v2133 = vtanh.pop %v1833
    %v2134 = vxor.u32 %v1834, 2147483648
    %v2135 = vmul.f32 %v2134, 1.442695
    %v2136 = vpow.pop %v2135
    %v2137 = vadd.f32 %v2136, 1.0
    %v2138 = vrcp.pop %v2137
    %v2139 = vmul.f32 1.0, %v2138
    %v2140 = vmul.f32 %v2132, %v1514
    %v2141 = vmul.f32 %v2126, %v2133
    %v2142 = vadd.f32 %v2140, %v2141
    %v2143 = vtanh.pop %v2142
    %v2144 = vmul.f32 %v2139, %v2143
    %v2145 = vxor.u32 %v2117, 2147483648
    %v2146 = vmul.f32 %v2145, 1.442695
    %v2147 = vpow.pop %v2146
    %v2148 = vadd.f32 %v2147, 1.0
    %v2149 = vrcp.pop %v2148
    %v2150 = vmul.f32 1.0, %v2149
    %v2151 = vxor.u32 %v2118, 2147483648
    %v2152 = vmul.f32 %v2151, 1.442695
    %v2153 = vpow.pop %v2152
    %v2154 = vadd.f32 %v2153, 1.0
    %v2155 = vrcp.pop %v2154
    %v2156 = vmul.f32 1.0, %v2155
    %v2157 = vtanh.pop %v2119
    %v2158 = vxor.u32 %v2120, 2147483648
    %v2159 = vmul.f32 %v2158, 1.442695
    %v2160 = vpow.pop %v2159
    %v2161 = vadd.f32 %v2160, 1.0
    %v2162 = vrcp.pop %v2161
    %v2163 = vmul.f32 1.0, %v2162
    %v2164 = vmul.f32 %v2156, %v1538
    %v2165 = vmul.f32 %v2150, %v2157
    %v2166 = vadd.f32 %v2164, %v2165
    %v2167 = vtanh.pop %v2166
    %v2168 = vmul.f32 %v2163, %v2167
    %s2169 = smul.u32 1, 2
    %s2170 = smul.addr %s2169, 8
    %s2171 = scalar_lea.vmem [#allocation4], %s2170
    %2172 = vst [vmem:[%s2171] sm:$0xff] %v2144
    %s2173 = smul.u32 6, 2
    %s2174 = smul.addr %s2173, 8
    %s2175 = scalar_lea.vmem [#allocation4], %s2174
    %2176 = vst [vmem:[%s2175 + $0x8] sm:$0xff] %v2168
    %s2177 = smul.u32 2, 4
    %s2178 = smul.addr %s2177, 8
    %s2179 = scalar_lea.vmem [#allocation2], %s2178
    %v2180 = vld [vmem:[%s2179] sm:$0xff]
    %v2181 = vld [vmem:[%s2179 + $0x8] sm:$0xff]
    %v2182 = vld [vmem:[%s2179 + $0x10] sm:$0xff]
    %v2183 = vld [vmem:[%s2179 + $0x18] sm:$0xff]
    %v2184 = vpack.c.bf16 %v2144, %v2144
    %v2185 = vld [vmem:[#allocation9] sm:$0xff]
    %v2186 = vld [vmem:[#allocation9 + $0x8] sm:$0xff]
    %v2187 = vld [vmem:[#allocation9 + $0x10] sm:$0xff]
    %v2188 = vld [vmem:[#allocation9 + $0x18] sm:$0xff]
    %v2189 = vld [vmem:[#allocation9 + $0x20] sm:$0xff]
    %v2190 = vld [vmem:[#allocation9 + $0x28] sm:$0xff]
    %v2191 = vld [vmem:[#allocation9 + $0x30] sm:$0xff]
    %v2192 = vld [vmem:[#allocation9 + $0x38] sm:$0xff]
    %v2193 = vld [vmem:[#allocation9 + $0x40] sm:$0xff]
    %v2194 = vld [vmem:[#allocation9 + $0x48] sm:$0xff]
    %v2195 = vld [vmem:[#allocation9 + $0x50] sm:$0xff]
    %v2196 = vld [vmem:[#allocation9 + $0x58] sm:$0xff]
    %v2197 = vld [vmem:[#allocation9 + $0x60] sm:$0xff]
    %v2198 = vld [vmem:[#allocation9 + $0x68] sm:$0xff]
    %v2199 = vld [vmem:[#allocation9 + $0x70] sm:$0xff]
    %v2200 = vld [vmem:[#allocation9 + $0x78] sm:$0xff]
    %v2201 = vld [vmem:[#allocation9 + $0x80] sm:$0xff]
    %v2202 = vld [vmem:[#allocation9 + $0x88] sm:$0xff]
    %v2203 = vld [vmem:[#allocation9 + $0x90] sm:$0xff]
    %v2204 = vld [vmem:[#allocation9 + $0x98] sm:$0xff]
    %v2205 = vld [vmem:[#allocation9 + $0xa0] sm:$0xff]
    %v2206 = vld [vmem:[#allocation9 + $0xa8] sm:$0xff]
    %v2207 = vld [vmem:[#allocation9 + $0xb0] sm:$0xff]
    %v2208 = vld [vmem:[#allocation9 + $0xb8] sm:$0xff]
    %v2209 = vld [vmem:[#allocation9 + $0xc0] sm:$0xff]
    %v2210 = vld [vmem:[#allocation9 + $0xc8] sm:$0xff]
    %v2211 = vld [vmem:[#allocation9 + $0xd0] sm:$0xff]
    %v2212 = vld [vmem:[#allocation9 + $0xd8] sm:$0xff]
    %v2213 = vld [vmem:[#allocation9 + $0xe0] sm:$0xff]
    %v2214 = vld [vmem:[#allocation9 + $0xe8] sm:$0xff]
    %v2215 = vld [vmem:[#allocation9 + $0xf0] sm:$0xff]
    %v2216 = vld [vmem:[#allocation9 + $0xf8] sm:$0xff]
    %v2249 = vunpack.c.l.b16 %v2185
    %v2250 = vunpack.c.h.b16 %v2185
    %v2251 = vunpack.c.l.b16 %v2186
    %v2252 = vunpack.c.h.b16 %v2186
    %v2253 = vunpack.c.l.b16 %v2187
    %v2254 = vunpack.c.h.b16 %v2187
    %v2255 = vunpack.c.l.b16 %v2188
    %v2256 = vunpack.c.h.b16 %v2188
    %v2257 = vunpack.c.l.b16 %v2189
    %v2258 = vunpack.c.h.b16 %v2189
    %v2259 = vunpack.c.l.b16 %v2190
    %v2260 = vunpack.c.h.b16 %v2190
    %v2261 = vunpack.c.l.b16 %v2191
    %v2262 = vunpack.c.h.b16 %v2191
    %v2263 = vunpack.c.l.b16 %v2192
    %v2264 = vunpack.c.h.b16 %v2192
    %v2265 = vunpack.c.l.b16 %v2193
    %v2266 = vunpack.c.h.b16 %v2193
    %v2267 = vunpack.c.l.b16 %v2194
    %v2268 = vunpack.c.h.b16 %v2194
    %v2269 = vunpack.c.l.b16 %v2195
    %v2270 = vunpack.c.h.b16 %v2195
    %v2271 = vunpack.c.l.b16 %v2196
    %v2272 = vunpack.c.h.b16 %v2196
    %v2273 = vunpack.c.l.b16 %v2197
    %v2274 = vunpack.c.h.b16 %v2197
    %v2275 = vunpack.c.l.b16 %v2198
    %v2276 = vunpack.c.h.b16 %v2198
    %v2277 = vunpack.c.l.b16 %v2199
    %v2278 = vunpack.c.h.b16 %v2199
    %v2279 = vunpack.c.l.b16 %v2200
    %v2280 = vunpack.c.h.b16 %v2200
    %v2281 = vunpack.c.l.b16 %v2201
    %v2282 = vunpack.c.h.b16 %v2201
    %v2283 = vunpack.c.l.b16 %v2202
    %v2284 = vunpack.c.h.b16 %v2202
    %v2285 = vunpack.c.l.b16 %v2203
    %v2286 = vunpack.c.h.b16 %v2203
    %v2287 = vunpack.c.l.b16 %v2204
    %v2288 = vunpack.c.h.b16 %v2204
    %v2289 = vunpack.c.l.b16 %v2205
    %v2290 = vunpack.c.h.b16 %v2205
    %v2291 = vunpack.c.l.b16 %v2206
    %v2292 = vunpack.c.h.b16 %v2206
    %v2293 = vunpack.c.l.b16 %v2207
    %v2294 = vunpack.c.h.b16 %v2207
    %v2295 = vunpack.c.l.b16 %v2208
    %v2296 = vunpack.c.h.b16 %v2208
    %v2297 = vunpack.c.l.b16 %v2209
    %v2298 = vunpack.c.h.b16 %v2209
    %v2299 = vunpack.c.l.b16 %v2210
    %v2300 = vunpack.c.h.b16 %v2210
    %v2301 = vunpack.c.l.b16 %v2211
    %v2302 = vunpack.c.h.b16 %v2211
    %v2303 = vunpack.c.l.b16 %v2212
    %v2304 = vunpack.c.h.b16 %v2212
    %v2305 = vunpack.c.l.b16 %v2213
    %v2306 = vunpack.c.h.b16 %v2213
    %v2307 = vunpack.c.l.b16 %v2214
    %v2308 = vunpack.c.h.b16 %v2214
    %v2309 = vunpack.c.l.b16 %v2215
    %v2310 = vunpack.c.h.b16 %v2215
    %v2311 = vunpack.c.l.b16 %v2216
    %v2312 = vunpack.c.h.b16 %v2216
    %v2313 = vpack.c.b16 %v2253, %v2249
    %v2314 = vpack.c.b16 %v2254, %v2250
    %v2315 = vpack.c.b16 %v2255, %v2251
    %v2316 = vpack.c.b16 %v2256, %v2252
    %v2317 = vpack.c.b16 %v2261, %v2257
    %v2318 = vpack.c.b16 %v2262, %v2258
    %v2319 = vpack.c.b16 %v2263, %v2259
    %v2320 = vpack.c.b16 %v2264, %v2260
    %v2321 = vpack.c.b16 %v2269, %v2265
    %v2322 = vpack.c.b16 %v2270, %v2266
    %v2323 = vpack.c.b16 %v2271, %v2267
    %v2324 = vpack.c.b16 %v2272, %v2268
    %v2325 = vpack.c.b16 %v2277, %v2273
    %v2326 = vpack.c.b16 %v2278, %v2274
    %v2327 = vpack.c.b16 %v2279, %v2275
    %v2328 = vpack.c.b16 %v2280, %v2276
    %v2329 = vpack.c.b16 %v2285, %v2281
    %v2330 = vpack.c.b16 %v2286, %v2282
    %v2331 = vpack.c.b16 %v2287, %v2283
    %v2332 = vpack.c.b16 %v2288, %v2284
    %v2333 = vpack.c.b16 %v2293, %v2289
    %v2334 = vpack.c.b16 %v2294, %v2290
    %v2335 = vpack.c.b16 %v2295, %v2291
    %v2336 = vpack.c.b16 %v2296, %v2292
    %v2337 = vpack.c.b16 %v2301, %v2297
    %v2338 = vpack.c.b16 %v2302, %v2298
    %v2339 = vpack.c.b16 %v2303, %v2299
    %v2340 = vpack.c.b16 %v2304, %v2300
    %v2341 = vpack.c.b16 %v2309, %v2305
    %v2342 = vpack.c.b16 %v2310, %v2306
    %v2343 = vpack.c.b16 %v2311, %v2307
    %v2344 = vpack.c.b16 %v2312, %v2308
    %2377 = vmatprep.subr.bf16.mxu0 %v2342
    %2378 = vmatpush1.bf16.msra.mxu0 %v2341
    %2379 = vmatprep.subr.bf16.mxu0 %v2338
    %2380 = vmatpush1.bf16.msra.mxu0 %v2337
    %2381 = vmatprep.subr.bf16.mxu0 %v2334
    %2382 = vmatpush1.bf16.msra.mxu0 %v2333
    %2383 = vmatprep.subr.bf16.mxu0 %v2330
    %2384 = vmatpush1.bf16.msra.mxu0 %v2329
    %2385 = vmatprep.subr.bf16.mxu0 %v2326
    %2386 = vmatpush1.bf16.msra.mxu0 %v2325
    %2387 = vmatprep.subr.bf16.mxu0 %v2322
    %2388 = vmatpush1.bf16.msra.mxu0 %v2321
    %2389 = vmatprep.subr.bf16.mxu0 %v2318
    %2390 = vmatpush1.bf16.msra.mxu0 %v2317
    %2391 = vmatprep.subr.bf16.mxu0 %v2314
    %2392 = vmatpush1.bf16.msra.mxu0 %v2313
    %2393 = vmatprep.subr.bf16.mxu0 0
    %2394 = vmatpush2.bf16.msra.mxu0 0
    %2395 = vmatprep.subr.bf16.mxu0 0
    %2396 = vmatpush2.bf16.msra.mxu0 0
    %2397 = vmatprep.subr.bf16.mxu0 0
    %2398 = vmatpush2.bf16.msra.mxu0 0
    %2399 = vmatprep.subr.bf16.mxu0 0
    %2400 = vmatpush2.bf16.msra.mxu0 0
    %2401 = vmatprep.subr.bf16.mxu0 0
    %2402 = vmatpush2.bf16.msra.mxu0 0
    %2403 = vmatprep.subr.bf16.mxu0 0
    %2404 = vmatpush2.bf16.msra.mxu0 0
    %2405 = vmatprep.subr.bf16.mxu0 0
    %2406 = vmatpush2.bf16.msra.mxu0 0
    %2407 = vmatprep.subr.bf16.mxu0 0
    %2408 = vmatpush2.bf16.msra.mxu0 0
    %2409 = vmatprep.mubr.bf16.mxu0 0
    %2410 = vmatmul.mubr.bf16.gmra.mxu0 %v2184
    %v2411 = vpop.f32.mrf.mxu0
    %v2412 = vadd.f32 0.0, %v2411
    %v2413 = vpop.f32.mrf.mxu0
    %v2414 = vadd.f32 0.0, %v2413
    %v2415 = vpop.f32.mrf.mxu0
    %v2416 = vpop.f32.mrf.mxu0
    %2417 = vdwg.mxu0
    %2418 = vmatprep.subr.bf16.mxu0 %v2344
    %2419 = vmatpush1.bf16.msra.mxu0 %v2343
    %2420 = vmatprep.subr.bf16.mxu0 %v2340
    %2421 = vmatpush1.bf16.msra.mxu0 %v2339
    %2422 = vmatprep.subr.bf16.mxu0 %v2336
    %2423 = vmatpush1.bf16.msra.mxu0 %v2335
    %2424 = vmatprep.subr.bf16.mxu0 %v2332
    %2425 = vmatpush1.bf16.msra.mxu0 %v2331
    %2426 = vmatprep.subr.bf16.mxu0 %v2328
    %2427 = vmatpush1.bf16.msra.mxu0 %v2327
    %2428 = vmatprep.subr.bf16.mxu0 %v2324
    %2429 = vmatpush1.bf16.msra.mxu0 %v2323
    %2430 = vmatprep.subr.bf16.mxu0 %v2320
    %2431 = vmatpush1.bf16.msra.mxu0 %v2319
    %2432 = vmatprep.subr.bf16.mxu0 %v2316
    %2433 = vmatpush1.bf16.msra.mxu0 %v2315
    %2434 = vmatprep.subr.bf16.mxu0 0
    %2435 = vmatpush2.bf16.msra.mxu0 0
    %2436 = vmatprep.subr.bf16.mxu0 0
    %2437 = vmatpush2.bf16.msra.mxu0 0
    %2438 = vmatprep.subr.bf16.mxu0 0
    %2439 = vmatpush2.bf16.msra.mxu0 0
    %2440 = vmatprep.subr.bf16.mxu0 0
    %2441 = vmatpush2.bf16.msra.mxu0 0
    %2442 = vmatprep.subr.bf16.mxu0 0
    %2443 = vmatpush2.bf16.msra.mxu0 0
    %2444 = vmatprep.subr.bf16.mxu0 0
    %2445 = vmatpush2.bf16.msra.mxu0 0
    %2446 = vmatprep.subr.bf16.mxu0 0
    %2447 = vmatpush2.bf16.msra.mxu0 0
    %2448 = vmatprep.subr.bf16.mxu0 0
    %2449 = vmatpush2.bf16.msra.mxu0 0
    %2450 = vmatprep.mubr.bf16.mxu0 0
    %2451 = vmatmul.mubr.bf16.gmra.mxu0 %v2184
    %v2452 = vpop.f32.mrf.mxu0
    %v2453 = vadd.f32 0.0, %v2452
    %v2454 = vpop.f32.mrf.mxu0
    %v2455 = vadd.f32 0.0, %v2454
    %v2456 = vpop.f32.mrf.mxu0
    %v2457 = vpop.f32.mrf.mxu0
    %2458 = vdwg.mxu0
    %v2459 = vadd.f32 %v2180, %v2412
    %v2460 = vadd.f32 %v2181, %v2414
    %v2461 = vadd.f32 %v2182, %v2453
    %v2462 = vadd.f32 %v2183, %v2455
    %s2463 = smul.u32 5, 4
    %s2464 = smul.addr %s2463, 8
    %s2465 = scalar_lea.vmem [#allocation3], %s2464
    %v2466 = vld [vmem:[%s2465] sm:$0xff]
    %v2467 = vld [vmem:[%s2465 + $0x8] sm:$0xff]
    %v2468 = vld [vmem:[%s2465 + $0x10] sm:$0xff]
    %v2469 = vld [vmem:[%s2465 + $0x18] sm:$0xff]
    %v2470 = vpack.c.bf16 %v2168, %v2168
    %v2471 = vld [vmem:[#allocation10] sm:$0xff]
    %v2472 = vld [vmem:[#allocation10 + $0x8] sm:$0xff]
    %v2473 = vld [vmem:[#allocation10 + $0x10] sm:$0xff]
    %v2474 = vld [vmem:[#allocation10 + $0x18] sm:$0xff]
    %v2475 = vld [vmem:[#allocation10 + $0x20] sm:$0xff]
    %v2476 = vld [vmem:[#allocation10 + $0x28] sm:$0xff]
    %v2477 = vld [vmem:[#allocation10 + $0x30] sm:$0xff]
    %v2478 = vld [vmem:[#allocation10 + $0x38] sm:$0xff]
    %v2479 = vld [vmem:[#allocation10 + $0x40] sm:$0xff]
    %v2480 = vld [vmem:[#allocation10 + $0x48] sm:$0xff]
    %v2481 = vld [vmem:[#allocation10 + $0x50] sm:$0xff]
    %v2482 = vld [vmem:[#allocation10 + $0x58] sm:$0xff]
    %v2483 = vld [vmem:[#allocation10 + $0x60] sm:$0xff]
    %v2484 = vld [vmem:[#allocation10 + $0x68] sm:$0xff]
    %v2485 = vld [vmem:[#allocation10 + $0x70] sm:$0xff]
    %v2486 = vld [vmem:[#allocation10 + $0x78] sm:$0xff]
    %v2487 = vld [vmem:[#allocation10 + $0x80] sm:$0xff]
    %v2488 = vld [vmem:[#allocation10 + $0x88] sm:$0xff]
    %v2489 = vld [vmem:[#allocation10 + $0x90] sm:$0xff]
    %v2490 = vld [vmem:[#allocation10 + $0x98] sm:$0xff]
    %v2491 = vld [vmem:[#allocation10 + $0xa0] sm:$0xff]
    %v2492 = vld [vmem:[#allocation10 + $0xa8] sm:$0xff]
    %v2493 = vld [vmem:[#allocation10 + $0xb0] sm:$0xff]
    %v2494 = vld [vmem:[#allocation10 + $0xb8] sm:$0xff]
    %v2495 = vld [vmem:[#allocation10 + $0xc0] sm:$0xff]
    %v2496 = vld [vmem:[#allocation10 + $0xc8] sm:$0xff]
    %v2497 = vld [vmem:[#allocation10 + $0xd0] sm:$0xff]
    %v2498 = vld [vmem:[#allocation10 + $0xd8] sm:$0xff]
    %v2499 = vld [vmem:[#allocation10 + $0xe0] sm:$0xff]
    %v2500 = vld [vmem:[#allocation10 + $0xe8] sm:$0xff]
    %v2501 = vld [vmem:[#allocation10 + $0xf0] sm:$0xff]
    %v2502 = vld [vmem:[#allocation10 + $0xf8] sm:$0xff]
    %v2535 = vunpack.c.l.b16 %v2471
    %v2536 = vunpack.c.h.b16 %v2471
    %v2537 = vunpack.c.l.b16 %v2472
    %v2538 = vunpack.c.h.b16 %v2472
    %v2539 = vunpack.c.l.b16 %v2473
    %v2540 = vunpack.c.h.b16 %v2473
    %v2541 = vunpack.c.l.b16 %v2474
    %v2542 = vunpack.c.h.b16 %v2474
    %v2543 = vunpack.c.l.b16 %v2475
    %v2544 = vunpack.c.h.b16 %v2475
    %v2545 = vunpack.c.l.b16 %v2476
    %v2546 = vunpack.c.h.b16 %v2476
    %v2547 = vunpack.c.l.b16 %v2477
    %v2548 = vunpack.c.h.b16 %v2477
    %v2549 = vunpack.c.l.b16 %v2478
    %v2550 = vunpack.c.h.b16 %v2478
    %v2551 = vunpack.c.l.b16 %v2479
    %v2552 = vunpack.c.h.b16 %v2479
    %v2553 = vunpack.c.l.b16 %v2480
    %v2554 = vunpack.c.h.b16 %v2480
    %v2555 = vunpack.c.l.b16 %v2481
    %v2556 = vunpack.c.h.b16 %v2481
    %v2557 = vunpack.c.l.b16 %v2482
    %v2558 = vunpack.c.h.b16 %v2482
    %v2559 = vunpack.c.l.b16 %v2483
    %v2560 = vunpack.c.h.b16 %v2483
    %v2561 = vunpack.c.l.b16 %v2484
    %v2562 = vunpack.c.h.b16 %v2484
    %v2563 = vunpack.c.l.b16 %v2485
    %v2564 = vunpack.c.h.b16 %v2485
    %v2565 = vunpack.c.l.b16 %v2486
    %v2566 = vunpack.c.h.b16 %v2486
    %v2567 = vunpack.c.l.b16 %v2487
    %v2568 = vunpack.c.h.b16 %v2487
    %v2569 = vunpack.c.l.b16 %v2488
    %v2570 = vunpack.c.h.b16 %v2488
    %v2571 = vunpack.c.l.b16 %v2489
    %v2572 = vunpack.c.h.b16 %v2489
    %v2573 = vunpack.c.l.b16 %v2490
    %v2574 = vunpack.c.h.b16 %v2490
    %v2575 = vunpack.c.l.b16 %v2491
    %v2576 = vunpack.c.h.b16 %v2491
    %v2577 = vunpack.c.l.b16 %v2492
    %v2578 = vunpack.c.h.b16 %v2492
    %v2579 = vunpack.c.l.b16 %v2493
    %v2580 = vunpack.c.h.b16 %v2493
    %v2581 = vunpack.c.l.b16 %v2494
    %v2582 = vunpack.c.h.b16 %v2494
    %v2583 = vunpack.c.l.b16 %v2495
    %v2584 = vunpack.c.h.b16 %v2495
    %v2585 = vunpack.c.l.b16 %v2496
    %v2586 = vunpack.c.h.b16 %v2496
    %v2587 = vunpack.c.l.b16 %v2497
    %v2588 = vunpack.c.h.b16 %v2497
    %v2589 = vunpack.c.l.b16 %v2498
    %v2590 = vunpack.c.h.b16 %v2498
    %v2591 = vunpack.c.l.b16 %v2499
    %v2592 = vunpack.c.h.b16 %v2499
    %v2593 = vunpack.c.l.b16 %v2500
    %v2594 = vunpack.c.h.b16 %v2500
    %v2595 = vunpack.c.l.b16 %v2501
    %v2596 = vunpack.c.h.b16 %v2501
    %v2597 = vunpack.c.l.b16 %v2502
    %v2598 = vunpack.c.h.b16 %v2502
    %v2599 = vpack.c.b16 %v2539, %v2535
    %v2600 = vpack.c.b16 %v2540, %v2536
    %v2601 = vpack.c.b16 %v2541, %v2537
    %v2602 = vpack.c.b16 %v2542, %v2538
    %v2603 = vpack.c.b16 %v2547, %v2543
    %v2604 = vpack.c.b16 %v2548, %v2544
    %v2605 = vpack.c.b16 %v2549, %v2545
    %v2606 = vpack.c.b16 %v2550, %v2546
    %v2607 = vpack.c.b16 %v2555, %v2551
    %v2608 = vpack.c.b16 %v2556, %v2552
    %v2609 = vpack.c.b16 %v2557, %v2553
    %v2610 = vpack.c.b16 %v2558, %v2554
    %v2611 = vpack.c.b16 %v2563, %v2559
    %v2612 = vpack.c.b16 %v2564, %v2560
    %v2613 = vpack.c.b16 %v2565, %v2561
    %v2614 = vpack.c.b16 %v2566, %v2562
    %v2615 = vpack.c.b16 %v2571, %v2567
    %v2616 = vpack.c.b16 %v2572, %v2568
    %v2617 = vpack.c.b16 %v2573, %v2569
    %v2618 = vpack.c.b16 %v2574, %v2570
    %v2619 = vpack.c.b16 %v2579, %v2575
    %v2620 = vpack.c.b16 %v2580, %v2576
    %v2621 = vpack.c.b16 %v2581, %v2577
    %v2622 = vpack.c.b16 %v2582, %v2578
    %v2623 = vpack.c.b16 %v2587, %v2583
    %v2624 = vpack.c.b16 %v2588, %v2584
    %v2625 = vpack.c.b16 %v2589, %v2585
    %v2626 = vpack.c.b16 %v2590, %v2586
    %v2627 = vpack.c.b16 %v2595, %v2591
    %v2628 = vpack.c.b16 %v2596, %v2592
    %v2629 = vpack.c.b16 %v2597, %v2593
    %v2630 = vpack.c.b16 %v2598, %v2594
    %2663 = vmatprep.subr.bf16.mxu0 %v2628
    %2664 = vmatpush1.bf16.msra.mxu0 %v2627
    %2665 = vmatprep.subr.bf16.mxu0 %v2624
    %2666 = vmatpush1.bf16.msra.mxu0 %v2623
    %2667 = vmatprep.subr.bf16.mxu0 %v2620
    %2668 = vmatpush1.bf16.msra.mxu0 %v2619
    %2669 = vmatprep.subr.bf16.mxu0 %v2616
    %2670 = vmatpush1.bf16.msra.mxu0 %v2615
    %2671 = vmatprep.subr.bf16.mxu0 %v2612
    %2672 = vmatpush1.bf16.msra.mxu0 %v2611
    %2673 = vmatprep.subr.bf16.mxu0 %v2608
    %2674 = vmatpush1.bf16.msra.mxu0 %v2607
    %2675 = vmatprep.subr.bf16.mxu0 %v2604
    %2676 = vmatpush1.bf16.msra.mxu0 %v2603
    %2677 = vmatprep.subr.bf16.mxu0 %v2600
    %2678 = vmatpush1.bf16.msra.mxu0 %v2599
    %2679 = vmatprep.subr.bf16.mxu0 0
    %2680 = vmatpush2.bf16.msra.mxu0 0
    %2681 = vmatprep.subr.bf16.mxu0 0
    %2682 = vmatpush2.bf16.msra.mxu0 0
    %2683 = vmatprep.subr.bf16.mxu0 0
    %2684 = vmatpush2.bf16.msra.mxu0 0
    %2685 = vmatprep.subr.bf16.mxu0 0
    %2686 = vmatpush2.bf16.msra.mxu0 0
    %2687 = vmatprep.subr.bf16.mxu0 0
    %2688 = vmatpush2.bf16.msra.mxu0 0
    %2689 = vmatprep.subr.bf16.mxu0 0
    %2690 = vmatpush2.bf16.msra.mxu0 0
    %2691 = vmatprep.subr.bf16.mxu0 0
    %2692 = vmatpush2.bf16.msra.mxu0 0
    %2693 = vmatprep.subr.bf16.mxu0 0
    %2694 = vmatpush2.bf16.msra.mxu0 0
    %2695 = vmatprep.mubr.bf16.mxu0 0
    %2696 = vmatmul.mubr.bf16.gmra.mxu0 %v2470
    %v2697 = vpop.f32.mrf.mxu0
    %v2698 = vadd.f32 0.0, %v2697
    %v2699 = vpop.f32.mrf.mxu0
    %v2700 = vadd.f32 0.0, %v2699
    %v2701 = vpop.f32.mrf.mxu0
    %v2702 = vpop.f32.mrf.mxu0
    %2703 = vdwg.mxu0
    %2704 = vmatprep.subr.bf16.mxu0 %v2630
    %2705 = vmatpush1.bf16.msra.mxu0 %v2629
    %2706 = vmatprep.subr.bf16.mxu0 %v2626
    %2707 = vmatpush1.bf16.msra.mxu0 %v2625
    %2708 = vmatprep.subr.bf16.mxu0 %v2622
    %2709 = vmatpush1.bf16.msra.mxu0 %v2621
    %2710 = vmatprep.subr.bf16.mxu0 %v2618
    %2711 = vmatpush1.bf16.msra.mxu0 %v2617
    %2712 = vmatprep.subr.bf16.mxu0 %v2614
    %2713 = vmatpush1.bf16.msra.mxu0 %v2613
    %2714 = vmatprep.subr.bf16.mxu0 %v2610
    %2715 = vmatpush1.bf16.msra.mxu0 %v2609
    %2716 = vmatprep.subr.bf16.mxu0 %v2606
    %2717 = vmatpush1.bf16.msra.mxu0 %v2605
    %2718 = vmatprep.subr.bf16.mxu0 %v2602
    %2719 = vmatpush1.bf16.msra.mxu0 %v2601
    %2720 = vmatprep.subr.bf16.mxu0 0
    %2721 = vmatpush2.bf16.msra.mxu0 0
    %2722 = vmatprep.subr.bf16.mxu0 0
    %2723 = vmatpush2.bf16.msra.mxu0 0
    %2724 = vmatprep.subr.bf16.mxu0 0
    %2725 = vmatpush2.bf16.msra.mxu0 0
    %2726 = vmatprep.subr.bf16.mxu0 0
    %2727 = vmatpush2.bf16.msra.mxu0 0
    %2728 = vmatprep.subr.bf16.mxu0 0
    %2729 = vmatpush2.bf16.msra.mxu0 0
    %2730 = vmatprep.subr.bf16.mxu0 0
    %2731 = vmatpush2.bf16.msra.mxu0 0
    %2732 = vmatprep.subr.bf16.mxu0 0
    %2733 = vmatpush2.bf16.msra.mxu0 0
    %2734 = vmatprep.subr.bf16.mxu0 0
    %2735 = vmatpush2.bf16.msra.mxu0 0
    %2736 = vmatprep.mubr.bf16.mxu0 0
    %2737 = vmatmul.mubr.bf16.gmra.mxu0 %v2470
    %v2738 = vpop.f32.mrf.mxu0
    %v2739 = vadd.f32 0.0, %v2738
    %v2740 = vpop.f32.mrf.mxu0
    %v2741 = vadd.f32 0.0, %v2740
    %v2742 = vpop.f32.mrf.mxu0
    %v2743 = vpop.f32.mrf.mxu0
    %2744 = vdwg.mxu0
    %v2745 = vadd.f32 %v2466, %v2698
    %v2746 = vadd.f32 %v2467, %v2700
    %v2747 = vadd.f32 %v2468, %v2739
    %v2748 = vadd.f32 %v2469, %v2741
    %v2749 = vxor.u32 %v2459, 2147483648
    %v2750 = vmul.f32 %v2749, 1.442695
    %v2751 = vpow.pop %v2750
    %v2752 = vadd.f32 %v2751, 1.0
    %v2753 = vrcp.pop %v2752
    %v2754 = vmul.f32 1.0, %v2753
    %v2755 = vxor.u32 %v2460, 2147483648
    %v2756 = vmul.f32 %v2755, 1.442695
    %v2757 = vpow.pop %v2756
    %v2758 = vadd.f32 %v2757, 1.0
    %v2759 = vrcp.pop %v2758
    %v2760 = vmul.f32 1.0, %v2759
    %v2761 = vtanh.pop %v2461
    %v2762 = vxor.u32 %v2462, 2147483648
    %v2763 = vmul.f32 %v2762, 1.442695
    %v2764 = vpow.pop %v2763
    %v2765 = vadd.f32 %v2764, 1.0
    %v2766 = vrcp.pop %v2765
    %v2767 = vmul.f32 1.0, %v2766
    %v2768 = vmul.f32 %v2760, %v2142
    %v2769 = vmul.f32 %v2754, %v2761
    %v2770 = vadd.f32 %v2768, %v2769
    %v2771 = vtanh.pop %v2770
    %v2772 = vmul.f32 %v2767, %v2771
    %v2773 = vxor.u32 %v2745, 2147483648
    %v2774 = vmul.f32 %v2773, 1.442695
    %v2775 = vpow.pop %v2774
    %v2776 = vadd.f32 %v2775, 1.0
    %v2777 = vrcp.pop %v2776
    %v2778 = vmul.f32 1.0, %v2777
    %v2779 = vxor.u32 %v2746, 2147483648
    %v2780 = vmul.f32 %v2779, 1.442695
    %v2781 = vpow.pop %v2780
    %v2782 = vadd.f32 %v2781, 1.0
    %v2783 = vrcp.pop %v2782
    %v2784 = vmul.f32 1.0, %v2783
    %v2785 = vtanh.pop %v2747
    %v2786 = vxor.u32 %v2748, 2147483648
    %v2787 = vmul.f32 %v2786, 1.442695
    %v2788 = vpow.pop %v2787
    %v2789 = vadd.f32 %v2788, 1.0
    %v2790 = vrcp.pop %v2789
    %v2791 = vmul.f32 1.0, %v2790
    %v2792 = vmul.f32 %v2784, %v2166
    %v2793 = vmul.f32 %v2778, %v2785
    %v2794 = vadd.f32 %v2792, %v2793
    %v2795 = vtanh.pop %v2794
    %v2796 = vmul.f32 %v2791, %v2795
    %s2797 = smul.u32 2, 2
    %s2798 = smul.addr %s2797, 8
    %s2799 = scalar_lea.vmem [#allocation4], %s2798
    %2800 = vst [vmem:[%s2799] sm:$0xff] %v2772
    %s2801 = smul.u32 5, 2
    %s2802 = smul.addr %s2801, 8
    %s2803 = scalar_lea.vmem [#allocation4], %s2802
    %2804 = vst [vmem:[%s2803 + $0x8] sm:$0xff] %v2796
    %s2805 = smul.u32 3, 4
    %s2806 = smul.addr %s2805, 8
    %s2807 = scalar_lea.vmem [#allocation2], %s2806
    %v2808 = vld [vmem:[%s2807] sm:$0xff]
    %v2809 = vld [vmem:[%s2807 + $0x8] sm:$0xff]
    %v2810 = vld [vmem:[%s2807 + $0x10] sm:$0xff]
    %v2811 = vld [vmem:[%s2807 + $0x18] sm:$0xff]
    %v2812 = vpack.c.bf16 %v2772, %v2772
    %v2813 = vld [vmem:[#allocation9] sm:$0xff]
    %v2814 = vld [vmem:[#allocation9 + $0x8] sm:$0xff]
    %v2815 = vld [vmem:[#allocation9 + $0x10] sm:$0xff]
    %v2816 = vld [vmem:[#allocation9 + $0x18] sm:$0xff]
    %v2817 = vld [vmem:[#allocation9 + $0x20] sm:$0xff]
    %v2818 = vld [vmem:[#allocation9 + $0x28] sm:$0xff]
    %v2819 = vld [vmem:[#allocation9 + $0x30] sm:$0xff]
    %v2820 = vld [vmem:[#allocation9 + $0x38] sm:$0xff]
    %v2821 = vld [vmem:[#allocation9 + $0x40] sm:$0xff]
    %v2822 = vld [vmem:[#allocation9 + $0x48] sm:$0xff]
    %v2823 = vld [vmem:[#allocation9 + $0x50] sm:$0xff]
    %v2824 = vld [vmem:[#allocation9 + $0x58] sm:$0xff]
    %v2825 = vld [vmem:[#allocation9 + $0x60] sm:$0xff]
    %v2826 = vld [vmem:[#allocation9 + $0x68] sm:$0xff]
    %v2827 = vld [vmem:[#allocation9 + $0x70] sm:$0xff]
    %v2828 = vld [vmem:[#allocation9 + $0x78] sm:$0xff]
    %v2829 = vld [vmem:[#allocation9 + $0x80] sm:$0xff]
    %v2830 = vld [vmem:[#allocation9 + $0x88] sm:$0xff]
    %v2831 = vld [vmem:[#allocation9 + $0x90] sm:$0xff]
    %v2832 = vld [vmem:[#allocation9 + $0x98] sm:$0xff]
    %v2833 = vld [vmem:[#allocation9 + $0xa0] sm:$0xff]
    %v2834 = vld [vmem:[#allocation9 + $0xa8] sm:$0xff]
    %v2835 = vld [vmem:[#allocation9 + $0xb0] sm:$0xff]
    %v2836 = vld [vmem:[#allocation9 + $0xb8] sm:$0xff]
    %v2837 = vld [vmem:[#allocation9 + $0xc0] sm:$0xff]
    %v2838 = vld [vmem:[#allocation9 + $0xc8] sm:$0xff]
    %v2839 = vld [vmem:[#allocation9 + $0xd0] sm:$0xff]
    %v2840 = vld [vmem:[#allocation9 + $0xd8] sm:$0xff]
    %v2841 = vld [vmem:[#allocation9 + $0xe0] sm:$0xff]
    %v2842 = vld [vmem:[#allocation9 + $0xe8] sm:$0xff]
    %v2843 = vld [vmem:[#allocation9 + $0xf0] sm:$0xff]
    %v2844 = vld [vmem:[#allocation9 + $0xf8] sm:$0xff]
    %v2877 = vunpack.c.l.b16 %v2813
    %v2878 = vunpack.c.h.b16 %v2813
    %v2879 = vunpack.c.l.b16 %v2814
    %v2880 = vunpack.c.h.b16 %v2814
    %v2881 = vunpack.c.l.b16 %v2815
    %v2882 = vunpack.c.h.b16 %v2815
    %v2883 = vunpack.c.l.b16 %v2816
    %v2884 = vunpack.c.h.b16 %v2816
    %v2885 = vunpack.c.l.b16 %v2817
    %v2886 = vunpack.c.h.b16 %v2817
    %v2887 = vunpack.c.l.b16 %v2818
    %v2888 = vunpack.c.h.b16 %v2818
    %v2889 = vunpack.c.l.b16 %v2819
    %v2890 = vunpack.c.h.b16 %v2819
    %v2891 = vunpack.c.l.b16 %v2820
    %v2892 = vunpack.c.h.b16 %v2820
    %v2893 = vunpack.c.l.b16 %v2821
    %v2894 = vunpack.c.h.b16 %v2821
    %v2895 = vunpack.c.l.b16 %v2822
    %v2896 = vunpack.c.h.b16 %v2822
    %v2897 = vunpack.c.l.b16 %v2823
    %v2898 = vunpack.c.h.b16 %v2823
    %v2899 = vunpack.c.l.b16 %v2824
    %v2900 = vunpack.c.h.b16 %v2824
    %v2901 = vunpack.c.l.b16 %v2825
    %v2902 = vunpack.c.h.b16 %v2825
    %v2903 = vunpack.c.l.b16 %v2826
    %v2904 = vunpack.c.h.b16 %v2826
    %v2905 = vunpack.c.l.b16 %v2827
    %v2906 = vunpack.c.h.b16 %v2827
    %v2907 = vunpack.c.l.b16 %v2828
    %v2908 = vunpack.c.h.b16 %v2828
    %v2909 = vunpack.c.l.b16 %v2829
    %v2910 = vunpack.c.h.b16 %v2829
    %v2911 = vunpack.c.l.b16 %v2830
    %v2912 = vunpack.c.h.b16 %v2830
    %v2913 = vunpack.c.l.b16 %v2831
    %v2914 = vunpack.c.h.b16 %v2831
    %v2915 = vunpack.c.l.b16 %v2832
    %v2916 = vunpack.c.h.b16 %v2832
    %v2917 = vunpack.c.l.b16 %v2833
    %v2918 = vunpack.c.h.b16 %v2833
    %v2919 = vunpack.c.l.b16 %v2834
    %v2920 = vunpack.c.h.b16 %v2834
    %v2921 = vunpack.c.l.b16 %v2835
    %v2922 = vunpack.c.h.b16 %v2835
    %v2923 = vunpack.c.l.b16 %v2836
    %v2924 = vunpack.c.h.b16 %v2836
    %v2925 = vunpack.c.l.b16 %v2837
    %v2926 = vunpack.c.h.b16 %v2837
    %v2927 = vunpack.c.l.b16 %v2838
    %v2928 = vunpack.c.h.b16 %v2838
    %v2929 = vunpack.c.l.b16 %v2839
    %v2930 = vunpack.c.h.b16 %v2839
    %v2931 = vunpack.c.l.b16 %v2840
    %v2932 = vunpack.c.h.b16 %v2840
    %v2933 = vunpack.c.l.b16 %v2841
    %v2934 = vunpack.c.h.b16 %v2841
    %v2935 = vunpack.c.l.b16 %v2842
    %v2936 = vunpack.c.h.b16 %v2842
    %v2937 = vunpack.c.l.b16 %v2843
    %v2938 = vunpack.c.h.b16 %v2843
    %v2939 = vunpack.c.l.b16 %v2844
    %v2940 = vunpack.c.h.b16 %v2844
    %v2941 = vpack.c.b16 %v2881, %v2877
    %v2942 = vpack.c.b16 %v2882, %v2878
    %v2943 = vpack.c.b16 %v2883, %v2879
    %v2944 = vpack.c.b16 %v2884, %v2880
    %v2945 = vpack.c.b16 %v2889, %v2885
    %v2946 = vpack.c.b16 %v2890, %v2886
    %v2947 = vpack.c.b16 %v2891, %v2887
    %v2948 = vpack.c.b16 %v2892, %v2888
    %v2949 = vpack.c.b16 %v2897, %v2893
    %v2950 = vpack.c.b16 %v2898, %v2894
    %v2951 = vpack.c.b16 %v2899, %v2895
    %v2952 = vpack.c.b16 %v2900, %v2896
    %v2953 = vpack.c.b16 %v2905, %v2901
    %v2954 = vpack.c.b16 %v2906, %v2902
    %v2955 = vpack.c.b16 %v2907, %v2903
    %v2956 = vpack.c.b16 %v2908, %v2904
    %v2957 = vpack.c.b16 %v2913, %v2909
    %v2958 = vpack.c.b16 %v2914, %v2910
    %v2959 = vpack.c.b16 %v2915, %v2911
    %v2960 = vpack.c.b16 %v2916, %v2912
    %v2961 = vpack.c.b16 %v2921, %v2917
    %v2962 = vpack.c.b16 %v2922, %v2918
    %v2963 = vpack.c.b16 %v2923, %v2919
    %v2964 = vpack.c.b16 %v2924, %v2920
    %v2965 = vpack.c.b16 %v2929, %v2925
    %v2966 = vpack.c.b16 %v2930, %v2926
    %v2967 = vpack.c.b16 %v2931, %v2927
    %v2968 = vpack.c.b16 %v2932, %v2928
    %v2969 = vpack.c.b16 %v2937, %v2933
    %v2970 = vpack.c.b16 %v2938, %v2934
    %v2971 = vpack.c.b16 %v2939, %v2935
    %v2972 = vpack.c.b16 %v2940, %v2936
    %3005 = vmatprep.subr.bf16.mxu0 %v2970
    %3006 = vmatpush1.bf16.msra.mxu0 %v2969
    %3007 = vmatprep.subr.bf16.mxu0 %v2966
    %3008 = vmatpush1.bf16.msra.mxu0 %v2965
    %3009 = vmatprep.subr.bf16.mxu0 %v2962
    %3010 = vmatpush1.bf16.msra.mxu0 %v2961
    %3011 = vmatprep.subr.bf16.mxu0 %v2958
    %3012 = vmatpush1.bf16.msra.mxu0 %v2957
    %3013 = vmatprep.subr.bf16.mxu0 %v2954
    %3014 = vmatpush1.bf16.msra.mxu0 %v2953
    %3015 = vmatprep.subr.bf16.mxu0 %v2950
    %3016 = vmatpush1.bf16.msra.mxu0 %v2949
    %3017 = vmatprep.subr.bf16.mxu0 %v2946
    %3018 = vmatpush1.bf16.msra.mxu0 %v2945
    %3019 = vmatprep.subr.bf16.mxu0 %v2942
    %3020 = vmatpush1.bf16.msra.mxu0 %v2941
    %3021 = vmatprep.subr.bf16.mxu0 0
    %3022 = vmatpush2.bf16.msra.mxu0 0
    %3023 = vmatprep.subr.bf16.mxu0 0
    %3024 = vmatpush2.bf16.msra.mxu0 0
    %3025 = vmatprep.subr.bf16.mxu0 0
    %3026 = vmatpush2.bf16.msra.mxu0 0
    %3027 = vmatprep.subr.bf16.mxu0 0
    %3028 = vmatpush2.bf16.msra.mxu0 0
    %3029 = vmatprep.subr.bf16.mxu0 0
    %3030 = vmatpush2.bf16.msra.mxu0 0
    %3031 = vmatprep.subr.bf16.mxu0 0
    %3032 = vmatpush2.bf16.msra.mxu0 0
    %3033 = vmatprep.subr.bf16.mxu0 0
    %3034 = vmatpush2.bf16.msra.mxu0 0
    %3035 = vmatprep.subr.bf16.mxu0 0
    %3036 = vmatpush2.bf16.msra.mxu0 0
    %3037 = vmatprep.mubr.bf16.mxu0 0
    %3038 = vmatmul.mubr.bf16.gmra.mxu0 %v2812
    %v3039 = vpop.f32.mrf.mxu0
    %v3040 = vadd.f32 0.0, %v3039
    %v3041 = vpop.f32.mrf.mxu0
    %v3042 = vadd.f32 0.0, %v3041
    %v3043 = vpop.f32.mrf.mxu0
    %v3044 = vpop.f32.mrf.mxu0
    %3045 = vdwg.mxu0
    %3046 = vmatprep.subr.bf16.mxu0 %v2972
    %3047 = vmatpush1.bf16.msra.mxu0 %v2971
    %3048 = vmatprep.subr.bf16.mxu0 %v2968
    %3049 = vmatpush1.bf16.msra.mxu0 %v2967
    %3050 = vmatprep.subr.bf16.mxu0 %v2964
    %3051 = vmatpush1.bf16.msra.mxu0 %v2963
    %3052 = vmatprep.subr.bf16.mxu0 %v2960
    %3053 = vmatpush1.bf16.msra.mxu0 %v2959
    %3054 = vmatprep.subr.bf16.mxu0 %v2956
    %3055 = vmatpush1.bf16.msra.mxu0 %v2955
    %3056 = vmatprep.subr.bf16.mxu0 %v2952
    %3057 = vmatpush1.bf16.msra.mxu0 %v2951
    %3058 = vmatprep.subr.bf16.mxu0 %v2948
    %3059 = vmatpush1.bf16.msra.mxu0 %v2947
    %3060 = vmatprep.subr.bf16.mxu0 %v2944
    %3061 = vmatpush1.bf16.msra.mxu0 %v2943
    %3062 = vmatprep.subr.bf16.mxu0 0
    %3063 = vmatpush2.bf16.msra.mxu0 0
    %3064 = vmatprep.subr.bf16.mxu0 0
    %3065 = vmatpush2.bf16.msra.mxu0 0
    %3066 = vmatprep.subr.bf16.mxu0 0
    %3067 = vmatpush2.bf16.msra.mxu0 0
    %3068 = vmatprep.subr.bf16.mxu0 0
    %3069 = vmatpush2.bf16.msra.mxu0 0
    %3070 = vmatprep.subr.bf16.mxu0 0
    %3071 = vmatpush2.bf16.msra.mxu0 0
    %3072 = vmatprep.subr.bf16.mxu0 0
    %3073 = vmatpush2.bf16.msra.mxu0 0
    %3074 = vmatprep.subr.bf16.mxu0 0
    %3075 = vmatpush2.bf16.msra.mxu0 0
    %3076 = vmatprep.subr.bf16.mxu0 0
    %3077 = vmatpush2.bf16.msra.mxu0 0
    %3078 = vmatprep.mubr.bf16.mxu0 0
    %3079 = vmatmul.mubr.bf16.gmra.mxu0 %v2812
    %v3080 = vpop.f32.mrf.mxu0
    %v3081 = vadd.f32 0.0, %v3080
    %v3082 = vpop.f32.mrf.mxu0
    %v3083 = vadd.f32 0.0, %v3082
    %v3084 = vpop.f32.mrf.mxu0
    %v3085 = vpop.f32.mrf.mxu0
    %3086 = vdwg.mxu0
    %v3087 = vadd.f32 %v2808, %v3040
    %v3088 = vadd.f32 %v2809, %v3042
    %v3089 = vadd.f32 %v2810, %v3081
    %v3090 = vadd.f32 %v2811, %v3083
    %s3091 = smul.u32 4, 4
    %s3092 = smul.addr %s3091, 8
    %s3093 = scalar_lea.vmem [#allocation3], %s3092
    %v3094 = vld [vmem:[%s3093] sm:$0xff]
    %v3095 = vld [vmem:[%s3093 + $0x8] sm:$0xff]
    %v3096 = vld [vmem:[%s3093 + $0x10] sm:$0xff]
    %v3097 = vld [vmem:[%s3093 + $0x18] sm:$0xff]
    %v3098 = vpack.c.bf16 %v2796, %v2796
    %v3099 = vld [vmem:[#allocation10] sm:$0xff]
    %v3100 = vld [vmem:[#allocation10 + $0x8] sm:$0xff]
    %v3101 = vld [vmem:[#allocation10 + $0x10] sm:$0xff]
    %v3102 = vld [vmem:[#allocation10 + $0x18] sm:$0xff]
    %v3103 = vld [vmem:[#allocation10 + $0x20] sm:$0xff]
    %v3104 = vld [vmem:[#allocation10 + $0x28] sm:$0xff]
    %v3105 = vld [vmem:[#allocation10 + $0x30] sm:$0xff]
    %v3106 = vld [vmem:[#allocation10 + $0x38] sm:$0xff]
    %v3107 = vld [vmem:[#allocation10 + $0x40] sm:$0xff]
    %v3108 = vld [vmem:[#allocation10 + $0x48] sm:$0xff]
    %v3109 = vld [vmem:[#allocation10 + $0x50] sm:$0xff]
    %v3110 = vld [vmem:[#allocation10 + $0x58] sm:$0xff]
    %v3111 = vld [vmem:[#allocation10 + $0x60] sm:$0xff]
    %v3112 = vld [vmem:[#allocation10 + $0x68] sm:$0xff]
    %v3113 = vld [vmem:[#allocation10 + $0x70] sm:$0xff]
    %v3114 = vld [vmem:[#allocation10 + $0x78] sm:$0xff]
    %v3115 = vld [vmem:[#allocation10 + $0x80] sm:$0xff]
    %v3116 = vld [vmem:[#allocation10 + $0x88] sm:$0xff]
    %v3117 = vld [vmem:[#allocation10 + $0x90] sm:$0xff]
    %v3118 = vld [vmem:[#allocation10 + $0x98] sm:$0xff]
    %v3119 = vld [vmem:[#allocation10 + $0xa0] sm:$0xff]
    %v3120 = vld [vmem:[#allocation10 + $0xa8] sm:$0xff]
    %v3121 = vld [vmem:[#allocation10 + $0xb0] sm:$0xff]
    %v3122 = vld [vmem:[#allocation10 + $0xb8] sm:$0xff]
    %v3123 = vld [vmem:[#allocation10 + $0xc0] sm:$0xff]
    %v3124 = vld [vmem:[#allocation10 + $0xc8] sm:$0xff]
    %v3125 = vld [vmem:[#allocation10 + $0xd0] sm:$0xff]
    %v3126 = vld [vmem:[#allocation10 + $0xd8] sm:$0xff]
    %v3127 = vld [vmem:[#allocation10 + $0xe0] sm:$0xff]
    %v3128 = vld [vmem:[#allocation10 + $0xe8] sm:$0xff]
    %v3129 = vld [vmem:[#allocation10 + $0xf0] sm:$0xff]
    %v3130 = vld [vmem:[#allocation10 + $0xf8] sm:$0xff]
    %v3163 = vunpack.c.l.b16 %v3099
    %v3164 = vunpack.c.h.b16 %v3099
    %v3165 = vunpack.c.l.b16 %v3100
    %v3166 = vunpack.c.h.b16 %v3100
    %v3167 = vunpack.c.l.b16 %v3101
    %v3168 = vunpack.c.h.b16 %v3101
    %v3169 = vunpack.c.l.b16 %v3102
    %v3170 = vunpack.c.h.b16 %v3102
    %v3171 = vunpack.c.l.b16 %v3103
    %v3172 = vunpack.c.h.b16 %v3103
    %v3173 = vunpack.c.l.b16 %v3104
    %v3174 = vunpack.c.h.b16 %v3104
    %v3175 = vunpack.c.l.b16 %v3105
    %v3176 = vunpack.c.h.b16 %v3105
    %v3177 = vunpack.c.l.b16 %v3106
    %v3178 = vunpack.c.h.b16 %v3106
    %v3179 = vunpack.c.l.b16 %v3107
    %v3180 = vunpack.c.h.b16 %v3107
    %v3181 = vunpack.c.l.b16 %v3108
    %v3182 = vunpack.c.h.b16 %v3108
    %v3183 = vunpack.c.l.b16 %v3109
    %v3184 = vunpack.c.h.b16 %v3109
    %v3185 = vunpack.c.l.b16 %v3110
    %v3186 = vunpack.c.h.b16 %v3110
    %v3187 = vunpack.c.l.b16 %v3111
    %v3188 = vunpack.c.h.b16 %v3111
    %v3189 = vunpack.c.l.b16 %v3112
    %v3190 = vunpack.c.h.b16 %v3112
    %v3191 = vunpack.c.l.b16 %v3113
    %v3192 = vunpack.c.h.b16 %v3113
    %v3193 = vunpack.c.l.b16 %v3114
    %v3194 = vunpack.c.h.b16 %v3114
    %v3195 = vunpack.c.l.b16 %v3115
    %v3196 = vunpack.c.h.b16 %v3115
    %v3197 = vunpack.c.l.b16 %v3116
    %v3198 = vunpack.c.h.b16 %v3116
    %v3199 = vunpack.c.l.b16 %v3117
    %v3200 = vunpack.c.h.b16 %v3117
    %v3201 = vunpack.c.l.b16 %v3118
    %v3202 = vunpack.c.h.b16 %v3118
    %v3203 = vunpack.c.l.b16 %v3119
    %v3204 = vunpack.c.h.b16 %v3119
    %v3205 = vunpack.c.l.b16 %v3120
    %v3206 = vunpack.c.h.b16 %v3120
    %v3207 = vunpack.c.l.b16 %v3121
    %v3208 = vunpack.c.h.b16 %v3121
    %v3209 = vunpack.c.l.b16 %v3122
    %v3210 = vunpack.c.h.b16 %v3122
    %v3211 = vunpack.c.l.b16 %v3123
    %v3212 = vunpack.c.h.b16 %v3123
    %v3213 = vunpack.c.l.b16 %v3124
    %v3214 = vunpack.c.h.b16 %v3124
    %v3215 = vunpack.c.l.b16 %v3125
    %v3216 = vunpack.c.h.b16 %v3125
    %v3217 = vunpack.c.l.b16 %v3126
    %v3218 = vunpack.c.h.b16 %v3126
    %v3219 = vunpack.c.l.b16 %v3127
    %v3220 = vunpack.c.h.b16 %v3127
    %v3221 = vunpack.c.l.b16 %v3128
    %v3222 = vunpack.c.h.b16 %v3128
    %v3223 = vunpack.c.l.b16 %v3129
    %v3224 = vunpack.c.h.b16 %v3129
    %v3225 = vunpack.c.l.b16 %v3130
    %v3226 = vunpack.c.h.b16 %v3130
    %v3227 = vpack.c.b16 %v3167, %v3163
    %v3228 = vpack.c.b16 %v3168, %v3164
    %v3229 = vpack.c.b16 %v3169, %v3165
    %v3230 = vpack.c.b16 %v3170, %v3166
    %v3231 = vpack.c.b16 %v3175, %v3171
    %v3232 = vpack.c.b16 %v3176, %v3172
    %v3233 = vpack.c.b16 %v3177, %v3173
    %v3234 = vpack.c.b16 %v3178, %v3174
    %v3235 = vpack.c.b16 %v3183, %v3179
    %v3236 = vpack.c.b16 %v3184, %v3180
    %v3237 = vpack.c.b16 %v3185, %v3181
    %v3238 = vpack.c.b16 %v3186, %v3182
    %v3239 = vpack.c.b16 %v3191, %v3187
    %v3240 = vpack.c.b16 %v3192, %v3188
    %v3241 = vpack.c.b16 %v3193, %v3189
    %v3242 = vpack.c.b16 %v3194, %v3190
    %v3243 = vpack.c.b16 %v3199, %v3195
    %v3244 = vpack.c.b16 %v3200, %v3196
    %v3245 = vpack.c.b16 %v3201, %v3197
    %v3246 = vpack.c.b16 %v3202, %v3198
    %v3247 = vpack.c.b16 %v3207, %v3203
    %v3248 = vpack.c.b16 %v3208, %v3204
    %v3249 = vpack.c.b16 %v3209, %v3205
    %v3250 = vpack.c.b16 %v3210, %v3206
    %v3251 = vpack.c.b16 %v3215, %v3211
    %v3252 = vpack.c.b16 %v3216, %v3212
    %v3253 = vpack.c.b16 %v3217, %v3213
    %v3254 = vpack.c.b16 %v3218, %v3214
    %v3255 = vpack.c.b16 %v3223, %v3219
    %v3256 = vpack.c.b16 %v3224, %v3220
    %v3257 = vpack.c.b16 %v3225, %v3221
    %v3258 = vpack.c.b16 %v3226, %v3222
    %3291 = vmatprep.subr.bf16.mxu0 %v3256
    %3292 = vmatpush1.bf16.msra.mxu0 %v3255
    %3293 = vmatprep.subr.bf16.mxu0 %v3252
    %3294 = vmatpush1.bf16.msra.mxu0 %v3251
    %3295 = vmatprep.subr.bf16.mxu0 %v3248
    %3296 = vmatpush1.bf16.msra.mxu0 %v3247
    %3297 = vmatprep.subr.bf16.mxu0 %v3244
    %3298 = vmatpush1.bf16.msra.mxu0 %v3243
    %3299 = vmatprep.subr.bf16.mxu0 %v3240
    %3300 = vmatpush1.bf16.msra.mxu0 %v3239
    %3301 = vmatprep.subr.bf16.mxu0 %v3236
    %3302 = vmatpush1.bf16.msra.mxu0 %v3235
    %3303 = vmatprep.subr.bf16.mxu0 %v3232
    %3304 = vmatpush1.bf16.msra.mxu0 %v3231
    %3305 = vmatprep.subr.bf16.mxu0 %v3228
    %3306 = vmatpush1.bf16.msra.mxu0 %v3227
    %3307 = vmatprep.subr.bf16.mxu0 0
    %3308 = vmatpush2.bf16.msra.mxu0 0
    %3309 = vmatprep.subr.bf16.mxu0 0
    %3310 = vmatpush2.bf16.msra.mxu0 0
    %3311 = vmatprep.subr.bf16.mxu0 0
    %3312 = vmatpush2.bf16.msra.mxu0 0
    %3313 = vmatprep.subr.bf16.mxu0 0
    %3314 = vmatpush2.bf16.msra.mxu0 0
    %3315 = vmatprep.subr.bf16.mxu0 0
    %3316 = vmatpush2.bf16.msra.mxu0 0
    %3317 = vmatprep.subr.bf16.mxu0 0
    %3318 = vmatpush2.bf16.msra.mxu0 0
    %3319 = vmatprep.subr.bf16.mxu0 0
    %3320 = vmatpush2.bf16.msra.mxu0 0
    %3321 = vmatprep.subr.bf16.mxu0 0
    %3322 = vmatpush2.bf16.msra.mxu0 0
    %3323 = vmatprep.mubr.bf16.mxu0 0
    %3324 = vmatmul.mubr.bf16.gmra.mxu0 %v3098
    %v3325 = vpop.f32.mrf.mxu0
    %v3326 = vadd.f32 0.0, %v3325
    %v3327 = vpop.f32.mrf.mxu0
    %v3328 = vadd.f32 0.0, %v3327
    %v3329 = vpop.f32.mrf.mxu0
    %v3330 = vpop.f32.mrf.mxu0
    %3331 = vdwg.mxu0
    %3332 = vmatprep.subr.bf16.mxu0 %v3258
    %3333 = vmatpush1.bf16.msra.mxu0 %v3257
    %3334 = vmatprep.subr.bf16.mxu0 %v3254
    %3335 = vmatpush1.bf16.msra.mxu0 %v3253
    %3336 = vmatprep.subr.bf16.mxu0 %v3250
    %3337 = vmatpush1.bf16.msra.mxu0 %v3249
    %3338 = vmatprep.subr.bf16.mxu0 %v3246
    %3339 = vmatpush1.bf16.msra.mxu0 %v3245
    %3340 = vmatprep.subr.bf16.mxu0 %v3242
    %3341 = vmatpush1.bf16.msra.mxu0 %v3241
    %3342 = vmatprep.subr.bf16.mxu0 %v3238
    %3343 = vmatpush1.bf16.msra.mxu0 %v3237
    %3344 = vmatprep.subr.bf16.mxu0 %v3234
    %3345 = vmatpush1.bf16.msra.mxu0 %v3233
    %3346 = vmatprep.subr.bf16.mxu0 %v3230
    %3347 = vmatpush1.bf16.msra.mxu0 %v3229
    %3348 = vmatprep.subr.bf16.mxu0 0
    %3349 = vmatpush2.bf16.msra.mxu0 0
    %3350 = vmatprep.subr.bf16.mxu0 0
    %3351 = vmatpush2.bf16.msra.mxu0 0
    %3352 = vmatprep.subr.bf16.mxu0 0
    %3353 = vmatpush2.bf16.msra.mxu0 0
    %3354 = vmatprep.subr.bf16.mxu0 0
    %3355 = vmatpush2.bf16.msra.mxu0 0
    %3356 = vmatprep.subr.bf16.mxu0 0
    %3357 = vmatpush2.bf16.msra.mxu0 0
    %3358 = vmatprep.subr.bf16.mxu0 0
    %3359 = vmatpush2.bf16.msra.mxu0 0
    %3360 = vmatprep.subr.bf16.mxu0 0
    %3361 = vmatpush2.bf16.msra.mxu0 0
    %3362 = vmatprep.subr.bf16.mxu0 0
    %3363 = vmatpush2.bf16.msra.mxu0 0
    %3364 = vmatprep.mubr.bf16.mxu0 0
    %3365 = vmatmul.mubr.bf16.gmra.mxu0 %v3098
    %v3366 = vpop.f32.mrf.mxu0
    %v3367 = vadd.f32 0.0, %v3366
    %v3368 = vpop.f32.mrf.mxu0
    %v3369 = vadd.f32 0.0, %v3368
    %v3370 = vpop.f32.mrf.mxu0
    %v3371 = vpop.f32.mrf.mxu0
    %3372 = vdwg.mxu0
    %v3373 = vadd.f32 %v3094, %v3326
    %v3374 = vadd.f32 %v3095, %v3328
    %v3375 = vadd.f32 %v3096, %v3367
    %v3376 = vadd.f32 %v3097, %v3369
    %v3377 = vxor.u32 %v3087, 2147483648
    %v3378 = vmul.f32 %v3377, 1.442695
    %v3379 = vpow.pop %v3378
    %v3380 = vadd.f32 %v3379, 1.0
    %v3381 = vrcp.pop %v3380
    %v3382 = vmul.f32 1.0, %v3381
    %v3383 = vxor.u32 %v3088, 2147483648
    %v3384 = vmul.f32 %v3383, 1.442695
    %v3385 = vpow.pop %v3384
    %v3386 = vadd.f32 %v3385, 1.0
    %v3387 = vrcp.pop %v3386
    %v3388 = vmul.f32 1.0, %v3387
    %v3389 = vtanh.pop %v3089
    %v3390 = vxor.u32 %v3090, 2147483648
    %v3391 = vmul.f32 %v3390, 1.442695
    %v3392 = vpow.pop %v3391
    %v3393 = vadd.f32 %v3392, 1.0
    %v3394 = vrcp.pop %v3393
    %v3395 = vmul.f32 1.0, %v3394
    %v3396 = vmul.f32 %v3388, %v2770
    %v3397 = vmul.f32 %v3382, %v3389
    %v3398 = vadd.f32 %v3396, %v3397
    %v3399 = vtanh.pop %v3398
    %v3400 = vmul.f32 %v3395, %v3399
    %v3401 = vxor.u32 %v3373, 2147483648
    %v3402 = vmul.f32 %v3401, 1.442695
    %v3403 = vpow.pop %v3402
    %v3404 = vadd.f32 %v3403, 1.0
    %v3405 = vrcp.pop %v3404
    %v3406 = vmul.f32 1.0, %v3405
    %v3407 = vxor.u32 %v3374, 2147483648
    %v3408 = vmul.f32 %v3407, 1.442695
    %v3409 = vpow.pop %v3408
    %v3410 = vadd.f32 %v3409, 1.0
    %v3411 = vrcp.pop %v3410
    %v3412 = vmul.f32 1.0, %v3411
    %v3413 = vtanh.pop %v3375
    %v3414 = vxor.u32 %v3376, 2147483648
    %v3415 = vmul.f32 %v3414, 1.442695
    %v3416 = vpow.pop %v3415
    %v3417 = vadd.f32 %v3416, 1.0
    %v3418 = vrcp.pop %v3417
    %v3419 = vmul.f32 1.0, %v3418
    %v3420 = vmul.f32 %v3412, %v2794
    %v3421 = vmul.f32 %v3406, %v3413
    %v3422 = vadd.f32 %v3420, %v3421
    %v3423 = vtanh.pop %v3422
    %v3424 = vmul.f32 %v3419, %v3423
    %s3425 = smul.u32 3, 2
    %s3426 = smul.addr %s3425, 8
    %s3427 = scalar_lea.vmem [#allocation4], %s3426
    %3428 = vst [vmem:[%s3427] sm:$0xff] %v3400
    %s3429 = smul.u32 4, 2
    %s3430 = smul.addr %s3429, 8
    %s3431 = scalar_lea.vmem [#allocation4], %s3430
    %3432 = vst [vmem:[%s3431 + $0x8] sm:$0xff] %v3424
    %s3433 = smul.addr %s3091, 8
    %s3434 = scalar_lea.vmem [#allocation2], %s3433
    %v3435 = vld [vmem:[%s3434] sm:$0xff]
    %v3436 = vld [vmem:[%s3434 + $0x8] sm:$0xff]
    %v3437 = vld [vmem:[%s3434 + $0x10] sm:$0xff]
    %v3438 = vld [vmem:[%s3434 + $0x18] sm:$0xff]
    %v3439 = vpack.c.bf16 %v3400, %v3400
    %v3440 = vld [vmem:[#allocation9] sm:$0xff]
    %v3441 = vld [vmem:[#allocation9 + $0x8] sm:$0xff]
    %v3442 = vld [vmem:[#allocation9 + $0x10] sm:$0xff]
    %v3443 = vld [vmem:[#allocation9 + $0x18] sm:$0xff]
    %v3444 = vld [vmem:[#allocation9 + $0x20] sm:$0xff]
    %v3445 = vld [vmem:[#allocation9 + $0x28] sm:$0xff]
    %v3446 = vld [vmem:[#allocation9 + $0x30] sm:$0xff]
    %v3447 = vld [vmem:[#allocation9 + $0x38] sm:$0xff]
    %v3448 = vld [vmem:[#allocation9 + $0x40] sm:$0xff]
    %v3449 = vld [vmem:[#allocation9 + $0x48] sm:$0xff]
    %v3450 = vld [vmem:[#allocation9 + $0x50] sm:$0xff]
    %v3451 = vld [vmem:[#allocation9 + $0x58] sm:$0xff]
    %v3452 = vld [vmem:[#allocation9 + $0x60] sm:$0xff]
    %v3453 = vld [vmem:[#allocation9 + $0x68] sm:$0xff]
    %v3454 = vld [vmem:[#allocation9 + $0x70] sm:$0xff]
    %v3455 = vld [vmem:[#allocation9 + $0x78] sm:$0xff]
    %v3456 = vld [vmem:[#allocation9 + $0x80] sm:$0xff]
    %v3457 = vld [vmem:[#allocation9 + $0x88] sm:$0xff]
    %v3458 = vld [vmem:[#allocation9 + $0x90] sm:$0xff]
    %v3459 = vld [vmem:[#allocation9 + $0x98] sm:$0xff]
    %v3460 = vld [vmem:[#allocation9 + $0xa0] sm:$0xff]
    %v3461 = vld [vmem:[#allocation9 + $0xa8] sm:$0xff]
    %v3462 = vld [vmem:[#allocation9 + $0xb0] sm:$0xff]
    %v3463 = vld [vmem:[#allocation9 + $0xb8] sm:$0xff]
    %v3464 = vld [vmem:[#allocation9 + $0xc0] sm:$0xff]
    %v3465 = vld [vmem:[#allocation9 + $0xc8] sm:$0xff]
    %v3466 = vld [vmem:[#allocation9 + $0xd0] sm:$0xff]
    %v3467 = vld [vmem:[#allocation9 + $0xd8] sm:$0xff]
    %v3468 = vld [vmem:[#allocation9 + $0xe0] sm:$0xff]
    %v3469 = vld [vmem:[#allocation9 + $0xe8] sm:$0xff]
    %v3470 = vld [vmem:[#allocation9 + $0xf0] sm:$0xff]
    %v3471 = vld [vmem:[#allocation9 + $0xf8] sm:$0xff]
    %v3504 = vunpack.c.l.b16 %v3440
    %v3505 = vunpack.c.h.b16 %v3440
    %v3506 = vunpack.c.l.b16 %v3441
    %v3507 = vunpack.c.h.b16 %v3441
    %v3508 = vunpack.c.l.b16 %v3442
    %v3509 = vunpack.c.h.b16 %v3442
    %v3510 = vunpack.c.l.b16 %v3443
    %v3511 = vunpack.c.h.b16 %v3443
    %v3512 = vunpack.c.l.b16 %v3444
    %v3513 = vunpack.c.h.b16 %v3444
    %v3514 = vunpack.c.l.b16 %v3445
    %v3515 = vunpack.c.h.b16 %v3445
    %v3516 = vunpack.c.l.b16 %v3446
    %v3517 = vunpack.c.h.b16 %v3446
    %v3518 = vunpack.c.l.b16 %v3447
    %v3519 = vunpack.c.h.b16 %v3447
    %v3520 = vunpack.c.l.b16 %v3448
    %v3521 = vunpack.c.h.b16 %v3448
    %v3522 = vunpack.c.l.b16 %v3449
    %v3523 = vunpack.c.h.b16 %v3449
    %v3524 = vunpack.c.l.b16 %v3450
    %v3525 = vunpack.c.h.b16 %v3450
    %v3526 = vunpack.c.l.b16 %v3451
    %v3527 = vunpack.c.h.b16 %v3451
    %v3528 = vunpack.c.l.b16 %v3452
    %v3529 = vunpack.c.h.b16 %v3452
    %v3530 = vunpack.c.l.b16 %v3453
    %v3531 = vunpack.c.h.b16 %v3453
    %v3532 = vunpack.c.l.b16 %v3454
    %v3533 = vunpack.c.h.b16 %v3454
    %v3534 = vunpack.c.l.b16 %v3455
    %v3535 = vunpack.c.h.b16 %v3455
    %v3536 = vunpack.c.l.b16 %v3456
    %v3537 = vunpack.c.h.b16 %v3456
    %v3538 = vunpack.c.l.b16 %v3457
    %v3539 = vunpack.c.h.b16 %v3457
    %v3540 = vunpack.c.l.b16 %v3458
    %v3541 = vunpack.c.h.b16 %v3458
    %v3542 = vunpack.c.l.b16 %v3459
    %v3543 = vunpack.c.h.b16 %v3459
    %v3544 = vunpack.c.l.b16 %v3460
    %v3545 = vunpack.c.h.b16 %v3460
    %v3546 = vunpack.c.l.b16 %v3461
    %v3547 = vunpack.c.h.b16 %v3461
    %v3548 = vunpack.c.l.b16 %v3462
    %v3549 = vunpack.c.h.b16 %v3462
    %v3550 = vunpack.c.l.b16 %v3463
    %v3551 = vunpack.c.h.b16 %v3463
    %v3552 = vunpack.c.l.b16 %v3464
    %v3553 = vunpack.c.h.b16 %v3464
    %v3554 = vunpack.c.l.b16 %v3465
    %v3555 = vunpack.c.h.b16 %v3465
    %v3556 = vunpack.c.l.b16 %v3466
    %v3557 = vunpack.c.h.b16 %v3466
    %v3558 = vunpack.c.l.b16 %v3467
    %v3559 = vunpack.c.h.b16 %v3467
    %v3560 = vunpack.c.l.b16 %v3468
    %v3561 = vunpack.c.h.b16 %v3468
    %v3562 = vunpack.c.l.b16 %v3469
    %v3563 = vunpack.c.h.b16 %v3469
    %v3564 = vunpack.c.l.b16 %v3470
    %v3565 = vunpack.c.h.b16 %v3470
    %v3566 = vunpack.c.l.b16 %v3471
    %v3567 = vunpack.c.h.b16 %v3471
    %v3568 = vpack.c.b16 %v3508, %v3504
    %v3569 = vpack.c.b16 %v3509, %v3505
    %v3570 = vpack.c.b16 %v3510, %v3506
    %v3571 = vpack.c.b16 %v3511, %v3507
    %v3572 = vpack.c.b16 %v3516, %v3512
    %v3573 = vpack.c.b16 %v3517, %v3513
    %v3574 = vpack.c.b16 %v3518, %v3514
    %v3575 = vpack.c.b16 %v3519, %v3515
    %v3576 = vpack.c.b16 %v3524, %v3520
    %v3577 = vpack.c.b16 %v3525, %v3521
    %v3578 = vpack.c.b16 %v3526, %v3522
    %v3579 = vpack.c.b16 %v3527, %v3523
    %v3580 = vpack.c.b16 %v3532, %v3528
    %v3581 = vpack.c.b16 %v3533, %v3529
    %v3582 = vpack.c.b16 %v3534, %v3530
    %v3583 = vpack.c.b16 %v3535, %v3531
    %v3584 = vpack.c.b16 %v3540, %v3536
    %v3585 = vpack.c.b16 %v3541, %v3537
    %v3586 = vpack.c.b16 %v3542, %v3538
    %v3587 = vpack.c.b16 %v3543, %v3539
    %v3588 = vpack.c.b16 %v3548, %v3544
    %v3589 = vpack.c.b16 %v3549, %v3545
    %v3590 = vpack.c.b16 %v3550, %v3546
    %v3591 = vpack.c.b16 %v3551, %v3547
    %v3592 = vpack.c.b16 %v3556, %v3552
    %v3593 = vpack.c.b16 %v3557, %v3553
    %v3594 = vpack.c.b16 %v3558, %v3554
    %v3595 = vpack.c.b16 %v3559, %v3555
    %v3596 = vpack.c.b16 %v3564, %v3560
    %v3597 = vpack.c.b16 %v3565, %v3561
    %v3598 = vpack.c.b16 %v3566, %v3562
    %v3599 = vpack.c.b16 %v3567, %v3563
    %3632 = vmatprep.subr.bf16.mxu0 %v3597
    %3633 = vmatpush1.bf16.msra.mxu0 %v3596
    %3634 = vmatprep.subr.bf16.mxu0 %v3593
    %3635 = vmatpush1.bf16.msra.mxu0 %v3592
    %3636 = vmatprep.subr.bf16.mxu0 %v3589
    %3637 = vmatpush1.bf16.msra.mxu0 %v3588
    %3638 = vmatprep.subr.bf16.mxu0 %v3585
    %3639 = vmatpush1.bf16.msra.mxu0 %v3584
    %3640 = vmatprep.subr.bf16.mxu0 %v3581
    %3641 = vmatpush1.bf16.msra.mxu0 %v3580
    %3642 = vmatprep.subr.bf16.mxu0 %v3577
    %3643 = vmatpush1.bf16.msra.mxu0 %v3576
    %3644 = vmatprep.subr.bf16.mxu0 %v3573
    %3645 = vmatpush1.bf16.msra.mxu0 %v3572
    %3646 = vmatprep.subr.bf16.mxu0 %v3569
    %3647 = vmatpush1.bf16.msra.mxu0 %v3568
    %3648 = vmatprep.subr.bf16.mxu0 0
    %3649 = vmatpush2.bf16.msra.mxu0 0
    %3650 = vmatprep.subr.bf16.mxu0 0
    %3651 = vmatpush2.bf16.msra.mxu0 0
    %3652 = vmatprep.subr.bf16.mxu0 0
    %3653 = vmatpush2.bf16.msra.mxu0 0
    %3654 = vmatprep.subr.bf16.mxu0 0
    %3655 = vmatpush2.bf16.msra.mxu0 0
    %3656 = vmatprep.subr.bf16.mxu0 0
    %3657 = vmatpush2.bf16.msra.mxu0 0
    %3658 = vmatprep.subr.bf16.mxu0 0
    %3659 = vmatpush2.bf16.msra.mxu0 0
    %3660 = vmatprep.subr.bf16.mxu0 0
    %3661 = vmatpush2.bf16.msra.mxu0 0
    %3662 = vmatprep.subr.bf16.mxu0 0
    %3663 = vmatpush2.bf16.msra.mxu0 0
    %3664 = vmatprep.mubr.bf16.mxu0 0
    %3665 = vmatmul.mubr.bf16.gmra.mxu0 %v3439
    %v3666 = vpop.f32.mrf.mxu0
    %v3667 = vadd.f32 0.0, %v3666
    %v3668 = vpop.f32.mrf.mxu0
    %v3669 = vadd.f32 0.0, %v3668
    %v3670 = vpop.f32.mrf.mxu0
    %v3671 = vpop.f32.mrf.mxu0
    %3672 = vdwg.mxu0
    %3673 = vmatprep.subr.bf16.mxu0 %v3599
    %3674 = vmatpush1.bf16.msra.mxu0 %v3598
    %3675 = vmatprep.subr.bf16.mxu0 %v3595
    %3676 = vmatpush1.bf16.msra.mxu0 %v3594
    %3677 = vmatprep.subr.bf16.mxu0 %v3591
    %3678 = vmatpush1.bf16.msra.mxu0 %v3590
    %3679 = vmatprep.subr.bf16.mxu0 %v3587
    %3680 = vmatpush1.bf16.msra.mxu0 %v3586
    %3681 = vmatprep.subr.bf16.mxu0 %v3583
    %3682 = vmatpush1.bf16.msra.mxu0 %v3582
    %3683 = vmatprep.subr.bf16.mxu0 %v3579
    %3684 = vmatpush1.bf16.msra.mxu0 %v3578
    %3685 = vmatprep.subr.bf16.mxu0 %v3575
    %3686 = vmatpush1.bf16.msra.mxu0 %v3574
    %3687 = vmatprep.subr.bf16.mxu0 %v3571
    %3688 = vmatpush1.bf16.msra.mxu0 %v3570
    %3689 = vmatprep.subr.bf16.mxu0 0
    %3690 = vmatpush2.bf16.msra.mxu0 0
    %3691 = vmatprep.subr.bf16.mxu0 0
    %3692 = vmatpush2.bf16.msra.mxu0 0
    %3693 = vmatprep.subr.bf16.mxu0 0
    %3694 = vmatpush2.bf16.msra.mxu0 0
    %3695 = vmatprep.subr.bf16.mxu0 0
    %3696 = vmatpush2.bf16.msra.mxu0 0
    %3697 = vmatprep.subr.bf16.mxu0 0
    %3698 = vmatpush2.bf16.msra.mxu0 0
    %3699 = vmatprep.subr.bf16.mxu0 0
    %3700 = vmatpush2.bf16.msra.mxu0 0
    %3701 = vmatprep.subr.bf16.mxu0 0
    %3702 = vmatpush2.bf16.msra.mxu0 0
    %3703 = vmatprep.subr.bf16.mxu0 0
    %3704 = vmatpush2.bf16.msra.mxu0 0
    %3705 = vmatprep.mubr.bf16.mxu0 0
    %3706 = vmatmul.mubr.bf16.gmra.mxu0 %v3439
    %v3707 = vpop.f32.mrf.mxu0
    %v3708 = vadd.f32 0.0, %v3707
    %v3709 = vpop.f32.mrf.mxu0
    %v3710 = vadd.f32 0.0, %v3709
    %v3711 = vpop.f32.mrf.mxu0
    %v3712 = vpop.f32.mrf.mxu0
    %3713 = vdwg.mxu0
    %v3714 = vadd.f32 %v3435, %v3667
    %v3715 = vadd.f32 %v3436, %v3669
    %v3716 = vadd.f32 %v3437, %v3708
    %v3717 = vadd.f32 %v3438, %v3710
    %s3718 = smul.addr %s2805, 8
    %s3719 = scalar_lea.vmem [#allocation3], %s3718
    %v3720 = vld [vmem:[%s3719] sm:$0xff]
    %v3721 = vld [vmem:[%s3719 + $0x8] sm:$0xff]
    %v3722 = vld [vmem:[%s3719 + $0x10] sm:$0xff]
    %v3723 = vld [vmem:[%s3719 + $0x18] sm:$0xff]
    %v3724 = vpack.c.bf16 %v3424, %v3424
    %v3725 = vld [vmem:[#allocation10] sm:$0xff]
    %v3726 = vld [vmem:[#allocation10 + $0x8] sm:$0xff]
    %v3727 = vld [vmem:[#allocation10 + $0x10] sm:$0xff]
    %v3728 = vld [vmem:[#allocation10 + $0x18] sm:$0xff]
    %v3729 = vld [vmem:[#allocation10 + $0x20] sm:$0xff]
    %v3730 = vld [vmem:[#allocation10 + $0x28] sm:$0xff]
    %v3731 = vld [vmem:[#allocation10 + $0x30] sm:$0xff]
    %v3732 = vld [vmem:[#allocation10 + $0x38] sm:$0xff]
    %v3733 = vld [vmem:[#allocation10 + $0x40] sm:$0xff]
    %v3734 = vld [vmem:[#allocation10 + $0x48] sm:$0xff]
    %v3735 = vld [vmem:[#allocation10 + $0x50] sm:$0xff]
    %v3736 = vld [vmem:[#allocation10 + $0x58] sm:$0xff]
    %v3737 = vld [vmem:[#allocation10 + $0x60] sm:$0xff]
    %v3738 = vld [vmem:[#allocation10 + $0x68] sm:$0xff]
    %v3739 = vld [vmem:[#allocation10 + $0x70] sm:$0xff]
    %v3740 = vld [vmem:[#allocation10 + $0x78] sm:$0xff]
    %v3741 = vld [vmem:[#allocation10 + $0x80] sm:$0xff]
    %v3742 = vld [vmem:[#allocation10 + $0x88] sm:$0xff]
    %v3743 = vld [vmem:[#allocation10 + $0x90] sm:$0xff]
    %v3744 = vld [vmem:[#allocation10 + $0x98] sm:$0xff]
    %v3745 = vld [vmem:[#allocation10 + $0xa0] sm:$0xff]
    %v3746 = vld [vmem:[#allocation10 + $0xa8] sm:$0xff]
    %v3747 = vld [vmem:[#allocation10 + $0xb0] sm:$0xff]
    %v3748 = vld [vmem:[#allocation10 + $0xb8] sm:$0xff]
    %v3749 = vld [vmem:[#allocation10 + $0xc0] sm:$0xff]
    %v3750 = vld [vmem:[#allocation10 + $0xc8] sm:$0xff]
    %v3751 = vld [vmem:[#allocation10 + $0xd0] sm:$0xff]
    %v3752 = vld [vmem:[#allocation10 + $0xd8] sm:$0xff]
    %v3753 = vld [vmem:[#allocation10 + $0xe0] sm:$0xff]
    %v3754 = vld [vmem:[#allocation10 + $0xe8] sm:$0xff]
    %v3755 = vld [vmem:[#allocation10 + $0xf0] sm:$0xff]
    %v3756 = vld [vmem:[#allocation10 + $0xf8] sm:$0xff]
    %v3789 = vunpack.c.l.b16 %v3725
    %v3790 = vunpack.c.h.b16 %v3725
    %v3791 = vunpack.c.l.b16 %v3726
    %v3792 = vunpack.c.h.b16 %v3726
    %v3793 = vunpack.c.l.b16 %v3727
    %v3794 = vunpack.c.h.b16 %v3727
    %v3795 = vunpack.c.l.b16 %v3728
    %v3796 = vunpack.c.h.b16 %v3728
    %v3797 = vunpack.c.l.b16 %v3729
    %v3798 = vunpack.c.h.b16 %v3729
    %v3799 = vunpack.c.l.b16 %v3730
    %v3800 = vunpack.c.h.b16 %v3730
    %v3801 = vunpack.c.l.b16 %v3731
    %v3802 = vunpack.c.h.b16 %v3731
    %v3803 = vunpack.c.l.b16 %v3732
    %v3804 = vunpack.c.h.b16 %v3732
    %v3805 = vunpack.c.l.b16 %v3733
    %v3806 = vunpack.c.h.b16 %v3733
    %v3807 = vunpack.c.l.b16 %v3734
    %v3808 = vunpack.c.h.b16 %v3734
    %v3809 = vunpack.c.l.b16 %v3735
    %v3810 = vunpack.c.h.b16 %v3735
    %v3811 = vunpack.c.l.b16 %v3736
    %v3812 = vunpack.c.h.b16 %v3736
    %v3813 = vunpack.c.l.b16 %v3737
    %v3814 = vunpack.c.h.b16 %v3737
    %v3815 = vunpack.c.l.b16 %v3738
    %v3816 = vunpack.c.h.b16 %v3738
    %v3817 = vunpack.c.l.b16 %v3739
    %v3818 = vunpack.c.h.b16 %v3739
    %v3819 = vunpack.c.l.b16 %v3740
    %v3820 = vunpack.c.h.b16 %v3740
    %v3821 = vunpack.c.l.b16 %v3741
    %v3822 = vunpack.c.h.b16 %v3741
    %v3823 = vunpack.c.l.b16 %v3742
    %v3824 = vunpack.c.h.b16 %v3742
    %v3825 = vunpack.c.l.b16 %v3743
    %v3826 = vunpack.c.h.b16 %v3743
    %v3827 = vunpack.c.l.b16 %v3744
    %v3828 = vunpack.c.h.b16 %v3744
    %v3829 = vunpack.c.l.b16 %v3745
    %v3830 = vunpack.c.h.b16 %v3745
    %v3831 = vunpack.c.l.b16 %v3746
    %v3832 = vunpack.c.h.b16 %v3746
    %v3833 = vunpack.c.l.b16 %v3747
    %v3834 = vunpack.c.h.b16 %v3747
    %v3835 = vunpack.c.l.b16 %v3748
    %v3836 = vunpack.c.h.b16 %v3748
    %v3837 = vunpack.c.l.b16 %v3749
    %v3838 = vunpack.c.h.b16 %v3749
    %v3839 = vunpack.c.l.b16 %v3750
    %v3840 = vunpack.c.h.b16 %v3750
    %v3841 = vunpack.c.l.b16 %v3751
    %v3842 = vunpack.c.h.b16 %v3751
    %v3843 = vunpack.c.l.b16 %v3752
    %v3844 = vunpack.c.h.b16 %v3752
    %v3845 = vunpack.c.l.b16 %v3753
    %v3846 = vunpack.c.h.b16 %v3753
    %v3847 = vunpack.c.l.b16 %v3754
    %v3848 = vunpack.c.h.b16 %v3754
    %v3849 = vunpack.c.l.b16 %v3755
    %v3850 = vunpack.c.h.b16 %v3755
    %v3851 = vunpack.c.l.b16 %v3756
    %v3852 = vunpack.c.h.b16 %v3756
    %v3853 = vpack.c.b16 %v3793, %v3789
    %v3854 = vpack.c.b16 %v3794, %v3790
    %v3855 = vpack.c.b16 %v3795, %v3791
    %v3856 = vpack.c.b16 %v3796, %v3792
    %v3857 = vpack.c.b16 %v3801, %v3797
    %v3858 = vpack.c.b16 %v3802, %v3798
    %v3859 = vpack.c.b16 %v3803, %v3799
    %v3860 = vpack.c.b16 %v3804, %v3800
    %v3861 = vpack.c.b16 %v3809, %v3805
    %v3862 = vpack.c.b16 %v3810, %v3806
    %v3863 = vpack.c.b16 %v3811, %v3807
    %v3864 = vpack.c.b16 %v3812, %v3808
    %v3865 = vpack.c.b16 %v3817, %v3813
    %v3866 = vpack.c.b16 %v3818, %v3814
    %v3867 = vpack.c.b16 %v3819, %v3815
    %v3868 = vpack.c.b16 %v3820, %v3816
    %v3869 = vpack.c.b16 %v3825, %v3821
    %v3870 = vpack.c.b16 %v3826, %v3822
    %v3871 = vpack.c.b16 %v3827, %v3823
    %v3872 = vpack.c.b16 %v3828, %v3824
    %v3873 = vpack.c.b16 %v3833, %v3829
    %v3874 = vpack.c.b16 %v3834, %v3830
    %v3875 = vpack.c.b16 %v3835, %v3831
    %v3876 = vpack.c.b16 %v3836, %v3832
    %v3877 = vpack.c.b16 %v3841, %v3837
    %v3878 = vpack.c.b16 %v3842, %v3838
    %v3879 = vpack.c.b16 %v3843, %v3839
    %v3880 = vpack.c.b16 %v3844, %v3840
    %v3881 = vpack.c.b16 %v3849, %v3845
    %v3882 = vpack.c.b16 %v3850, %v3846
    %v3883 = vpack.c.b16 %v3851, %v3847
    %v3884 = vpack.c.b16 %v3852, %v3848
    %3917 = vmatprep.subr.bf16.mxu0 %v3882
    %3918 = vmatpush1.bf16.msra.mxu0 %v3881
    %3919 = vmatprep.subr.bf16.mxu0 %v3878
    %3920 = vmatpush1.bf16.msra.mxu0 %v3877
    %3921 = vmatprep.subr.bf16.mxu0 %v3874
    %3922 = vmatpush1.bf16.msra.mxu0 %v3873
    %3923 = vmatprep.subr.bf16.mxu0 %v3870
    %3924 = vmatpush1.bf16.msra.mxu0 %v3869
    %3925 = vmatprep.subr.bf16.mxu0 %v3866
    %3926 = vmatpush1.bf16.msra.mxu0 %v3865
    %3927 = vmatprep.subr.bf16.mxu0 %v3862
    %3928 = vmatpush1.bf16.msra.mxu0 %v3861
    %3929 = vmatprep.subr.bf16.mxu0 %v3858
    %3930 = vmatpush1.bf16.msra.mxu0 %v3857
    %3931 = vmatprep.subr.bf16.mxu0 %v3854
    %3932 = vmatpush1.bf16.msra.mxu0 %v3853
    %3933 = vmatprep.subr.bf16.mxu0 0
    %3934 = vmatpush2.bf16.msra.mxu0 0
    %3935 = vmatprep.subr.bf16.mxu0 0
    %3936 = vmatpush2.bf16.msra.mxu0 0
    %3937 = vmatprep.subr.bf16.mxu0 0
    %3938 = vmatpush2.bf16.msra.mxu0 0
    %3939 = vmatprep.subr.bf16.mxu0 0
    %3940 = vmatpush2.bf16.msra.mxu0 0
    %3941 = vmatprep.subr.bf16.mxu0 0
    %3942 = vmatpush2.bf16.msra.mxu0 0
    %3943 = vmatprep.subr.bf16.mxu0 0
    %3944 = vmatpush2.bf16.msra.mxu0 0
    %3945 = vmatprep.subr.bf16.mxu0 0
    %3946 = vmatpush2.bf16.msra.mxu0 0
    %3947 = vmatprep.subr.bf16.mxu0 0
    %3948 = vmatpush2.bf16.msra.mxu0 0
    %3949 = vmatprep.mubr.bf16.mxu0 0
    %3950 = vmatmul.mubr.bf16.gmra.mxu0 %v3724
    %v3951 = vpop.f32.mrf.mxu0
    %v3952 = vadd.f32 0.0, %v3951
    %v3953 = vpop.f32.mrf.mxu0
    %v3954 = vadd.f32 0.0, %v3953
    %v3955 = vpop.f32.mrf.mxu0
    %v3956 = vpop.f32.mrf.mxu0
    %3957 = vdwg.mxu0
    %3958 = vmatprep.subr.bf16.mxu0 %v3884
    %3959 = vmatpush1.bf16.msra.mxu0 %v3883
    %3960 = vmatprep.subr.bf16.mxu0 %v3880
    %3961 = vmatpush1.bf16.msra.mxu0 %v3879
    %3962 = vmatprep.subr.bf16.mxu0 %v3876
    %3963 = vmatpush1.bf16.msra.mxu0 %v3875
    %3964 = vmatprep.subr.bf16.mxu0 %v3872
    %3965 = vmatpush1.bf16.msra.mxu0 %v3871
    %3966 = vmatprep.subr.bf16.mxu0 %v3868
    %3967 = vmatpush1.bf16.msra.mxu0 %v3867
    %3968 = vmatprep.subr.bf16.mxu0 %v3864
    %3969 = vmatpush1.bf16.msra.mxu0 %v3863
    %3970 = vmatprep.subr.bf16.mxu0 %v3860
    %3971 = vmatpush1.bf16.msra.mxu0 %v3859
    %3972 = vmatprep.subr.bf16.mxu0 %v3856
    %3973 = vmatpush1.bf16.msra.mxu0 %v3855
    %3974 = vmatprep.subr.bf16.mxu0 0
    %3975 = vmatpush2.bf16.msra.mxu0 0
    %3976 = vmatprep.subr.bf16.mxu0 0
    %3977 = vmatpush2.bf16.msra.mxu0 0
    %3978 = vmatprep.subr.bf16.mxu0 0
    %3979 = vmatpush2.bf16.msra.mxu0 0
    %3980 = vmatprep.subr.bf16.mxu0 0
    %3981 = vmatpush2.bf16.msra.mxu0 0
    %3982 = vmatprep.subr.bf16.mxu0 0
    %3983 = vmatpush2.bf16.msra.mxu0 0
    %3984 = vmatprep.subr.bf16.mxu0 0
    %3985 = vmatpush2.bf16.msra.mxu0 0
    %3986 = vmatprep.subr.bf16.mxu0 0
    %3987 = vmatpush2.bf16.msra.mxu0 0
    %3988 = vmatprep.subr.bf16.mxu0 0
    %3989 = vmatpush2.bf16.msra.mxu0 0
    %3990 = vmatprep.mubr.bf16.mxu0 0
    %3991 = vmatmul.mubr.bf16.gmra.mxu0 %v3724
    %v3992 = vpop.f32.mrf.mxu0
    %v3993 = vadd.f32 0.0, %v3992
    %v3994 = vpop.f32.mrf.mxu0
    %v3995 = vadd.f32 0.0, %v3994
    %v3996 = vpop.f32.mrf.mxu0
    %v3997 = vpop.f32.mrf.mxu0
    %3998 = vdwg.mxu0
    %v3999 = vadd.f32 %v3720, %v3952
    %v4000 = vadd.f32 %v3721, %v3954
    %v4001 = vadd.f32 %v3722, %v3993
    %v4002 = vadd.f32 %v3723, %v3995
    %v4003 = vxor.u32 %v3714, 2147483648
    %v4004 = vmul.f32 %v4003, 1.442695
    %v4005 = vpow.pop %v4004
    %v4006 = vadd.f32 %v4005, 1.0
    %v4007 = vrcp.pop %v4006
    %v4008 = vmul.f32 1.0, %v4007
    %v4009 = vxor.u32 %v3715, 2147483648
    %v4010 = vmul.f32 %v4009, 1.442695
    %v4011 = vpow.pop %v4010
    %v4012 = vadd.f32 %v4011, 1.0
    %v4013 = vrcp.pop %v4012
    %v4014 = vmul.f32 1.0, %v4013
    %v4015 = vtanh.pop %v3716
    %v4016 = vxor.u32 %v3717, 2147483648
    %v4017 = vmul.f32 %v4016, 1.442695
    %v4018 = vpow.pop %v4017
    %v4019 = vadd.f32 %v4018, 1.0
    %v4020 = vrcp.pop %v4019
    %v4021 = vmul.f32 1.0, %v4020
    %v4022 = vmul.f32 %v4014, %v3398
    %v4023 = vmul.f32 %v4008, %v4015
    %v4024 = vadd.f32 %v4022, %v4023
    %v4025 = vtanh.pop %v4024
    %v4026 = vmul.f32 %v4021, %v4025
    %v4027 = vxor.u32 %v3999, 2147483648
    %v4028 = vmul.f32 %v4027, 1.442695
    %v4029 = vpow.pop %v4028
    %v4030 = vadd.f32 %v4029, 1.0
    %v4031 = vrcp.pop %v4030
    %v4032 = vmul.f32 1.0, %v4031
    %v4033 = vxor.u32 %v4000, 2147483648
    %v4034 = vmul.f32 %v4033, 1.442695
    %v4035 = vpow.pop %v4034
    %v4036 = vadd.f32 %v4035, 1.0
    %v4037 = vrcp.pop %v4036
    %v4038 = vmul.f32 1.0, %v4037
    %v4039 = vtanh.pop %v4001
    %v4040 = vxor.u32 %v4002, 2147483648
    %v4041 = vmul.f32 %v4040, 1.442695
    %v4042 = vpow.pop %v4041
    %v4043 = vadd.f32 %v4042, 1.0
    %v4044 = vrcp.pop %v4043
    %v4045 = vmul.f32 1.0, %v4044
    %v4046 = vmul.f32 %v4038, %v3422
    %v4047 = vmul.f32 %v4032, %v4039
    %v4048 = vadd.f32 %v4046, %v4047
    %v4049 = vtanh.pop %v4048
    %v4050 = vmul.f32 %v4045, %v4049
    %4051 = vst [vmem:[%s3431] sm:$0xff] %v4026
    %4052 = vst [vmem:[%s3427 + $0x8] sm:$0xff] %v4050
    %s4053 = smul.addr %s2463, 8
    %s4054 = scalar_lea.vmem [#allocation2], %s4053
    %v4055 = vld [vmem:[%s4054] sm:$0xff]
    %v4056 = vld [vmem:[%s4054 + $0x8] sm:$0xff]
    %v4057 = vld [vmem:[%s4054 + $0x10] sm:$0xff]
    %v4058 = vld [vmem:[%s4054 + $0x18] sm:$0xff]
    %v4059 = vpack.c.bf16 %v4026, %v4026
    %v4060 = vld [vmem:[#allocation9] sm:$0xff]
    %v4061 = vld [vmem:[#allocation9 + $0x8] sm:$0xff]
    %v4062 = vld [vmem:[#allocation9 + $0x10] sm:$0xff]
    %v4063 = vld [vmem:[#allocation9 + $0x18] sm:$0xff]
    %v4064 = vld [vmem:[#allocation9 + $0x20] sm:$0xff]
    %v4065 = vld [vmem:[#allocation9 + $0x28] sm:$0xff]
    %v4066 = vld [vmem:[#allocation9 + $0x30] sm:$0xff]
    %v4067 = vld [vmem:[#allocation9 + $0x38] sm:$0xff]
    %v4068 = vld [vmem:[#allocation9 + $0x40] sm:$0xff]
    %v4069 = vld [vmem:[#allocation9 + $0x48] sm:$0xff]
    %v4070 = vld [vmem:[#allocation9 + $0x50] sm:$0xff]
    %v4071 = vld [vmem:[#allocation9 + $0x58] sm:$0xff]
    %v4072 = vld [vmem:[#allocation9 + $0x60] sm:$0xff]
    %v4073 = vld [vmem:[#allocation9 + $0x68] sm:$0xff]
    %v4074 = vld [vmem:[#allocation9 + $0x70] sm:$0xff]
    %v4075 = vld [vmem:[#allocation9 + $0x78] sm:$0xff]
    %v4076 = vld [vmem:[#allocation9 + $0x80] sm:$0xff]
    %v4077 = vld [vmem:[#allocation9 + $0x88] sm:$0xff]
    %v4078 = vld [vmem:[#allocation9 + $0x90] sm:$0xff]
    %v4079 = vld [vmem:[#allocation9 + $0x98] sm:$0xff]
    %v4080 = vld [vmem:[#allocation9 + $0xa0] sm:$0xff]
    %v4081 = vld [vmem:[#allocation9 + $0xa8] sm:$0xff]
    %v4082 = vld [vmem:[#allocation9 + $0xb0] sm:$0xff]
    %v4083 = vld [vmem:[#allocation9 + $0xb8] sm:$0xff]
    %v4084 = vld [vmem:[#allocation9 + $0xc0] sm:$0xff]
    %v4085 = vld [vmem:[#allocation9 + $0xc8] sm:$0xff]
    %v4086 = vld [vmem:[#allocation9 + $0xd0] sm:$0xff]
    %v4087 = vld [vmem:[#allocation9 + $0xd8] sm:$0xff]
    %v4088 = vld [vmem:[#allocation9 + $0xe0] sm:$0xff]
    %v4089 = vld [vmem:[#allocation9 + $0xe8] sm:$0xff]
    %v4090 = vld [vmem:[#allocation9 + $0xf0] sm:$0xff]
    %v4091 = vld [vmem:[#allocation9 + $0xf8] sm:$0xff]
    %v4124 = vunpack.c.l.b16 %v4060
    %v4125 = vunpack.c.h.b16 %v4060
    %v4126 = vunpack.c.l.b16 %v4061
    %v4127 = vunpack.c.h.b16 %v4061
    %v4128 = vunpack.c.l.b16 %v4062
    %v4129 = vunpack.c.h.b16 %v4062
    %v4130 = vunpack.c.l.b16 %v4063
    %v4131 = vunpack.c.h.b16 %v4063
    %v4132 = vunpack.c.l.b16 %v4064
    %v4133 = vunpack.c.h.b16 %v4064
    %v4134 = vunpack.c.l.b16 %v4065
    %v4135 = vunpack.c.h.b16 %v4065
    %v4136 = vunpack.c.l.b16 %v4066
    %v4137 = vunpack.c.h.b16 %v4066
    %v4138 = vunpack.c.l.b16 %v4067
    %v4139 = vunpack.c.h.b16 %v4067
    %v4140 = vunpack.c.l.b16 %v4068
    %v4141 = vunpack.c.h.b16 %v4068
    %v4142 = vunpack.c.l.b16 %v4069
    %v4143 = vunpack.c.h.b16 %v4069
    %v4144 = vunpack.c.l.b16 %v4070
    %v4145 = vunpack.c.h.b16 %v4070
    %v4146 = vunpack.c.l.b16 %v4071
    %v4147 = vunpack.c.h.b16 %v4071
    %v4148 = vunpack.c.l.b16 %v4072
    %v4149 = vunpack.c.h.b16 %v4072
    %v4150 = vunpack.c.l.b16 %v4073
    %v4151 = vunpack.c.h.b16 %v4073
    %v4152 = vunpack.c.l.b16 %v4074
    %v4153 = vunpack.c.h.b16 %v4074
    %v4154 = vunpack.c.l.b16 %v4075
    %v4155 = vunpack.c.h.b16 %v4075
    %v4156 = vunpack.c.l.b16 %v4076
    %v4157 = vunpack.c.h.b16 %v4076
    %v4158 = vunpack.c.l.b16 %v4077
    %v4159 = vunpack.c.h.b16 %v4077
    %v4160 = vunpack.c.l.b16 %v4078
    %v4161 = vunpack.c.h.b16 %v4078
    %v4162 = vunpack.c.l.b16 %v4079
    %v4163 = vunpack.c.h.b16 %v4079
    %v4164 = vunpack.c.l.b16 %v4080
    %v4165 = vunpack.c.h.b16 %v4080
    %v4166 = vunpack.c.l.b16 %v4081
    %v4167 = vunpack.c.h.b16 %v4081
    %v4168 = vunpack.c.l.b16 %v4082
    %v4169 = vunpack.c.h.b16 %v4082
    %v4170 = vunpack.c.l.b16 %v4083
    %v4171 = vunpack.c.h.b16 %v4083
    %v4172 = vunpack.c.l.b16 %v4084
    %v4173 = vunpack.c.h.b16 %v4084
    %v4174 = vunpack.c.l.b16 %v4085
    %v4175 = vunpack.c.h.b16 %v4085
    %v4176 = vunpack.c.l.b16 %v4086
    %v4177 = vunpack.c.h.b16 %v4086
    %v4178 = vunpack.c.l.b16 %v4087
    %v4179 = vunpack.c.h.b16 %v4087
    %v4180 = vunpack.c.l.b16 %v4088
    %v4181 = vunpack.c.h.b16 %v4088
    %v4182 = vunpack.c.l.b16 %v4089
    %v4183 = vunpack.c.h.b16 %v4089
    %v4184 = vunpack.c.l.b16 %v4090
    %v4185 = vunpack.c.h.b16 %v4090
    %v4186 = vunpack.c.l.b16 %v4091
    %v4187 = vunpack.c.h.b16 %v4091
    %v4188 = vpack.c.b16 %v4128, %v4124
    %v4189 = vpack.c.b16 %v4129, %v4125
    %v4190 = vpack.c.b16 %v4130, %v4126
    %v4191 = vpack.c.b16 %v4131, %v4127
    %v4192 = vpack.c.b16 %v4136, %v4132
    %v4193 = vpack.c.b16 %v4137, %v4133
    %v4194 = vpack.c.b16 %v4138, %v4134
    %v4195 = vpack.c.b16 %v4139, %v4135
    %v4196 = vpack.c.b16 %v4144, %v4140
    %v4197 = vpack.c.b16 %v4145, %v4141
    %v4198 = vpack.c.b16 %v4146, %v4142
    %v4199 = vpack.c.b16 %v4147, %v4143
    %v4200 = vpack.c.b16 %v4152, %v4148
    %v4201 = vpack.c.b16 %v4153, %v4149
    %v4202 = vpack.c.b16 %v4154, %v4150
    %v4203 = vpack.c.b16 %v4155, %v4151
    %v4204 = vpack.c.b16 %v4160, %v4156
    %v4205 = vpack.c.b16 %v4161, %v4157
    %v4206 = vpack.c.b16 %v4162, %v4158
    %v4207 = vpack.c.b16 %v4163, %v4159
    %v4208 = vpack.c.b16 %v4168, %v4164
    %v4209 = vpack.c.b16 %v4169, %v4165
    %v4210 = vpack.c.b16 %v4170, %v4166
    %v4211 = vpack.c.b16 %v4171, %v4167
    %v4212 = vpack.c.b16 %v4176, %v4172
    %v4213 = vpack.c.b16 %v4177, %v4173
    %v4214 = vpack.c.b16 %v4178, %v4174
    %v4215 = vpack.c.b16 %v4179, %v4175
    %v4216 = vpack.c.b16 %v4184, %v4180
    %v4217 = vpack.c.b16 %v4185, %v4181
    %v4218 = vpack.c.b16 %v4186, %v4182
    %v4219 = vpack.c.b16 %v4187, %v4183
    %4252 = vmatprep.subr.bf16.mxu0 %v4217
    %4253 = vmatpush1.bf16.msra.mxu0 %v4216
    %4254 = vmatprep.subr.bf16.mxu0 %v4213
    %4255 = vmatpush1.bf16.msra.mxu0 %v4212
    %4256 = vmatprep.subr.bf16.mxu0 %v4209
    %4257 = vmatpush1.bf16.msra.mxu0 %v4208
    %4258 = vmatprep.subr.bf16.mxu0 %v4205
    %4259 = vmatpush1.bf16.msra.mxu0 %v4204
    %4260 = vmatprep.subr.bf16.mxu0 %v4201
    %4261 = vmatpush1.bf16.msra.mxu0 %v4200
    %4262 = vmatprep.subr.bf16.mxu0 %v4197
    %4263 = vmatpush1.bf16.msra.mxu0 %v4196
    %4264 = vmatprep.subr.bf16.mxu0 %v4193
    %4265 = vmatpush1.bf16.msra.mxu0 %v4192
    %4266 = vmatprep.subr.bf16.mxu0 %v4189
    %4267 = vmatpush1.bf16.msra.mxu0 %v4188
    %4268 = vmatprep.subr.bf16.mxu0 0
    %4269 = vmatpush2.bf16.msra.mxu0 0
    %4270 = vmatprep.subr.bf16.mxu0 0
    %4271 = vmatpush2.bf16.msra.mxu0 0
    %4272 = vmatprep.subr.bf16.mxu0 0
    %4273 = vmatpush2.bf16.msra.mxu0 0
    %4274 = vmatprep.subr.bf16.mxu0 0
    %4275 = vmatpush2.bf16.msra.mxu0 0
    %4276 = vmatprep.subr.bf16.mxu0 0
    %4277 = vmatpush2.bf16.msra.mxu0 0
    %4278 = vmatprep.subr.bf16.mxu0 0
    %4279 = vmatpush2.bf16.msra.mxu0 0
    %4280 = vmatprep.subr.bf16.mxu0 0
    %4281 = vmatpush2.bf16.msra.mxu0 0
    %4282 = vmatprep.subr.bf16.mxu0 0
    %4283 = vmatpush2.bf16.msra.mxu0 0
    %4284 = vmatprep.mubr.bf16.mxu0 0
    %4285 = vmatmul.mubr.bf16.gmra.mxu0 %v4059
    %v4286 = vpop.f32.mrf.mxu0
    %v4287 = vadd.f32 0.0, %v4286
    %v4288 = vpop.f32.mrf.mxu0
    %v4289 = vadd.f32 0.0, %v4288
    %v4290 = vpop.f32.mrf.mxu0
    %v4291 = vpop.f32.mrf.mxu0
    %4292 = vdwg.mxu0
    %4293 = vmatprep.subr.bf16.mxu0 %v4219
    %4294 = vmatpush1.bf16.msra.mxu0 %v4218
    %4295 = vmatprep.subr.bf16.mxu0 %v4215
    %4296 = vmatpush1.bf16.msra.mxu0 %v4214
    %4297 = vmatprep.subr.bf16.mxu0 %v4211
    %4298 = vmatpush1.bf16.msra.mxu0 %v4210
    %4299 = vmatprep.subr.bf16.mxu0 %v4207
    %4300 = vmatpush1.bf16.msra.mxu0 %v4206
    %4301 = vmatprep.subr.bf16.mxu0 %v4203
    %4302 = vmatpush1.bf16.msra.mxu0 %v4202
    %4303 = vmatprep.subr.bf16.mxu0 %v4199
    %4304 = vmatpush1.bf16.msra.mxu0 %v4198
    %4305 = vmatprep.subr.bf16.mxu0 %v4195
    %4306 = vmatpush1.bf16.msra.mxu0 %v4194
    %4307 = vmatprep.subr.bf16.mxu0 %v4191
    %4308 = vmatpush1.bf16.msra.mxu0 %v4190
    %4309 = vmatprep.subr.bf16.mxu0 0
    %4310 = vmatpush2.bf16.msra.mxu0 0
    %4311 = vmatprep.subr.bf16.mxu0 0
    %4312 = vmatpush2.bf16.msra.mxu0 0
    %4313 = vmatprep.subr.bf16.mxu0 0
    %4314 = vmatpush2.bf16.msra.mxu0 0
    %4315 = vmatprep.subr.bf16.mxu0 0
    %4316 = vmatpush2.bf16.msra.mxu0 0
    %4317 = vmatprep.subr.bf16.mxu0 0
    %4318 = vmatpush2.bf16.msra.mxu0 0
    %4319 = vmatprep.subr.bf16.mxu0 0
    %4320 = vmatpush2.bf16.msra.mxu0 0
    %4321 = vmatprep.subr.bf16.mxu0 0
    %4322 = vmatpush2.bf16.msra.mxu0 0
    %4323 = vmatprep.subr.bf16.mxu0 0
    %4324 = vmatpush2.bf16.msra.mxu0 0
    %4325 = vmatprep.mubr.bf16.mxu0 0
    %4326 = vmatmul.mubr.bf16.gmra.mxu0 %v4059
    %v4327 = vpop.f32.mrf.mxu0
    %v4328 = vadd.f32 0.0, %v4327
    %v4329 = vpop.f32.mrf.mxu0
    %v4330 = vadd.f32 0.0, %v4329
    %v4331 = vpop.f32.mrf.mxu0
    %v4332 = vpop.f32.mrf.mxu0
    %4333 = vdwg.mxu0
    %v4334 = vadd.f32 %v4055, %v4287
    %v4335 = vadd.f32 %v4056, %v4289
    %v4336 = vadd.f32 %v4057, %v4328
    %v4337 = vadd.f32 %v4058, %v4330
    %s4338 = smul.addr %s2177, 8
    %s4339 = scalar_lea.vmem [#allocation3], %s4338
    %v4340 = vld [vmem:[%s4339] sm:$0xff]
    %v4341 = vld [vmem:[%s4339 + $0x8] sm:$0xff]
    %v4342 = vld [vmem:[%s4339 + $0x10] sm:$0xff]
    %v4343 = vld [vmem:[%s4339 + $0x18] sm:$0xff]
    %v4344 = vpack.c.bf16 %v4050, %v4050
    %v4345 = vld [vmem:[#allocation10] sm:$0xff]
    %v4346 = vld [vmem:[#allocation10 + $0x8] sm:$0xff]
    %v4347 = vld [vmem:[#allocation10 + $0x10] sm:$0xff]
    %v4348 = vld [vmem:[#allocation10 + $0x18] sm:$0xff]
    %v4349 = vld [vmem:[#allocation10 + $0x20] sm:$0xff]
    %v4350 = vld [vmem:[#allocation10 + $0x28] sm:$0xff]
    %v4351 = vld [vmem:[#allocation10 + $0x30] sm:$0xff]
    %v4352 = vld [vmem:[#allocation10 + $0x38] sm:$0xff]
    %v4353 = vld [vmem:[#allocation10 + $0x40] sm:$0xff]
    %v4354 = vld [vmem:[#allocation10 + $0x48] sm:$0xff]
    %v4355 = vld [vmem:[#allocation10 + $0x50] sm:$0xff]
    %v4356 = vld [vmem:[#allocation10 + $0x58] sm:$0xff]
    %v4357 = vld [vmem:[#allocation10 + $0x60] sm:$0xff]
    %v4358 = vld [vmem:[#allocation10 + $0x68] sm:$0xff]
    %v4359 = vld [vmem:[#allocation10 + $0x70] sm:$0xff]
    %v4360 = vld [vmem:[#allocation10 + $0x78] sm:$0xff]
    %v4361 = vld [vmem:[#allocation10 + $0x80] sm:$0xff]
    %v4362 = vld [vmem:[#allocation10 + $0x88] sm:$0xff]
    %v4363 = vld [vmem:[#allocation10 + $0x90] sm:$0xff]
    %v4364 = vld [vmem:[#allocation10 + $0x98] sm:$0xff]
    %v4365 = vld [vmem:[#allocation10 + $0xa0] sm:$0xff]
    %v4366 = vld [vmem:[#allocation10 + $0xa8] sm:$0xff]
    %v4367 = vld [vmem:[#allocation10 + $0xb0] sm:$0xff]
    %v4368 = vld [vmem:[#allocation10 + $0xb8] sm:$0xff]
    %v4369 = vld [vmem:[#allocation10 + $0xc0] sm:$0xff]
    %v4370 = vld [vmem:[#allocation10 + $0xc8] sm:$0xff]
    %v4371 = vld [vmem:[#allocation10 + $0xd0] sm:$0xff]
    %v4372 = vld [vmem:[#allocation10 + $0xd8] sm:$0xff]
    %v4373 = vld [vmem:[#allocation10 + $0xe0] sm:$0xff]
    %v4374 = vld [vmem:[#allocation10 + $0xe8] sm:$0xff]
    %v4375 = vld [vmem:[#allocation10 + $0xf0] sm:$0xff]
    %v4376 = vld [vmem:[#allocation10 + $0xf8] sm:$0xff]
    %v4409 = vunpack.c.l.b16 %v4345
    %v4410 = vunpack.c.h.b16 %v4345
    %v4411 = vunpack.c.l.b16 %v4346
    %v4412 = vunpack.c.h.b16 %v4346
    %v4413 = vunpack.c.l.b16 %v4347
    %v4414 = vunpack.c.h.b16 %v4347
    %v4415 = vunpack.c.l.b16 %v4348
    %v4416 = vunpack.c.h.b16 %v4348
    %v4417 = vunpack.c.l.b16 %v4349
    %v4418 = vunpack.c.h.b16 %v4349
    %v4419 = vunpack.c.l.b16 %v4350
    %v4420 = vunpack.c.h.b16 %v4350
    %v4421 = vunpack.c.l.b16 %v4351
    %v4422 = vunpack.c.h.b16 %v4351
    %v4423 = vunpack.c.l.b16 %v4352
    %v4424 = vunpack.c.h.b16 %v4352
    %v4425 = vunpack.c.l.b16 %v4353
    %v4426 = vunpack.c.h.b16 %v4353
    %v4427 = vunpack.c.l.b16 %v4354
    %v4428 = vunpack.c.h.b16 %v4354
    %v4429 = vunpack.c.l.b16 %v4355
    %v4430 = vunpack.c.h.b16 %v4355
    %v4431 = vunpack.c.l.b16 %v4356
    %v4432 = vunpack.c.h.b16 %v4356
    %v4433 = vunpack.c.l.b16 %v4357
    %v4434 = vunpack.c.h.b16 %v4357
    %v4435 = vunpack.c.l.b16 %v4358
    %v4436 = vunpack.c.h.b16 %v4358
    %v4437 = vunpack.c.l.b16 %v4359
    %v4438 = vunpack.c.h.b16 %v4359
    %v4439 = vunpack.c.l.b16 %v4360
    %v4440 = vunpack.c.h.b16 %v4360
    %v4441 = vunpack.c.l.b16 %v4361
    %v4442 = vunpack.c.h.b16 %v4361
    %v4443 = vunpack.c.l.b16 %v4362
    %v4444 = vunpack.c.h.b16 %v4362
    %v4445 = vunpack.c.l.b16 %v4363
    %v4446 = vunpack.c.h.b16 %v4363
    %v4447 = vunpack.c.l.b16 %v4364
    %v4448 = vunpack.c.h.b16 %v4364
    %v4449 = vunpack.c.l.b16 %v4365
    %v4450 = vunpack.c.h.b16 %v4365
    %v4451 = vunpack.c.l.b16 %v4366
    %v4452 = vunpack.c.h.b16 %v4366
    %v4453 = vunpack.c.l.b16 %v4367
    %v4454 = vunpack.c.h.b16 %v4367
    %v4455 = vunpack.c.l.b16 %v4368
    %v4456 = vunpack.c.h.b16 %v4368
    %v4457 = vunpack.c.l.b16 %v4369
    %v4458 = vunpack.c.h.b16 %v4369
    %v4459 = vunpack.c.l.b16 %v4370
    %v4460 = vunpack.c.h.b16 %v4370
    %v4461 = vunpack.c.l.b16 %v4371
    %v4462 = vunpack.c.h.b16 %v4371
    %v4463 = vunpack.c.l.b16 %v4372
    %v4464 = vunpack.c.h.b16 %v4372
    %v4465 = vunpack.c.l.b16 %v4373
    %v4466 = vunpack.c.h.b16 %v4373
    %v4467 = vunpack.c.l.b16 %v4374
    %v4468 = vunpack.c.h.b16 %v4374
    %v4469 = vunpack.c.l.b16 %v4375
    %v4470 = vunpack.c.h.b16 %v4375
    %v4471 = vunpack.c.l.b16 %v4376
    %v4472 = vunpack.c.h.b16 %v4376
    %v4473 = vpack.c.b16 %v4413, %v4409
    %v4474 = vpack.c.b16 %v4414, %v4410
    %v4475 = vpack.c.b16 %v4415, %v4411
    %v4476 = vpack.c.b16 %v4416, %v4412
    %v4477 = vpack.c.b16 %v4421, %v4417
    %v4478 = vpack.c.b16 %v4422, %v4418
    %v4479 = vpack.c.b16 %v4423, %v4419
    %v4480 = vpack.c.b16 %v4424, %v4420
    %v4481 = vpack.c.b16 %v4429, %v4425
    %v4482 = vpack.c.b16 %v4430, %v4426
    %v4483 = vpack.c.b16 %v4431, %v4427
    %v4484 = vpack.c.b16 %v4432, %v4428
    %v4485 = vpack.c.b16 %v4437, %v4433
    %v4486 = vpack.c.b16 %v4438, %v4434
    %v4487 = vpack.c.b16 %v4439, %v4435
    %v4488 = vpack.c.b16 %v4440, %v4436
    %v4489 = vpack.c.b16 %v4445, %v4441
    %v4490 = vpack.c.b16 %v4446, %v4442
    %v4491 = vpack.c.b16 %v4447, %v4443
    %v4492 = vpack.c.b16 %v4448, %v4444
    %v4493 = vpack.c.b16 %v4453, %v4449
    %v4494 = vpack.c.b16 %v4454, %v4450
    %v4495 = vpack.c.b16 %v4455, %v4451
    %v4496 = vpack.c.b16 %v4456, %v4452
    %v4497 = vpack.c.b16 %v4461, %v4457
    %v4498 = vpack.c.b16 %v4462, %v4458
    %v4499 = vpack.c.b16 %v4463, %v4459
    %v4500 = vpack.c.b16 %v4464, %v4460
    %v4501 = vpack.c.b16 %v4469, %v4465
    %v4502 = vpack.c.b16 %v4470, %v4466
    %v4503 = vpack.c.b16 %v4471, %v4467
    %v4504 = vpack.c.b16 %v4472, %v4468
    %4537 = vmatprep.subr.bf16.mxu0 %v4502
    %4538 = vmatpush1.bf16.msra.mxu0 %v4501
    %4539 = vmatprep.subr.bf16.mxu0 %v4498
    %4540 = vmatpush1.bf16.msra.mxu0 %v4497
    %4541 = vmatprep.subr.bf16.mxu0 %v4494
    %4542 = vmatpush1.bf16.msra.mxu0 %v4493
    %4543 = vmatprep.subr.bf16.mxu0 %v4490
    %4544 = vmatpush1.bf16.msra.mxu0 %v4489
    %4545 = vmatprep.subr.bf16.mxu0 %v4486
    %4546 = vmatpush1.bf16.msra.mxu0 %v4485
    %4547 = vmatprep.subr.bf16.mxu0 %v4482
    %4548 = vmatpush1.bf16.msra.mxu0 %v4481
    %4549 = vmatprep.subr.bf16.mxu0 %v4478
    %4550 = vmatpush1.bf16.msra.mxu0 %v4477
    %4551 = vmatprep.subr.bf16.mxu0 %v4474
    %4552 = vmatpush1.bf16.msra.mxu0 %v4473
    %4553 = vmatprep.subr.bf16.mxu0 0
    %4554 = vmatpush2.bf16.msra.mxu0 0
    %4555 = vmatprep.subr.bf16.mxu0 0
    %4556 = vmatpush2.bf16.msra.mxu0 0
    %4557 = vmatprep.subr.bf16.mxu0 0
    %4558 = vmatpush2.bf16.msra.mxu0 0
    %4559 = vmatprep.subr.bf16.mxu0 0
    %4560 = vmatpush2.bf16.msra.mxu0 0
    %4561 = vmatprep.subr.bf16.mxu0 0
    %4562 = vmatpush2.bf16.msra.mxu0 0
    %4563 = vmatprep.subr.bf16.mxu0 0
    %4564 = vmatpush2.bf16.msra.mxu0 0
    %4565 = vmatprep.subr.bf16.mxu0 0
    %4566 = vmatpush2.bf16.msra.mxu0 0
    %4567 = vmatprep.subr.bf16.mxu0 0
    %4568 = vmatpush2.bf16.msra.mxu0 0
    %4569 = vmatprep.mubr.bf16.mxu0 0
    %4570 = vmatmul.mubr.bf16.gmra.mxu0 %v4344
    %v4571 = vpop.f32.mrf.mxu0
    %v4572 = vadd.f32 0.0, %v4571
    %v4573 = vpop.f32.mrf.mxu0
    %v4574 = vadd.f32 0.0, %v4573
    %v4575 = vpop.f32.mrf.mxu0
    %v4576 = vpop.f32.mrf.mxu0
    %4577 = vdwg.mxu0
    %4578 = vmatprep.subr.bf16.mxu0 %v4504
    %4579 = vmatpush1.bf16.msra.mxu0 %v4503
    %4580 = vmatprep.subr.bf16.mxu0 %v4500
    %4581 = vmatpush1.bf16.msra.mxu0 %v4499
    %4582 = vmatprep.subr.bf16.mxu0 %v4496
    %4583 = vmatpush1.bf16.msra.mxu0 %v4495
    %4584 = vmatprep.subr.bf16.mxu0 %v4492
    %4585 = vmatpush1.bf16.msra.mxu0 %v4491
    %4586 = vmatprep.subr.bf16.mxu0 %v4488
    %4587 = vmatpush1.bf16.msra.mxu0 %v4487
    %4588 = vmatprep.subr.bf16.mxu0 %v4484
    %4589 = vmatpush1.bf16.msra.mxu0 %v4483
    %4590 = vmatprep.subr.bf16.mxu0 %v4480
    %4591 = vmatpush1.bf16.msra.mxu0 %v4479
    %4592 = vmatprep.subr.bf16.mxu0 %v4476
    %4593 = vmatpush1.bf16.msra.mxu0 %v4475
    %4594 = vmatprep.subr.bf16.mxu0 0
    %4595 = vmatpush2.bf16.msra.mxu0 0
    %4596 = vmatprep.subr.bf16.mxu0 0
    %4597 = vmatpush2.bf16.msra.mxu0 0
    %4598 = vmatprep.subr.bf16.mxu0 0
    %4599 = vmatpush2.bf16.msra.mxu0 0
    %4600 = vmatprep.subr.bf16.mxu0 0
    %4601 = vmatpush2.bf16.msra.mxu0 0
    %4602 = vmatprep.subr.bf16.mxu0 0
    %4603 = vmatpush2.bf16.msra.mxu0 0
    %4604 = vmatprep.subr.bf16.mxu0 0
    %4605 = vmatpush2.bf16.msra.mxu0 0
    %4606 = vmatprep.subr.bf16.mxu0 0
    %4607 = vmatpush2.bf16.msra.mxu0 0
    %4608 = vmatprep.subr.bf16.mxu0 0
    %4609 = vmatpush2.bf16.msra.mxu0 0
    %4610 = vmatprep.mubr.bf16.mxu0 0
    %4611 = vmatmul.mubr.bf16.gmra.mxu0 %v4344
    %v4612 = vpop.f32.mrf.mxu0
    %v4613 = vadd.f32 0.0, %v4612
    %v4614 = vpop.f32.mrf.mxu0
    %v4615 = vadd.f32 0.0, %v4614
    %v4616 = vpop.f32.mrf.mxu0
    %v4617 = vpop.f32.mrf.mxu0
    %4618 = vdwg.mxu0
    %v4619 = vadd.f32 %v4340, %v4572
    %v4620 = vadd.f32 %v4341, %v4574
    %v4621 = vadd.f32 %v4342, %v4613
    %v4622 = vadd.f32 %v4343, %v4615
    %v4623 = vxor.u32 %v4334, 2147483648
    %v4624 = vmul.f32 %v4623, 1.442695
    %v4625 = vpow.pop %v4624
    %v4626 = vadd.f32 %v4625, 1.0
    %v4627 = vrcp.pop %v4626
    %v4628 = vmul.f32 1.0, %v4627
    %v4629 = vxor.u32 %v4335, 2147483648
    %v4630 = vmul.f32 %v4629, 1.442695
    %v4631 = vpow.pop %v4630
    %v4632 = vadd.f32 %v4631, 1.0
    %v4633 = vrcp.pop %v4632
    %v4634 = vmul.f32 1.0, %v4633
    %v4635 = vtanh.pop %v4336
    %v4636 = vxor.u32 %v4337, 2147483648
    %v4637 = vmul.f32 %v4636, 1.442695
    %v4638 = vpow.pop %v4637
    %v4639 = vadd.f32 %v4638, 1.0
    %v4640 = vrcp.pop %v4639
    %v4641 = vmul.f32 1.0, %v4640
    %v4642 = vmul.f32 %v4634, %v4024
    %v4643 = vmul.f32 %v4628, %v4635
    %v4644 = vadd.f32 %v4642, %v4643
    %v4645 = vtanh.pop %v4644
    %v4646 = vmul.f32 %v4641, %v4645
    %v4647 = vxor.u32 %v4619, 2147483648
    %v4648 = vmul.f32 %v4647, 1.442695
    %v4649 = vpow.pop %v4648
    %v4650 = vadd.f32 %v4649, 1.0
    %v4651 = vrcp.pop %v4650
    %v4652 = vmul.f32 1.0, %v4651
    %v4653 = vxor.u32 %v4620, 2147483648
    %v4654 = vmul.f32 %v4653, 1.442695
    %v4655 = vpow.pop %v4654
    %v4656 = vadd.f32 %v4655, 1.0
    %v4657 = vrcp.pop %v4656
    %v4658 = vmul.f32 1.0, %v4657
    %v4659 = vtanh.pop %v4621
    %v4660 = vxor.u32 %v4622, 2147483648
    %v4661 = vmul.f32 %v4660, 1.442695
    %v4662 = vpow.pop %v4661
    %v4663 = vadd.f32 %v4662, 1.0
    %v4664 = vrcp.pop %v4663
    %v4665 = vmul.f32 1.0, %v4664
    %v4666 = vmul.f32 %v4658, %v4048
    %v4667 = vmul.f32 %v4652, %v4659
    %v4668 = vadd.f32 %v4666, %v4667
    %v4669 = vtanh.pop %v4668
    %v4670 = vmul.f32 %v4665, %v4669
    %4671 = vst [vmem:[%s2803] sm:$0xff] %v4646
    %4672 = vst [vmem:[%s2799 + $0x8] sm:$0xff] %v4670
    %s4673 = smul.addr %s1835, 8
    %s4674 = scalar_lea.vmem [#allocation2], %s4673
    %v4675 = vld [vmem:[%s4674] sm:$0xff]
    %v4676 = vld [vmem:[%s4674 + $0x8] sm:$0xff]
    %v4677 = vld [vmem:[%s4674 + $0x10] sm:$0xff]
    %v4678 = vld [vmem:[%s4674 + $0x18] sm:$0xff]
    %v4679 = vpack.c.bf16 %v4646, %v4646
    %v4680 = vld [vmem:[#allocation9] sm:$0xff]
    %v4681 = vld [vmem:[#allocation9 + $0x8] sm:$0xff]
    %v4682 = vld [vmem:[#allocation9 + $0x10] sm:$0xff]
    %v4683 = vld [vmem:[#allocation9 + $0x18] sm:$0xff]
    %v4684 = vld [vmem:[#allocation9 + $0x20] sm:$0xff]
    %v4685 = vld [vmem:[#allocation9 + $0x28] sm:$0xff]
    %v4686 = vld [vmem:[#allocation9 + $0x30] sm:$0xff]
    %v4687 = vld [vmem:[#allocation9 + $0x38] sm:$0xff]
    %v4688 = vld [vmem:[#allocation9 + $0x40] sm:$0xff]
    %v4689 = vld [vmem:[#allocation9 + $0x48] sm:$0xff]
    %v4690 = vld [vmem:[#allocation9 + $0x50] sm:$0xff]
    %v4691 = vld [vmem:[#allocation9 + $0x58] sm:$0xff]
    %v4692 = vld [vmem:[#allocation9 + $0x60] sm:$0xff]
    %v4693 = vld [vmem:[#allocation9 + $0x68] sm:$0xff]
    %v4694 = vld [vmem:[#allocation9 + $0x70] sm:$0xff]
    %v4695 = vld [vmem:[#allocation9 + $0x78] sm:$0xff]
    %v4696 = vld [vmem:[#allocation9 + $0x80] sm:$0xff]
    %v4697 = vld [vmem:[#allocation9 + $0x88] sm:$0xff]
    %v4698 = vld [vmem:[#allocation9 + $0x90] sm:$0xff]
    %v4699 = vld [vmem:[#allocation9 + $0x98] sm:$0xff]
    %v4700 = vld [vmem:[#allocation9 + $0xa0] sm:$0xff]
    %v4701 = vld [vmem:[#allocation9 + $0xa8] sm:$0xff]
    %v4702 = vld [vmem:[#allocation9 + $0xb0] sm:$0xff]
    %v4703 = vld [vmem:[#allocation9 + $0xb8] sm:$0xff]
    %v4704 = vld [vmem:[#allocation9 + $0xc0] sm:$0xff]
    %v4705 = vld [vmem:[#allocation9 + $0xc8] sm:$0xff]
    %v4706 = vld [vmem:[#allocation9 + $0xd0] sm:$0xff]
    %v4707 = vld [vmem:[#allocation9 + $0xd8] sm:$0xff]
    %v4708 = vld [vmem:[#allocation9 + $0xe0] sm:$0xff]
    %v4709 = vld [vmem:[#allocation9 + $0xe8] sm:$0xff]
    %v4710 = vld [vmem:[#allocation9 + $0xf0] sm:$0xff]
    %v4711 = vld [vmem:[#allocation9 + $0xf8] sm:$0xff]
    %v4744 = vunpack.c.l.b16 %v4680
    %v4745 = vunpack.c.h.b16 %v4680
    %v4746 = vunpack.c.l.b16 %v4681
    %v4747 = vunpack.c.h.b16 %v4681
    %v4748 = vunpack.c.l.b16 %v4682
    %v4749 = vunpack.c.h.b16 %v4682
    %v4750 = vunpack.c.l.b16 %v4683
    %v4751 = vunpack.c.h.b16 %v4683
    %v4752 = vunpack.c.l.b16 %v4684
    %v4753 = vunpack.c.h.b16 %v4684
    %v4754 = vunpack.c.l.b16 %v4685
    %v4755 = vunpack.c.h.b16 %v4685
    %v4756 = vunpack.c.l.b16 %v4686
    %v4757 = vunpack.c.h.b16 %v4686
    %v4758 = vunpack.c.l.b16 %v4687
    %v4759 = vunpack.c.h.b16 %v4687
    %v4760 = vunpack.c.l.b16 %v4688
    %v4761 = vunpack.c.h.b16 %v4688
    %v4762 = vunpack.c.l.b16 %v4689
    %v4763 = vunpack.c.h.b16 %v4689
    %v4764 = vunpack.c.l.b16 %v4690
    %v4765 = vunpack.c.h.b16 %v4690
    %v4766 = vunpack.c.l.b16 %v4691
    %v4767 = vunpack.c.h.b16 %v4691
    %v4768 = vunpack.c.l.b16 %v4692
    %v4769 = vunpack.c.h.b16 %v4692
    %v4770 = vunpack.c.l.b16 %v4693
    %v4771 = vunpack.c.h.b16 %v4693
    %v4772 = vunpack.c.l.b16 %v4694
    %v4773 = vunpack.c.h.b16 %v4694
    %v4774 = vunpack.c.l.b16 %v4695
    %v4775 = vunpack.c.h.b16 %v4695
    %v4776 = vunpack.c.l.b16 %v4696
    %v4777 = vunpack.c.h.b16 %v4696
    %v4778 = vunpack.c.l.b16 %v4697
    %v4779 = vunpack.c.h.b16 %v4697
    %v4780 = vunpack.c.l.b16 %v4698
    %v4781 = vunpack.c.h.b16 %v4698
    %v4782 = vunpack.c.l.b16 %v4699
    %v4783 = vunpack.c.h.b16 %v4699
    %v4784 = vunpack.c.l.b16 %v4700
    %v4785 = vunpack.c.h.b16 %v4700
    %v4786 = vunpack.c.l.b16 %v4701
    %v4787 = vunpack.c.h.b16 %v4701
    %v4788 = vunpack.c.l.b16 %v4702
    %v4789 = vunpack.c.h.b16 %v4702
    %v4790 = vunpack.c.l.b16 %v4703
    %v4791 = vunpack.c.h.b16 %v4703
    %v4792 = vunpack.c.l.b16 %v4704
    %v4793 = vunpack.c.h.b16 %v4704
    %v4794 = vunpack.c.l.b16 %v4705
    %v4795 = vunpack.c.h.b16 %v4705
    %v4796 = vunpack.c.l.b16 %v4706
    %v4797 = vunpack.c.h.b16 %v4706
    %v4798 = vunpack.c.l.b16 %v4707
    %v4799 = vunpack.c.h.b16 %v4707
    %v4800 = vunpack.c.l.b16 %v4708
    %v4801 = vunpack.c.h.b16 %v4708
    %v4802 = vunpack.c.l.b16 %v4709
    %v4803 = vunpack.c.h.b16 %v4709
    %v4804 = vunpack.c.l.b16 %v4710
    %v4805 = vunpack.c.h.b16 %v4710
    %v4806 = vunpack.c.l.b16 %v4711
    %v4807 = vunpack.c.h.b16 %v4711
    %v4808 = vpack.c.b16 %v4748, %v4744
    %v4809 = vpack.c.b16 %v4749, %v4745
    %v4810 = vpack.c.b16 %v4750, %v4746
    %v4811 = vpack.c.b16 %v4751, %v4747
    %v4812 = vpack.c.b16 %v4756, %v4752
    %v4813 = vpack.c.b16 %v4757, %v4753
    %v4814 = vpack.c.b16 %v4758, %v4754
    %v4815 = vpack.c.b16 %v4759, %v4755
    %v4816 = vpack.c.b16 %v4764, %v4760
    %v4817 = vpack.c.b16 %v4765, %v4761
    %v4818 = vpack.c.b16 %v4766, %v4762
    %v4819 = vpack.c.b16 %v4767, %v4763
    %v4820 = vpack.c.b16 %v4772, %v4768
    %v4821 = vpack.c.b16 %v4773, %v4769
    %v4822 = vpack.c.b16 %v4774, %v4770
    %v4823 = vpack.c.b16 %v4775, %v4771
    %v4824 = vpack.c.b16 %v4780, %v4776
    %v4825 = vpack.c.b16 %v4781, %v4777
    %v4826 = vpack.c.b16 %v4782, %v4778
    %v4827 = vpack.c.b16 %v4783, %v4779
    %v4828 = vpack.c.b16 %v4788, %v4784
    %v4829 = vpack.c.b16 %v4789, %v4785
    %v4830 = vpack.c.b16 %v4790, %v4786
    %v4831 = vpack.c.b16 %v4791, %v4787
    %v4832 = vpack.c.b16 %v4796, %v4792
    %v4833 = vpack.c.b16 %v4797, %v4793
    %v4834 = vpack.c.b16 %v4798, %v4794
    %v4835 = vpack.c.b16 %v4799, %v4795
    %v4836 = vpack.c.b16 %v4804, %v4800
    %v4837 = vpack.c.b16 %v4805, %v4801
    %v4838 = vpack.c.b16 %v4806, %v4802
    %v4839 = vpack.c.b16 %v4807, %v4803
    %4872 = vmatprep.subr.bf16.mxu0 %v4837
    %4873 = vmatpush1.bf16.msra.mxu0 %v4836
    %4874 = vmatprep.subr.bf16.mxu0 %v4833
    %4875 = vmatpush1.bf16.msra.mxu0 %v4832
    %4876 = vmatprep.subr.bf16.mxu0 %v4829
    %4877 = vmatpush1.bf16.msra.mxu0 %v4828
    %4878 = vmatprep.subr.bf16.mxu0 %v4825
    %4879 = vmatpush1.bf16.msra.mxu0 %v4824
    %4880 = vmatprep.subr.bf16.mxu0 %v4821
    %4881 = vmatpush1.bf16.msra.mxu0 %v4820
    %4882 = vmatprep.subr.bf16.mxu0 %v4817
    %4883 = vmatpush1.bf16.msra.mxu0 %v4816
    %4884 = vmatprep.subr.bf16.mxu0 %v4813
    %4885 = vmatpush1.bf16.msra.mxu0 %v4812
    %4886 = vmatprep.subr.bf16.mxu0 %v4809
    %4887 = vmatpush1.bf16.msra.mxu0 %v4808
    %4888 = vmatprep.subr.bf16.mxu0 0
    %4889 = vmatpush2.bf16.msra.mxu0 0
    %4890 = vmatprep.subr.bf16.mxu0 0
    %4891 = vmatpush2.bf16.msra.mxu0 0
    %4892 = vmatprep.subr.bf16.mxu0 0
    %4893 = vmatpush2.bf16.msra.mxu0 0
    %4894 = vmatprep.subr.bf16.mxu0 0
    %4895 = vmatpush2.bf16.msra.mxu0 0
    %4896 = vmatprep.subr.bf16.mxu0 0
    %4897 = vmatpush2.bf16.msra.mxu0 0
    %4898 = vmatprep.subr.bf16.mxu0 0
    %4899 = vmatpush2.bf16.msra.mxu0 0
    %4900 = vmatprep.subr.bf16.mxu0 0
    %4901 = vmatpush2.bf16.msra.mxu0 0
    %4902 = vmatprep.subr.bf16.mxu0 0
    %4903 = vmatpush2.bf16.msra.mxu0 0
    %4904 = vmatprep.mubr.bf16.mxu0 0
    %4905 = vmatmul.mubr.bf16.gmra.mxu0 %v4679
    %v4906 = vpop.f32.mrf.mxu0
    %v4907 = vadd.f32 0.0, %v4906
    %v4908 = vpop.f32.mrf.mxu0
    %v4909 = vadd.f32 0.0, %v4908
    %v4910 = vpop.f32.mrf.mxu0
    %v4911 = vpop.f32.mrf.mxu0
    %4912 = vdwg.mxu0
    %4913 = vmatprep.subr.bf16.mxu0 %v4839
    %4914 = vmatpush1.bf16.msra.mxu0 %v4838
    %4915 = vmatprep.subr.bf16.mxu0 %v4835
    %4916 = vmatpush1.bf16.msra.mxu0 %v4834
    %4917 = vmatprep.subr.bf16.mxu0 %v4831
    %4918 = vmatpush1.bf16.msra.mxu0 %v4830
    %4919 = vmatprep.subr.bf16.mxu0 %v4827
    %4920 = vmatpush1.bf16.msra.mxu0 %v4826
    %4921 = vmatprep.subr.bf16.mxu0 %v4823
    %4922 = vmatpush1.bf16.msra.mxu0 %v4822
    %4923 = vmatprep.subr.bf16.mxu0 %v4819
    %4924 = vmatpush1.bf16.msra.mxu0 %v4818
    %4925 = vmatprep.subr.bf16.mxu0 %v4815
    %4926 = vmatpush1.bf16.msra.mxu0 %v4814
    %4927 = vmatprep.subr.bf16.mxu0 %v4811
    %4928 = vmatpush1.bf16.msra.mxu0 %v4810
    %4929 = vmatprep.subr.bf16.mxu0 0
    %4930 = vmatpush2.bf16.msra.mxu0 0
    %4931 = vmatprep.subr.bf16.mxu0 0
    %4932 = vmatpush2.bf16.msra.mxu0 0
    %4933 = vmatprep.subr.bf16.mxu0 0
    %4934 = vmatpush2.bf16.msra.mxu0 0
    %4935 = vmatprep.subr.bf16.mxu0 0
    %4936 = vmatpush2.bf16.msra.mxu0 0
    %4937 = vmatprep.subr.bf16.mxu0 0
    %4938 = vmatpush2.bf16.msra.mxu0 0
    %4939 = vmatprep.subr.bf16.mxu0 0
    %4940 = vmatpush2.bf16.msra.mxu0 0
    %4941 = vmatprep.subr.bf16.mxu0 0
    %4942 = vmatpush2.bf16.msra.mxu0 0
    %4943 = vmatprep.subr.bf16.mxu0 0
    %4944 = vmatpush2.bf16.msra.mxu0 0
    %4945 = vmatprep.mubr.bf16.mxu0 0
    %4946 = vmatmul.mubr.bf16.gmra.mxu0 %v4679
    %v4947 = vpop.f32.mrf.mxu0
    %v4948 = vadd.f32 0.0, %v4947
    %v4949 = vpop.f32.mrf.mxu0
    %v4950 = vadd.f32 0.0, %v4949
    %v4951 = vpop.f32.mrf.mxu0
    %v4952 = vpop.f32.mrf.mxu0
    %4953 = vdwg.mxu0
    %v4954 = vadd.f32 %v4675, %v4907
    %v4955 = vadd.f32 %v4676, %v4909
    %v4956 = vadd.f32 %v4677, %v4948
    %v4957 = vadd.f32 %v4678, %v4950
    %s4958 = smul.addr %s1549, 8
    %s4959 = scalar_lea.vmem [#allocation3], %s4958
    %v4960 = vld [vmem:[%s4959] sm:$0xff]
    %v4961 = vld [vmem:[%s4959 + $0x8] sm:$0xff]
    %v4962 = vld [vmem:[%s4959 + $0x10] sm:$0xff]
    %v4963 = vld [vmem:[%s4959 + $0x18] sm:$0xff]
    %v4964 = vpack.c.bf16 %v4670, %v4670
    %v4965 = vld [vmem:[#allocation10] sm:$0xff]
    %v4966 = vld [vmem:[#allocation10 + $0x8] sm:$0xff]
    %v4967 = vld [vmem:[#allocation10 + $0x10] sm:$0xff]
    %v4968 = vld [vmem:[#allocation10 + $0x18] sm:$0xff]
    %v4969 = vld [vmem:[#allocation10 + $0x20] sm:$0xff]
    %v4970 = vld [vmem:[#allocation10 + $0x28] sm:$0xff]
    %v4971 = vld [vmem:[#allocation10 + $0x30] sm:$0xff]
    %v4972 = vld [vmem:[#allocation10 + $0x38] sm:$0xff]
    %v4973 = vld [vmem:[#allocation10 + $0x40] sm:$0xff]
    %v4974 = vld [vmem:[#allocation10 + $0x48] sm:$0xff]
    %v4975 = vld [vmem:[#allocation10 + $0x50] sm:$0xff]
    %v4976 = vld [vmem:[#allocation10 + $0x58] sm:$0xff]
    %v4977 = vld [vmem:[#allocation10 + $0x60] sm:$0xff]
    %v4978 = vld [vmem:[#allocation10 + $0x68] sm:$0xff]
    %v4979 = vld [vmem:[#allocation10 + $0x70] sm:$0xff]
    %v4980 = vld [vmem:[#allocation10 + $0x78] sm:$0xff]
    %v4981 = vld [vmem:[#allocation10 + $0x80] sm:$0xff]
    %v4982 = vld [vmem:[#allocation10 + $0x88] sm:$0xff]
    %v4983 = vld [vmem:[#allocation10 + $0x90] sm:$0xff]
    %v4984 = vld [vmem:[#allocation10 + $0x98] sm:$0xff]
    %v4985 = vld [vmem:[#allocation10 + $0xa0] sm:$0xff]
    %v4986 = vld [vmem:[#allocation10 + $0xa8] sm:$0xff]
    %v4987 = vld [vmem:[#allocation10 + $0xb0] sm:$0xff]
    %v4988 = vld [vmem:[#allocation10 + $0xb8] sm:$0xff]
    %v4989 = vld [vmem:[#allocation10 + $0xc0] sm:$0xff]
    %v4990 = vld [vmem:[#allocation10 + $0xc8] sm:$0xff]
    %v4991 = vld [vmem:[#allocation10 + $0xd0] sm:$0xff]
    %v4992 = vld [vmem:[#allocation10 + $0xd8] sm:$0xff]
    %v4993 = vld [vmem:[#allocation10 + $0xe0] sm:$0xff]
    %v4994 = vld [vmem:[#allocation10 + $0xe8] sm:$0xff]
    %v4995 = vld [vmem:[#allocation10 + $0xf0] sm:$0xff]
    %v4996 = vld [vmem:[#allocation10 + $0xf8] sm:$0xff]
    %v5029 = vunpack.c.l.b16 %v4965
    %v5030 = vunpack.c.h.b16 %v4965
    %v5031 = vunpack.c.l.b16 %v4966
    %v5032 = vunpack.c.h.b16 %v4966
    %v5033 = vunpack.c.l.b16 %v4967
    %v5034 = vunpack.c.h.b16 %v4967
    %v5035 = vunpack.c.l.b16 %v4968
    %v5036 = vunpack.c.h.b16 %v4968
    %v5037 = vunpack.c.l.b16 %v4969
    %v5038 = vunpack.c.h.b16 %v4969
    %v5039 = vunpack.c.l.b16 %v4970
    %v5040 = vunpack.c.h.b16 %v4970
    %v5041 = vunpack.c.l.b16 %v4971
    %v5042 = vunpack.c.h.b16 %v4971
    %v5043 = vunpack.c.l.b16 %v4972
    %v5044 = vunpack.c.h.b16 %v4972
    %v5045 = vunpack.c.l.b16 %v4973
    %v5046 = vunpack.c.h.b16 %v4973
    %v5047 = vunpack.c.l.b16 %v4974
    %v5048 = vunpack.c.h.b16 %v4974
    %v5049 = vunpack.c.l.b16 %v4975
    %v5050 = vunpack.c.h.b16 %v4975
    %v5051 = vunpack.c.l.b16 %v4976
    %v5052 = vunpack.c.h.b16 %v4976
    %v5053 = vunpack.c.l.b16 %v4977
    %v5054 = vunpack.c.h.b16 %v4977
    %v5055 = vunpack.c.l.b16 %v4978
    %v5056 = vunpack.c.h.b16 %v4978
    %v5057 = vunpack.c.l.b16 %v4979
    %v5058 = vunpack.c.h.b16 %v4979
    %v5059 = vunpack.c.l.b16 %v4980
    %v5060 = vunpack.c.h.b16 %v4980
    %v5061 = vunpack.c.l.b16 %v4981
    %v5062 = vunpack.c.h.b16 %v4981
    %v5063 = vunpack.c.l.b16 %v4982
    %v5064 = vunpack.c.h.b16 %v4982
    %v5065 = vunpack.c.l.b16 %v4983
    %v5066 = vunpack.c.h.b16 %v4983
    %v5067 = vunpack.c.l.b16 %v4984
    %v5068 = vunpack.c.h.b16 %v4984
    %v5069 = vunpack.c.l.b16 %v4985
    %v5070 = vunpack.c.h.b16 %v4985
    %v5071 = vunpack.c.l.b16 %v4986
    %v5072 = vunpack.c.h.b16 %v4986
    %v5073 = vunpack.c.l.b16 %v4987
    %v5074 = vunpack.c.h.b16 %v4987
    %v5075 = vunpack.c.l.b16 %v4988
    %v5076 = vunpack.c.h.b16 %v4988
    %v5077 = vunpack.c.l.b16 %v4989
    %v5078 = vunpack.c.h.b16 %v4989
    %v5079 = vunpack.c.l.b16 %v4990
    %v5080 = vunpack.c.h.b16 %v4990
    %v5081 = vunpack.c.l.b16 %v4991
    %v5082 = vunpack.c.h.b16 %v4991
    %v5083 = vunpack.c.l.b16 %v4992
    %v5084 = vunpack.c.h.b16 %v4992
    %v5085 = vunpack.c.l.b16 %v4993
    %v5086 = vunpack.c.h.b16 %v4993
    %v5087 = vunpack.c.l.b16 %v4994
    %v5088 = vunpack.c.h.b16 %v4994
    %v5089 = vunpack.c.l.b16 %v4995
    %v5090 = vunpack.c.h.b16 %v4995
    %v5091 = vunpack.c.l.b16 %v4996
    %v5092 = vunpack.c.h.b16 %v4996
    %v5093 = vpack.c.b16 %v5033, %v5029
    %v5094 = vpack.c.b16 %v5034, %v5030
    %v5095 = vpack.c.b16 %v5035, %v5031
    %v5096 = vpack.c.b16 %v5036, %v5032
    %v5097 = vpack.c.b16 %v5041, %v5037
    %v5098 = vpack.c.b16 %v5042, %v5038
    %v5099 = vpack.c.b16 %v5043, %v5039
    %v5100 = vpack.c.b16 %v5044, %v5040
    %v5101 = vpack.c.b16 %v5049, %v5045
    %v5102 = vpack.c.b16 %v5050, %v5046
    %v5103 = vpack.c.b16 %v5051, %v5047
    %v5104 = vpack.c.b16 %v5052, %v5048
    %v5105 = vpack.c.b16 %v5057, %v5053
    %v5106 = vpack.c.b16 %v5058, %v5054
    %v5107 = vpack.c.b16 %v5059, %v5055
    %v5108 = vpack.c.b16 %v5060, %v5056
    %v5109 = vpack.c.b16 %v5065, %v5061
    %v5110 = vpack.c.b16 %v5066, %v5062
    %v5111 = vpack.c.b16 %v5067, %v5063
    %v5112 = vpack.c.b16 %v5068, %v5064
    %v5113 = vpack.c.b16 %v5073, %v5069
    %v5114 = vpack.c.b16 %v5074, %v5070
    %v5115 = vpack.c.b16 %v5075, %v5071
    %v5116 = vpack.c.b16 %v5076, %v5072
    %v5117 = vpack.c.b16 %v5081, %v5077
    %v5118 = vpack.c.b16 %v5082, %v5078
    %v5119 = vpack.c.b16 %v5083, %v5079
    %v5120 = vpack.c.b16 %v5084, %v5080
    %v5121 = vpack.c.b16 %v5089, %v5085
    %v5122 = vpack.c.b16 %v5090, %v5086
    %v5123 = vpack.c.b16 %v5091, %v5087
    %v5124 = vpack.c.b16 %v5092, %v5088
    %5157 = vmatprep.subr.bf16.mxu0 %v5122
    %5158 = vmatpush1.bf16.msra.mxu0 %v5121
    %5159 = vmatprep.subr.bf16.mxu0 %v5118
    %5160 = vmatpush1.bf16.msra.mxu0 %v5117
    %5161 = vmatprep.subr.bf16.mxu0 %v5114
    %5162 = vmatpush1.bf16.msra.mxu0 %v5113
    %5163 = vmatprep.subr.bf16.mxu0 %v5110
    %5164 = vmatpush1.bf16.msra.mxu0 %v5109
    %5165 = vmatprep.subr.bf16.mxu0 %v5106
    %5166 = vmatpush1.bf16.msra.mxu0 %v5105
    %5167 = vmatprep.subr.bf16.mxu0 %v5102
    %5168 = vmatpush1.bf16.msra.mxu0 %v5101
    %5169 = vmatprep.subr.bf16.mxu0 %v5098
    %5170 = vmatpush1.bf16.msra.mxu0 %v5097
    %5171 = vmatprep.subr.bf16.mxu0 %v5094
    %5172 = vmatpush1.bf16.msra.mxu0 %v5093
    %5173 = vmatprep.subr.bf16.mxu0 0
    %5174 = vmatpush2.bf16.msra.mxu0 0
    %5175 = vmatprep.subr.bf16.mxu0 0
    %5176 = vmatpush2.bf16.msra.mxu0 0
    %5177 = vmatprep.subr.bf16.mxu0 0
    %5178 = vmatpush2.bf16.msra.mxu0 0
    %5179 = vmatprep.subr.bf16.mxu0 0
    %5180 = vmatpush2.bf16.msra.mxu0 0
    %5181 = vmatprep.subr.bf16.mxu0 0
    %5182 = vmatpush2.bf16.msra.mxu0 0
    %5183 = vmatprep.subr.bf16.mxu0 0
    %5184 = vmatpush2.bf16.msra.mxu0 0
    %5185 = vmatprep.subr.bf16.mxu0 0
    %5186 = vmatpush2.bf16.msra.mxu0 0
    %5187 = vmatprep.subr.bf16.mxu0 0
    %5188 = vmatpush2.bf16.msra.mxu0 0
    %5189 = vmatprep.mubr.bf16.mxu0 0
    %5190 = vmatmul.mubr.bf16.gmra.mxu0 %v4964
    %v5191 = vpop.f32.mrf.mxu0
    %v5192 = vadd.f32 0.0, %v5191
    %v5193 = vpop.f32.mrf.mxu0
    %v5194 = vadd.f32 0.0, %v5193
    %v5195 = vpop.f32.mrf.mxu0
    %v5196 = vpop.f32.mrf.mxu0
    %5197 = vdwg.mxu0
    %5198 = vmatprep.subr.bf16.mxu0 %v5124
    %5199 = vmatpush1.bf16.msra.mxu0 %v5123
    %5200 = vmatprep.subr.bf16.mxu0 %v5120
    %5201 = vmatpush1.bf16.msra.mxu0 %v5119
    %5202 = vmatprep.subr.bf16.mxu0 %v5116
    %5203 = vmatpush1.bf16.msra.mxu0 %v5115
    %5204 = vmatprep.subr.bf16.mxu0 %v5112
    %5205 = vmatpush1.bf16.msra.mxu0 %v5111
    %5206 = vmatprep.subr.bf16.mxu0 %v5108
    %5207 = vmatpush1.bf16.msra.mxu0 %v5107
    %5208 = vmatprep.subr.bf16.mxu0 %v5104
    %5209 = vmatpush1.bf16.msra.mxu0 %v5103
    %5210 = vmatprep.subr.bf16.mxu0 %v5100
    %5211 = vmatpush1.bf16.msra.mxu0 %v5099
    %5212 = vmatprep.subr.bf16.mxu0 %v5096
    %5213 = vmatpush1.bf16.msra.mxu0 %v5095
    %5214 = vmatprep.subr.bf16.mxu0 0
    %5215 = vmatpush2.bf16.msra.mxu0 0
    %5216 = vmatprep.subr.bf16.mxu0 0
    %5217 = vmatpush2.bf16.msra.mxu0 0
    %5218 = vmatprep.subr.bf16.mxu0 0
    %5219 = vmatpush2.bf16.msra.mxu0 0
    %5220 = vmatprep.subr.bf16.mxu0 0
    %5221 = vmatpush2.bf16.msra.mxu0 0
    %5222 = vmatprep.subr.bf16.mxu0 0
    %5223 = vmatpush2.bf16.msra.mxu0 0
    %5224 = vmatprep.subr.bf16.mxu0 0
    %5225 = vmatpush2.bf16.msra.mxu0 0
    %5226 = vmatprep.subr.bf16.mxu0 0
    %5227 = vmatpush2.bf16.msra.mxu0 0
    %5228 = vmatprep.subr.bf16.mxu0 0
    %5229 = vmatpush2.bf16.msra.mxu0 0
    %5230 = vmatprep.mubr.bf16.mxu0 0
    %5231 = vmatmul.mubr.bf16.gmra.mxu0 %v4964
    %v5232 = vpop.f32.mrf.mxu0
    %v5233 = vadd.f32 0.0, %v5232
    %v5234 = vpop.f32.mrf.mxu0
    %v5235 = vadd.f32 0.0, %v5234
    %v5236 = vpop.f32.mrf.mxu0
    %v5237 = vpop.f32.mrf.mxu0
    %5238 = vdwg.mxu0
    %v5239 = vadd.f32 %v4960, %v5192
    %v5240 = vadd.f32 %v4961, %v5194
    %v5241 = vadd.f32 %v4962, %v5233
    %v5242 = vadd.f32 %v4963, %v5235
    %v5243 = vxor.u32 %v4954, 2147483648
    %v5244 = vmul.f32 %v5243, 1.442695
    %v5245 = vpow.pop %v5244
    %v5246 = vadd.f32 %v5245, 1.0
    %v5247 = vrcp.pop %v5246
    %v5248 = vmul.f32 1.0, %v5247
    %v5249 = vxor.u32 %v4955, 2147483648
    %v5250 = vmul.f32 %v5249, 1.442695
    %v5251 = vpow.pop %v5250
    %v5252 = vadd.f32 %v5251, 1.0
    %v5253 = vrcp.pop %v5252
    %v5254 = vmul.f32 1.0, %v5253
    %v5255 = vtanh.pop %v4956
    %v5256 = vxor.u32 %v4957, 2147483648
    %v5257 = vmul.f32 %v5256, 1.442695
    %v5258 = vpow.pop %v5257
    %v5259 = vadd.f32 %v5258, 1.0
    %v5260 = vrcp.pop %v5259
    %v5261 = vmul.f32 1.0, %v5260
    %v5262 = vmul.f32 %v5254, %v4644
    %v5263 = vmul.f32 %v5248, %v5255
    %v5264 = vadd.f32 %v5262, %v5263
    %v5265 = vtanh.pop %v5264
    %v5266 = vmul.f32 %v5261, %v5265
    %v5267 = vxor.u32 %v5239, 2147483648
    %v5268 = vmul.f32 %v5267, 1.442695
    %v5269 = vpow.pop %v5268
    %v5270 = vadd.f32 %v5269, 1.0
    %v5271 = vrcp.pop %v5270
    %v5272 = vmul.f32 1.0, %v5271
    %v5273 = vxor.u32 %v5240, 2147483648
    %v5274 = vmul.f32 %v5273, 1.442695
    %v5275 = vpow.pop %v5274
    %v5276 = vadd.f32 %v5275, 1.0
    %v5277 = vrcp.pop %v5276
    %v5278 = vmul.f32 1.0, %v5277
    %v5279 = vtanh.pop %v5241
    %v5280 = vxor.u32 %v5242, 2147483648
    %v5281 = vmul.f32 %v5280, 1.442695
    %v5282 = vpow.pop %v5281
    %v5283 = vadd.f32 %v5282, 1.0
    %v5284 = vrcp.pop %v5283
    %v5285 = vmul.f32 1.0, %v5284
    %v5286 = vmul.f32 %v5278, %v4668
    %v5287 = vmul.f32 %v5272, %v5279
    %v5288 = vadd.f32 %v5286, %v5287
    %v5289 = vtanh.pop %v5288
    %v5290 = vmul.f32 %v5285, %v5289
    %5291 = vst [vmem:[%s2175] sm:$0xff] %v5266
    %5292 = vst [vmem:[%s2171 + $0x8] sm:$0xff] %v5290
    %s5293 = smul.addr %s1208, 8
    %s5294 = scalar_lea.vmem [#allocation2], %s5293
    %v5295 = vld [vmem:[%s5294] sm:$0xff]
    %v5296 = vld [vmem:[%s5294 + $0x8] sm:$0xff]
    %v5297 = vld [vmem:[%s5294 + $0x10] sm:$0xff]
    %v5298 = vld [vmem:[%s5294 + $0x18] sm:$0xff]
    %v5299 = vpack.c.bf16 %v5266, %v5266
    %v5300 = vld [vmem:[#allocation9] sm:$0xff]
    %v5301 = vld [vmem:[#allocation9 + $0x8] sm:$0xff]
    %v5302 = vld [vmem:[#allocation9 + $0x10] sm:$0xff]
    %v5303 = vld [vmem:[#allocation9 + $0x18] sm:$0xff]
    %v5304 = vld [vmem:[#allocation9 + $0x20] sm:$0xff]
    %v5305 = vld [vmem:[#allocation9 + $0x28] sm:$0xff]
    %v5306 = vld [vmem:[#allocation9 + $0x30] sm:$0xff]
    %v5307 = vld [vmem:[#allocation9 + $0x38] sm:$0xff]
    %v5308 = vld [vmem:[#allocation9 + $0x40] sm:$0xff]
    %v5309 = vld [vmem:[#allocation9 + $0x48] sm:$0xff]
    %v5310 = vld [vmem:[#allocation9 + $0x50] sm:$0xff]
    %v5311 = vld [vmem:[#allocation9 + $0x58] sm:$0xff]
    %v5312 = vld [vmem:[#allocation9 + $0x60] sm:$0xff]
    %v5313 = vld [vmem:[#allocation9 + $0x68] sm:$0xff]
    %v5314 = vld [vmem:[#allocation9 + $0x70] sm:$0xff]
    %v5315 = vld [vmem:[#allocation9 + $0x78] sm:$0xff]
    %v5316 = vld [vmem:[#allocation9 + $0x80] sm:$0xff]
    %v5317 = vld [vmem:[#allocation9 + $0x88] sm:$0xff]
    %v5318 = vld [vmem:[#allocation9 + $0x90] sm:$0xff]
    %v5319 = vld [vmem:[#allocation9 + $0x98] sm:$0xff]
    %v5320 = vld [vmem:[#allocation9 + $0xa0] sm:$0xff]
    %v5321 = vld [vmem:[#allocation9 + $0xa8] sm:$0xff]
    %v5322 = vld [vmem:[#allocation9 + $0xb0] sm:$0xff]
    %v5323 = vld [vmem:[#allocation9 + $0xb8] sm:$0xff]
    %v5324 = vld [vmem:[#allocation9 + $0xc0] sm:$0xff]
    %v5325 = vld [vmem:[#allocation9 + $0xc8] sm:$0xff]
    %v5326 = vld [vmem:[#allocation9 + $0xd0] sm:$0xff]
    %v5327 = vld [vmem:[#allocation9 + $0xd8] sm:$0xff]
    %v5328 = vld [vmem:[#allocation9 + $0xe0] sm:$0xff]
    %v5329 = vld [vmem:[#allocation9 + $0xe8] sm:$0xff]
    %v5330 = vld [vmem:[#allocation9 + $0xf0] sm:$0xff]
    %v5331 = vld [vmem:[#allocation9 + $0xf8] sm:$0xff]
    %v5364 = vunpack.c.l.b16 %v5300
    %v5365 = vunpack.c.h.b16 %v5300
    %v5366 = vunpack.c.l.b16 %v5301
    %v5367 = vunpack.c.h.b16 %v5301
    %v5368 = vunpack.c.l.b16 %v5302
    %v5369 = vunpack.c.h.b16 %v5302
    %v5370 = vunpack.c.l.b16 %v5303
    %v5371 = vunpack.c.h.b16 %v5303
    %v5372 = vunpack.c.l.b16 %v5304
    %v5373 = vunpack.c.h.b16 %v5304
    %v5374 = vunpack.c.l.b16 %v5305
    %v5375 = vunpack.c.h.b16 %v5305
    %v5376 = vunpack.c.l.b16 %v5306
    %v5377 = vunpack.c.h.b16 %v5306
    %v5378 = vunpack.c.l.b16 %v5307
    %v5379 = vunpack.c.h.b16 %v5307
    %v5380 = vunpack.c.l.b16 %v5308
    %v5381 = vunpack.c.h.b16 %v5308
    %v5382 = vunpack.c.l.b16 %v5309
    %v5383 = vunpack.c.h.b16 %v5309
    %v5384 = vunpack.c.l.b16 %v5310
    %v5385 = vunpack.c.h.b16 %v5310
    %v5386 = vunpack.c.l.b16 %v5311
    %v5387 = vunpack.c.h.b16 %v5311
    %v5388 = vunpack.c.l.b16 %v5312
    %v5389 = vunpack.c.h.b16 %v5312
    %v5390 = vunpack.c.l.b16 %v5313
    %v5391 = vunpack.c.h.b16 %v5313
    %v5392 = vunpack.c.l.b16 %v5314
    %v5393 = vunpack.c.h.b16 %v5314
    %v5394 = vunpack.c.l.b16 %v5315
    %v5395 = vunpack.c.h.b16 %v5315
    %v5396 = vunpack.c.l.b16 %v5316
    %v5397 = vunpack.c.h.b16 %v5316
    %v5398 = vunpack.c.l.b16 %v5317
    %v5399 = vunpack.c.h.b16 %v5317
    %v5400 = vunpack.c.l.b16 %v5318
    %v5401 = vunpack.c.h.b16 %v5318
    %v5402 = vunpack.c.l.b16 %v5319
    %v5403 = vunpack.c.h.b16 %v5319
    %v5404 = vunpack.c.l.b16 %v5320
    %v5405 = vunpack.c.h.b16 %v5320
    %v5406 = vunpack.c.l.b16 %v5321
    %v5407 = vunpack.c.h.b16 %v5321
    %v5408 = vunpack.c.l.b16 %v5322
    %v5409 = vunpack.c.h.b16 %v5322
    %v5410 = vunpack.c.l.b16 %v5323
    %v5411 = vunpack.c.h.b16 %v5323
    %v5412 = vunpack.c.l.b16 %v5324
    %v5413 = vunpack.c.h.b16 %v5324
    %v5414 = vunpack.c.l.b16 %v5325
    %v5415 = vunpack.c.h.b16 %v5325
    %v5416 = vunpack.c.l.b16 %v5326
    %v5417 = vunpack.c.h.b16 %v5326
    %v5418 = vunpack.c.l.b16 %v5327
    %v5419 = vunpack.c.h.b16 %v5327
    %v5420 = vunpack.c.l.b16 %v5328
    %v5421 = vunpack.c.h.b16 %v5328
    %v5422 = vunpack.c.l.b16 %v5329
    %v5423 = vunpack.c.h.b16 %v5329
    %v5424 = vunpack.c.l.b16 %v5330
    %v5425 = vunpack.c.h.b16 %v5330
    %v5426 = vunpack.c.l.b16 %v5331
    %v5427 = vunpack.c.h.b16 %v5331
    %v5428 = vpack.c.b16 %v5368, %v5364
    %v5429 = vpack.c.b16 %v5369, %v5365
    %v5430 = vpack.c.b16 %v5370, %v5366
    %v5431 = vpack.c.b16 %v5371, %v5367
    %v5432 = vpack.c.b16 %v5376, %v5372
    %v5433 = vpack.c.b16 %v5377, %v5373
    %v5434 = vpack.c.b16 %v5378, %v5374
    %v5435 = vpack.c.b16 %v5379, %v5375
    %v5436 = vpack.c.b16 %v5384, %v5380
    %v5437 = vpack.c.b16 %v5385, %v5381
    %v5438 = vpack.c.b16 %v5386, %v5382
    %v5439 = vpack.c.b16 %v5387, %v5383
    %v5440 = vpack.c.b16 %v5392, %v5388
    %v5441 = vpack.c.b16 %v5393, %v5389
    %v5442 = vpack.c.b16 %v5394, %v5390
    %v5443 = vpack.c.b16 %v5395, %v5391
    %v5444 = vpack.c.b16 %v5400, %v5396
    %v5445 = vpack.c.b16 %v5401, %v5397
    %v5446 = vpack.c.b16 %v5402, %v5398
    %v5447 = vpack.c.b16 %v5403, %v5399
    %v5448 = vpack.c.b16 %v5408, %v5404
    %v5449 = vpack.c.b16 %v5409, %v5405
    %v5450 = vpack.c.b16 %v5410, %v5406
    %v5451 = vpack.c.b16 %v5411, %v5407
    %v5452 = vpack.c.b16 %v5416, %v5412
    %v5453 = vpack.c.b16 %v5417, %v5413
    %v5454 = vpack.c.b16 %v5418, %v5414
    %v5455 = vpack.c.b16 %v5419, %v5415
    %v5456 = vpack.c.b16 %v5424, %v5420
    %v5457 = vpack.c.b16 %v5425, %v5421
    %v5458 = vpack.c.b16 %v5426, %v5422
    %v5459 = vpack.c.b16 %v5427, %v5423
    %5492 = vmatprep.subr.bf16.mxu0 %v5457
    %5493 = vmatpush1.bf16.msra.mxu0 %v5456
    %5494 = vmatprep.subr.bf16.mxu0 %v5453
    %5495 = vmatpush1.bf16.msra.mxu0 %v5452
    %5496 = vmatprep.subr.bf16.mxu0 %v5449
    %5497 = vmatpush1.bf16.msra.mxu0 %v5448
    %5498 = vmatprep.subr.bf16.mxu0 %v5445
    %5499 = vmatpush1.bf16.msra.mxu0 %v5444
    %5500 = vmatprep.subr.bf16.mxu0 %v5441
    %5501 = vmatpush1.bf16.msra.mxu0 %v5440
    %5502 = vmatprep.subr.bf16.mxu0 %v5437
    %5503 = vmatpush1.bf16.msra.mxu0 %v5436
    %5504 = vmatprep.subr.bf16.mxu0 %v5433
    %5505 = vmatpush1.bf16.msra.mxu0 %v5432
    %5506 = vmatprep.subr.bf16.mxu0 %v5429
    %5507 = vmatpush1.bf16.msra.mxu0 %v5428
    %5508 = vmatprep.subr.bf16.mxu0 0
    %5509 = vmatpush2.bf16.msra.mxu0 0
    %5510 = vmatprep.subr.bf16.mxu0 0
    %5511 = vmatpush2.bf16.msra.mxu0 0
    %5512 = vmatprep.subr.bf16.mxu0 0
    %5513 = vmatpush2.bf16.msra.mxu0 0
    %5514 = vmatprep.subr.bf16.mxu0 0
    %5515 = vmatpush2.bf16.msra.mxu0 0
    %5516 = vmatprep.subr.bf16.mxu0 0
    %5517 = vmatpush2.bf16.msra.mxu0 0
    %5518 = vmatprep.subr.bf16.mxu0 0
    %5519 = vmatpush2.bf16.msra.mxu0 0
    %5520 = vmatprep.subr.bf16.mxu0 0
    %5521 = vmatpush2.bf16.msra.mxu0 0
    %5522 = vmatprep.subr.bf16.mxu0 0
    %5523 = vmatpush2.bf16.msra.mxu0 0
    %5524 = vmatprep.mubr.bf16.mxu0 0
    %5525 = vmatmul.mubr.bf16.gmra.mxu0 %v5299
    %v5526 = vpop.f32.mrf.mxu0
    %v5527 = vadd.f32 0.0, %v5526
    %v5528 = vpop.f32.mrf.mxu0
    %v5529 = vadd.f32 0.0, %v5528
    %v5530 = vpop.f32.mrf.mxu0
    %v5531 = vpop.f32.mrf.mxu0
    %5532 = vdwg.mxu0
    %5533 = vmatprep.subr.bf16.mxu0 %v5459
    %5534 = vmatpush1.bf16.msra.mxu0 %v5458
    %5535 = vmatprep.subr.bf16.mxu0 %v5455
    %5536 = vmatpush1.bf16.msra.mxu0 %v5454
    %5537 = vmatprep.subr.bf16.mxu0 %v5451
    %5538 = vmatpush1.bf16.msra.mxu0 %v5450
    %5539 = vmatprep.subr.bf16.mxu0 %v5447
    %5540 = vmatpush1.bf16.msra.mxu0 %v5446
    %5541 = vmatprep.subr.bf16.mxu0 %v5443
    %5542 = vmatpush1.bf16.msra.mxu0 %v5442
    %5543 = vmatprep.subr.bf16.mxu0 %v5439
    %5544 = vmatpush1.bf16.msra.mxu0 %v5438
    %5545 = vmatprep.subr.bf16.mxu0 %v5435
    %5546 = vmatpush1.bf16.msra.mxu0 %v5434
    %5547 = vmatprep.subr.bf16.mxu0 %v5431
    %5548 = vmatpush1.bf16.msra.mxu0 %v5430
    %5549 = vmatprep.subr.bf16.mxu0 0
    %5550 = vmatpush2.bf16.msra.mxu0 0
    %5551 = vmatprep.subr.bf16.mxu0 0
    %5552 = vmatpush2.bf16.msra.mxu0 0
    %5553 = vmatprep.subr.bf16.mxu0 0
    %5554 = vmatpush2.bf16.msra.mxu0 0
    %5555 = vmatprep.subr.bf16.mxu0 0
    %5556 = vmatpush2.bf16.msra.mxu0 0
    %5557 = vmatprep.subr.bf16.mxu0 0
    %5558 = vmatpush2.bf16.msra.mxu0 0
    %5559 = vmatprep.subr.bf16.mxu0 0
    %5560 = vmatpush2.bf16.msra.mxu0 0
    %5561 = vmatprep.subr.bf16.mxu0 0
    %5562 = vmatpush2.bf16.msra.mxu0 0
    %5563 = vmatprep.subr.bf16.mxu0 0
    %5564 = vmatpush2.bf16.msra.mxu0 0
    %5565 = vmatprep.mubr.bf16.mxu0 0
    %5566 = vmatmul.mubr.bf16.gmra.mxu0 %v5299
    %v5567 = vpop.f32.mrf.mxu0
    %v5568 = vadd.f32 0.0, %v5567
    %v5569 = vpop.f32.mrf.mxu0
    %v5570 = vadd.f32 0.0, %v5569
    %v5571 = vpop.f32.mrf.mxu0
    %v5572 = vpop.f32.mrf.mxu0
    %5573 = vdwg.mxu0
    %v5574 = vadd.f32 %v5295, %v5527
    %v5575 = vadd.f32 %v5296, %v5529
    %v5576 = vadd.f32 %v5297, %v5568
    %v5577 = vadd.f32 %v5298, %v5570
    %s5578 = smul.addr %s923, 8
    %s5579 = scalar_lea.vmem [#allocation3], %s5578
    %v5580 = vld [vmem:[%s5579] sm:$0xff]
    %v5581 = vld [vmem:[%s5579 + $0x8] sm:$0xff]
    %v5582 = vld [vmem:[%s5579 + $0x10] sm:$0xff]
    %v5583 = vld [vmem:[%s5579 + $0x18] sm:$0xff]
    %v5584 = vpack.c.bf16 %v5290, %v5290
    %v5585 = vld [vmem:[#allocation10] sm:$0xff]
    %v5586 = vld [vmem:[#allocation10 + $0x8] sm:$0xff]
    %v5587 = vld [vmem:[#allocation10 + $0x10] sm:$0xff]
    %v5588 = vld [vmem:[#allocation10 + $0x18] sm:$0xff]
    %v5589 = vld [vmem:[#allocation10 + $0x20] sm:$0xff]
    %v5590 = vld [vmem:[#allocation10 + $0x28] sm:$0xff]
    %v5591 = vld [vmem:[#allocation10 + $0x30] sm:$0xff]
    %v5592 = vld [vmem:[#allocation10 + $0x38] sm:$0xff]
    %v5593 = vld [vmem:[#allocation10 + $0x40] sm:$0xff]
    %v5594 = vld [vmem:[#allocation10 + $0x48] sm:$0xff]
    %v5595 = vld [vmem:[#allocation10 + $0x50] sm:$0xff]
    %v5596 = vld [vmem:[#allocation10 + $0x58] sm:$0xff]
    %v5597 = vld [vmem:[#allocation10 + $0x60] sm:$0xff]
    %v5598 = vld [vmem:[#allocation10 + $0x68] sm:$0xff]
    %v5599 = vld [vmem:[#allocation10 + $0x70] sm:$0xff]
    %v5600 = vld [vmem:[#allocation10 + $0x78] sm:$0xff]
    %v5601 = vld [vmem:[#allocation10 + $0x80] sm:$0xff]
    %v5602 = vld [vmem:[#allocation10 + $0x88] sm:$0xff]
    %v5603 = vld [vmem:[#allocation10 + $0x90] sm:$0xff]
    %v5604 = vld [vmem:[#allocation10 + $0x98] sm:$0xff]
    %v5605 = vld [vmem:[#allocation10 + $0xa0] sm:$0xff]
    %v5606 = vld [vmem:[#allocation10 + $0xa8] sm:$0xff]
    %v5607 = vld [vmem:[#allocation10 + $0xb0] sm:$0xff]
    %v5608 = vld [vmem:[#allocation10 + $0xb8] sm:$0xff]
    %v5609 = vld [vmem:[#allocation10 + $0xc0] sm:$0xff]
    %v5610 = vld [vmem:[#allocation10 + $0xc8] sm:$0xff]
    %v5611 = vld [vmem:[#allocation10 + $0xd0] sm:$0xff]
    %v5612 = vld [vmem:[#allocation10 + $0xd8] sm:$0xff]
    %v5613 = vld [vmem:[#allocation10 + $0xe0] sm:$0xff]
    %v5614 = vld [vmem:[#allocation10 + $0xe8] sm:$0xff]
    %v5615 = vld [vmem:[#allocation10 + $0xf0] sm:$0xff]
    %v5616 = vld [vmem:[#allocation10 + $0xf8] sm:$0xff]
    %v5649 = vunpack.c.l.b16 %v5585
    %v5650 = vunpack.c.h.b16 %v5585
    %v5651 = vunpack.c.l.b16 %v5586
    %v5652 = vunpack.c.h.b16 %v5586
    %v5653 = vunpack.c.l.b16 %v5587
    %v5654 = vunpack.c.h.b16 %v5587
    %v5655 = vunpack.c.l.b16 %v5588
    %v5656 = vunpack.c.h.b16 %v5588
    %v5657 = vunpack.c.l.b16 %v5589
    %v5658 = vunpack.c.h.b16 %v5589
    %v5659 = vunpack.c.l.b16 %v5590
    %v5660 = vunpack.c.h.b16 %v5590
    %v5661 = vunpack.c.l.b16 %v5591
    %v5662 = vunpack.c.h.b16 %v5591
    %v5663 = vunpack.c.l.b16 %v5592
    %v5664 = vunpack.c.h.b16 %v5592
    %v5665 = vunpack.c.l.b16 %v5593
    %v5666 = vunpack.c.h.b16 %v5593
    %v5667 = vunpack.c.l.b16 %v5594
    %v5668 = vunpack.c.h.b16 %v5594
    %v5669 = vunpack.c.l.b16 %v5595
    %v5670 = vunpack.c.h.b16 %v5595
    %v5671 = vunpack.c.l.b16 %v5596
    %v5672 = vunpack.c.h.b16 %v5596
    %v5673 = vunpack.c.l.b16 %v5597
    %v5674 = vunpack.c.h.b16 %v5597
    %v5675 = vunpack.c.l.b16 %v5598
    %v5676 = vunpack.c.h.b16 %v5598
    %v5677 = vunpack.c.l.b16 %v5599
    %v5678 = vunpack.c.h.b16 %v5599
    %v5679 = vunpack.c.l.b16 %v5600
    %v5680 = vunpack.c.h.b16 %v5600
    %v5681 = vunpack.c.l.b16 %v5601
    %v5682 = vunpack.c.h.b16 %v5601
    %v5683 = vunpack.c.l.b16 %v5602
    %v5684 = vunpack.c.h.b16 %v5602
    %v5685 = vunpack.c.l.b16 %v5603
    %v5686 = vunpack.c.h.b16 %v5603
    %v5687 = vunpack.c.l.b16 %v5604
    %v5688 = vunpack.c.h.b16 %v5604
    %v5689 = vunpack.c.l.b16 %v5605
    %v5690 = vunpack.c.h.b16 %v5605
    %v5691 = vunpack.c.l.b16 %v5606
    %v5692 = vunpack.c.h.b16 %v5606
    %v5693 = vunpack.c.l.b16 %v5607
    %v5694 = vunpack.c.h.b16 %v5607
    %v5695 = vunpack.c.l.b16 %v5608
    %v5696 = vunpack.c.h.b16 %v5608
    %v5697 = vunpack.c.l.b16 %v5609
    %v5698 = vunpack.c.h.b16 %v5609
    %v5699 = vunpack.c.l.b16 %v5610
    %v5700 = vunpack.c.h.b16 %v5610
    %v5701 = vunpack.c.l.b16 %v5611
    %v5702 = vunpack.c.h.b16 %v5611
    %v5703 = vunpack.c.l.b16 %v5612
    %v5704 = vunpack.c.h.b16 %v5612
    %v5705 = vunpack.c.l.b16 %v5613
    %v5706 = vunpack.c.h.b16 %v5613
    %v5707 = vunpack.c.l.b16 %v5614
    %v5708 = vunpack.c.h.b16 %v5614
    %v5709 = vunpack.c.l.b16 %v5615
    %v5710 = vunpack.c.h.b16 %v5615
    %v5711 = vunpack.c.l.b16 %v5616
    %v5712 = vunpack.c.h.b16 %v5616
    %v5713 = vpack.c.b16 %v5653, %v5649
    %v5714 = vpack.c.b16 %v5654, %v5650
    %v5715 = vpack.c.b16 %v5655, %v5651
    %v5716 = vpack.c.b16 %v5656, %v5652
    %v5717 = vpack.c.b16 %v5661, %v5657
    %v5718 = vpack.c.b16 %v5662, %v5658
    %v5719 = vpack.c.b16 %v5663, %v5659
    %v5720 = vpack.c.b16 %v5664, %v5660
    %v5721 = vpack.c.b16 %v5669, %v5665
    %v5722 = vpack.c.b16 %v5670, %v5666
    %v5723 = vpack.c.b16 %v5671, %v5667
    %v5724 = vpack.c.b16 %v5672, %v5668
    %v5725 = vpack.c.b16 %v5677, %v5673
    %v5726 = vpack.c.b16 %v5678, %v5674
    %v5727 = vpack.c.b16 %v5679, %v5675
    %v5728 = vpack.c.b16 %v5680, %v5676
    %v5729 = vpack.c.b16 %v5685, %v5681
    %v5730 = vpack.c.b16 %v5686, %v5682
    %v5731 = vpack.c.b16 %v5687, %v5683
    %v5732 = vpack.c.b16 %v5688, %v5684
    %v5733 = vpack.c.b16 %v5693, %v5689
    %v5734 = vpack.c.b16 %v5694, %v5690
    %v5735 = vpack.c.b16 %v5695, %v5691
    %v5736 = vpack.c.b16 %v5696, %v5692
    %v5737 = vpack.c.b16 %v5701, %v5697
    %v5738 = vpack.c.b16 %v5702, %v5698
    %v5739 = vpack.c.b16 %v5703, %v5699
    %v5740 = vpack.c.b16 %v5704, %v5700
    %v5741 = vpack.c.b16 %v5709, %v5705
    %v5742 = vpack.c.b16 %v5710, %v5706
    %v5743 = vpack.c.b16 %v5711, %v5707
    %v5744 = vpack.c.b16 %v5712, %v5708
    %5777 = vmatprep.subr.bf16.mxu0 %v5742
    %5778 = vmatpush1.bf16.msra.mxu0 %v5741
    %5779 = vmatprep.subr.bf16.mxu0 %v5738
    %5780 = vmatpush1.bf16.msra.mxu0 %v5737
    %5781 = vmatprep.subr.bf16.mxu0 %v5734
    %5782 = vmatpush1.bf16.msra.mxu0 %v5733
    %5783 = vmatprep.subr.bf16.mxu0 %v5730
    %5784 = vmatpush1.bf16.msra.mxu0 %v5729
    %5785 = vmatprep.subr.bf16.mxu0 %v5726
    %5786 = vmatpush1.bf16.msra.mxu0 %v5725
    %5787 = vmatprep.subr.bf16.mxu0 %v5722
    %5788 = vmatpush1.bf16.msra.mxu0 %v5721
    %5789 = vmatprep.subr.bf16.mxu0 %v5718
    %5790 = vmatpush1.bf16.msra.mxu0 %v5717
    %5791 = vmatprep.subr.bf16.mxu0 %v5714
    %5792 = vmatpush1.bf16.msra.mxu0 %v5713
    %5793 = vmatprep.subr.bf16.mxu0 0
    %5794 = vmatpush2.bf16.msra.mxu0 0
    %5795 = vmatprep.subr.bf16.mxu0 0
    %5796 = vmatpush2.bf16.msra.mxu0 0
    %5797 = vmatprep.subr.bf16.mxu0 0
    %5798 = vmatpush2.bf16.msra.mxu0 0
    %5799 = vmatprep.subr.bf16.mxu0 0
    %5800 = vmatpush2.bf16.msra.mxu0 0
    %5801 = vmatprep.subr.bf16.mxu0 0
    %5802 = vmatpush2.bf16.msra.mxu0 0
    %5803 = vmatprep.subr.bf16.mxu0 0
    %5804 = vmatpush2.bf16.msra.mxu0 0
    %5805 = vmatprep.subr.bf16.mxu0 0
    %5806 = vmatpush2.bf16.msra.mxu0 0
    %5807 = vmatprep.subr.bf16.mxu0 0
    %5808 = vmatpush2.bf16.msra.mxu0 0
    %5809 = vmatprep.mubr.bf16.mxu0 0
    %5810 = vmatmul.mubr.bf16.gmra.mxu0 %v5584
    %v5811 = vpop.f32.mrf.mxu0
    %v5812 = vadd.f32 0.0, %v5811
    %v5813 = vpop.f32.mrf.mxu0
    %v5814 = vadd.f32 0.0, %v5813
    %v5815 = vpop.f32.mrf.mxu0
    %v5816 = vpop.f32.mrf.mxu0
    %5817 = vdwg.mxu0
    %5818 = vmatprep.subr.bf16.mxu0 %v5744
    %5819 = vmatpush1.bf16.msra.mxu0 %v5743
    %5820 = vmatprep.subr.bf16.mxu0 %v5740
    %5821 = vmatpush1.bf16.msra.mxu0 %v5739
    %5822 = vmatprep.subr.bf16.mxu0 %v5736
    %5823 = vmatpush1.bf16.msra.mxu0 %v5735
    %5824 = vmatprep.subr.bf16.mxu0 %v5732
    %5825 = vmatpush1.bf16.msra.mxu0 %v5731
    %5826 = vmatprep.subr.bf16.mxu0 %v5728
    %5827 = vmatpush1.bf16.msra.mxu0 %v5727
    %5828 = vmatprep.subr.bf16.mxu0 %v5724
    %5829 = vmatpush1.bf16.msra.mxu0 %v5723
    %5830 = vmatprep.subr.bf16.mxu0 %v5720
    %5831 = vmatpush1.bf16.msra.mxu0 %v5719
    %5832 = vmatprep.subr.bf16.mxu0 %v5716
    %5833 = vmatpush1.bf16.msra.mxu0 %v5715
    %5834 = vmatprep.subr.bf16.mxu0 0
    %5835 = vmatpush2.bf16.msra.mxu0 0
    %5836 = vmatprep.subr.bf16.mxu0 0
    %5837 = vmatpush2.bf16.msra.mxu0 0
    %5838 = vmatprep.subr.bf16.mxu0 0
    %5839 = vmatpush2.bf16.msra.mxu0 0
    %5840 = vmatprep.subr.bf16.mxu0 0
    %5841 = vmatpush2.bf16.msra.mxu0 0
    %5842 = vmatprep.subr.bf16.mxu0 0
    %5843 = vmatpush2.bf16.msra.mxu0 0
    %5844 = vmatprep.subr.bf16.mxu0 0
    %5845 = vmatpush2.bf16.msra.mxu0 0
    %5846 = vmatprep.subr.bf16.mxu0 0
    %5847 = vmatpush2.bf16.msra.mxu0 0
    %5848 = vmatprep.subr.bf16.mxu0 0
    %5849 = vmatpush2.bf16.msra.mxu0 0
    %5850 = vmatprep.mubr.bf16.mxu0 0
    %5851 = vmatmul.mubr.bf16.gmra.mxu0 %v5584
    %v5852 = vpop.f32.mrf.mxu0
    %v5853 = vadd.f32 0.0, %v5852
    %v5854 = vpop.f32.mrf.mxu0
    %v5855 = vadd.f32 0.0, %v5854
    %v5856 = vpop.f32.mrf.mxu0
    %v5857 = vpop.f32.mrf.mxu0
    %5858 = vdwg.mxu0
    %v5859 = vadd.f32 %v5580, %v5812
    %v5860 = vadd.f32 %v5581, %v5814
    %v5861 = vadd.f32 %v5582, %v5853
    %v5862 = vadd.f32 %v5583, %v5855
    %v5863 = vxor.u32 %v5574, 2147483648
    %v5864 = vmul.f32 %v5863, 1.442695
    %v5865 = vpow.pop %v5864
    %v5866 = vadd.f32 %v5865, 1.0
    %v5867 = vrcp.pop %v5866
    %v5868 = vmul.f32 1.0, %v5867
    %v5869 = vxor.u32 %v5575, 2147483648
    %v5870 = vmul.f32 %v5869, 1.442695
    %v5871 = vpow.pop %v5870
    %v5872 = vadd.f32 %v5871, 1.0
    %v5873 = vrcp.pop %v5872
    %v5874 = vmul.f32 1.0, %v5873
    %v5875 = vtanh.pop %v5576
    %v5876 = vxor.u32 %v5577, 2147483648
    %v5877 = vmul.f32 %v5876, 1.442695
    %v5878 = vpow.pop %v5877
    %v5879 = vadd.f32 %v5878, 1.0
    %v5880 = vrcp.pop %v5879
    %v5881 = vmul.f32 1.0, %v5880
    %v5882 = vmul.f32 %v5874, %v5264
    %v5883 = vmul.f32 %v5868, %v5875
    %v5884 = vadd.f32 %v5882, %v5883
    %v5885 = vtanh.pop %v5884
    %v5886 = vmul.f32 %v5881, %v5885
    %v5887 = vxor.u32 %v5859, 2147483648
    %v5888 = vmul.f32 %v5887, 1.442695
    %v5889 = vpow.pop %v5888
    %v5890 = vadd.f32 %v5889, 1.0
    %v5891 = vrcp.pop %v5890
    %v5892 = vmul.f32 1.0, %v5891
    %v5893 = vxor.u32 %v5860, 2147483648
    %v5894 = vmul.f32 %v5893, 1.442695
    %v5895 = vpow.pop %v5894
    %v5896 = vadd.f32 %v5895, 1.0
    %v5897 = vrcp.pop %v5896
    %v5898 = vmul.f32 1.0, %v5897
    %v5899 = vtanh.pop %v5861
    %v5900 = vxor.u32 %v5862, 2147483648
    %v5901 = vmul.f32 %v5900, 1.442695
    %v5902 = vpow.pop %v5901
    %v5903 = vadd.f32 %v5902, 1.0
    %v5904 = vrcp.pop %v5903
    %v5905 = vmul.f32 1.0, %v5904
    %v5906 = vmul.f32 %v5898, %v5288
    %v5907 = vmul.f32 %v5892, %v5899
    %v5908 = vadd.f32 %v5906, %v5907
    %v5909 = vtanh.pop %v5908
    %v5910 = vmul.f32 %v5905, %v5909
    %5911 = vst [vmem:[%s1547] sm:$0xff] %v5886
    %5912 = vst [vmem:[%s1543 + $0x8] sm:$0xff] %v5910
    %v5913 = vld [vmem:[#allocation4] sm:$0xff]
    %v5914 = vld [vmem:[#allocation4 + $0x8] sm:$0xff]
    %v5915 = vld [vmem:[#allocation4 + $0x10] sm:$0xff]
    %v5916 = vld [vmem:[#allocation4 + $0x18] sm:$0xff]
    %v5917 = vld [vmem:[#allocation4 + $0x20] sm:$0xff]
    %v5918 = vld [vmem:[#allocation4 + $0x28] sm:$0xff]
    %v5919 = vld [vmem:[#allocation4 + $0x30] sm:$0xff]
    %v5920 = vld [vmem:[#allocation4 + $0x38] sm:$0xff]
    %v5921 = vld [vmem:[#allocation4 + $0x40] sm:$0xff]
    %v5922 = vld [vmem:[#allocation4 + $0x48] sm:$0xff]
    %v5923 = vld [vmem:[#allocation4 + $0x50] sm:$0xff]
    %v5924 = vld [vmem:[#allocation4 + $0x58] sm:$0xff]
    %v5925 = vld [vmem:[#allocation4 + $0x60] sm:$0xff]
    %v5926 = vld [vmem:[#allocation4 + $0x68] sm:$0xff]
    %v5927 = vld [vmem:[#allocation4 + $0x70] sm:$0xff]
    %v5928 = vld [vmem:[#allocation4 + $0x78] sm:$0xff]
    %v5929 = vpack.c.bf16 %v5915, %v5913
    %v5930 = vpack.c.bf16 %v5916, %v5914
    %v5931 = vpack.c.bf16 %v5919, %v5917
    %v5932 = vpack.c.bf16 %v5920, %v5918
    %v5933 = vpack.c.bf16 %v5923, %v5921
    %v5934 = vpack.c.bf16 %v5924, %v5922
    %v5935 = vpack.c.bf16 %v5927, %v5925
    %v5936 = vpack.c.bf16 %v5928, %v5926
    %v5937 = vld [vmem:[#allocation12] sm:$0xf]
    %v5938 = vld [vmem:[#allocation12 + $0x4] sm:$0xf]
    %v5939 = vld [vmem:[#allocation12 + $0x8] sm:$0xf]
    %v5940 = vld [vmem:[#allocation12 + $0xc] sm:$0xf]
    %v5941 = vld [vmem:[#allocation12 + $0x10] sm:$0xf]
    %v5942 = vld [vmem:[#allocation12 + $0x14] sm:$0xf]
    %v5943 = vld [vmem:[#allocation12 + $0x18] sm:$0xf]
    %v5944 = vld [vmem:[#allocation12 + $0x1c] sm:$0xf]
    %v5945 = vld [vmem:[#allocation12 + $0x20] sm:$0xf]
    %v5946 = vld [vmem:[#allocation12 + $0x24] sm:$0xf]
    %v5947 = vld [vmem:[#allocation12 + $0x28] sm:$0xf]
    %v5948 = vld [vmem:[#allocation12 + $0x2c] sm:$0xf]
    %v5949 = vld [vmem:[#allocation12 + $0x30] sm:$0xf]
    %v5950 = vld [vmem:[#allocation12 + $0x34] sm:$0xf]
    %v5951 = vld [vmem:[#allocation12 + $0x38] sm:$0xf]
    %v5952 = vld [vmem:[#allocation12 + $0x3c] sm:$0xf]
    %v5953 = vld [vmem:[#allocation12 + $0x40] sm:$0xf]
    %v5954 = vld [vmem:[#allocation12 + $0x44] sm:$0xf]
    %v5955 = vld [vmem:[#allocation12 + $0x48] sm:$0xf]
    %v5956 = vld [vmem:[#allocation12 + $0x4c] sm:$0xf]
    %v5957 = vld [vmem:[#allocation12 + $0x50] sm:$0xf]
    %v5958 = vld [vmem:[#allocation12 + $0x54] sm:$0xf]
    %v5959 = vld [vmem:[#allocation12 + $0x58] sm:$0xf]
    %v5960 = vld [vmem:[#allocation12 + $0x5c] sm:$0xf]
    %v5961 = vld [vmem:[#allocation12 + $0x60] sm:$0xf]
    %v5962 = vld [vmem:[#allocation12 + $0x64] sm:$0xf]
    %v5963 = vld [vmem:[#allocation12 + $0x68] sm:$0xf]
    %v5964 = vld [vmem:[#allocation12 + $0x6c] sm:$0xf]
    %v5965 = vld [vmem:[#allocation12 + $0x70] sm:$0xf]
    %v5966 = vld [vmem:[#allocation12 + $0x74] sm:$0xf]
    %v5967 = vld [vmem:[#allocation12 + $0x78] sm:$0xf]
    %v5968 = vld [vmem:[#allocation12 + $0x7c] sm:$0xf]
    %v5969 = vld [vmem:[%s8] sm:$0x1]
    %v5971 = vlaneseq
    %v5972 = vshrl.u32 %v5971, 7
    %v5973 = vsub.s32 0, %v5972
    %v5974 = vrot.slane %v5969, %v5973
    %v6008 = vunpack.c.l.b16 %v5937
    %v6009 = vunpack.c.l.b16 %v5938
    %v6010 = vunpack.c.l.b16 %v5939
    %v6011 = vunpack.c.l.b16 %v5940
    %v6012 = vunpack.c.l.b16 %v5941
    %v6013 = vunpack.c.l.b16 %v5942
    %v6014 = vunpack.c.l.b16 %v5943
    %v6015 = vunpack.c.l.b16 %v5944
    %v6016 = vunpack.c.l.b16 %v5945
    %v6017 = vunpack.c.l.b16 %v5946
    %v6018 = vunpack.c.l.b16 %v5947
    %v6019 = vunpack.c.l.b16 %v5948
    %v6020 = vunpack.c.l.b16 %v5949
    %v6021 = vunpack.c.l.b16 %v5950
    %v6022 = vunpack.c.l.b16 %v5951
    %v6023 = vunpack.c.l.b16 %v5952
    %v6024 = vunpack.c.l.b16 %v5953
    %v6025 = vunpack.c.l.b16 %v5954
    %v6026 = vunpack.c.l.b16 %v5955
    %v6027 = vunpack.c.l.b16 %v5956
    %v6028 = vunpack.c.l.b16 %v5957
    %v6029 = vunpack.c.l.b16 %v5958
    %v6030 = vunpack.c.l.b16 %v5959
    %v6031 = vunpack.c.l.b16 %v5960
    %v6032 = vunpack.c.l.b16 %v5961
    %v6033 = vunpack.c.l.b16 %v5962
    %v6034 = vunpack.c.l.b16 %v5963
    %v6035 = vunpack.c.l.b16 %v5964
    %v6036 = vunpack.c.l.b16 %v5965
    %v6037 = vunpack.c.l.b16 %v5966
    %v6038 = vunpack.c.l.b16 %v5967
    %v6039 = vunpack.c.l.b16 %v5968
    %v6040 = vpack.c.b16 %v6009, %v6008
    %v6041 = vpack.c.b16 %v6011, %v6010
    %v6042 = vpack.c.b16 %v6013, %v6012
    %v6043 = vpack.c.b16 %v6015, %v6014
    %v6044 = vpack.c.b16 %v6017, %v6016
    %v6045 = vpack.c.b16 %v6019, %v6018
    %v6046 = vpack.c.b16 %v6021, %v6020
    %v6047 = vpack.c.b16 %v6023, %v6022
    %v6048 = vpack.c.b16 %v6025, %v6024
    %v6049 = vpack.c.b16 %v6027, %v6026
    %v6050 = vpack.c.b16 %v6029, %v6028
    %v6051 = vpack.c.b16 %v6031, %v6030
    %v6052 = vpack.c.b16 %v6033, %v6032
    %v6053 = vpack.c.b16 %v6035, %v6034
    %v6054 = vpack.c.b16 %v6037, %v6036
    %v6055 = vpack.c.b16 %v6039, %v6038
    %6072 = vmatprep.subr.bf16.mxu0 0
    %6073 = vmatpush1.bf16.msra.mxu0 %v6047
    %6074 = vmatprep.subr.bf16.mxu0 0
    %6075 = vmatpush1.bf16.msra.mxu0 %v6046
    %6076 = vmatprep.subr.bf16.mxu0 0
    %6077 = vmatpush1.bf16.msra.mxu0 %v6045
    %6078 = vmatprep.subr.bf16.mxu0 0
    %6079 = vmatpush1.bf16.msra.mxu0 %v6044
    %6080 = vmatprep.subr.bf16.mxu0 0
    %6081 = vmatpush1.bf16.msra.mxu0 %v6043
    %6082 = vmatprep.subr.bf16.mxu0 0
    %6083 = vmatpush1.bf16.msra.mxu0 %v6042
    %6084 = vmatprep.subr.bf16.mxu0 0
    %6085 = vmatpush1.bf16.msra.mxu0 %v6041
    %6086 = vmatprep.subr.bf16.mxu0 0
    %6087 = vmatpush1.bf16.msra.mxu0 %v6040
    %6088 = vmatprep.subr.bf16.mxu0 0
    %6089 = vmatpush2.bf16.msra.mxu0 %v6055
    %6090 = vmatprep.subr.bf16.mxu0 0
    %6091 = vmatpush2.bf16.msra.mxu0 %v6054
    %6092 = vmatprep.subr.bf16.mxu0 0
    %6093 = vmatpush2.bf16.msra.mxu0 %v6053
    %6094 = vmatprep.subr.bf16.mxu0 0
    %6095 = vmatpush2.bf16.msra.mxu0 %v6052
    %6096 = vmatprep.subr.bf16.mxu0 0
    %6097 = vmatpush2.bf16.msra.mxu0 %v6051
    %6098 = vmatprep.subr.bf16.mxu0 0
    %6099 = vmatpush2.bf16.msra.mxu0 %v6050
    %6100 = vmatprep.subr.bf16.mxu0 0
    %6101 = vmatpush2.bf16.msra.mxu0 %v6049
    %6102 = vmatprep.subr.bf16.mxu0 0
    %6103 = vmatpush2.bf16.msra.mxu0 %v6048
    %6104 = vmatprep.mubr.bf16.mxu0 %v5930
    %6105 = vmatmul.mubr.bf16.gmra.mxu0 %v5929
    %v6106 = vpop.f32.mrf.mxu0
    %v6107 = vadd.f32 %v5974, %v6106
    %v6108 = vpop.f32.mrf.mxu0
    %v6109 = vpop.f32.mrf.mxu0
    %v6110 = vadd.f32 %v5974, %v6109
    %v6111 = vpop.f32.mrf.mxu0
    %6112 = vmatprep.mubr.bf16.mxu0 %v5932
    %6113 = vmatmul.mubr.bf16.gmra.mxu0 %v5931
    %v6114 = vpop.f32.mrf.mxu0
    %v6115 = vadd.f32 %v5974, %v6114
    %v6116 = vpop.f32.mrf.mxu0
    %v6117 = vpop.f32.mrf.mxu0
    %v6118 = vadd.f32 %v5974, %v6117
    %v6119 = vpop.f32.mrf.mxu0
    %6120 = vmatprep.mubr.bf16.mxu0 %v5934
    %6121 = vmatmul.mubr.bf16.gmra.mxu0 %v5933
    %v6122 = vpop.f32.mrf.mxu0
    %v6123 = vadd.f32 %v5974, %v6122
    %v6124 = vpop.f32.mrf.mxu0
    %v6125 = vpop.f32.mrf.mxu0
    %v6126 = vadd.f32 %v5974, %v6125
    %v6127 = vpop.f32.mrf.mxu0
    %6128 = vmatprep.mubr.bf16.mxu0 %v5936
    %6129 = vmatmul.mubr.bf16.gmra.mxu0 %v5935
    %v6130 = vpop.f32.mrf.mxu0
    %v6131 = vadd.f32 %v5974, %v6130
    %v6132 = vpop.f32.mrf.mxu0
    %v6133 = vpop.f32.mrf.mxu0
    %v6134 = vadd.f32 %v5974, %v6133
    %v6135 = vpop.f32.mrf.mxu0
    %6136 = vdwg.mxu0
    %v6137 = vmax.f32 %v6107, 0.0
    %v6138 = vmax.f32 %v6110, 0.0
    %v6139 = vmax.f32 %v6115, 0.0
    %v6140 = vmax.f32 %v6118, 0.0
    %v6141 = vmax.f32 %v6123, 0.0
    %v6142 = vmax.f32 %v6126, 0.0
    %v6143 = vmax.f32 %v6131, 0.0
    %v6144 = vmax.f32 %v6134, 0.0
    %v6145 = vpack.c.bf16 %v6138, %v6137
    %v6146 = vpack.c.bf16 %v6140, %v6139
    %v6147 = vpack.c.bf16 %v6142, %v6141
    %v6148 = vpack.c.bf16 %v6144, %v6143
    %v6149 = vld [vmem:[%s9] sm:$0xf]
    %v6150 = vld [vmem:[%s9 + $0x4] sm:$0xf]
    %v6151 = vld [vmem:[%s9 + $0x8] sm:$0xf]
    %v6152 = vld [vmem:[%s9 + $0xc] sm:$0xf]
    %v6153 = vld [vmem:[%s9 + $0x10] sm:$0xf]
    %v6154 = vld [vmem:[%s9 + $0x14] sm:$0xf]
    %v6155 = vld [vmem:[%s9 + $0x18] sm:$0xf]
    %v6156 = vld [vmem:[%s9 + $0x1c] sm:$0xf]
    %v6157 = vld [vmem:[%s9 + $0x20] sm:$0xf]
    %v6158 = vld [vmem:[%s9 + $0x24] sm:$0xf]
    %v6159 = vld [vmem:[%s9 + $0x28] sm:$0xf]
    %v6160 = vld [vmem:[%s9 + $0x2c] sm:$0xf]
    %v6161 = vld [vmem:[%s9 + $0x30] sm:$0xf]
    %v6162 = vld [vmem:[%s9 + $0x34] sm:$0xf]
    %v6163 = vld [vmem:[%s9 + $0x38] sm:$0xf]
    %v6164 = vld [vmem:[%s9 + $0x3c] sm:$0xf]
    %v6165 = vld [vmem:[%s10] sm:$0x1]
    %v6167 = vlaneseq
    %v6168 = vshrl.u32 %v6167, 7
    %v6169 = vsub.s32 0, %v6168
    %v6170 = vrot.slane %v6165, %v6169
    %v6188 = vunpack.c.l.b16 %v6149
    %v6189 = vunpack.c.l.b16 %v6150
    %v6190 = vunpack.c.l.b16 %v6151
    %v6191 = vunpack.c.l.b16 %v6152
    %v6192 = vunpack.c.l.b16 %v6153
    %v6193 = vunpack.c.l.b16 %v6154
    %v6194 = vunpack.c.l.b16 %v6155
    %v6195 = vunpack.c.l.b16 %v6156
    %v6196 = vunpack.c.l.b16 %v6157
    %v6197 = vunpack.c.l.b16 %v6158
    %v6198 = vunpack.c.l.b16 %v6159
    %v6199 = vunpack.c.l.b16 %v6160
    %v6200 = vunpack.c.l.b16 %v6161
    %v6201 = vunpack.c.l.b16 %v6162
    %v6202 = vunpack.c.l.b16 %v6163
    %v6203 = vunpack.c.l.b16 %v6164
    %v6204 = vpack.c.b16 %v6189, %v6188
    %v6205 = vpack.c.b16 %v6191, %v6190
    %v6206 = vpack.c.b16 %v6193, %v6192
    %v6207 = vpack.c.b16 %v6195, %v6194
    %v6208 = vpack.c.b16 %v6197, %v6196
    %v6209 = vpack.c.b16 %v6199, %v6198
    %v6210 = vpack.c.b16 %v6201, %v6200
    %v6211 = vpack.c.b16 %v6203, %v6202
    %6220 = vmatprep.subr.bf16.mxu0 0
    %6221 = vmatpush1.bf16.msra.mxu0 %v6211
    %6222 = vmatprep.subr.bf16.mxu0 0
    %6223 = vmatpush1.bf16.msra.mxu0 %v6210
    %6224 = vmatprep.subr.bf16.mxu0 0
    %6225 = vmatpush1.bf16.msra.mxu0 %v6209
    %6226 = vmatprep.subr.bf16.mxu0 0
    %6227 = vmatpush1.bf16.msra.mxu0 %v6208
    %6228 = vmatprep.subr.bf16.mxu0 0
    %6229 = vmatpush1.bf16.msra.mxu0 %v6207
    %6230 = vmatprep.subr.bf16.mxu0 0
    %6231 = vmatpush1.bf16.msra.mxu0 %v6206
    %6232 = vmatprep.subr.bf16.mxu0 0
    %6233 = vmatpush1.bf16.msra.mxu0 %v6205
    %6234 = vmatprep.subr.bf16.mxu0 0
    %6235 = vmatpush1.bf16.msra.mxu0 %v6204
    %6236 = vmatprep.subr.bf16.mxu0 0
    %6237 = vmatpush2.bf16.msra.mxu0 0
    %6238 = vmatprep.subr.bf16.mxu0 0
    %6239 = vmatpush2.bf16.msra.mxu0 0
    %6240 = vmatprep.subr.bf16.mxu0 0
    %6241 = vmatpush2.bf16.msra.mxu0 0
    %6242 = vmatprep.subr.bf16.mxu0 0
    %6243 = vmatpush2.bf16.msra.mxu0 0
    %6244 = vmatprep.subr.bf16.mxu0 0
    %6245 = vmatpush2.bf16.msra.mxu0 0
    %6246 = vmatprep.subr.bf16.mxu0 0
    %6247 = vmatpush2.bf16.msra.mxu0 0
    %6248 = vmatprep.subr.bf16.mxu0 0
    %6249 = vmatpush2.bf16.msra.mxu0 0
    %6250 = vmatprep.subr.bf16.mxu0 0
    %6251 = vmatpush2.bf16.msra.mxu0 0
    %6252 = vmatprep.mubr.bf16.mxu0 0
    %6253 = vmatmul.mubr.bf16.gmra.mxu0 %v6145
    %v6254 = vpop.f32.mrf.mxu0
    %v6255 = vadd.f32 %v6170, %v6254
    %v6256 = vpop.f32.mrf.mxu0
    %v6257 = vpop.f32.mrf.mxu0
    %v6258 = vadd.f32 %v6170, %v6257
    %v6259 = vpop.f32.mrf.mxu0
    %6260 = vmatprep.mubr.bf16.mxu0 0
    %6261 = vmatmul.mubr.bf16.gmra.mxu0 %v6146
    %v6262 = vpop.f32.mrf.mxu0
    %v6263 = vadd.f32 %v6170, %v6262
    %v6264 = vpop.f32.mrf.mxu0
    %v6265 = vpop.f32.mrf.mxu0
    %v6266 = vadd.f32 %v6170, %v6265
    %v6267 = vpop.f32.mrf.mxu0
    %6268 = vmatprep.mubr.bf16.mxu0 0
    %6269 = vmatmul.mubr.bf16.gmra.mxu0 %v6147
    %v6270 = vpop.f32.mrf.mxu0
    %v6271 = vadd.f32 %v6170, %v6270
    %v6272 = vpop.f32.mrf.mxu0
    %v6273 = vpop.f32.mrf.mxu0
    %v6274 = vadd.f32 %v6170, %v6273
    %v6275 = vpop.f32.mrf.mxu0
    %6276 = vmatprep.mubr.bf16.mxu0 0
    %6277 = vmatmul.mubr.bf16.gmra.mxu0 %v6148
    %v6278 = vpop.f32.mrf.mxu0
    %v6279 = vadd.f32 %v6170, %v6278
    %v6280 = vpop.f32.mrf.mxu0
    %v6281 = vpop.f32.mrf.mxu0
    %v6282 = vadd.f32 %v6170, %v6281
    %v6283 = vpop.f32.mrf.mxu0
    %6284 = vdwg.mxu0
    %6285 = vmax.xlane.f32.xlu0 %v6255
    %v6286 = vpop.xlane.xlu0 %6285
    %6287 = vmax.xlane.f32.xlu0 %v6258
    %v6288 = vpop.xlane.xlu0 %6287
    %6289 = vmax.xlane.f32.xlu0 %v6263
    %v6290 = vpop.xlane.xlu0 %6289
    %6291 = vmax.xlane.f32.xlu0 %v6266
    %v6292 = vpop.xlane.xlu0 %6291
    %6293 = vmax.xlane.f32.xlu0 %v6271
    %v6294 = vpop.xlane.xlu0 %6293
    %6295 = vmax.xlane.f32.xlu0 %v6274
    %v6296 = vpop.xlane.xlu0 %6295
    %6297 = vmax.xlane.f32.xlu0 %v6279
    %v6298 = vpop.xlane.xlu0 %6297
    %6299 = vmax.xlane.f32.xlu0 %v6282
    %v6300 = vpop.xlane.xlu0 %6299
    %v6301 = vsub.f32 %v6255, %v6286
    %v6302 = vsub.f32 %v6258, %v6288
    %v6303 = vsub.f32 %v6263, %v6290
    %v6304 = vsub.f32 %v6266, %v6292
    %v6305 = vsub.f32 %v6271, %v6294
    %v6306 = vsub.f32 %v6274, %v6296
    %v6307 = vsub.f32 %v6279, %v6298
    %v6308 = vsub.f32 %v6282, %v6300
    %v6309 = vmul.f32 %v6301, 1.442695
    %v6310 = vpow.pop %v6309
    %v6311 = vmul.f32 %v6302, 1.442695
    %v6312 = vpow.pop %v6311
    %v6313 = vmul.f32 %v6303, 1.442695
    %v6314 = vpow.pop %v6313
    %v6315 = vmul.f32 %v6304, 1.442695
    %v6316 = vpow.pop %v6315
    %v6317 = vmul.f32 %v6305, 1.442695
    %v6318 = vpow.pop %v6317
    %v6319 = vmul.f32 %v6306, 1.442695
    %v6320 = vpow.pop %v6319
    %v6321 = vmul.f32 %v6307, 1.442695
    %v6322 = vpow.pop %v6321
    %v6323 = vmul.f32 %v6308, 1.442695
    %v6324 = vpow.pop %v6323
    %6325 = vadd.xlane.f32.xlu0 %v6310
    %v6326 = vpop.xlane.xlu0 %6325
    %6327 = vadd.xlane.f32.xlu0 %v6312
    %v6328 = vpop.xlane.xlu0 %6327
    %6329 = vadd.xlane.f32.xlu0 %v6314
    %v6330 = vpop.xlane.xlu0 %6329
    %6331 = vadd.xlane.f32.xlu0 %v6316
    %v6332 = vpop.xlane.xlu0 %6331
    %6333 = vadd.xlane.f32.xlu0 %v6318
    %v6334 = vpop.xlane.xlu0 %6333
    %6335 = vadd.xlane.f32.xlu0 %v6320
    %v6336 = vpop.xlane.xlu0 %6335
    %6337 = vadd.xlane.f32.xlu0 %v6322
    %v6338 = vpop.xlane.xlu0 %6337
    %6339 = vadd.xlane.f32.xlu0 %v6324
    %v6340 = vpop.xlane.xlu0 %6339
    %v6341 = vrcp.pop %v6326
    %v6342 = vmul.f32 %v6310, %v6341
    %v6343 = vrcp.pop %v6328
    %v6344 = vmul.f32 %v6312, %v6343
    %v6345 = vrcp.pop %v6330
    %v6346 = vmul.f32 %v6314, %v6345
    %v6347 = vrcp.pop %v6332
    %v6348 = vmul.f32 %v6316, %v6347
    %v6349 = vrcp.pop %v6334
    %v6350 = vmul.f32 %v6318, %v6349
    %v6351 = vrcp.pop %v6336
    %v6352 = vmul.f32 %v6320, %v6351
    %v6353 = vrcp.pop %v6338
    %v6354 = vmul.f32 %v6322, %v6353
    %v6355 = vrcp.pop %v6340
    %v6356 = vmul.f32 %v6324, %v6355
    %6357 = vst [vmem:[%s11] sm:$0xff] %v6342
    %6358 = vst [vmem:[%s11 + $0x8] sm:$0xff] %v6344
    %6359 = vst [vmem:[%s11 + $0x10] sm:$0xff] %v6346
    %6360 = vst [vmem:[%s11 + $0x18] sm:$0xff] %v6348
    %6361 = vst [vmem:[%s11 + $0x20] sm:$0xff] %v6350
    %6362 = vst [vmem:[%s11 + $0x28] sm:$0xff] %v6352
    %6363 = vst [vmem:[%s11 + $0x30] sm:$0xff] %v6354
    %6364 = vst [vmem:[%s11 + $0x38] sm:$0xff] %v6356
    // Predicated region
    $region66: #{eeg_sleep_edf_seq_forward.1} parent=1 // pred_check
      _
    $region67: #{eeg_sleep_edf_seq_forward.1} parent=1 // pred_check_branch
      %6366 = sbr.rel (0) target = $region69
    $region68: #{eeg_sleep_edf_seq_forward.1} parent=1 // pred_region
      _
    $region69: #{eeg_sleep_edf_seq_forward.1} parent=1 // pred_fallthru
      _
    // Predicated region
    $region70: #{eeg_sleep_edf_seq_forward.1} parent=1 // pred_check
      _
    $region71: #{eeg_sleep_edf_seq_forward.1} parent=1 // pred_check_branch
      %6368 = sbr.rel (0) target = $region73
    $region72: #{eeg_sleep_edf_seq_forward.1} parent=1 // pred_region
      _
    $region73: #{eeg_sleep_edf_seq_forward.1} parent=1 // pred_fallthru
      _
    %6369 = vsyncpa [#allocation6], 1
    %6370 = vsyncpa [#allocation8], 1
    %6371 = vsyncpa [#allocation11], 1

</llo_original>
